<compile_context>
chip_gen: v5e
topology: v5e:2x2
jax: 0.10.0
libtpu: 0.0.40
codegen_flags: <defaults>
</compile_context>

<pallas_src>
import math

import jax
import jax.numpy as jnp
from jax.experimental import pallas as pl
from jax.experimental.pallas import tpu as pltpu

LOG2 = math.log(2.0)


# ----------------------------------------------------------------------------
# Fused Pallas kernel: the whole flow (all MaskedLinear + Tanh pairs) per batch tile
# ----------------------------------------------------------------------------
def make_fused_kernel(D, layer_dims):
    """layer_dims: list of (in_features, out_features) per MaskedLinear layer."""
    n_layers = len(layer_dims)

    def kernel(*refs):
        x_ref = refs[0]
        param_refs = refs[1:1 + 4 * n_layers]              # (wT, bias, expL_bd, shift) per layer
        y_ref = refs[1 + 4 * n_layers]
        sld_ref = refs[2 + 4 * n_layers]
        y_scr = refs[3 + 4 * n_layers]                      # (TB, Hmax) activation carry
        sld_scr = refs[4 + 4 * n_layers]                    # (TB, Hmax) lane-dense sum-log-det carry

        TB = x_ref.shape[0]

        for l, (fin, fout) in enumerate(layer_dims):        # static unroll (heterogeneous shapes)
            in_d, out_d = fin // D, fout // D
            wT = param_refs[4 * l][...]                     # (fin, fout)  effective weight, transposed
            bias = param_refs[4 * l + 1][...]               # (1, fout)
            eL = param_refs[4 * l + 2][...]                 # (fin, fout)  block-diag exp(ldblk - rowmax)
            sh = param_refs[4 * l + 3][...]                 # (1, fout)    rowmax, flattened (d, o)

            if l == 0:
                y_in = x_ref[...]                                        # (TB, fin)
                sld_in = jnp.zeros((TB, fin), jnp.float32)               # sum_logdets starts at 0
            else:
                y_in = y_scr[:, 0:fin]
                sld_in = sld_scr[:, 0:fin]

            # --- MaskedLinear pre-activation: one MXU matmul ---
            pre = jnp.dot(y_in, wT, preferred_element_type=jnp.float32) + bias   # (TB, fout)

            # --- Tanh + its log-det from one shared exponential ---
            a = jnp.abs(pre)
            e = jnp.exp(-2.0 * a)                            # EUP
            den = 1.0 + e
            r = pl.reciprocal(den, approx=True)              # EUP approx (near-free slot)
            r = r * (2.0 - den * r)                          # one Newton step (VPU) -> ~f32 accurate
            sgn = jnp.where(pre >= 0.0, 1.0, -1.0)
            y_out = sgn * (1.0 - e) * r                      # tanh(pre)
            ld_tanh = -2.0 * (a - LOG2 + jnp.log1p(e))       # log(1 - tanh^2), numerically stable

            # --- block-autoregressive logsumexp recursion, vectorized over all D blocks ---
            #   sld_out = m_in (per-block max) + rowmax + log( exp(sld_in - m_in) @ expL_blockdiag )
            m_parts = [
                jnp.max(sld_in[:, d * in_d:(d + 1) * in_d], axis=-1, keepdims=True)
                for d in range(D)                            # register-level only; no stores
            ]
            m_bcast = jnp.concatenate(
                [jnp.broadcast_to(m_parts[d], (TB, in_d)) for d in range(D)], axis=-1)   # (TB, fin)
            p = jnp.exp(sld_in - m_bcast)                                                # one EUP pass
            s = jnp.dot(p, eL, preferred_element_type=jnp.float32)                       # (TB, fout) MXU
            m_out = jnp.concatenate(
                [jnp.broadcast_to(m_parts[d], (TB, out_d)) for d in range(D)], axis=-1)  # (TB, fout)
            sld_out = jnp.log(s) + m_out + sh + ld_tanh                                  # (TB, fout)

            # --- carry in VMEM scratch / emit (single lane-dense store per array) ---
            if l == n_layers - 1:
                y_ref[...] = y_out
                sld_ref[...] = sld_out
            else:
                y_scr[:, 0:fout] = y_out
                sld_scr[:, 0:fout] = sld_out

    return kernel


def bnaf_forward_pallas(x, layers, D, block_b=256):
    """Run the whole flow in ONE pallas_call, tiled over batch (parallel grid axis)."""
    B, _ = x.shape
    TB = block_b if (block_b <= B and B % block_b == 0) else B
    nb = B // TB

    layer_dims = [tuple(l[1].shape) for l in layers]         # wT is (in_f, out_f)
    Hmax = max(f for (_, f) in layer_dims)

    flat_params = []
    in_specs = [pl.BlockSpec((TB, D), lambda i: (i, 0))]     # batch-tiled input
    for (_, wT, bias2d, eL_bd, shift, _) in layers:
        for arr in (wT, bias2d, eL_bd, shift):
            flat_params.append(arr)
            in_specs.append(pl.BlockSpec(arr.shape, lambda i: (0, 0)))   # VMEM-resident params

    y, sld = pl.pallas_call(
        make_fused_kernel(D, layer_dims),
        grid=(nb,),
        out_shape=(
            jax.ShapeDtypeStruct((B, D), jnp.float32),
            jax.ShapeDtypeStruct((B, D), jnp.float32),
        ),
        in_specs=in_specs,
        out_specs=(
            pl.BlockSpec((TB, D), lambda i: (i, 0)),
            pl.BlockSpec((TB, D), lambda i: (i, 0)),
        ),
        scratch_shapes=[
            pltpu.VMEM((TB, Hmax), jnp.float32),             # activation carry between layers
            pltpu.VMEM((TB, Hmax), jnp.float32),             # sum-log-det carry (lane-dense)
        ],
        compiler_params=pltpu.CompilerParams(
            dimension_semantics=("parallel",),
        ),
    )(x, *flat_params)
    return y, sld


# ----------------------------------------------------------------------------
# Parameter setup (deterministic, mirrors MaskedLinear.__init__ shapes/masks)
# ----------------------------------------------------------------------------
def init_masked_linear(key, in_f, out_f, D):
    in_d, out_d = in_f // D, out_f // D
    k1, k2, k3 = jax.random.split(key, 3)
    rows = jnp.arange(out_f)[:, None] // out_d               # block-row index
    cols = jnp.arange(in_f)[None, :] // in_d                 # block-col index
    mask_d = (rows == cols).astype(jnp.float32)
    mask_o = (cols < rows).astype(jnp.float32)
    bound = 1.0 / math.sqrt(in_f)
    weight = jax.random.uniform(k1, (out_f, in_f), jnp.float32, -bound, bound) * (mask_d + mask_o)
    logg = jnp.log(jax.random.uniform(k2, (out_f, 1), jnp.float32, 0.1, 1.0))
    bias = jax.random.uniform(k3, (out_f,), jnp.float32, -bound, bound)
    return weight, logg, bias, mask_d, mask_o


def effective_params(weight, logg, bias, mask_d, mask_o, D):
    """Plain-JAX glue: weight-normalised effective matrix + pre-exponentiated block log-dets."""
    v = jnp.exp(weight) * mask_d + weight * mask_o
    v_norm = jnp.sqrt(jnp.sum(v * v, axis=1, keepdims=True))            # (out, 1)
    w_eff = jnp.exp(logg) * v / v_norm                                   # (out, in)
    logdet_full = logg + weight - 0.5 * jnp.log(v_norm ** 2)             # (out, in)
    out_f, in_f = weight.shape
    out_d, in_d = out_f // D, in_f // D
    ld4 = logdet_full.reshape(D, out_d, D, in_d)
    ldblk = jnp.stack([ld4[d, :, d, :] for d in range(D)], axis=0)       # (D, out_d, in_d)

    # Row-max-shifted, pre-exponentiated block log-dets laid out block-diagonally so the
    # kernel's logsumexp contraction is ONE lane-dense matmul (stable: max added back via shift).
    rowmax = jnp.max(ldblk, axis=-1)                                     # (D, out_d)
    expL = jnp.exp(ldblk - rowmax[..., None])                            # (D, out_d, in_d)
    eL_bd = jnp.zeros((in_f, out_f), jnp.float32)
    for d in range(D):
        eL_bd = eL_bd.at[d * in_d:(d + 1) * in_d, d * out_d:(d + 1) * out_d].set(expL[d].T)
    shift = rowmax.reshape(1, out_f)                                     # (1, D*out_d), (d, o) order
    return w_eff, w_eff.T, bias.reshape(1, out_f), eL_bd, shift, ldblk


# ----------------------------------------------------------------------------
# Pure-JAX reference (mirrors the PyTorch module exactly)
# ----------------------------------------------------------------------------
def bnaf_forward_ref(x, layers, D):
    B = x.shape[0]
    sld = jnp.zeros((1, D, 1, 1), jnp.float32)
    y = x
    for (w_eff, _wT, b2, _eL, _sh, ldblk) in layers:
        out_f = w_eff.shape[0]
        out_d = out_f // D
        pre = jnp.dot(y, w_eff.T, precision=jax.lax.Precision.HIGHEST) + b2
        sld_t = jnp.swapaxes(sld, 2, 3)                                  # (.., D, 1, in_d)
        sld = jax.scipy.special.logsumexp(sld_t + ldblk[None], axis=-1, keepdims=True)
        ld_tanh = -2.0 * (pre - LOG2 + jax.nn.softplus(-2.0 * pre))
        sld = sld + ld_tanh.reshape(B, D, out_d, 1)
        y = jnp.tanh(pre)
    return y, jnp.squeeze(sld)


# ----------------------------------------------------------------------------
if __name__ == "__main__":
    D = 4            # data_dim
    H = 32           # hidden_dim
    n_hidden = 1
    B = 512          # batch: two 256-row grid steps (tiny data, exercises the parallel batch grid)

    key = jax.random.PRNGKey(0)
    keys = jax.random.split(key, n_hidden + 3)

    # layer dims: D->H, (H->H) * n_hidden, H->D   (each followed by Tanh)
    dims = [(D, H)] + [(H, H)] * n_hidden + [(H, D)]
    layers = []
    for (in_f, out_f), k in zip(dims, keys[:-1]):
        params = init_masked_linear(k, in_f, out_f, D)
        layers.append(effective_params(*params, D))

    x = jax.random.uniform(keys[-1], (B, D), jnp.float32, -1.0, 1.0)

    fwd = jax.jit(lambda xx: bnaf_forward_pallas(xx, layers, D, block_b=256))
    y, sum_logdets = fwd(x)
    y = jax.block_until_ready(y)
    sum_logdets = jax.block_until_ready(sum_logdets)

    y_ref, sld_ref = bnaf_forward_ref(x, layers, D)

    assert y.shape == (B, D) and sum_logdets.shape == (B, D)
    assert bool(jnp.all(jnp.isfinite(y))) and bool(jnp.all(jnp.isfinite(sum_logdets)))
    # Kernel matmuls run at default MXU precision (reference uses HIGHEST) and tanh uses an
    # approx-reciprocal + one Newton step, so a ~2e-3 tolerance is used deliberately.
    err_y = float(jnp.max(jnp.abs(y - y_ref)))
    err_s = float(jnp.max(jnp.abs(sum_logdets - sld_ref)))
    assert jnp.allclose(y, y_ref, rtol=2e-3, atol=2e-3), f"y mismatch, max abs err {err_y}"
    assert jnp.allclose(sum_logdets, sld_ref, rtol=2e-3, atol=2e-3), f"sld mismatch, max abs err {err_s}"

    print("KERNEL_OK")
</pallas_src>

<mosaic_0001>
module attributes {stable_mosaic.version = 11 : i64} {
  func.func @kernel(%arg0: i32, %arg1: memref<256x4xf32, #tpu.memory_space<vmem>>, %arg2: memref<4x32xf32, #tpu.memory_space<vmem>>, %arg3: memref<1x32xf32, #tpu.memory_space<vmem>>, %arg4: memref<4x32xf32, #tpu.memory_space<vmem>>, %arg5: memref<1x32xf32, #tpu.memory_space<vmem>>, %arg6: memref<32x32xf32, #tpu.memory_space<vmem>>, %arg7: memref<1x32xf32, #tpu.memory_space<vmem>>, %arg8: memref<32x32xf32, #tpu.memory_space<vmem>>, %arg9: memref<1x32xf32, #tpu.memory_space<vmem>>, %arg10: memref<32x4xf32, #tpu.memory_space<vmem>>, %arg11: memref<1x4xf32, #tpu.memory_space<vmem>>, %arg12: memref<32x4xf32, #tpu.memory_space<vmem>>, %arg13: memref<1x4xf32, #tpu.memory_space<vmem>>, %arg14: memref<256x4xf32, #tpu.memory_space<vmem>>, %arg15: memref<256x4xf32, #tpu.memory_space<vmem>>, %arg16: memref<256x32xf32, #tpu.memory_space<vmem>>, %arg17: memref<256x32xf32, #tpu.memory_space<vmem>>) attributes {dimension_semantics = [#tpu.dimension_semantics<parallel>], iteration_bounds = array<i64: 2>, scalar_prefetch = 0 : i64, scratch_operands = 2 : i64, tpu.core_type = #tpu.core_type<tc>, window_params = [{transform_indices = @transform_0, window_bounds = array<i64: 256, 4>}, {pipeline_mode = #tpu.pipeline_mode<synchronous>, transform_indices = @transform_1, window_bounds = array<i64: 4, 32>}, {pipeline_mode = #tpu.pipeline_mode<synchronous>, transform_indices = @transform_2, window_bounds = array<i64: 1, 32>}, {pipeline_mode = #tpu.pipeline_mode<synchronous>, transform_indices = @transform_3, window_bounds = array<i64: 4, 32>}, {pipeline_mode = #tpu.pipeline_mode<synchronous>, transform_indices = @transform_4, window_bounds = array<i64: 1, 32>}, {pipeline_mode = #tpu.pipeline_mode<synchronous>, transform_indices = @transform_5, window_bounds = array<i64: 32, 32>}, {pipeline_mode = #tpu.pipeline_mode<synchronous>, transform_indices = @transform_6, window_bounds = array<i64: 1, 32>}, {pipeline_mode = #tpu.pipeline_mode<synchronous>, transform_indices = @transform_7, window_bounds = array<i64: 32, 32>}, {pipeline_mode = #tpu.pipeline_mode<synchronous>, transform_indices = @transform_8, window_bounds = array<i64: 1, 32>}, {pipeline_mode = #tpu.pipeline_mode<synchronous>, transform_indices = @transform_9, window_bounds = array<i64: 32, 4>}, {pipeline_mode = #tpu.pipeline_mode<synchronous>, transform_indices = @transform_10, window_bounds = array<i64: 1, 4>}, {pipeline_mode = #tpu.pipeline_mode<synchronous>, transform_indices = @transform_11, window_bounds = array<i64: 32, 4>}, {pipeline_mode = #tpu.pipeline_mode<synchronous>, transform_indices = @transform_12, window_bounds = array<i64: 1, 4>}, {transform_indices = @transform_13, window_bounds = array<i64: 256, 4>}, {transform_indices = @transform_14, window_bounds = array<i64: 256, 4>}]} {
    %c0 = arith.constant 0 : index
    %c0_0 = arith.constant 0 : index
    %0 = vector.load %arg2[%c0, %c0_0] : memref<4x32xf32, #tpu.memory_space<vmem>>, vector<4x32xf32>
    %c0_1 = arith.constant 0 : index
    %c0_2 = arith.constant 0 : index
    %1 = vector.load %arg3[%c0_1, %c0_2] : memref<1x32xf32, #tpu.memory_space<vmem>>, vector<1x32xf32>
    %c0_3 = arith.constant 0 : index
    %c0_4 = arith.constant 0 : index
    %2 = vector.load %arg4[%c0_3, %c0_4] : memref<4x32xf32, #tpu.memory_space<vmem>>, vector<4x32xf32>
    %c0_5 = arith.constant 0 : index
    %c0_6 = arith.constant 0 : index
    %3 = vector.load %arg5[%c0_5, %c0_6] : memref<1x32xf32, #tpu.memory_space<vmem>>, vector<1x32xf32>
    %c0_7 = arith.constant 0 : index
    %c0_8 = arith.constant 0 : index
    %4 = vector.load %arg1[%c0_7, %c0_8] : memref<256x4xf32, #tpu.memory_space<vmem>>, vector<256x4xf32>
    %cst = arith.constant 0.000000e+00 : f32
    %5 = vector.broadcast %cst : f32 to vector<256x4xf32>
    %cst_9 = arith.constant dense<0.000000e+00> : vector<256x32xf32>
    %6 = tpu.matmul %4, %0, %cst_9 {dimension_numbers = #tpu.dot_dimension_numbers<[1], [0], [0], [1], [0, 0, 1, 1], [], []>} : vector<256x4xf32>, vector<4x32xf32>, vector<256x32xf32> -> vector<256x32xf32>
    %7 = vector.broadcast %1 : vector<1x32xf32> to vector<256x32xf32>
    %8 = arith.addf %6, %7 : vector<256x32xf32>
    %9 = math.absf %8 : vector<256x32xf32>
    %cst_10 = arith.constant -2.000000e+00 : f32
    %10 = vector.broadcast %cst_10 : f32 to vector<256x32xf32>
    %11 = arith.mulf %10, %9 : vector<256x32xf32>
    %12 = math.exp %11 : vector<256x32xf32>
    %cst_11 = arith.constant 1.000000e+00 : f32
    %13 = vector.broadcast %cst_11 : f32 to vector<256x32xf32>
    %14 = arith.addf %13, %12 : vector<256x32xf32>
    %15 = tpu.reciprocal %14 {approx = true} : vector<256x32xf32> -> vector<256x32xf32>
    %16 = arith.mulf %14, %15 : vector<256x32xf32>
    %cst_12 = arith.constant 2.000000e+00 : f32
    %17 = vector.broadcast %cst_12 : f32 to vector<256x32xf32>
    %18 = arith.subf %17, %16 : vector<256x32xf32>
    %19 = arith.mulf %15, %18 : vector<256x32xf32>
    %cst_13 = arith.constant 0.000000e+00 : f32
    %20 = vector.broadcast %cst_13 : f32 to vector<256x32xf32>
    %21 = arith.cmpf oge, %8, %20 : vector<256x32xf32>
    %cst_14 = arith.constant 1.000000e+00 : f32
    %cst_15 = arith.constant -1.000000e+00 : f32
    %22 = vector.broadcast %cst_14 : f32 to vector<256x32xf32>
    %23 = vector.broadcast %cst_15 : f32 to vector<256x32xf32>
    %24 = arith.select %21, %22, %23 : vector<256x32xi1>, vector<256x32xf32>
    %cst_16 = arith.constant 1.000000e+00 : f32
    %25 = vector.broadcast %cst_16 : f32 to vector<256x32xf32>
    %26 = arith.subf %25, %12 : vector<256x32xf32>
    %27 = arith.mulf %24, %26 : vector<256x32xf32>
    %28 = arith.mulf %27, %19 : vector<256x32xf32>
    %cst_17 = arith.constant 0.693147182 : f32
    %29 = vector.broadcast %cst_17 : f32 to vector<256x32xf32>
    %30 = arith.subf %9, %29 : vector<256x32xf32>
    %31 = math.log1p %12 : vector<256x32xf32>
    %32 = arith.addf %30, %31 : vector<256x32xf32>
    %cst_18 = arith.constant -2.000000e+00 : f32
    %33 = vector.broadcast %cst_18 : f32 to vector<256x32xf32>
    %34 = arith.mulf %33, %32 : vector<256x32xf32>
    %35 = vector.extract_strided_slice %5 {offsets = [0, 0], sizes = [256, 1], strides = [1, 1]} : vector<256x4xf32> to vector<256x1xf32>
    %cst_19 = arith.constant dense<0xFF800000> : vector<256xf32>
    %36 = vector.multi_reduction <maximumf>, %35, %cst_19 [1] : vector<256x1xf32> to vector<256xf32>
    %37 = vector.shape_cast %36 : vector<256xf32> to vector<256x1xf32>
    %38 = vector.extract_strided_slice %5 {offsets = [0, 1], sizes = [256, 1], strides = [1, 1]} : vector<256x4xf32> to vector<256x1xf32>
    %cst_20 = arith.constant dense<0xFF800000> : vector<256xf32>
    %39 = vector.multi_reduction <maximumf>, %38, %cst_20 [1] : vector<256x1xf32> to vector<256xf32>
    %40 = vector.shape_cast %39 : vector<256xf32> to vector<256x1xf32>
    %41 = vector.extract_strided_slice %5 {offsets = [0, 2], sizes = [256, 1], strides = [1, 1]} : vector<256x4xf32> to vector<256x1xf32>
    %cst_21 = arith.constant dense<0xFF800000> : vector<256xf32>
    %42 = vector.multi_reduction <maximumf>, %41, %cst_21 [1] : vector<256x1xf32> to vector<256xf32>
    %43 = vector.shape_cast %42 : vector<256xf32> to vector<256x1xf32>
    %44 = vector.extract_strided_slice %5 {offsets = [0, 3], sizes = [256, 1], strides = [1, 1]} : vector<256x4xf32> to vector<256x1xf32>
    %cst_22 = arith.constant dense<0xFF800000> : vector<256xf32>
    %45 = vector.multi_reduction <maximumf>, %44, %cst_22 [1] : vector<256x1xf32> to vector<256xf32>
    %46 = vector.shape_cast %45 : vector<256xf32> to vector<256x1xf32>
    %47 = tpu.concatenate %37, %40, %43, %46 in 1 : vector<256x1xf32>, vector<256x1xf32>, vector<256x1xf32>, vector<256x1xf32> -> vector<256x4xf32>
    %48 = arith.subf %5, %47 : vector<256x4xf32>
    %49 = math.exp %48 : vector<256x4xf32>
    %cst_23 = arith.constant dense<0.000000e+00> : vector<256x32xf32>
    %50 = tpu.matmul %49, %2, %cst_23 {dimension_numbers = #tpu.dot_dimension_numbers<[1], [0], [0], [1], [0, 0, 1, 1], [], []>} : vector<256x4xf32>, vector<4x32xf32>, vector<256x32xf32> -> vector<256x32xf32>
    %51 = vector.shape_cast %37 : vector<256x1xf32> to vector<256x1xf32>
    %52 = vector.broadcast %51 : vector<256x1xf32> to vector<256x8xf32>
    %53 = vector.shape_cast %40 : vector<256x1xf32> to vector<256x1xf32>
    %54 = vector.broadcast %53 : vector<256x1xf32> to vector<256x8xf32>
    %55 = vector.shape_cast %43 : vector<256x1xf32> to vector<256x1xf32>
    %56 = vector.broadcast %55 : vector<256x1xf32> to vector<256x8xf32>
    %57 = vector.shape_cast %46 : vector<256x1xf32> to vector<256x1xf32>
    %58 = vector.broadcast %57 : vector<256x1xf32> to vector<256x8xf32>
    %59 = tpu.concatenate %52, %54, %56, %58 in 1 : vector<256x8xf32>, vector<256x8xf32>, vector<256x8xf32>, vector<256x8xf32> -> vector<256x32xf32>
    %60 = math.log %50 : vector<256x32xf32>
    %61 = arith.addf %60, %59 : vector<256x32xf32>
    %62 = vector.broadcast %3 : vector<1x32xf32> to vector<256x32xf32>
    %63 = arith.addf %61, %62 : vector<256x32xf32>
    %64 = arith.addf %63, %34 : vector<256x32xf32>
    %c0_24 = arith.constant 0 : index
    %c0_25 = arith.constant 0 : index
    %65 = vector.load %arg16[%c0_24, %c0_25] : memref<256x32xf32, #tpu.memory_space<vmem>>, vector<256x32xf32>
    tpu.vector_store %arg16[%c0_24, %c0_25], %28 {strides = array<i32>} : memref<256x32xf32, #tpu.memory_space<vmem>>, vector<256x32xf32>,
    %c0_26 = arith.constant 0 : index
    %c0_27 = arith.constant 0 : index
    %66 = vector.load %arg17[%c0_26, %c0_27] : memref<256x32xf32, #tpu.memory_space<vmem>>, vector<256x32xf32>
    tpu.vector_store %arg17[%c0_26, %c0_27], %64 {strides = array<i32>} : memref<256x32xf32, #tpu.memory_space<vmem>>, vector<256x32xf32>,
    %c0_28 = arith.constant 0 : index
    %c0_29 = arith.constant 0 : index
    %67 = vector.load %arg6[%c0_28, %c0_29] : memref<32x32xf32, #tpu.memory_space<vmem>>, vector<32x32xf32>
    %c0_30 = arith.constant 0 : index
    %c0_31 = arith.constant 0 : index
    %68 = vector.load %arg7[%c0_30, %c0_31] : memref<1x32xf32, #tpu.memory_space<vmem>>, vector<1x32xf32>
    %c0_32 = arith.constant 0 : index
    %c0_33 = arith.constant 0 : index
    %69 = vector.load %arg8[%c0_32, %c0_33] : memref<32x32xf32, #tpu.memory_space<vmem>>, vector<32x32xf32>
    %c0_34 = arith.constant 0 : index
    %c0_35 = arith.constant 0 : index
    %70 = vector.load %arg9[%c0_34, %c0_35] : memref<1x32xf32, #tpu.memory_space<vmem>>, vector<1x32xf32>
    %c0_36 = arith.constant 0 : index
    %c0_37 = arith.constant 0 : index
    %71 = vector.load %arg16[%c0_36, %c0_37] : memref<256x32xf32, #tpu.memory_space<vmem>>, vector<256x32xf32>
    %c0_38 = arith.constant 0 : index
    %c0_39 = arith.constant 0 : index
    %72 = vector.load %arg17[%c0_38, %c0_39] : memref<256x32xf32, #tpu.memory_space<vmem>>, vector<256x32xf32>
    %cst_40 = arith.constant dense<0.000000e+00> : vector<256x32xf32>
    %73 = tpu.matmul %71, %67, %cst_40 {dimension_numbers = #tpu.dot_dimension_numbers<[1], [0], [0], [1], [0, 0, 1, 1], [], []>} : vector<256x32xf32>, vector<32x32xf32>, vector<256x32xf32> -> vector<256x32xf32>
    %74 = vector.broadcast %68 : vector<1x32xf32> to vector<256x32xf32>
    %75 = arith.addf %73, %74 : vector<256x32xf32>
    %76 = math.absf %75 : vector<256x32xf32>
    %cst_41 = arith.constant -2.000000e+00 : f32
    %77 = vector.broadcast %cst_41 : f32 to vector<256x32xf32>
    %78 = arith.mulf %77, %76 : vector<256x32xf32>
    %79 = math.exp %78 : vector<256x32xf32>
    %cst_42 = arith.constant 1.000000e+00 : f32
    %80 = vector.broadcast %cst_42 : f32 to vector<256x32xf32>
    %81 = arith.addf %80, %79 : vector<256x32xf32>
    %82 = tpu.reciprocal %81 {approx = true} : vector<256x32xf32> -> vector<256x32xf32>
    %83 = arith.mulf %81, %82 : vector<256x32xf32>
    %cst_43 = arith.constant 2.000000e+00 : f32
    %84 = vector.broadcast %cst_43 : f32 to vector<256x32xf32>
    %85 = arith.subf %84, %83 : vector<256x32xf32>
    %86 = arith.mulf %82, %85 : vector<256x32xf32>
    %cst_44 = arith.constant 0.000000e+00 : f32
    %87 = vector.broadcast %cst_44 : f32 to vector<256x32xf32>
    %88 = arith.cmpf oge, %75, %87 : vector<256x32xf32>
    %cst_45 = arith.constant 1.000000e+00 : f32
    %cst_46 = arith.constant -1.000000e+00 : f32
    %89 = vector.broadcast %cst_45 : f32 to vector<256x32xf32>
    %90 = vector.broadcast %cst_46 : f32 to vector<256x32xf32>
    %91 = arith.select %88, %89, %90 : vector<256x32xi1>, vector<256x32xf32>
    %cst_47 = arith.constant 1.000000e+00 : f32
    %92 = vector.broadcast %cst_47 : f32 to vector<256x32xf32>
    %93 = arith.subf %92, %79 : vector<256x32xf32>
    %94 = arith.mulf %91, %93 : vector<256x32xf32>
    %95 = arith.mulf %94, %86 : vector<256x32xf32>
    %cst_48 = arith.constant 0.693147182 : f32
    %96 = vector.broadcast %cst_48 : f32 to vector<256x32xf32>
    %97 = arith.subf %76, %96 : vector<256x32xf32>
    %98 = math.log1p %79 : vector<256x32xf32>
    %99 = arith.addf %97, %98 : vector<256x32xf32>
    %cst_49 = arith.constant -2.000000e+00 : f32
    %100 = vector.broadcast %cst_49 : f32 to vector<256x32xf32>
    %101 = arith.mulf %100, %99 : vector<256x32xf32>
    %102 = vector.extract_strided_slice %72 {offsets = [0, 0], sizes = [256, 8], strides = [1, 1]} : vector<256x32xf32> to vector<256x8xf32>
    %cst_50 = arith.constant dense<0xFF800000> : vector<256xf32>
    %103 = vector.multi_reduction <maximumf>, %102, %cst_50 [1] : vector<256x8xf32> to vector<256xf32>
    %104 = vector.shape_cast %103 : vector<256xf32> to vector<256x1xf32>
    %105 = vector.extract_strided_slice %72 {offsets = [0, 8], sizes = [256, 8], strides = [1, 1]} : vector<256x32xf32> to vector<256x8xf32>
    %cst_51 = arith.constant dense<0xFF800000> : vector<256xf32>
    %106 = vector.multi_reduction <maximumf>, %105, %cst_51 [1] : vector<256x8xf32> to vector<256xf32>
    %107 = vector.shape_cast %106 : vector<256xf32> to vector<256x1xf32>
    %108 = vector.extract_strided_slice %72 {offsets = [0, 16], sizes = [256, 8], strides = [1, 1]} : vector<256x32xf32> to vector<256x8xf32>
    %cst_52 = arith.constant dense<0xFF800000> : vector<256xf32>
    %109 = vector.multi_reduction <maximumf>, %108, %cst_52 [1] : vector<256x8xf32> to vector<256xf32>
    %110 = vector.shape_cast %109 : vector<256xf32> to vector<256x1xf32>
    %111 = vector.extract_strided_slice %72 {offsets = [0, 24], sizes = [256, 8], strides = [1, 1]} : vector<256x32xf32> to vector<256x8xf32>
    %cst_53 = arith.constant dense<0xFF800000> : vector<256xf32>
    %112 = vector.multi_reduction <maximumf>, %111, %cst_53 [1] : vector<256x8xf32> to vector<256xf32>
    %113 = vector.shape_cast %112 : vector<256xf32> to vector<256x1xf32>
    %114 = vector.shape_cast %104 : vector<256x1xf32> to vector<256x1xf32>
    %115 = vector.broadcast %114 : vector<256x1xf32> to vector<256x8xf32>
    %116 = vector.shape_cast %107 : vector<256x1xf32> to vector<256x1xf32>
    %117 = vector.broadcast %116 : vector<256x1xf32> to vector<256x8xf32>
    %118 = vector.shape_cast %110 : vector<256x1xf32> to vector<256x1xf32>
    %119 = vector.broadcast %118 : vector<256x1xf32> to vector<256x8xf32>
    %120 = vector.shape_cast %113 : vector<256x1xf32> to vector<256x1xf32>
    %121 = vector.broadcast %120 : vector<256x1xf32> to vector<256x8xf32>
    %122 = tpu.concatenate %115, %117, %119, %121 in 1 : vector<256x8xf32>, vector<256x8xf32>, vector<256x8xf32>, vector<256x8xf32> -> vector<256x32xf32>
    %123 = arith.subf %72, %122 : vector<256x32xf32>
    %124 = math.exp %123 : vector<256x32xf32>
    %cst_54 = arith.constant dense<0.000000e+00> : vector<256x32xf32>
    %125 = tpu.matmul %124, %69, %cst_54 {dimension_numbers = #tpu.dot_dimension_numbers<[1], [0], [0], [1], [0, 0, 1, 1], [], []>} : vector<256x32xf32>, vector<32x32xf32>, vector<256x32xf32> -> vector<256x32xf32>
    %126 = vector.shape_cast %104 : vector<256x1xf32> to vector<256x1xf32>
    %127 = vector.broadcast %126 : vector<256x1xf32> to vector<256x8xf32>
    %128 = vector.shape_cast %107 : vector<256x1xf32> to vector<256x1xf32>
    %129 = vector.broadcast %128 : vector<256x1xf32> to vector<256x8xf32>
    %130 = vector.shape_cast %110 : vector<256x1xf32> to vector<256x1xf32>
    %131 = vector.broadcast %130 : vector<256x1xf32> to vector<256x8xf32>
    %132 = vector.shape_cast %113 : vector<256x1xf32> to vector<256x1xf32>
    %133 = vector.broadcast %132 : vector<256x1xf32> to vector<256x8xf32>
    %134 = tpu.concatenate %127, %129, %131, %133 in 1 : vector<256x8xf32>, vector<256x8xf32>, vector<256x8xf32>, vector<256x8xf32> -> vector<256x32xf32>
    %135 = math.log %125 : vector<256x32xf32>
    %136 = arith.addf %135, %134 : vector<256x32xf32>
    %137 = vector.broadcast %70 : vector<1x32xf32> to vector<256x32xf32>
    %138 = arith.addf %136, %137 : vector<256x32xf32>
    %139 = arith.addf %138, %101 : vector<256x32xf32>
    %c0_55 = arith.constant 0 : index
    %c0_56 = arith.constant 0 : index
    %140 = vector.load %arg16[%c0_55, %c0_56] : memref<256x32xf32, #tpu.memory_space<vmem>>, vector<256x32xf32>
    tpu.vector_store %arg16[%c0_55, %c0_56], %95 {strides = array<i32>} : memref<256x32xf32, #tpu.memory_space<vmem>>, vector<256x32xf32>,
    %c0_57 = arith.constant 0 : index
    %c0_58 = arith.constant 0 : index
    %141 = vector.load %arg17[%c0_57, %c0_58] : memref<256x32xf32, #tpu.memory_space<vmem>>, vector<256x32xf32>
    tpu.vector_store %arg17[%c0_57, %c0_58], %139 {strides = array<i32>} : memref<256x32xf32, #tpu.memory_space<vmem>>, vector<256x32xf32>,
    %c0_59 = arith.constant 0 : index
    %c0_60 = arith.constant 0 : index
    %142 = vector.load %arg10[%c0_59, %c0_60] : memref<32x4xf32, #tpu.memory_space<vmem>>, vector<32x4xf32>
    %c0_61 = arith.constant 0 : index
    %c0_62 = arith.constant 0 : index
    %143 = vector.load %arg11[%c0_61, %c0_62] : memref<1x4xf32, #tpu.memory_space<vmem>>, vector<1x4xf32>
    %c0_63 = arith.constant 0 : index
    %c0_64 = arith.constant 0 : index
    %144 = vector.load %arg12[%c0_63, %c0_64] : memref<32x4xf32, #tpu.memory_space<vmem>>, vector<32x4xf32>
    %c0_65 = arith.constant 0 : index
    %c0_66 = arith.constant 0 : index
    %145 = vector.load %arg13[%c0_65, %c0_66] : memref<1x4xf32, #tpu.memory_space<vmem>>, vector<1x4xf32>
    %c0_67 = arith.constant 0 : index
    %c0_68 = arith.constant 0 : index
    %146 = vector.load %arg16[%c0_67, %c0_68] : memref<256x32xf32, #tpu.memory_space<vmem>>, vector<256x32xf32>
    %c0_69 = arith.constant 0 : index
    %c0_70 = arith.constant 0 : index
    %147 = vector.load %arg17[%c0_69, %c0_70] : memref<256x32xf32, #tpu.memory_space<vmem>>, vector<256x32xf32>
    %cst_71 = arith.constant dense<0.000000e+00> : vector<256x4xf32>
    %148 = tpu.matmul %146, %142, %cst_71 {dimension_numbers = #tpu.dot_dimension_numbers<[1], [0], [0], [1], [0, 0, 1, 1], [], []>} : vector<256x32xf32>, vector<32x4xf32>, vector<256x4xf32> -> vector<256x4xf32>
    %149 = vector.broadcast %143 : vector<1x4xf32> to vector<256x4xf32>
    %150 = arith.addf %148, %149 : vector<256x4xf32>
    %151 = math.absf %150 : vector<256x4xf32>
    %cst_72 = arith.constant -2.000000e+00 : f32
    %152 = vector.broadcast %cst_72 : f32 to vector<256x4xf32>
    %153 = arith.mulf %152, %151 : vector<256x4xf32>
    %154 = math.exp %153 : vector<256x4xf32>
    %cst_73 = arith.constant 1.000000e+00 : f32
    %155 = vector.broadcast %cst_73 : f32 to vector<256x4xf32>
    %156 = arith.addf %155, %154 : vector<256x4xf32>
    %157 = tpu.reciprocal %156 {approx = true} : vector<256x4xf32> -> vector<256x4xf32>
    %158 = arith.mulf %156, %157 : vector<256x4xf32>
    %cst_74 = arith.constant 2.000000e+00 : f32
    %159 = vector.broadcast %cst_74 : f32 to vector<256x4xf32>
    %160 = arith.subf %159, %158 : vector<256x4xf32>
    %161 = arith.mulf %157, %160 : vector<256x4xf32>
    %cst_75 = arith.constant 0.000000e+00 : f32
    %162 = vector.broadcast %cst_75 : f32 to vector<256x4xf32>
    %163 = arith.cmpf oge, %150, %162 : vector<256x4xf32>
    %cst_76 = arith.constant 1.000000e+00 : f32
    %cst_77 = arith.constant -1.000000e+00 : f32
    %164 = vector.broadcast %cst_76 : f32 to vector<256x4xf32>
    %165 = vector.broadcast %cst_77 : f32 to vector<256x4xf32>
    %166 = arith.select %163, %164, %165 : vector<256x4xi1>, vector<256x4xf32>
    %cst_78 = arith.constant 1.000000e+00 : f32
    %167 = vector.broadcast %cst_78 : f32 to vector<256x4xf32>
    %168 = arith.subf %167, %154 : vector<256x4xf32>
    %169 = arith.mulf %166, %168 : vector<256x4xf32>
    %170 = arith.mulf %169, %161 : vector<256x4xf32>
    %cst_79 = arith.constant 0.693147182 : f32
    %171 = vector.broadcast %cst_79 : f32 to vector<256x4xf32>
    %172 = arith.subf %151, %171 : vector<256x4xf32>
    %173 = math.log1p %154 : vector<256x4xf32>
    %174 = arith.addf %172, %173 : vector<256x4xf32>
    %cst_80 = arith.constant -2.000000e+00 : f32
    %175 = vector.broadcast %cst_80 : f32 to vector<256x4xf32>
    %176 = arith.mulf %175, %174 : vector<256x4xf32>
    %177 = vector.extract_strided_slice %147 {offsets = [0, 0], sizes = [256, 8], strides = [1, 1]} : vector<256x32xf32> to vector<256x8xf32>
    %cst_81 = arith.constant dense<0xFF800000> : vector<256xf32>
    %178 = vector.multi_reduction <maximumf>, %177, %cst_81 [1] : vector<256x8xf32> to vector<256xf32>
    %179 = vector.shape_cast %178 : vector<256xf32> to vector<256x1xf32>
    %180 = vector.extract_strided_slice %147 {offsets = [0, 8], sizes = [256, 8], strides = [1, 1]} : vector<256x32xf32> to vector<256x8xf32>
    %cst_82 = arith.constant dense<0xFF800000> : vector<256xf32>
    %181 = vector.multi_reduction <maximumf>, %180, %cst_82 [1] : vector<256x8xf32> to vector<256xf32>
    %182 = vector.shape_cast %181 : vector<256xf32> to vector<256x1xf32>
    %183 = vector.extract_strided_slice %147 {offsets = [0, 16], sizes = [256, 8], strides = [1, 1]} : vector<256x32xf32> to vector<256x8xf32>
    %cst_83 = arith.constant dense<0xFF800000> : vector<256xf32>
    %184 = vector.multi_reduction <maximumf>, %183, %cst_83 [1] : vector<256x8xf32> to vector<256xf32>
    %185 = vector.shape_cast %184 : vector<256xf32> to vector<256x1xf32>
    %186 = vector.extract_strided_slice %147 {offsets = [0, 24], sizes = [256, 8], strides = [1, 1]} : vector<256x32xf32> to vector<256x8xf32>
    %cst_84 = arith.constant dense<0xFF800000> : vector<256xf32>
    %187 = vector.multi_reduction <maximumf>, %186, %cst_84 [1] : vector<256x8xf32> to vector<256xf32>
    %188 = vector.shape_cast %187 : vector<256xf32> to vector<256x1xf32>
    %189 = vector.shape_cast %179 : vector<256x1xf32> to vector<256x1xf32>
    %190 = vector.broadcast %189 : vector<256x1xf32> to vector<256x8xf32>
    %191 = vector.shape_cast %182 : vector<256x1xf32> to vector<256x1xf32>
    %192 = vector.broadcast %191 : vector<256x1xf32> to vector<256x8xf32>
    %193 = vector.shape_cast %185 : vector<256x1xf32> to vector<256x1xf32>
    %194 = vector.broadcast %193 : vector<256x1xf32> to vector<256x8xf32>
    %195 = vector.shape_cast %188 : vector<256x1xf32> to vector<256x1xf32>
    %196 = vector.broadcast %195 : vector<256x1xf32> to vector<256x8xf32>
    %197 = tpu.concatenate %190, %192, %194, %196 in 1 : vector<256x8xf32>, vector<256x8xf32>, vector<256x8xf32>, vector<256x8xf32> -> vector<256x32xf32>
    %198 = arith.subf %147, %197 : vector<256x32xf32>
    %199 = math.exp %198 : vector<256x32xf32>
    %cst_85 = arith.constant dense<0.000000e+00> : vector<256x4xf32>
    %200 = tpu.matmul %199, %144, %cst_85 {dimension_numbers = #tpu.dot_dimension_numbers<[1], [0], [0], [1], [0, 0, 1, 1], [], []>} : vector<256x32xf32>, vector<32x4xf32>, vector<256x4xf32> -> vector<256x4xf32>
    %201 = tpu.concatenate %179, %182, %185, %188 in 1 : vector<256x1xf32>, vector<256x1xf32>, vector<256x1xf32>, vector<256x1xf32> -> vector<256x4xf32>
    %202 = math.log %200 : vector<256x4xf32>
    %203 = arith.addf %202, %201 : vector<256x4xf32>
    %204 = vector.broadcast %145 : vector<1x4xf32> to vector<256x4xf32>
    %205 = arith.addf %203, %204 : vector<256x4xf32>
    %206 = arith.addf %205, %176 : vector<256x4xf32>
    %c0_86 = arith.constant 0 : index
    %c0_87 = arith.constant 0 : index
    %207 = vector.load %arg14[%c0_86, %c0_87] : memref<256x4xf32, #tpu.memory_space<vmem>>, vector<256x4xf32>
    tpu.vector_store %arg14[%c0_86, %c0_87], %170 {strides = array<i32>} : memref<256x4xf32, #tpu.memory_space<vmem>>, vector<256x4xf32>,
    %c0_88 = arith.constant 0 : index
    %c0_89 = arith.constant 0 : index
    %208 = vector.load %arg15[%c0_88, %c0_89] : memref<256x4xf32, #tpu.memory_space<vmem>>, vector<256x4xf32>
    tpu.vector_store %arg15[%c0_88, %c0_89], %206 {strides = array<i32>} : memref<256x4xf32, #tpu.memory_space<vmem>>, vector<256x4xf32>,
    return
  }
  func.func @transform_0(%arg0: i32) -> (i32, i32) {
    %c0_i32 = arith.constant 0 : i32
    %c0_i32_0 = arith.constant 0 : i32
    return %arg0, %c0_i32 : i32, i32
  }
  func.func @transform_1(%arg0: i32) -> (i32, i32) {
    %c0_i32 = arith.constant 0 : i32
    %c0_i32_0 = arith.constant 0 : i32
    %c0_i32_1 = arith.constant 0 : i32
    return %c0_i32, %c0_i32_0 : i32, i32
  }
  func.func @transform_2(%arg0: i32) -> (i32, i32) {
    %c0_i32 = arith.constant 0 : i32
    %c0_i32_0 = arith.constant 0 : i32
    %c0_i32_1 = arith.constant 0 : i32
    return %c0_i32, %c0_i32_0 : i32, i32
  }
  func.func @transform_3(%arg0: i32) -> (i32, i32) {
    %c0_i32 = arith.constant 0 : i32
    %c0_i32_0 = arith.constant 0 : i32
    %c0_i32_1 = arith.constant 0 : i32
    return %c0_i32, %c0_i32_0 : i32, i32
  }
  func.func @transform_4(%arg0: i32) -> (i32, i32) {
    %c0_i32 = arith.constant 0 : i32
    %c0_i32_0 = arith.constant 0 : i32
    %c0_i32_1 = arith.constant 0 : i32
    return %c0_i32, %c0_i32_0 : i32, i32
  }
  func.func @transform_5(%arg0: i32) -> (i32, i32) {
    %c0_i32 = arith.constant 0 : i32
    %c0_i32_0 = arith.constant 0 : i32
    %c0_i32_1 = arith.constant 0 : i32
    return %c0_i32, %c0_i32_0 : i32, i32
  }
  func.func @transform_6(%arg0: i32) -> (i32, i32) {
    %c0_i32 = arith.constant 0 : i32
    %c0_i32_0 = arith.constant 0 : i32
    %c0_i32_1 = arith.constant 0 : i32
    return %c0_i32, %c0_i32_0 : i32, i32
  }
  func.func @transform_7(%arg0: i32) -> (i32, i32) {
    %c0_i32 = arith.constant 0 : i32
    %c0_i32_0 = arith.constant 0 : i32
    %c0_i32_1 = arith.constant 0 : i32
    return %c0_i32, %c0_i32_0 : i32, i32
  }
  func.func @transform_8(%arg0: i32) -> (i32, i32) {
    %c0_i32 = arith.constant 0 : i32
    %c0_i32_0 = arith.constant 0 : i32
    %c0_i32_1 = arith.constant 0 : i32
    return %c0_i32, %c0_i32_0 : i32, i32
  }
  func.func @transform_9(%arg0: i32) -> (i32, i32) {
    %c0_i32 = arith.constant 0 : i32
    %c0_i32_0 = arith.constant 0 : i32
    %c0_i32_1 = arith.constant 0 : i32
    return %c0_i32, %c0_i32_0 : i32, i32
  }
  func.func @transform_10(%arg0: i32) -> (i32, i32) {
    %c0_i32 = arith.constant 0 : i32
    %c0_i32_0 = arith.constant 0 : i32
    %c0_i32_1 = arith.constant 0 : i32
    return %c0_i32, %c0_i32_0 : i32, i32
  }
  func.func @transform_11(%arg0: i32) -> (i32, i32) {
    %c0_i32 = arith.constant 0 : i32
    %c0_i32_0 = arith.constant 0 : i32
    %c0_i32_1 = arith.constant 0 : i32
    return %c0_i32, %c0_i32_0 : i32, i32
  }
  func.func @transform_12(%arg0: i32) -> (i32, i32) {
    %c0_i32 = arith.constant 0 : i32
    %c0_i32_0 = arith.constant 0 : i32
    %c0_i32_1 = arith.constant 0 : i32
    return %c0_i32, %c0_i32_0 : i32, i32
  }
  func.func @transform_13(%arg0: i32) -> (i32, i32) {
    %c0_i32 = arith.constant 0 : i32
    %c0_i32_0 = arith.constant 0 : i32
    return %arg0, %c0_i32 : i32, i32
  }
  func.func @transform_14(%arg0: i32) -> (i32, i32) {
    %c0_i32 = arith.constant 0 : i32
    %c0_i32_0 = arith.constant 0 : i32
    return %arg0, %c0_i32 : i32, i32
  }
}

</mosaic_0001>

<llo_original>
// kernel: _lambda_.1
$region0: #{_lambda_.1}
  #allocation0 [shape = 'u32[]', space=smem, size = 0x4, offset = 0x4, fixed_abs, tag = 'smem constant byte address 0x4 - core index']
  #allocation1 [shape = 'u32[72,128]{1,0:T(1,128)}', space=vmem, size = 0x9000, scoped, tag = 'internal scratch']
  #allocation2 [shape = 'f32[256,32]{1,0:T(8,128)}', space=vmem, size = 0x20000, scoped, tag = 'scratch operand']
  #allocation3 [shape = 'f32[256,32]{1,0:T(8,128)}', space=vmem, size = 0x20000, scoped, tag = 'scratch operand']
  %s0 = inlined_call_operand.vmem [shape: f32[512,4], index: 0, kind: input, shape index: {}]
  %s1 = inlined_call_operand.vmem [shape: f32[4,32], index: 1, kind: input, shape index: {}]
  %s2 = inlined_call_operand.vmem [shape: f32[1,32], index: 2, kind: input, shape index: {}]
  %s3 = inlined_call_operand.vmem [shape: f32[4,32], index: 3, kind: input, shape index: {}]
  %s4 = inlined_call_operand.vmem [shape: f32[1,32], index: 4, kind: input, shape index: {}]
  %s5 = inlined_call_operand.vmem [shape: f32[32,32], index: 5, kind: input, shape index: {}]
  %s6 = inlined_call_operand.vmem [shape: f32[1,32], index: 6, kind: input, shape index: {}]
  %s7 = inlined_call_operand.vmem [shape: f32[32,32], index: 7, kind: input, shape index: {}]
  %s8 = inlined_call_operand.vmem [shape: f32[1,32], index: 8, kind: input, shape index: {}]
  %s9 = inlined_call_operand.vmem [shape: f32[32,4], index: 9, kind: input, shape index: {}]
  %s10 = inlined_call_operand.vmem [shape: f32[1,4], index: 10, kind: input, shape index: {}]
  %s11 = inlined_call_operand.vmem [shape: f32[32,4], index: 11, kind: input, shape index: {}]
  %s12 = inlined_call_operand.vmem [shape: f32[1,4], index: 12, kind: input, shape index: {}]
  %s13 = inlined_call_operand.vmem [shape: f32[512,4], index: 13, kind: output, shape index: {0}]
  %s14 = inlined_call_operand.vmem [shape: f32[512,4], index: 14, kind: output, shape index: {1}]
  %15 = xla_tuple %s13, %s14
  %s16 = sld [smem:[#allocation0]]
  $region93: #{_lambda_.1} parent=0
    _
  %s18 = ssub.s32 1, %s16
  %s19 = scalar_select 0, %s18, %s16
  loop: start=0, step=1, limit=4
  $region2: #{_lambda_.1} parent=0 // loop_pre_header
    _
  $region3: #{_lambda_.1} parent=0 // loop_header
    %s21 = sphi 0, %s25
    %p22 = scmp.ge.s32.totalorder %s21, 4
    %s31 = sphi 0, %s33
    %s34 = sphi 0, %s31
    %s35 = sphi 0, %s34
    %s51 = sphi 0, %s35
    %s55 = sphi 0, %s55
    %s57 = sphi 0, %s55
    %s58 = sphi 0, %s57
    %s72 = sphi 0, %s58
    %s76 = sphi 0, %s76
    %s78 = sphi 0, %s76
    %s79 = sphi 0, %s78
    %s93 = sphi 0, %s79
    %s97 = sphi 0, %s97
    %s99 = sphi 0, %s97
    %s100 = sphi 0, %s99
    %s114 = sphi 0, %s100
    %s118 = sphi 0, %s118
    %s120 = sphi 0, %s118
    %s121 = sphi 0, %s120
    %s135 = sphi 0, %s121
    %s139 = sphi 0, %s139
    %s141 = sphi 0, %s139
    %s142 = sphi 0, %s141
    %s156 = sphi 0, %s142
    %s160 = sphi 0, %s160
    %s162 = sphi 0, %s160
    %s163 = sphi 0, %s162
    %s177 = sphi 0, %s163
    %s181 = sphi 0, %s181
    %s183 = sphi 0, %s181
    %s184 = sphi 0, %s183
    %s198 = sphi 0, %s184
    %s202 = sphi 0, %s202
    %s204 = sphi 0, %s202
    %s205 = sphi 0, %s204
    %s219 = sphi 0, %s205
    %s223 = sphi 0, %s223
    %s225 = sphi 0, %s223
    %s226 = sphi 0, %s225
    %s240 = sphi 0, %s226
    %s244 = sphi 0, %s244
    %s246 = sphi 0, %s244
    %s247 = sphi 0, %s246
    %s261 = sphi 0, %s247
    %s265 = sphi 0, %s265
    %s267 = sphi 0, %s265
    %s268 = sphi 0, %s267
    %s282 = sphi 0, %s268
    %s286 = sphi 0, %s286
    %s288 = sphi 0, %s286
    %s289 = sphi 0, %s288
    %s303 = sphi 0, %s289
    %s309 = sphi 0, %s311
    %s312 = sphi 0, %s309
    %s313 = sphi 0, %s312
    %s329 = sphi 0, %s313
    %s335 = sphi 0, %s337
    %s338 = sphi 0, %s335
    %s339 = sphi 0, %s338
    %s355 = sphi 0, %s339
  $region4: #{_lambda_.1} parent=0 // loop_header_branch
    %24 = sbr.rel (%p22) target = $region8
  $region5: #{_lambda_.1} parent=0 // loop_body
    %s26 = ssub.s32 %s21, 1
    %s27 = ssub.s32 %s21, 2
    %s28 = sadd.s32 %s21, 1
    %s29 = ssub.s32 %s21, %s28
    %p30 = scmp.eq.s32.totalorder %s29, 0
    %s32 = sadd.s32 %s31, 1
    %s33 = scalar_select %p30, %s31, %s32
    %p36 = pneg %p30
    %p37 = scmp.eq.s32.totalorder %s21, 1
    %p38 = por %p36, %p37
    %p39 = scmp.ne.s32.totalorder %s31, %s34
    %p40 = scmp.eq.s32.totalorder %s21, 0
    %p41 = por %p39, %p40
    %p42 = scmp.ne.s32.totalorder %s31, %s34
    %p43 = scmp.eq.s32.totalorder %s26, 1
    %p44 = por %p42, %p43
    %p45 = scmp.ne.s32.totalorder %s34, %s35
    %p46 = scmp.eq.s32.totalorder %s26, 0
    %p47 = por %p45, %p46
    %p48 = scmp.ne.s32.totalorder %s34, %s35
    %p49 = scmp.eq.s32.totalorder %s27, 1
    %p50 = por %p48, %p49
    %p52 = scmp.ne.s32.totalorder %s35, %s51
    %p53 = scmp.eq.s32.totalorder %s27, 0
    %p54 = por %p52, %p53
    %s56 = sadd.s32 %s55, 1
    %p59 = scmp.eq.s32.totalorder %s21, 1
    %p60 = scmp.ne.s32.totalorder %s55, %s57
    %p61 = scmp.eq.s32.totalorder %s21, 0
    %p62 = por %p60, %p61
    %p63 = scmp.ne.s32.totalorder %s55, %s57
    %p64 = scmp.eq.s32.totalorder %s26, 1
    %p65 = por %p63, %p64
    %p66 = scmp.ne.s32.totalorder %s57, %s58
    %p67 = scmp.eq.s32.totalorder %s26, 0
    %p68 = por %p66, %p67
    %p69 = scmp.ne.s32.totalorder %s57, %s58
    %p70 = scmp.eq.s32.totalorder %s27, 1
    %p71 = por %p69, %p70
    %p73 = scmp.ne.s32.totalorder %s58, %s72
    %p74 = scmp.eq.s32.totalorder %s27, 0
    %p75 = por %p73, %p74
    %s77 = sadd.s32 %s76, 1
    %p80 = scmp.eq.s32.totalorder %s21, 1
    %p81 = scmp.ne.s32.totalorder %s76, %s78
    %p82 = scmp.eq.s32.totalorder %s21, 0
    %p83 = por %p81, %p82
    %p84 = scmp.ne.s32.totalorder %s76, %s78
    %p85 = scmp.eq.s32.totalorder %s26, 1
    %p86 = por %p84, %p85
    %p87 = scmp.ne.s32.totalorder %s78, %s79
    %p88 = scmp.eq.s32.totalorder %s26, 0
    %p89 = por %p87, %p88
    %p90 = scmp.ne.s32.totalorder %s78, %s79
    %p91 = scmp.eq.s32.totalorder %s27, 1
    %p92 = por %p90, %p91
    %p94 = scmp.ne.s32.totalorder %s79, %s93
    %p95 = scmp.eq.s32.totalorder %s27, 0
    %p96 = por %p94, %p95
    %s98 = sadd.s32 %s97, 1
    %p101 = scmp.eq.s32.totalorder %s21, 1
    %p102 = scmp.ne.s32.totalorder %s97, %s99
    %p103 = scmp.eq.s32.totalorder %s21, 0
    %p104 = por %p102, %p103
    %p105 = scmp.ne.s32.totalorder %s97, %s99
    %p106 = scmp.eq.s32.totalorder %s26, 1
    %p107 = por %p105, %p106
    %p108 = scmp.ne.s32.totalorder %s99, %s100
    %p109 = scmp.eq.s32.totalorder %s26, 0
    %p110 = por %p108, %p109
    %p111 = scmp.ne.s32.totalorder %s99, %s100
    %p112 = scmp.eq.s32.totalorder %s27, 1
    %p113 = por %p111, %p112
    %p115 = scmp.ne.s32.totalorder %s100, %s114
    %p116 = scmp.eq.s32.totalorder %s27, 0
    %p117 = por %p115, %p116
    %s119 = sadd.s32 %s118, 1
    %p122 = scmp.eq.s32.totalorder %s21, 1
    %p123 = scmp.ne.s32.totalorder %s118, %s120
    %p124 = scmp.eq.s32.totalorder %s21, 0
    %p125 = por %p123, %p124
    %p126 = scmp.ne.s32.totalorder %s118, %s120
    %p127 = scmp.eq.s32.totalorder %s26, 1
    %p128 = por %p126, %p127
    %p129 = scmp.ne.s32.totalorder %s120, %s121
    %p130 = scmp.eq.s32.totalorder %s26, 0
    %p131 = por %p129, %p130
    %p132 = scmp.ne.s32.totalorder %s120, %s121
    %p133 = scmp.eq.s32.totalorder %s27, 1
    %p134 = por %p132, %p133
    %p136 = scmp.ne.s32.totalorder %s121, %s135
    %p137 = scmp.eq.s32.totalorder %s27, 0
    %p138 = por %p136, %p137
    %s140 = sadd.s32 %s139, 1
    %p143 = scmp.eq.s32.totalorder %s21, 1
    %p144 = scmp.ne.s32.totalorder %s139, %s141
    %p145 = scmp.eq.s32.totalorder %s21, 0
    %p146 = por %p144, %p145
    %p147 = scmp.ne.s32.totalorder %s139, %s141
    %p148 = scmp.eq.s32.totalorder %s26, 1
    %p149 = por %p147, %p148
    %p150 = scmp.ne.s32.totalorder %s141, %s142
    %p151 = scmp.eq.s32.totalorder %s26, 0
    %p152 = por %p150, %p151
    %p153 = scmp.ne.s32.totalorder %s141, %s142
    %p154 = scmp.eq.s32.totalorder %s27, 1
    %p155 = por %p153, %p154
    %p157 = scmp.ne.s32.totalorder %s142, %s156
    %p158 = scmp.eq.s32.totalorder %s27, 0
    %p159 = por %p157, %p158
    %s161 = sadd.s32 %s160, 1
    %p164 = scmp.eq.s32.totalorder %s21, 1
    %p165 = scmp.ne.s32.totalorder %s160, %s162
    %p166 = scmp.eq.s32.totalorder %s21, 0
    %p167 = por %p165, %p166
    %p168 = scmp.ne.s32.totalorder %s160, %s162
    %p169 = scmp.eq.s32.totalorder %s26, 1
    %p170 = por %p168, %p169
    %p171 = scmp.ne.s32.totalorder %s162, %s163
    %p172 = scmp.eq.s32.totalorder %s26, 0
    %p173 = por %p171, %p172
    %p174 = scmp.ne.s32.totalorder %s162, %s163
    %p175 = scmp.eq.s32.totalorder %s27, 1
    %p176 = por %p174, %p175
    %p178 = scmp.ne.s32.totalorder %s163, %s177
    %p179 = scmp.eq.s32.totalorder %s27, 0
    %p180 = por %p178, %p179
    %s182 = sadd.s32 %s181, 1
    %p185 = scmp.eq.s32.totalorder %s21, 1
    %p186 = scmp.ne.s32.totalorder %s181, %s183
    %p187 = scmp.eq.s32.totalorder %s21, 0
    %p188 = por %p186, %p187
    %p189 = scmp.ne.s32.totalorder %s181, %s183
    %p190 = scmp.eq.s32.totalorder %s26, 1
    %p191 = por %p189, %p190
    %p192 = scmp.ne.s32.totalorder %s183, %s184
    %p193 = scmp.eq.s32.totalorder %s26, 0
    %p194 = por %p192, %p193
    %p195 = scmp.ne.s32.totalorder %s183, %s184
    %p196 = scmp.eq.s32.totalorder %s27, 1
    %p197 = por %p195, %p196
    %p199 = scmp.ne.s32.totalorder %s184, %s198
    %p200 = scmp.eq.s32.totalorder %s27, 0
    %p201 = por %p199, %p200
    %s203 = sadd.s32 %s202, 1
    %p206 = scmp.eq.s32.totalorder %s21, 1
    %p207 = scmp.ne.s32.totalorder %s202, %s204
    %p208 = scmp.eq.s32.totalorder %s21, 0
    %p209 = por %p207, %p208
    %p210 = scmp.ne.s32.totalorder %s202, %s204
    %p211 = scmp.eq.s32.totalorder %s26, 1
    %p212 = por %p210, %p211
    %p213 = scmp.ne.s32.totalorder %s204, %s205
    %p214 = scmp.eq.s32.totalorder %s26, 0
    %p215 = por %p213, %p214
    %p216 = scmp.ne.s32.totalorder %s204, %s205
    %p217 = scmp.eq.s32.totalorder %s27, 1
    %p218 = por %p216, %p217
    %p220 = scmp.ne.s32.totalorder %s205, %s219
    %p221 = scmp.eq.s32.totalorder %s27, 0
    %p222 = por %p220, %p221
    %s224 = sadd.s32 %s223, 1
    %p227 = scmp.eq.s32.totalorder %s21, 1
    %p228 = scmp.ne.s32.totalorder %s223, %s225
    %p229 = scmp.eq.s32.totalorder %s21, 0
    %p230 = por %p228, %p229
    %p231 = scmp.ne.s32.totalorder %s223, %s225
    %p232 = scmp.eq.s32.totalorder %s26, 1
    %p233 = por %p231, %p232
    %p234 = scmp.ne.s32.totalorder %s225, %s226
    %p235 = scmp.eq.s32.totalorder %s26, 0
    %p236 = por %p234, %p235
    %p237 = scmp.ne.s32.totalorder %s225, %s226
    %p238 = scmp.eq.s32.totalorder %s27, 1
    %p239 = por %p237, %p238
    %p241 = scmp.ne.s32.totalorder %s226, %s240
    %p242 = scmp.eq.s32.totalorder %s27, 0
    %p243 = por %p241, %p242
    %s245 = sadd.s32 %s244, 1
    %p248 = scmp.eq.s32.totalorder %s21, 1
    %p249 = scmp.ne.s32.totalorder %s244, %s246
    %p250 = scmp.eq.s32.totalorder %s21, 0
    %p251 = por %p249, %p250
    %p252 = scmp.ne.s32.totalorder %s244, %s246
    %p253 = scmp.eq.s32.totalorder %s26, 1
    %p254 = por %p252, %p253
    %p255 = scmp.ne.s32.totalorder %s246, %s247
    %p256 = scmp.eq.s32.totalorder %s26, 0
    %p257 = por %p255, %p256
    %p258 = scmp.ne.s32.totalorder %s246, %s247
    %p259 = scmp.eq.s32.totalorder %s27, 1
    %p260 = por %p258, %p259
    %p262 = scmp.ne.s32.totalorder %s247, %s261
    %p263 = scmp.eq.s32.totalorder %s27, 0
    %p264 = por %p262, %p263
    %s266 = sadd.s32 %s265, 1
    %p269 = scmp.eq.s32.totalorder %s21, 1
    %p270 = scmp.ne.s32.totalorder %s265, %s267
    %p271 = scmp.eq.s32.totalorder %s21, 0
    %p272 = por %p270, %p271
    %p273 = scmp.ne.s32.totalorder %s265, %s267
    %p274 = scmp.eq.s32.totalorder %s26, 1
    %p275 = por %p273, %p274
    %p276 = scmp.ne.s32.totalorder %s267, %s268
    %p277 = scmp.eq.s32.totalorder %s26, 0
    %p278 = por %p276, %p277
    %p279 = scmp.ne.s32.totalorder %s267, %s268
    %p280 = scmp.eq.s32.totalorder %s27, 1
    %p281 = por %p279, %p280
    %p283 = scmp.ne.s32.totalorder %s268, %s282
    %p284 = scmp.eq.s32.totalorder %s27, 0
    %p285 = por %p283, %p284
    %s287 = sadd.s32 %s286, 1
    %p290 = scmp.eq.s32.totalorder %s21, 1
    %p291 = scmp.ne.s32.totalorder %s286, %s288
    %p292 = scmp.eq.s32.totalorder %s21, 0
    %p293 = por %p291, %p292
    %p294 = scmp.ne.s32.totalorder %s286, %s288
    %p295 = scmp.eq.s32.totalorder %s26, 1
    %p296 = por %p294, %p295
    %p297 = scmp.ne.s32.totalorder %s288, %s289
    %p298 = scmp.eq.s32.totalorder %s26, 0
    %p299 = por %p297, %p298
    %p300 = scmp.ne.s32.totalorder %s288, %s289
    %p301 = scmp.eq.s32.totalorder %s27, 1
    %p302 = por %p300, %p301
    %p304 = scmp.ne.s32.totalorder %s289, %s303
    %p305 = scmp.eq.s32.totalorder %s27, 0
    %p306 = por %p304, %p305
    %s307 = ssub.s32 %s21, %s28
    %p308 = scmp.eq.s32.totalorder %s307, 0
    %s310 = sadd.s32 %s309, 1
    %s311 = scalar_select %p308, %s309, %s310
    %p314 = pneg %p308
    %p315 = scmp.eq.s32.totalorder %s21, 1
    %p316 = por %p314, %p315
    %p317 = scmp.ne.s32.totalorder %s309, %s312
    %p318 = scmp.eq.s32.totalorder %s21, 0
    %p319 = por %p317, %p318
    %p320 = scmp.ne.s32.totalorder %s309, %s312
    %p321 = scmp.eq.s32.totalorder %s26, 1
    %p322 = por %p320, %p321
    %p323 = scmp.ne.s32.totalorder %s312, %s313
    %p324 = scmp.eq.s32.totalorder %s26, 0
    %p325 = por %p323, %p324
    %p326 = scmp.ne.s32.totalorder %s312, %s313
    %p327 = scmp.eq.s32.totalorder %s27, 1
    %p328 = por %p326, %p327
    %p330 = scmp.ne.s32.totalorder %s313, %s329
    %p331 = scmp.eq.s32.totalorder %s27, 0
    %p332 = por %p330, %p331
    %s333 = ssub.s32 %s21, %s28
    %p334 = scmp.eq.s32.totalorder %s333, 0
    %s336 = sadd.s32 %s335, 1
    %s337 = scalar_select %p334, %s335, %s336
    %p340 = pneg %p334
    %p341 = scmp.eq.s32.totalorder %s21, 1
    %p342 = por %p340, %p341
    %p343 = scmp.ne.s32.totalorder %s335, %s338
    %p344 = scmp.eq.s32.totalorder %s21, 0
    %p345 = por %p343, %p344
    %p346 = scmp.ne.s32.totalorder %s335, %s338
    %p347 = scmp.eq.s32.totalorder %s26, 1
    %p348 = por %p346, %p347
    %p349 = scmp.ne.s32.totalorder %s338, %s339
    %p350 = scmp.eq.s32.totalorder %s26, 0
    %p351 = por %p349, %p350
    %p352 = scmp.ne.s32.totalorder %s338, %s339
    %p353 = scmp.eq.s32.totalorder %s27, 1
    %p354 = por %p352, %p353
    %p356 = scmp.ne.s32.totalorder %s339, %s355
    %p357 = scmp.eq.s32.totalorder %s27, 0
    %p358 = por %p356, %p357
    %p359 = scmp.le.s32.totalorder 1, %s21
    %p360 = scmp.lt.s32.totalorder %s21, 3
    %p361 = pnand %p359, %p360
    %p362 = pneg %p361
    // Predicated region
    $region9: #{_lambda_.1} parent=5 // pred_check
      _
    $region10: #{_lambda_.1} parent=5 // pred_check_branch
      %364 = sbr.rel (%p361) target = $region12
    $region11: #{_lambda_.1} parent=5 // pred_region
      %s365 = ssub.s32 %s21, 1
      // Predicated region
      $region13: #{_lambda_.1} parent=11 // pred_check
        %p366 = pneg %p68
      $region14: #{_lambda_.1} parent=11 // pred_check_branch
        %368 = sbr.rel (%p366) target = $region16
      $region15: #{_lambda_.1} parent=11 // pred_region
        _
      $region16: #{_lambda_.1} parent=11 // pred_fallthru
        _
      // Predicated region
      $region17: #{_lambda_.1} parent=11 // pred_check
        %p369 = pneg %p89
      $region18: #{_lambda_.1} parent=11 // pred_check_branch
        %371 = sbr.rel (%p369) target = $region20
      $region19: #{_lambda_.1} parent=11 // pred_region
        _
      $region20: #{_lambda_.1} parent=11 // pred_fallthru
        _
      // Predicated region
      $region21: #{_lambda_.1} parent=11 // pred_check
        %p372 = pneg %p110
      $region22: #{_lambda_.1} parent=11 // pred_check_branch
        %374 = sbr.rel (%p372) target = $region24
      $region23: #{_lambda_.1} parent=11 // pred_region
        _
      $region24: #{_lambda_.1} parent=11 // pred_fallthru
        _
      // Predicated region
      $region25: #{_lambda_.1} parent=11 // pred_check
        %p375 = pneg %p131
      $region26: #{_lambda_.1} parent=11 // pred_check_branch
        %377 = sbr.rel (%p375) target = $region28
      $region27: #{_lambda_.1} parent=11 // pred_region
        _
      $region28: #{_lambda_.1} parent=11 // pred_fallthru
        _
      // Predicated region
      $region29: #{_lambda_.1} parent=11 // pred_check
        %p378 = pneg %p152
      $region30: #{_lambda_.1} parent=11 // pred_check_branch
        %380 = sbr.rel (%p378) target = $region32
      $region31: #{_lambda_.1} parent=11 // pred_region
        _
      $region32: #{_lambda_.1} parent=11 // pred_fallthru
        _
      // Predicated region
      $region33: #{_lambda_.1} parent=11 // pred_check
        %p381 = pneg %p173
      $region34: #{_lambda_.1} parent=11 // pred_check_branch
        %383 = sbr.rel (%p381) target = $region36
      $region35: #{_lambda_.1} parent=11 // pred_region
        _
      $region36: #{_lambda_.1} parent=11 // pred_fallthru
        _
      // Predicated region
      $region37: #{_lambda_.1} parent=11 // pred_check
        %p384 = pneg %p194
      $region38: #{_lambda_.1} parent=11 // pred_check_branch
        %386 = sbr.rel (%p384) target = $region40
      $region39: #{_lambda_.1} parent=11 // pred_region
        _
      $region40: #{_lambda_.1} parent=11 // pred_fallthru
        _
      // Predicated region
      $region41: #{_lambda_.1} parent=11 // pred_check
        %p387 = pneg %p215
      $region42: #{_lambda_.1} parent=11 // pred_check_branch
        %389 = sbr.rel (%p387) target = $region44
      $region43: #{_lambda_.1} parent=11 // pred_region
        _
      $region44: #{_lambda_.1} parent=11 // pred_fallthru
        _
      // Predicated region
      $region45: #{_lambda_.1} parent=11 // pred_check
        %p390 = pneg %p236
      $region46: #{_lambda_.1} parent=11 // pred_check_branch
        %392 = sbr.rel (%p390) target = $region48
      $region47: #{_lambda_.1} parent=11 // pred_region
        _
      $region48: #{_lambda_.1} parent=11 // pred_fallthru
        _
      // Predicated region
      $region49: #{_lambda_.1} parent=11 // pred_check
        %p393 = pneg %p257
      $region50: #{_lambda_.1} parent=11 // pred_check_branch
        %395 = sbr.rel (%p393) target = $region52
      $region51: #{_lambda_.1} parent=11 // pred_region
        _
      $region52: #{_lambda_.1} parent=11 // pred_fallthru
        _
      // Predicated region
      $region53: #{_lambda_.1} parent=11 // pred_check
        %p396 = pneg %p278
      $region54: #{_lambda_.1} parent=11 // pred_check_branch
        %398 = sbr.rel (%p396) target = $region56
      $region55: #{_lambda_.1} parent=11 // pred_region
        _
      $region56: #{_lambda_.1} parent=11 // pred_fallthru
        _
      // Predicated region
      $region57: #{_lambda_.1} parent=11 // pred_check
        %p399 = pneg %p299
      $region58: #{_lambda_.1} parent=11 // pred_check_branch
        %401 = sbr.rel (%p399) target = $region60
      $region59: #{_lambda_.1} parent=11 // pred_region
        _
      $region60: #{_lambda_.1} parent=11 // pred_fallthru
        _
    $region12: #{_lambda_.1} parent=5 // pred_fallthru
      _
    %p402 = scmp.lt.s32.totalorder %s21, 2
    // Predicated region
    $region61: #{_lambda_.1} parent=5 // pred_check
      %p403 = pneg %p402
    $region62: #{_lambda_.1} parent=5 // pred_check_branch
      %405 = sbr.rel (%p403) target = $region64
    $region63: #{_lambda_.1} parent=5 // pred_region
      // Predicated region
      $region65: #{_lambda_.1} parent=63 // pred_check
        %p406 = pneg %p41
      $region66: #{_lambda_.1} parent=63 // pred_check_branch
        %408 = sbr.rel (%p406) target = $region68
      $region67: #{_lambda_.1} parent=63 // pred_region
        %s409 = smul.u32 32, %s21
        %p410 = scmp.lt.s32.totalorder %s409, 63
        %s411 = scalar_select %p410, %s409, 63
        %s412 = smul.addr %s411, 8
        %s413 = scalar_lea.vmem %s0, %s412
        %s414 = smul.u32 32, %s21
      $region68: #{_lambda_.1} parent=63 // pred_fallthru
        _
    $region64: #{_lambda_.1} parent=5 // pred_fallthru
      _
    %p415 = scmp.le.s32.totalorder 1, %s21
    %p416 = scmp.lt.s32.totalorder %s21, 3
    %p417 = pnand %p415, %p416
    %p418 = pneg %p417
    // Predicated region
    $region69: #{_lambda_.1} parent=5 // pred_check
      _
    $region70: #{_lambda_.1} parent=5 // pred_check_branch
      %420 = sbr.rel (%p417) target = $region72
    $region71: #{_lambda_.1} parent=5 // pred_region
      %s421 = ssub.s32 %s21, 1
      %s422 = smul.u32 32, %s26
      %p423 = scmp.lt.s32.totalorder %s422, 63
      %s424 = scalar_select %p423, %s422, 63
      %s425 = smul.addr %s424, 8
      %s426 = scalar_lea.vmem %s0, %s425
      %p427 = pneg %p47
      %p428 = pneg %p44
      %p429 = pneg %p68
      %p430 = pneg %p65
      %p431 = pneg %p89
      %p432 = pneg %p86
      %p433 = pneg %p110
      %p434 = pneg %p107
      %p435 = pneg %p131
      %p436 = pneg %p128
      %p437 = pneg %p152
      %p438 = pneg %p149
      %p439 = pneg %p173
      %p440 = pneg %p170
      %p441 = pneg %p194
      %p442 = pneg %p191
      %p443 = pneg %p215
      %p444 = pneg %p212
      %p445 = pneg %p236
      %p446 = pneg %p233
      %p447 = pneg %p257
      %p448 = pneg %p254
      %p449 = pneg %p278
      %p450 = pneg %p275
      %p451 = pneg %p299
      %p452 = pneg %p296
      %p453 = pneg %p325
      %p454 = pneg %p322
      %s455 = smul.u32 32, %s26
      %p456 = scmp.lt.s32.totalorder %s455, 63
      %s457 = scalar_select %p456, %s455, 63
      %s458 = smul.addr %s457, 8
      %s459 = scalar_lea.vmem %s13, %s458
      %p460 = pneg %p351
      %p461 = pneg %p348
      %s462 = smul.u32 32, %s26
      %p463 = scmp.lt.s32.totalorder %s462, 63
      %s464 = scalar_select %p463, %s462, 63
      %s465 = smul.addr %s464, 8
      %s466 = scalar_lea.vmem %s14, %s465
      %s467 = smul.u32 32, %s26
      %p468 = scmp.lt.s32.totalorder %s467, 63
      %s469 = scalar_select %p468, %s467, 63
      %s470 = smul.addr %s469, 8
      %s471 = scalar_lea.vmem %s0, %s470
      %s472 = smul.u32 32, %s26
      %s473 = smul.u32 32, %s26
      %p474 = scmp.lt.s32.totalorder %s473, 63
      %s475 = scalar_select %p474, %s473, 63
      %s476 = smul.addr %s475, 8
      %s477 = scalar_lea.vmem %s13, %s476
      %s478 = smul.u32 32, %s26
      %s479 = smul.u32 32, %s26
      %p480 = scmp.lt.s32.totalorder %s479, 63
      %s481 = scalar_select %p480, %s479, 63
      %s482 = smul.addr %s481, 8
      %s483 = scalar_lea.vmem %s14, %s482
      %s484 = smul.u32 32, %s26
      %v485 = vld [vmem:[%s1] sm:$0xf]
      %v486 = vld [vmem:[%s2] sm:$0x1]
      %v487 = vld [vmem:[%s3] sm:$0xf]
      %v488 = vld [vmem:[%s4] sm:$0x1]
      %v489 = vld [vmem:[%s471] sm:$0xff]
      %v490 = vld [vmem:[%s471 + $0x8] sm:$0xff]
      %v491 = vld [vmem:[%s471 + $0x10] sm:$0xff]
      %v492 = vld [vmem:[%s471 + $0x18] sm:$0xff]
      %v493 = vld [vmem:[%s471 + $0x20] sm:$0xff]
      %v494 = vld [vmem:[%s471 + $0x28] sm:$0xff]
      %v495 = vld [vmem:[%s471 + $0x30] sm:$0xff]
      %v496 = vld [vmem:[%s471 + $0x38] sm:$0xff]
      %v497 = vld [vmem:[%s471 + $0x40] sm:$0xff]
      %v498 = vld [vmem:[%s471 + $0x48] sm:$0xff]
      %v499 = vld [vmem:[%s471 + $0x50] sm:$0xff]
      %v500 = vld [vmem:[%s471 + $0x58] sm:$0xff]
      %v501 = vld [vmem:[%s471 + $0x60] sm:$0xff]
      %v502 = vld [vmem:[%s471 + $0x68] sm:$0xff]
      %v503 = vld [vmem:[%s471 + $0x70] sm:$0xff]
      %v504 = vld [vmem:[%s471 + $0x78] sm:$0xff]
      %v505 = vld [vmem:[%s471 + $0x80] sm:$0xff]
      %v506 = vld [vmem:[%s471 + $0x88] sm:$0xff]
      %v507 = vld [vmem:[%s471 + $0x90] sm:$0xff]
      %v508 = vld [vmem:[%s471 + $0x98] sm:$0xff]
      %v509 = vld [vmem:[%s471 + $0xa0] sm:$0xff]
      %v510 = vld [vmem:[%s471 + $0xa8] sm:$0xff]
      %v511 = vld [vmem:[%s471 + $0xb0] sm:$0xff]
      %v512 = vld [vmem:[%s471 + $0xb8] sm:$0xff]
      %v513 = vld [vmem:[%s471 + $0xc0] sm:$0xff]
      %v514 = vld [vmem:[%s471 + $0xc8] sm:$0xff]
      %v515 = vld [vmem:[%s471 + $0xd0] sm:$0xff]
      %v516 = vld [vmem:[%s471 + $0xd8] sm:$0xff]
      %v517 = vld [vmem:[%s471 + $0xe0] sm:$0xff]
      %v518 = vld [vmem:[%s471 + $0xe8] sm:$0xff]
      %v519 = vld [vmem:[%s471 + $0xf0] sm:$0xff]
      %v520 = vld [vmem:[%s471 + $0xf8] sm:$0xff]
      %v522 = vperm.slane %v486, 0
      %vm524 = vcmask 31744
      %v526 = vsel %vm524, %v489, 0
      %v529 = vsel %vm524, %v490, 0
      %v532 = vsel %vm524, %v491, 0
      %v535 = vsel %vm524, %v492, 0
      %v538 = vsel %vm524, %v493, 0
      %v541 = vsel %vm524, %v494, 0
      %v544 = vsel %vm524, %v495, 0
      %v547 = vsel %vm524, %v496, 0
      %v550 = vsel %vm524, %v497, 0
      %v553 = vsel %vm524, %v498, 0
      %v556 = vsel %vm524, %v499, 0
      %v559 = vsel %vm524, %v500, 0
      %v562 = vsel %vm524, %v501, 0
      %v565 = vsel %vm524, %v502, 0
      %v568 = vsel %vm524, %v503, 0
      %v571 = vsel %vm524, %v504, 0
      %v574 = vsel %vm524, %v505, 0
      %v577 = vsel %vm524, %v506, 0
      %v580 = vsel %vm524, %v507, 0
      %v583 = vsel %vm524, %v508, 0
      %v586 = vsel %vm524, %v509, 0
      %v589 = vsel %vm524, %v510, 0
      %v592 = vsel %vm524, %v511, 0
      %v595 = vsel %vm524, %v512, 0
      %v598 = vsel %vm524, %v513, 0
      %v601 = vsel %vm524, %v514, 0
      %v604 = vsel %vm524, %v515, 0
      %v607 = vsel %vm524, %v516, 0
      %v610 = vsel %vm524, %v517, 0
      %v613 = vsel %vm524, %v518, 0
      %v616 = vsel %vm524, %v519, 0
      %v619 = vsel %vm524, %v520, 0
      %vm621 = vcmask 1043456
      %v623 = vsel %vm621, %v485, 0
      %625 = vmatpush.msra.mxu0 0.0
      %626 = vmatpush.msra.mxu0 0.0
      %627 = vmatpush.msra.mxu0 0.0
      %628 = vmatpush.msra.mxu0 0.0
      %629 = vmatpush.msra.mxu0 0.0
      %630 = vmatpush.msra.mxu0 0.0
      %631 = vmatpush.msra.mxu0 0.0
      %632 = vmatpush.msra.mxu0 0.0
      %633 = vmatpush.msra.mxu0 0.0
      %634 = vmatpush.msra.mxu0 0.0
      %635 = vmatpush.msra.mxu0 0.0
      %636 = vmatpush.msra.mxu0 0.0
      %637 = vmatpush.msra.mxu0 0.0
      %638 = vmatpush.msra.mxu0 0.0
      %639 = vmatpush.msra.mxu0 0.0
      %640 = vmatpush.msra.mxu0 %v623
      %641 = vmatmul.f32.gmra.mxu0 %v526
      %v642 = vpop.f32.mrf.mxu0
      %v643 = vadd.f32 %v522, %v642
      %644 = vmatmul.f32.gmra.mxu0 %v529
      %v645 = vpop.f32.mrf.mxu0
      %v646 = vadd.f32 %v522, %v645
      %647 = vmatmul.f32.gmra.mxu0 %v532
      %v648 = vpop.f32.mrf.mxu0
      %v649 = vadd.f32 %v522, %v648
      %650 = vmatmul.f32.gmra.mxu0 %v535
      %v651 = vpop.f32.mrf.mxu0
      %v652 = vadd.f32 %v522, %v651
      %653 = vmatmul.f32.gmra.mxu0 %v538
      %v654 = vpop.f32.mrf.mxu0
      %v655 = vadd.f32 %v522, %v654
      %656 = vmatmul.f32.gmra.mxu0 %v541
      %v657 = vpop.f32.mrf.mxu0
      %v658 = vadd.f32 %v522, %v657
      %659 = vmatmul.f32.gmra.mxu0 %v544
      %v660 = vpop.f32.mrf.mxu0
      %v661 = vadd.f32 %v522, %v660
      %662 = vmatmul.f32.gmra.mxu0 %v547
      %v663 = vpop.f32.mrf.mxu0
      %v664 = vadd.f32 %v522, %v663
      %665 = vmatmul.f32.gmra.mxu0 %v550
      %v666 = vpop.f32.mrf.mxu0
      %v667 = vadd.f32 %v522, %v666
      %668 = vmatmul.f32.gmra.mxu0 %v553
      %v669 = vpop.f32.mrf.mxu0
      %v670 = vadd.f32 %v522, %v669
      %671 = vmatmul.f32.gmra.mxu0 %v556
      %v672 = vpop.f32.mrf.mxu0
      %v673 = vadd.f32 %v522, %v672
      %674 = vmatmul.f32.gmra.mxu0 %v559
      %v675 = vpop.f32.mrf.mxu0
      %v676 = vadd.f32 %v522, %v675
      %677 = vmatmul.f32.gmra.mxu0 %v562
      %v678 = vpop.f32.mrf.mxu0
      %v679 = vadd.f32 %v522, %v678
      %680 = vmatmul.f32.gmra.mxu0 %v565
      %v681 = vpop.f32.mrf.mxu0
      %v682 = vadd.f32 %v522, %v681
      %683 = vmatmul.f32.gmra.mxu0 %v568
      %v684 = vpop.f32.mrf.mxu0
      %v685 = vadd.f32 %v522, %v684
      %686 = vmatmul.f32.gmra.mxu0 %v571
      %v687 = vpop.f32.mrf.mxu0
      %v688 = vadd.f32 %v522, %v687
      %689 = vmatmul.f32.gmra.mxu0 %v574
      %v690 = vpop.f32.mrf.mxu0
      %v691 = vadd.f32 %v522, %v690
      %692 = vmatmul.f32.gmra.mxu0 %v577
      %v693 = vpop.f32.mrf.mxu0
      %v694 = vadd.f32 %v522, %v693
      %695 = vmatmul.f32.gmra.mxu0 %v580
      %v696 = vpop.f32.mrf.mxu0
      %v697 = vadd.f32 %v522, %v696
      %698 = vmatmul.f32.gmra.mxu0 %v583
      %v699 = vpop.f32.mrf.mxu0
      %v700 = vadd.f32 %v522, %v699
      %701 = vmatmul.f32.gmra.mxu0 %v586
      %v702 = vpop.f32.mrf.mxu0
      %v703 = vadd.f32 %v522, %v702
      %704 = vmatmul.f32.gmra.mxu0 %v589
      %v705 = vpop.f32.mrf.mxu0
      %v706 = vadd.f32 %v522, %v705
      %707 = vmatmul.f32.gmra.mxu0 %v592
      %v708 = vpop.f32.mrf.mxu0
      %v709 = vadd.f32 %v522, %v708
      %710 = vmatmul.f32.gmra.mxu0 %v595
      %v711 = vpop.f32.mrf.mxu0
      %v712 = vadd.f32 %v522, %v711
      %713 = vmatmul.f32.gmra.mxu0 %v598
      %v714 = vpop.f32.mrf.mxu0
      %v715 = vadd.f32 %v522, %v714
      %716 = vmatmul.f32.gmra.mxu0 %v601
      %v717 = vpop.f32.mrf.mxu0
      %v718 = vadd.f32 %v522, %v717
      %719 = vmatmul.f32.gmra.mxu0 %v604
      %v720 = vpop.f32.mrf.mxu0
      %v721 = vadd.f32 %v522, %v720
      %722 = vmatmul.f32.gmra.mxu0 %v607
      %v723 = vpop.f32.mrf.mxu0
      %v724 = vadd.f32 %v522, %v723
      %725 = vmatmul.f32.gmra.mxu0 %v610
      %v726 = vpop.f32.mrf.mxu0
      %v727 = vadd.f32 %v522, %v726
      %728 = vmatmul.f32.gmra.mxu0 %v613
      %v729 = vpop.f32.mrf.mxu0
      %v730 = vadd.f32 %v522, %v729
      %731 = vmatmul.f32.gmra.mxu0 %v616
      %v732 = vpop.f32.mrf.mxu0
      %v733 = vadd.f32 %v522, %v732
      %734 = vmatmul.f32.gmra.mxu0 %v619
      %v735 = vpop.f32.mrf.mxu0
      %v736 = vadd.f32 %v522, %v735
      %737 = vdwg.mxu0
      %v738 = vand.u32 2147483647, %v643
      %v739 = vand.u32 2147483647, %v646
      %v740 = vand.u32 2147483647, %v649
      %v741 = vand.u32 2147483647, %v652
      %v742 = vand.u32 2147483647, %v655
      %v743 = vand.u32 2147483647, %v658
      %v744 = vand.u32 2147483647, %v661
      %v745 = vand.u32 2147483647, %v664
      %v746 = vand.u32 2147483647, %v667
      %v747 = vand.u32 2147483647, %v670
      %v748 = vand.u32 2147483647, %v673
      %v749 = vand.u32 2147483647, %v676
      %v750 = vand.u32 2147483647, %v679
      %v751 = vand.u32 2147483647, %v682
      %v752 = vand.u32 2147483647, %v685
      %v753 = vand.u32 2147483647, %v688
      %v754 = vand.u32 2147483647, %v691
      %v755 = vand.u32 2147483647, %v694
      %v756 = vand.u32 2147483647, %v697
      %v757 = vand.u32 2147483647, %v700
      %v758 = vand.u32 2147483647, %v703
      %v759 = vand.u32 2147483647, %v706
      %v760 = vand.u32 2147483647, %v709
      %v761 = vand.u32 2147483647, %v712
      %v762 = vand.u32 2147483647, %v715
      %v763 = vand.u32 2147483647, %v718
      %v764 = vand.u32 2147483647, %v721
      %v765 = vand.u32 2147483647, %v724
      %v766 = vand.u32 2147483647, %v727
      %v767 = vand.u32 2147483647, %v730
      %v768 = vand.u32 2147483647, %v733
      %v769 = vand.u32 2147483647, %v736
      %v770 = vmul.f32 %v738, -2.0
      %v771 = vmul.f32 %v739, -2.0
      %v772 = vmul.f32 %v740, -2.0
      %v773 = vmul.f32 %v741, -2.0
      %v774 = vmul.f32 %v742, -2.0
      %v775 = vmul.f32 %v743, -2.0
      %v776 = vmul.f32 %v744, -2.0
      %v777 = vmul.f32 %v745, -2.0
      %v778 = vmul.f32 %v746, -2.0
      %v779 = vmul.f32 %v747, -2.0
      %v780 = vmul.f32 %v748, -2.0
      %v781 = vmul.f32 %v749, -2.0
      %v782 = vmul.f32 %v750, -2.0
      %v783 = vmul.f32 %v751, -2.0
      %v784 = vmul.f32 %v752, -2.0
      %v785 = vmul.f32 %v753, -2.0
      %v786 = vmul.f32 %v754, -2.0
      %v787 = vmul.f32 %v755, -2.0
      %v788 = vmul.f32 %v756, -2.0
      %v789 = vmul.f32 %v757, -2.0
      %v790 = vmul.f32 %v758, -2.0
      %v791 = vmul.f32 %v759, -2.0
      %v792 = vmul.f32 %v760, -2.0
      %v793 = vmul.f32 %v761, -2.0
      %v794 = vmul.f32 %v762, -2.0
      %v795 = vmul.f32 %v763, -2.0
      %v796 = vmul.f32 %v764, -2.0
      %v797 = vmul.f32 %v765, -2.0
      %v798 = vmul.f32 %v766, -2.0
      %v799 = vmul.f32 %v767, -2.0
      %v800 = vmul.f32 %v768, -2.0
      %v801 = vmul.f32 %v769, -2.0
      %v802 = vmul.f32 %v770, 1.442695
      %v803 = vpow.pop %v802
      %v804 = vmul.f32 %v771, 1.442695
      %v805 = vpow.pop %v804
      %v806 = vmul.f32 %v772, 1.442695
      %v807 = vpow.pop %v806
      %v808 = vmul.f32 %v773, 1.442695
      %v809 = vpow.pop %v808
      %v810 = vmul.f32 %v774, 1.442695
      %v811 = vpow.pop %v810
      %v812 = vmul.f32 %v775, 1.442695
      %v813 = vpow.pop %v812
      %v814 = vmul.f32 %v776, 1.442695
      %v815 = vpow.pop %v814
      %v816 = vmul.f32 %v777, 1.442695
      %v817 = vpow.pop %v816
      %v818 = vmul.f32 %v778, 1.442695
      %v819 = vpow.pop %v818
      %v820 = vmul.f32 %v779, 1.442695
      %v821 = vpow.pop %v820
      %v822 = vmul.f32 %v780, 1.442695
      %v823 = vpow.pop %v822
      %v824 = vmul.f32 %v781, 1.442695
      %v825 = vpow.pop %v824
      %v826 = vmul.f32 %v782, 1.442695
      %v827 = vpow.pop %v826
      %v828 = vmul.f32 %v783, 1.442695
      %v829 = vpow.pop %v828
      %v830 = vmul.f32 %v784, 1.442695
      %v831 = vpow.pop %v830
      %v832 = vmul.f32 %v785, 1.442695
      %v833 = vpow.pop %v832
      %v834 = vmul.f32 %v786, 1.442695
      %v835 = vpow.pop %v834
      %v836 = vmul.f32 %v787, 1.442695
      %v837 = vpow.pop %v836
      %v838 = vmul.f32 %v788, 1.442695
      %v839 = vpow.pop %v838
      %v840 = vmul.f32 %v789, 1.442695
      %v841 = vpow.pop %v840
      %v842 = vmul.f32 %v790, 1.442695
      %v843 = vpow.pop %v842
      %v844 = vmul.f32 %v791, 1.442695
      %v845 = vpow.pop %v844
      %v846 = vmul.f32 %v792, 1.442695
      %v847 = vpow.pop %v846
      %v848 = vmul.f32 %v793, 1.442695
      %v849 = vpow.pop %v848
      %v850 = vmul.f32 %v794, 1.442695
      %v851 = vpow.pop %v850
      %v852 = vmul.f32 %v795, 1.442695
      %v853 = vpow.pop %v852
      %v854 = vmul.f32 %v796, 1.442695
      %v855 = vpow.pop %v854
      %v856 = vmul.f32 %v797, 1.442695
      %v857 = vpow.pop %v856
      %v858 = vmul.f32 %v798, 1.442695
      %v859 = vpow.pop %v858
      %v860 = vmul.f32 %v799, 1.442695
      %v861 = vpow.pop %v860
      %v862 = vmul.f32 %v800, 1.442695
      %v863 = vpow.pop %v862
      %v864 = vmul.f32 %v801, 1.442695
      %v865 = vpow.pop %v864
      %v866 = vadd.f32 %v803, 1.0
      %v867 = vadd.f32 %v805, 1.0
      %v868 = vadd.f32 %v807, 1.0
      %v869 = vadd.f32 %v809, 1.0
      %v870 = vadd.f32 %v811, 1.0
      %v871 = vadd.f32 %v813, 1.0
      %v872 = vadd.f32 %v815, 1.0
      %v873 = vadd.f32 %v817, 1.0
      %v874 = vadd.f32 %v819, 1.0
      %v875 = vadd.f32 %v821, 1.0
      %v876 = vadd.f32 %v823, 1.0
      %v877 = vadd.f32 %v825, 1.0
      %v878 = vadd.f32 %v827, 1.0
      %v879 = vadd.f32 %v829, 1.0
      %v880 = vadd.f32 %v831, 1.0
      %v881 = vadd.f32 %v833, 1.0
      %v882 = vadd.f32 %v835, 1.0
      %v883 = vadd.f32 %v837, 1.0
      %v884 = vadd.f32 %v839, 1.0
      %v885 = vadd.f32 %v841, 1.0
      %v886 = vadd.f32 %v843, 1.0
      %v887 = vadd.f32 %v845, 1.0
      %v888 = vadd.f32 %v847, 1.0
      %v889 = vadd.f32 %v849, 1.0
      %v890 = vadd.f32 %v851, 1.0
      %v891 = vadd.f32 %v853, 1.0
      %v892 = vadd.f32 %v855, 1.0
      %v893 = vadd.f32 %v857, 1.0
      %v894 = vadd.f32 %v859, 1.0
      %v895 = vadd.f32 %v861, 1.0
      %v896 = vadd.f32 %v863, 1.0
      %v897 = vadd.f32 %v865, 1.0
      %v898 = vrcp.pop %v866
      %v899 = vrcp.pop %v867
      %v900 = vrcp.pop %v868
      %v901 = vrcp.pop %v869
      %v902 = vrcp.pop %v870
      %v903 = vrcp.pop %v871
      %v904 = vrcp.pop %v872
      %v905 = vrcp.pop %v873
      %v906 = vrcp.pop %v874
      %v907 = vrcp.pop %v875
      %v908 = vrcp.pop %v876
      %v909 = vrcp.pop %v877
      %v910 = vrcp.pop %v878
      %v911 = vrcp.pop %v879
      %v912 = vrcp.pop %v880
      %v913 = vrcp.pop %v881
      %v914 = vrcp.pop %v882
      %v915 = vrcp.pop %v883
      %v916 = vrcp.pop %v884
      %v917 = vrcp.pop %v885
      %v918 = vrcp.pop %v886
      %v919 = vrcp.pop %v887
      %v920 = vrcp.pop %v888
      %v921 = vrcp.pop %v889
      %v922 = vrcp.pop %v890
      %v923 = vrcp.pop %v891
      %v924 = vrcp.pop %v892
      %v925 = vrcp.pop %v893
      %v926 = vrcp.pop %v894
      %v927 = vrcp.pop %v895
      %v928 = vrcp.pop %v896
      %v929 = vrcp.pop %v897
      %v930 = vmul.f32 %v866, %v898
      %v931 = vmul.f32 %v867, %v899
      %v932 = vmul.f32 %v868, %v900
      %v933 = vmul.f32 %v869, %v901
      %v934 = vmul.f32 %v870, %v902
      %v935 = vmul.f32 %v871, %v903
      %v936 = vmul.f32 %v872, %v904
      %v937 = vmul.f32 %v873, %v905
      %v938 = vmul.f32 %v874, %v906
      %v939 = vmul.f32 %v875, %v907
      %v940 = vmul.f32 %v876, %v908
      %v941 = vmul.f32 %v877, %v909
      %v942 = vmul.f32 %v878, %v910
      %v943 = vmul.f32 %v879, %v911
      %v944 = vmul.f32 %v880, %v912
      %v945 = vmul.f32 %v881, %v913
      %v946 = vmul.f32 %v882, %v914
      %v947 = vmul.f32 %v883, %v915
      %v948 = vmul.f32 %v884, %v916
      %v949 = vmul.f32 %v885, %v917
      %v950 = vmul.f32 %v886, %v918
      %v951 = vmul.f32 %v887, %v919
      %v952 = vmul.f32 %v888, %v920
      %v953 = vmul.f32 %v889, %v921
      %v954 = vmul.f32 %v890, %v922
      %v955 = vmul.f32 %v891, %v923
      %v956 = vmul.f32 %v892, %v924
      %v957 = vmul.f32 %v893, %v925
      %v958 = vmul.f32 %v894, %v926
      %v959 = vmul.f32 %v895, %v927
      %v960 = vmul.f32 %v896, %v928
      %v961 = vmul.f32 %v897, %v929
      %v962 = vsub.f32 2.0, %v930
      %v963 = vsub.f32 2.0, %v931
      %v964 = vsub.f32 2.0, %v932
      %v965 = vsub.f32 2.0, %v933
      %v966 = vsub.f32 2.0, %v934
      %v967 = vsub.f32 2.0, %v935
      %v968 = vsub.f32 2.0, %v936
      %v969 = vsub.f32 2.0, %v937
      %v970 = vsub.f32 2.0, %v938
      %v971 = vsub.f32 2.0, %v939
      %v972 = vsub.f32 2.0, %v940
      %v973 = vsub.f32 2.0, %v941
      %v974 = vsub.f32 2.0, %v942
      %v975 = vsub.f32 2.0, %v943
      %v976 = vsub.f32 2.0, %v944
      %v977 = vsub.f32 2.0, %v945
      %v978 = vsub.f32 2.0, %v946
      %v979 = vsub.f32 2.0, %v947
      %v980 = vsub.f32 2.0, %v948
      %v981 = vsub.f32 2.0, %v949
      %v982 = vsub.f32 2.0, %v950
      %v983 = vsub.f32 2.0, %v951
      %v984 = vsub.f32 2.0, %v952
      %v985 = vsub.f32 2.0, %v953
      %v986 = vsub.f32 2.0, %v954
      %v987 = vsub.f32 2.0, %v955
      %v988 = vsub.f32 2.0, %v956
      %v989 = vsub.f32 2.0, %v957
      %v990 = vsub.f32 2.0, %v958
      %v991 = vsub.f32 2.0, %v959
      %v992 = vsub.f32 2.0, %v960
      %v993 = vsub.f32 2.0, %v961
      %v994 = vmul.f32 %v898, %v962
      %v995 = vmul.f32 %v899, %v963
      %v996 = vmul.f32 %v900, %v964
      %v997 = vmul.f32 %v901, %v965
      %v998 = vmul.f32 %v902, %v966
      %v999 = vmul.f32 %v903, %v967
      %v1000 = vmul.f32 %v904, %v968
      %v1001 = vmul.f32 %v905, %v969
      %v1002 = vmul.f32 %v906, %v970
      %v1003 = vmul.f32 %v907, %v971
      %v1004 = vmul.f32 %v908, %v972
      %v1005 = vmul.f32 %v909, %v973
      %v1006 = vmul.f32 %v910, %v974
      %v1007 = vmul.f32 %v911, %v975
      %v1008 = vmul.f32 %v912, %v976
      %v1009 = vmul.f32 %v913, %v977
      %v1010 = vmul.f32 %v914, %v978
      %v1011 = vmul.f32 %v915, %v979
      %v1012 = vmul.f32 %v916, %v980
      %v1013 = vmul.f32 %v917, %v981
      %v1014 = vmul.f32 %v918, %v982
      %v1015 = vmul.f32 %v919, %v983
      %v1016 = vmul.f32 %v920, %v984
      %v1017 = vmul.f32 %v921, %v985
      %v1018 = vmul.f32 %v922, %v986
      %v1019 = vmul.f32 %v923, %v987
      %v1020 = vmul.f32 %v924, %v988
      %v1021 = vmul.f32 %v925, %v989
      %v1022 = vmul.f32 %v926, %v990
      %v1023 = vmul.f32 %v927, %v991
      %v1024 = vmul.f32 %v928, %v992
      %v1025 = vmul.f32 %v929, %v993
      %vm1026 = vcmp.ge.f32.partialorder %v643, 0.0
      %vm1027 = vcmp.ge.f32.partialorder %v646, 0.0
      %vm1028 = vcmp.ge.f32.partialorder %v649, 0.0
      %vm1029 = vcmp.ge.f32.partialorder %v652, 0.0
      %vm1030 = vcmp.ge.f32.partialorder %v655, 0.0
      %vm1031 = vcmp.ge.f32.partialorder %v658, 0.0
      %vm1032 = vcmp.ge.f32.partialorder %v661, 0.0
      %vm1033 = vcmp.ge.f32.partialorder %v664, 0.0
      %vm1034 = vcmp.ge.f32.partialorder %v667, 0.0
      %vm1035 = vcmp.ge.f32.partialorder %v670, 0.0
      %vm1036 = vcmp.ge.f32.partialorder %v673, 0.0
      %vm1037 = vcmp.ge.f32.partialorder %v676, 0.0
      %vm1038 = vcmp.ge.f32.partialorder %v679, 0.0
      %vm1039 = vcmp.ge.f32.partialorder %v682, 0.0
      %vm1040 = vcmp.ge.f32.partialorder %v685, 0.0
      %vm1041 = vcmp.ge.f32.partialorder %v688, 0.0
      %vm1042 = vcmp.ge.f32.partialorder %v691, 0.0
      %vm1043 = vcmp.ge.f32.partialorder %v694, 0.0
      %vm1044 = vcmp.ge.f32.partialorder %v697, 0.0
      %vm1045 = vcmp.ge.f32.partialorder %v700, 0.0
      %vm1046 = vcmp.ge.f32.partialorder %v703, 0.0
      %vm1047 = vcmp.ge.f32.partialorder %v706, 0.0
      %vm1048 = vcmp.ge.f32.partialorder %v709, 0.0
      %vm1049 = vcmp.ge.f32.partialorder %v712, 0.0
      %vm1050 = vcmp.ge.f32.partialorder %v715, 0.0
      %vm1051 = vcmp.ge.f32.partialorder %v718, 0.0
      %vm1052 = vcmp.ge.f32.partialorder %v721, 0.0
      %vm1053 = vcmp.ge.f32.partialorder %v724, 0.0
      %vm1054 = vcmp.ge.f32.partialorder %v727, 0.0
      %vm1055 = vcmp.ge.f32.partialorder %v730, 0.0
      %vm1056 = vcmp.ge.f32.partialorder %v733, 0.0
      %vm1057 = vcmp.ge.f32.partialorder %v736, 0.0
      %v1058 = vsel %vm1026, 1.0, -1.0
      %v1059 = vsel %vm1027, 1.0, -1.0
      %v1060 = vsel %vm1028, 1.0, -1.0
      %v1061 = vsel %vm1029, 1.0, -1.0
      %v1062 = vsel %vm1030, 1.0, -1.0
      %v1063 = vsel %vm1031, 1.0, -1.0
      %v1064 = vsel %vm1032, 1.0, -1.0
      %v1065 = vsel %vm1033, 1.0, -1.0
      %v1066 = vsel %vm1034, 1.0, -1.0
      %v1067 = vsel %vm1035, 1.0, -1.0
      %v1068 = vsel %vm1036, 1.0, -1.0
      %v1069 = vsel %vm1037, 1.0, -1.0
      %v1070 = vsel %vm1038, 1.0, -1.0
      %v1071 = vsel %vm1039, 1.0, -1.0
      %v1072 = vsel %vm1040, 1.0, -1.0
      %v1073 = vsel %vm1041, 1.0, -1.0
      %v1074 = vsel %vm1042, 1.0, -1.0
      %v1075 = vsel %vm1043, 1.0, -1.0
      %v1076 = vsel %vm1044, 1.0, -1.0
      %v1077 = vsel %vm1045, 1.0, -1.0
      %v1078 = vsel %vm1046, 1.0, -1.0
      %v1079 = vsel %vm1047, 1.0, -1.0
      %v1080 = vsel %vm1048, 1.0, -1.0
      %v1081 = vsel %vm1049, 1.0, -1.0
      %v1082 = vsel %vm1050, 1.0, -1.0
      %v1083 = vsel %vm1051, 1.0, -1.0
      %v1084 = vsel %vm1052, 1.0, -1.0
      %v1085 = vsel %vm1053, 1.0, -1.0
      %v1086 = vsel %vm1054, 1.0, -1.0
      %v1087 = vsel %vm1055, 1.0, -1.0
      %v1088 = vsel %vm1056, 1.0, -1.0
      %v1089 = vsel %vm1057, 1.0, -1.0
      %v1090 = vsub.f32 1.0, %v803
      %v1091 = vsub.f32 1.0, %v805
      %v1092 = vsub.f32 1.0, %v807
      %v1093 = vsub.f32 1.0, %v809
      %v1094 = vsub.f32 1.0, %v811
      %v1095 = vsub.f32 1.0, %v813
      %v1096 = vsub.f32 1.0, %v815
      %v1097 = vsub.f32 1.0, %v817
      %v1098 = vsub.f32 1.0, %v819
      %v1099 = vsub.f32 1.0, %v821
      %v1100 = vsub.f32 1.0, %v823
      %v1101 = vsub.f32 1.0, %v825
      %v1102 = vsub.f32 1.0, %v827
      %v1103 = vsub.f32 1.0, %v829
      %v1104 = vsub.f32 1.0, %v831
      %v1105 = vsub.f32 1.0, %v833
      %v1106 = vsub.f32 1.0, %v835
      %v1107 = vsub.f32 1.0, %v837
      %v1108 = vsub.f32 1.0, %v839
      %v1109 = vsub.f32 1.0, %v841
      %v1110 = vsub.f32 1.0, %v843
      %v1111 = vsub.f32 1.0, %v845
      %v1112 = vsub.f32 1.0, %v847
      %v1113 = vsub.f32 1.0, %v849
      %v1114 = vsub.f32 1.0, %v851
      %v1115 = vsub.f32 1.0, %v853
      %v1116 = vsub.f32 1.0, %v855
      %v1117 = vsub.f32 1.0, %v857
      %v1118 = vsub.f32 1.0, %v859
      %v1119 = vsub.f32 1.0, %v861
      %v1120 = vsub.f32 1.0, %v863
      %v1121 = vsub.f32 1.0, %v865
      %v1122 = vmul.f32 %v1058, %v1090
      %v1123 = vmul.f32 %v1059, %v1091
      %v1124 = vmul.f32 %v1060, %v1092
      %v1125 = vmul.f32 %v1061, %v1093
      %v1126 = vmul.f32 %v1062, %v1094
      %v1127 = vmul.f32 %v1063, %v1095
      %v1128 = vmul.f32 %v1064, %v1096
      %v1129 = vmul.f32 %v1065, %v1097
      %v1130 = vmul.f32 %v1066, %v1098
      %v1131 = vmul.f32 %v1067, %v1099
      %v1132 = vmul.f32 %v1068, %v1100
      %v1133 = vmul.f32 %v1069, %v1101
      %v1134 = vmul.f32 %v1070, %v1102
      %v1135 = vmul.f32 %v1071, %v1103
      %v1136 = vmul.f32 %v1072, %v1104
      %v1137 = vmul.f32 %v1073, %v1105
      %v1138 = vmul.f32 %v1074, %v1106
      %v1139 = vmul.f32 %v1075, %v1107
      %v1140 = vmul.f32 %v1076, %v1108
      %v1141 = vmul.f32 %v1077, %v1109
      %v1142 = vmul.f32 %v1078, %v1110
      %v1143 = vmul.f32 %v1079, %v1111
      %v1144 = vmul.f32 %v1080, %v1112
      %v1145 = vmul.f32 %v1081, %v1113
      %v1146 = vmul.f32 %v1082, %v1114
      %v1147 = vmul.f32 %v1083, %v1115
      %v1148 = vmul.f32 %v1084, %v1116
      %v1149 = vmul.f32 %v1085, %v1117
      %v1150 = vmul.f32 %v1086, %v1118
      %v1151 = vmul.f32 %v1087, %v1119
      %v1152 = vmul.f32 %v1088, %v1120
      %v1153 = vmul.f32 %v1089, %v1121
      %v1154 = vmul.f32 %v1122, %v994
      %v1155 = vmul.f32 %v1123, %v995
      %v1156 = vmul.f32 %v1124, %v996
      %v1157 = vmul.f32 %v1125, %v997
      %v1158 = vmul.f32 %v1126, %v998
      %v1159 = vmul.f32 %v1127, %v999
      %v1160 = vmul.f32 %v1128, %v1000
      %v1161 = vmul.f32 %v1129, %v1001
      %v1162 = vmul.f32 %v1130, %v1002
      %v1163 = vmul.f32 %v1131, %v1003
      %v1164 = vmul.f32 %v1132, %v1004
      %v1165 = vmul.f32 %v1133, %v1005
      %v1166 = vmul.f32 %v1134, %v1006
      %v1167 = vmul.f32 %v1135, %v1007
      %v1168 = vmul.f32 %v1136, %v1008
      %v1169 = vmul.f32 %v1137, %v1009
      %v1170 = vmul.f32 %v1138, %v1010
      %v1171 = vmul.f32 %v1139, %v1011
      %v1172 = vmul.f32 %v1140, %v1012
      %v1173 = vmul.f32 %v1141, %v1013
      %v1174 = vmul.f32 %v1142, %v1014
      %v1175 = vmul.f32 %v1143, %v1015
      %v1176 = vmul.f32 %v1144, %v1016
      %v1177 = vmul.f32 %v1145, %v1017
      %v1178 = vmul.f32 %v1146, %v1018
      %v1179 = vmul.f32 %v1147, %v1019
      %v1180 = vmul.f32 %v1148, %v1020
      %v1181 = vmul.f32 %v1149, %v1021
      %v1182 = vmul.f32 %v1150, %v1022
      %v1183 = vmul.f32 %v1151, %v1023
      %v1184 = vmul.f32 %v1152, %v1024
      %v1185 = vmul.f32 %v1153, %v1025
      %v1186 = vsub.f32 %v738, 0.6931472
      %v1187 = vsub.f32 %v739, 0.6931472
      %v1188 = vsub.f32 %v740, 0.6931472
      %v1189 = vsub.f32 %v741, 0.6931472
      %v1190 = vsub.f32 %v742, 0.6931472
      %v1191 = vsub.f32 %v743, 0.6931472
      %v1192 = vsub.f32 %v744, 0.6931472
      %v1193 = vsub.f32 %v745, 0.6931472
      %v1194 = vsub.f32 %v746, 0.6931472
      %v1195 = vsub.f32 %v747, 0.6931472
      %v1196 = vsub.f32 %v748, 0.6931472
      %v1197 = vsub.f32 %v749, 0.6931472
      %v1198 = vsub.f32 %v750, 0.6931472
      %v1199 = vsub.f32 %v751, 0.6931472
      %v1200 = vsub.f32 %v752, 0.6931472
      %v1201 = vsub.f32 %v753, 0.6931472
      %v1202 = vsub.f32 %v754, 0.6931472
      %v1203 = vsub.f32 %v755, 0.6931472
      %v1204 = vsub.f32 %v756, 0.6931472
      %v1205 = vsub.f32 %v757, 0.6931472
      %v1206 = vsub.f32 %v758, 0.6931472
      %v1207 = vsub.f32 %v759, 0.6931472
      %v1208 = vsub.f32 %v760, 0.6931472
      %v1209 = vsub.f32 %v761, 0.6931472
      %v1210 = vsub.f32 %v762, 0.6931472
      %v1211 = vsub.f32 %v763, 0.6931472
      %v1212 = vsub.f32 %v764, 0.6931472
      %v1213 = vsub.f32 %v765, 0.6931472
      %v1214 = vsub.f32 %v766, 0.6931472
      %v1215 = vsub.f32 %v767, 0.6931472
      %v1216 = vsub.f32 %v768, 0.6931472
      %v1217 = vsub.f32 %v769, 0.6931472
      %v1218 = vadd.f32 %v803, 1.0
      %v1219 = vlog2.pop %v1218
      %v1220 = vmul.f32 %v1219, 0.6931472
      %v1221 = vmul.f32 -0.5, %v803
      %v1222 = vadd.f32 %v1221, 1.0
      %v1223 = vmul.f32 %v1222, %v803
      %v1224 = vand.u32 2147483647, %v803
      %vm1225 = vcmp.lt.f32.partialorder %v1224, 0.0004427343
      %v1226 = vsel %vm1225, %v1223, %v1220
      %v1227 = vadd.f32 %v805, 1.0
      %v1228 = vlog2.pop %v1227
      %v1229 = vmul.f32 %v1228, 0.6931472
      %v1230 = vmul.f32 -0.5, %v805
      %v1231 = vadd.f32 %v1230, 1.0
      %v1232 = vmul.f32 %v1231, %v805
      %v1233 = vand.u32 2147483647, %v805
      %vm1234 = vcmp.lt.f32.partialorder %v1233, 0.0004427343
      %v1235 = vsel %vm1234, %v1232, %v1229
      %v1236 = vadd.f32 %v807, 1.0
      %v1237 = vlog2.pop %v1236
      %v1238 = vmul.f32 %v1237, 0.6931472
      %v1239 = vmul.f32 -0.5, %v807
      %v1240 = vadd.f32 %v1239, 1.0
      %v1241 = vmul.f32 %v1240, %v807
      %v1242 = vand.u32 2147483647, %v807
      %vm1243 = vcmp.lt.f32.partialorder %v1242, 0.0004427343
      %v1244 = vsel %vm1243, %v1241, %v1238
      %v1245 = vadd.f32 %v809, 1.0
      %v1246 = vlog2.pop %v1245
      %v1247 = vmul.f32 %v1246, 0.6931472
      %v1248 = vmul.f32 -0.5, %v809
      %v1249 = vadd.f32 %v1248, 1.0
      %v1250 = vmul.f32 %v1249, %v809
      %v1251 = vand.u32 2147483647, %v809
      %vm1252 = vcmp.lt.f32.partialorder %v1251, 0.0004427343
      %v1253 = vsel %vm1252, %v1250, %v1247
      %v1254 = vadd.f32 %v811, 1.0
      %v1255 = vlog2.pop %v1254
      %v1256 = vmul.f32 %v1255, 0.6931472
      %v1257 = vmul.f32 -0.5, %v811
      %v1258 = vadd.f32 %v1257, 1.0
      %v1259 = vmul.f32 %v1258, %v811
      %v1260 = vand.u32 2147483647, %v811
      %vm1261 = vcmp.lt.f32.partialorder %v1260, 0.0004427343
      %v1262 = vsel %vm1261, %v1259, %v1256
      %v1263 = vadd.f32 %v813, 1.0
      %v1264 = vlog2.pop %v1263
      %v1265 = vmul.f32 %v1264, 0.6931472
      %v1266 = vmul.f32 -0.5, %v813
      %v1267 = vadd.f32 %v1266, 1.0
      %v1268 = vmul.f32 %v1267, %v813
      %v1269 = vand.u32 2147483647, %v813
      %vm1270 = vcmp.lt.f32.partialorder %v1269, 0.0004427343
      %v1271 = vsel %vm1270, %v1268, %v1265
      %v1272 = vadd.f32 %v815, 1.0
      %v1273 = vlog2.pop %v1272
      %v1274 = vmul.f32 %v1273, 0.6931472
      %v1275 = vmul.f32 -0.5, %v815
      %v1276 = vadd.f32 %v1275, 1.0
      %v1277 = vmul.f32 %v1276, %v815
      %v1278 = vand.u32 2147483647, %v815
      %vm1279 = vcmp.lt.f32.partialorder %v1278, 0.0004427343
      %v1280 = vsel %vm1279, %v1277, %v1274
      %v1281 = vadd.f32 %v817, 1.0
      %v1282 = vlog2.pop %v1281
      %v1283 = vmul.f32 %v1282, 0.6931472
      %v1284 = vmul.f32 -0.5, %v817
      %v1285 = vadd.f32 %v1284, 1.0
      %v1286 = vmul.f32 %v1285, %v817
      %v1287 = vand.u32 2147483647, %v817
      %vm1288 = vcmp.lt.f32.partialorder %v1287, 0.0004427343
      %v1289 = vsel %vm1288, %v1286, %v1283
      %v1290 = vadd.f32 %v819, 1.0
      %v1291 = vlog2.pop %v1290
      %v1292 = vmul.f32 %v1291, 0.6931472
      %v1293 = vmul.f32 -0.5, %v819
      %v1294 = vadd.f32 %v1293, 1.0
      %v1295 = vmul.f32 %v1294, %v819
      %v1296 = vand.u32 2147483647, %v819
      %vm1297 = vcmp.lt.f32.partialorder %v1296, 0.0004427343
      %v1298 = vsel %vm1297, %v1295, %v1292
      %v1299 = vadd.f32 %v821, 1.0
      %v1300 = vlog2.pop %v1299
      %v1301 = vmul.f32 %v1300, 0.6931472
      %v1302 = vmul.f32 -0.5, %v821
      %v1303 = vadd.f32 %v1302, 1.0
      %v1304 = vmul.f32 %v1303, %v821
      %v1305 = vand.u32 2147483647, %v821
      %vm1306 = vcmp.lt.f32.partialorder %v1305, 0.0004427343
      %v1307 = vsel %vm1306, %v1304, %v1301
      %v1308 = vadd.f32 %v823, 1.0
      %v1309 = vlog2.pop %v1308
      %v1310 = vmul.f32 %v1309, 0.6931472
      %v1311 = vmul.f32 -0.5, %v823
      %v1312 = vadd.f32 %v1311, 1.0
      %v1313 = vmul.f32 %v1312, %v823
      %v1314 = vand.u32 2147483647, %v823
      %vm1315 = vcmp.lt.f32.partialorder %v1314, 0.0004427343
      %v1316 = vsel %vm1315, %v1313, %v1310
      %v1317 = vadd.f32 %v825, 1.0
      %v1318 = vlog2.pop %v1317
      %v1319 = vmul.f32 %v1318, 0.6931472
      %v1320 = vmul.f32 -0.5, %v825
      %v1321 = vadd.f32 %v1320, 1.0
      %v1322 = vmul.f32 %v1321, %v825
      %v1323 = vand.u32 2147483647, %v825
      %vm1324 = vcmp.lt.f32.partialorder %v1323, 0.0004427343
      %v1325 = vsel %vm1324, %v1322, %v1319
      %v1326 = vadd.f32 %v827, 1.0
      %v1327 = vlog2.pop %v1326
      %v1328 = vmul.f32 %v1327, 0.6931472
      %v1329 = vmul.f32 -0.5, %v827
      %v1330 = vadd.f32 %v1329, 1.0
      %v1331 = vmul.f32 %v1330, %v827
      %v1332 = vand.u32 2147483647, %v827
      %vm1333 = vcmp.lt.f32.partialorder %v1332, 0.0004427343
      %v1334 = vsel %vm1333, %v1331, %v1328
      %v1335 = vadd.f32 %v829, 1.0
      %v1336 = vlog2.pop %v1335
      %v1337 = vmul.f32 %v1336, 0.6931472
      %v1338 = vmul.f32 -0.5, %v829
      %v1339 = vadd.f32 %v1338, 1.0
      %v1340 = vmul.f32 %v1339, %v829
      %v1341 = vand.u32 2147483647, %v829
      %vm1342 = vcmp.lt.f32.partialorder %v1341, 0.0004427343
      %v1343 = vsel %vm1342, %v1340, %v1337
      %v1344 = vadd.f32 %v831, 1.0
      %v1345 = vlog2.pop %v1344
      %v1346 = vmul.f32 %v1345, 0.6931472
      %v1347 = vmul.f32 -0.5, %v831
      %v1348 = vadd.f32 %v1347, 1.0
      %v1349 = vmul.f32 %v1348, %v831
      %v1350 = vand.u32 2147483647, %v831
      %vm1351 = vcmp.lt.f32.partialorder %v1350, 0.0004427343
      %v1352 = vsel %vm1351, %v1349, %v1346
      %v1353 = vadd.f32 %v833, 1.0
      %v1354 = vlog2.pop %v1353
      %v1355 = vmul.f32 %v1354, 0.6931472
      %v1356 = vmul.f32 -0.5, %v833
      %v1357 = vadd.f32 %v1356, 1.0
      %v1358 = vmul.f32 %v1357, %v833
      %v1359 = vand.u32 2147483647, %v833
      %vm1360 = vcmp.lt.f32.partialorder %v1359, 0.0004427343
      %v1361 = vsel %vm1360, %v1358, %v1355
      %v1362 = vadd.f32 %v835, 1.0
      %v1363 = vlog2.pop %v1362
      %v1364 = vmul.f32 %v1363, 0.6931472
      %v1365 = vmul.f32 -0.5, %v835
      %v1366 = vadd.f32 %v1365, 1.0
      %v1367 = vmul.f32 %v1366, %v835
      %v1368 = vand.u32 2147483647, %v835
      %vm1369 = vcmp.lt.f32.partialorder %v1368, 0.0004427343
      %v1370 = vsel %vm1369, %v1367, %v1364
      %v1371 = vadd.f32 %v837, 1.0
      %v1372 = vlog2.pop %v1371
      %v1373 = vmul.f32 %v1372, 0.6931472
      %v1374 = vmul.f32 -0.5, %v837
      %v1375 = vadd.f32 %v1374, 1.0
      %v1376 = vmul.f32 %v1375, %v837
      %v1377 = vand.u32 2147483647, %v837
      %vm1378 = vcmp.lt.f32.partialorder %v1377, 0.0004427343
      %v1379 = vsel %vm1378, %v1376, %v1373
      %v1380 = vadd.f32 %v839, 1.0
      %v1381 = vlog2.pop %v1380
      %v1382 = vmul.f32 %v1381, 0.6931472
      %v1383 = vmul.f32 -0.5, %v839
      %v1384 = vadd.f32 %v1383, 1.0
      %v1385 = vmul.f32 %v1384, %v839
      %v1386 = vand.u32 2147483647, %v839
      %vm1387 = vcmp.lt.f32.partialorder %v1386, 0.0004427343
      %v1388 = vsel %vm1387, %v1385, %v1382
      %v1389 = vadd.f32 %v841, 1.0
      %v1390 = vlog2.pop %v1389
      %v1391 = vmul.f32 %v1390, 0.6931472
      %v1392 = vmul.f32 -0.5, %v841
      %v1393 = vadd.f32 %v1392, 1.0
      %v1394 = vmul.f32 %v1393, %v841
      %v1395 = vand.u32 2147483647, %v841
      %vm1396 = vcmp.lt.f32.partialorder %v1395, 0.0004427343
      %v1397 = vsel %vm1396, %v1394, %v1391
      %v1398 = vadd.f32 %v843, 1.0
      %v1399 = vlog2.pop %v1398
      %v1400 = vmul.f32 %v1399, 0.6931472
      %v1401 = vmul.f32 -0.5, %v843
      %v1402 = vadd.f32 %v1401, 1.0
      %v1403 = vmul.f32 %v1402, %v843
      %v1404 = vand.u32 2147483647, %v843
      %vm1405 = vcmp.lt.f32.partialorder %v1404, 0.0004427343
      %v1406 = vsel %vm1405, %v1403, %v1400
      %v1407 = vadd.f32 %v845, 1.0
      %v1408 = vlog2.pop %v1407
      %v1409 = vmul.f32 %v1408, 0.6931472
      %v1410 = vmul.f32 -0.5, %v845
      %v1411 = vadd.f32 %v1410, 1.0
      %v1412 = vmul.f32 %v1411, %v845
      %v1413 = vand.u32 2147483647, %v845
      %vm1414 = vcmp.lt.f32.partialorder %v1413, 0.0004427343
      %v1415 = vsel %vm1414, %v1412, %v1409
      %v1416 = vadd.f32 %v847, 1.0
      %v1417 = vlog2.pop %v1416
      %v1418 = vmul.f32 %v1417, 0.6931472
      %v1419 = vmul.f32 -0.5, %v847
      %v1420 = vadd.f32 %v1419, 1.0
      %v1421 = vmul.f32 %v1420, %v847
      %v1422 = vand.u32 2147483647, %v847
      %vm1423 = vcmp.lt.f32.partialorder %v1422, 0.0004427343
      %v1424 = vsel %vm1423, %v1421, %v1418
      %v1425 = vadd.f32 %v849, 1.0
      %v1426 = vlog2.pop %v1425
      %v1427 = vmul.f32 %v1426, 0.6931472
      %v1428 = vmul.f32 -0.5, %v849
      %v1429 = vadd.f32 %v1428, 1.0
      %v1430 = vmul.f32 %v1429, %v849
      %v1431 = vand.u32 2147483647, %v849
      %vm1432 = vcmp.lt.f32.partialorder %v1431, 0.0004427343
      %v1433 = vsel %vm1432, %v1430, %v1427
      %v1434 = vadd.f32 %v851, 1.0
      %v1435 = vlog2.pop %v1434
      %v1436 = vmul.f32 %v1435, 0.6931472
      %v1437 = vmul.f32 -0.5, %v851
      %v1438 = vadd.f32 %v1437, 1.0
      %v1439 = vmul.f32 %v1438, %v851
      %v1440 = vand.u32 2147483647, %v851
      %vm1441 = vcmp.lt.f32.partialorder %v1440, 0.0004427343
      %v1442 = vsel %vm1441, %v1439, %v1436
      %v1443 = vadd.f32 %v853, 1.0
      %v1444 = vlog2.pop %v1443
      %v1445 = vmul.f32 %v1444, 0.6931472
      %v1446 = vmul.f32 -0.5, %v853
      %v1447 = vadd.f32 %v1446, 1.0
      %v1448 = vmul.f32 %v1447, %v853
      %v1449 = vand.u32 2147483647, %v853
      %vm1450 = vcmp.lt.f32.partialorder %v1449, 0.0004427343
      %v1451 = vsel %vm1450, %v1448, %v1445
      %v1452 = vadd.f32 %v855, 1.0
      %v1453 = vlog2.pop %v1452
      %v1454 = vmul.f32 %v1453, 0.6931472
      %v1455 = vmul.f32 -0.5, %v855
      %v1456 = vadd.f32 %v1455, 1.0
      %v1457 = vmul.f32 %v1456, %v855
      %v1458 = vand.u32 2147483647, %v855
      %vm1459 = vcmp.lt.f32.partialorder %v1458, 0.0004427343
      %v1460 = vsel %vm1459, %v1457, %v1454
      %v1461 = vadd.f32 %v857, 1.0
      %v1462 = vlog2.pop %v1461
      %v1463 = vmul.f32 %v1462, 0.6931472
      %v1464 = vmul.f32 -0.5, %v857
      %v1465 = vadd.f32 %v1464, 1.0
      %v1466 = vmul.f32 %v1465, %v857
      %v1467 = vand.u32 2147483647, %v857
      %vm1468 = vcmp.lt.f32.partialorder %v1467, 0.0004427343
      %v1469 = vsel %vm1468, %v1466, %v1463
      %v1470 = vadd.f32 %v859, 1.0
      %v1471 = vlog2.pop %v1470
      %v1472 = vmul.f32 %v1471, 0.6931472
      %v1473 = vmul.f32 -0.5, %v859
      %v1474 = vadd.f32 %v1473, 1.0
      %v1475 = vmul.f32 %v1474, %v859
      %v1476 = vand.u32 2147483647, %v859
      %vm1477 = vcmp.lt.f32.partialorder %v1476, 0.0004427343
      %v1478 = vsel %vm1477, %v1475, %v1472
      %v1479 = vadd.f32 %v861, 1.0
      %v1480 = vlog2.pop %v1479
      %v1481 = vmul.f32 %v1480, 0.6931472
      %v1482 = vmul.f32 -0.5, %v861
      %v1483 = vadd.f32 %v1482, 1.0
      %v1484 = vmul.f32 %v1483, %v861
      %v1485 = vand.u32 2147483647, %v861
      %vm1486 = vcmp.lt.f32.partialorder %v1485, 0.0004427343
      %v1487 = vsel %vm1486, %v1484, %v1481
      %v1488 = vadd.f32 %v863, 1.0
      %v1489 = vlog2.pop %v1488
      %v1490 = vmul.f32 %v1489, 0.6931472
      %v1491 = vmul.f32 -0.5, %v863
      %v1492 = vadd.f32 %v1491, 1.0
      %v1493 = vmul.f32 %v1492, %v863
      %v1494 = vand.u32 2147483647, %v863
      %vm1495 = vcmp.lt.f32.partialorder %v1494, 0.0004427343
      %v1496 = vsel %vm1495, %v1493, %v1490
      %v1497 = vadd.f32 %v865, 1.0
      %v1498 = vlog2.pop %v1497
      %v1499 = vmul.f32 %v1498, 0.6931472
      %v1500 = vmul.f32 -0.5, %v865
      %v1501 = vadd.f32 %v1500, 1.0
      %v1502 = vmul.f32 %v1501, %v865
      %v1503 = vand.u32 2147483647, %v865
      %vm1504 = vcmp.lt.f32.partialorder %v1503, 0.0004427343
      %v1505 = vsel %vm1504, %v1502, %v1499
      %v1506 = vadd.f32 %v1186, %v1226
      %v1507 = vadd.f32 %v1187, %v1235
      %v1508 = vadd.f32 %v1188, %v1244
      %v1509 = vadd.f32 %v1189, %v1253
      %v1510 = vadd.f32 %v1190, %v1262
      %v1511 = vadd.f32 %v1191, %v1271
      %v1512 = vadd.f32 %v1192, %v1280
      %v1513 = vadd.f32 %v1193, %v1289
      %v1514 = vadd.f32 %v1194, %v1298
      %v1515 = vadd.f32 %v1195, %v1307
      %v1516 = vadd.f32 %v1196, %v1316
      %v1517 = vadd.f32 %v1197, %v1325
      %v1518 = vadd.f32 %v1198, %v1334
      %v1519 = vadd.f32 %v1199, %v1343
      %v1520 = vadd.f32 %v1200, %v1352
      %v1521 = vadd.f32 %v1201, %v1361
      %v1522 = vadd.f32 %v1202, %v1370
      %v1523 = vadd.f32 %v1203, %v1379
      %v1524 = vadd.f32 %v1204, %v1388
      %v1525 = vadd.f32 %v1205, %v1397
      %v1526 = vadd.f32 %v1206, %v1406
      %v1527 = vadd.f32 %v1207, %v1415
      %v1528 = vadd.f32 %v1208, %v1424
      %v1529 = vadd.f32 %v1209, %v1433
      %v1530 = vadd.f32 %v1210, %v1442
      %v1531 = vadd.f32 %v1211, %v1451
      %v1532 = vadd.f32 %v1212, %v1460
      %v1533 = vadd.f32 %v1213, %v1469
      %v1534 = vadd.f32 %v1214, %v1478
      %v1535 = vadd.f32 %v1215, %v1487
      %v1536 = vadd.f32 %v1216, %v1496
      %v1537 = vadd.f32 %v1217, %v1505
      %v1538 = vmul.f32 %v1506, -2.0
      %v1539 = vmul.f32 %v1507, -2.0
      %v1540 = vmul.f32 %v1508, -2.0
      %v1541 = vmul.f32 %v1509, -2.0
      %v1542 = vmul.f32 %v1510, -2.0
      %v1543 = vmul.f32 %v1511, -2.0
      %v1544 = vmul.f32 %v1512, -2.0
      %v1545 = vmul.f32 %v1513, -2.0
      %v1546 = vmul.f32 %v1514, -2.0
      %v1547 = vmul.f32 %v1515, -2.0
      %v1548 = vmul.f32 %v1516, -2.0
      %v1549 = vmul.f32 %v1517, -2.0
      %v1550 = vmul.f32 %v1518, -2.0
      %v1551 = vmul.f32 %v1519, -2.0
      %v1552 = vmul.f32 %v1520, -2.0
      %v1553 = vmul.f32 %v1521, -2.0
      %v1554 = vmul.f32 %v1522, -2.0
      %v1555 = vmul.f32 %v1523, -2.0
      %v1556 = vmul.f32 %v1524, -2.0
      %v1557 = vmul.f32 %v1525, -2.0
      %v1558 = vmul.f32 %v1526, -2.0
      %v1559 = vmul.f32 %v1527, -2.0
      %v1560 = vmul.f32 %v1528, -2.0
      %v1561 = vmul.f32 %v1529, -2.0
      %v1562 = vmul.f32 %v1530, -2.0
      %v1563 = vmul.f32 %v1531, -2.0
      %v1564 = vmul.f32 %v1532, -2.0
      %v1565 = vmul.f32 %v1533, -2.0
      %v1566 = vmul.f32 %v1534, -2.0
      %v1567 = vmul.f32 %v1535, -2.0
      %v1568 = vmul.f32 %v1536, -2.0
      %v1569 = vmul.f32 %v1537, -2.0
      %v1571 = vsel %vm524, 1.0, 0
      %v1574 = vsel %vm621, %v487, 0
      %1576 = vmatpush.msra.mxu0 0.0
      %1577 = vmatpush.msra.mxu0 0.0
      %1578 = vmatpush.msra.mxu0 0.0
      %1579 = vmatpush.msra.mxu0 0.0
      %1580 = vmatpush.msra.mxu0 0.0
      %1581 = vmatpush.msra.mxu0 0.0
      %1582 = vmatpush.msra.mxu0 0.0
      %1583 = vmatpush.msra.mxu0 0.0
      %1584 = vmatpush.msra.mxu0 0.0
      %1585 = vmatpush.msra.mxu0 0.0
      %1586 = vmatpush.msra.mxu0 0.0
      %1587 = vmatpush.msra.mxu0 0.0
      %1588 = vmatpush.msra.mxu0 0.0
      %1589 = vmatpush.msra.mxu0 0.0
      %1590 = vmatpush.msra.mxu0 0.0
      %1591 = vmatpush.msra.mxu0 %v1574
      %1592 = vmatmul.f32.gmra.mxu0 %v1571
      %v1593 = vpop.f32.mrf.mxu0
      %v1594 = vadd.f32 0.0, %v1593
      %1595 = vmatmul.f32.gmra.mxu0 %v1571
      %v1596 = vpop.f32.mrf.mxu0
      %v1597 = vadd.f32 0.0, %v1596
      %1598 = vmatmul.f32.gmra.mxu0 %v1571
      %v1599 = vpop.f32.mrf.mxu0
      %v1600 = vadd.f32 0.0, %v1599
      %1601 = vmatmul.f32.gmra.mxu0 %v1571
      %v1602 = vpop.f32.mrf.mxu0
      %v1603 = vadd.f32 0.0, %v1602
      %1604 = vmatmul.f32.gmra.mxu0 %v1571
      %v1605 = vpop.f32.mrf.mxu0
      %v1606 = vadd.f32 0.0, %v1605
      %1607 = vmatmul.f32.gmra.mxu0 %v1571
      %v1608 = vpop.f32.mrf.mxu0
      %v1609 = vadd.f32 0.0, %v1608
      %1610 = vmatmul.f32.gmra.mxu0 %v1571
      %v1611 = vpop.f32.mrf.mxu0
      %v1612 = vadd.f32 0.0, %v1611
      %1613 = vmatmul.f32.gmra.mxu0 %v1571
      %v1614 = vpop.f32.mrf.mxu0
      %v1615 = vadd.f32 0.0, %v1614
      %1616 = vmatmul.f32.gmra.mxu0 %v1571
      %v1617 = vpop.f32.mrf.mxu0
      %v1618 = vadd.f32 0.0, %v1617
      %1619 = vmatmul.f32.gmra.mxu0 %v1571
      %v1620 = vpop.f32.mrf.mxu0
      %v1621 = vadd.f32 0.0, %v1620
      %1622 = vmatmul.f32.gmra.mxu0 %v1571
      %v1623 = vpop.f32.mrf.mxu0
      %v1624 = vadd.f32 0.0, %v1623
      %1625 = vmatmul.f32.gmra.mxu0 %v1571
      %v1626 = vpop.f32.mrf.mxu0
      %v1627 = vadd.f32 0.0, %v1626
      %1628 = vmatmul.f32.gmra.mxu0 %v1571
      %v1629 = vpop.f32.mrf.mxu0
      %v1630 = vadd.f32 0.0, %v1629
      %1631 = vmatmul.f32.gmra.mxu0 %v1571
      %v1632 = vpop.f32.mrf.mxu0
      %v1633 = vadd.f32 0.0, %v1632
      %1634 = vmatmul.f32.gmra.mxu0 %v1571
      %v1635 = vpop.f32.mrf.mxu0
      %v1636 = vadd.f32 0.0, %v1635
      %1637 = vmatmul.f32.gmra.mxu0 %v1571
      %v1638 = vpop.f32.mrf.mxu0
      %v1639 = vadd.f32 0.0, %v1638
      %1640 = vmatmul.f32.gmra.mxu0 %v1571
      %v1641 = vpop.f32.mrf.mxu0
      %v1642 = vadd.f32 0.0, %v1641
      %1643 = vmatmul.f32.gmra.mxu0 %v1571
      %v1644 = vpop.f32.mrf.mxu0
      %v1645 = vadd.f32 0.0, %v1644
      %1646 = vmatmul.f32.gmra.mxu0 %v1571
      %v1647 = vpop.f32.mrf.mxu0
      %v1648 = vadd.f32 0.0, %v1647
      %1649 = vmatmul.f32.gmra.mxu0 %v1571
      %v1650 = vpop.f32.mrf.mxu0
      %v1651 = vadd.f32 0.0, %v1650
      %1652 = vmatmul.f32.gmra.mxu0 %v1571
      %v1653 = vpop.f32.mrf.mxu0
      %v1654 = vadd.f32 0.0, %v1653
      %1655 = vmatmul.f32.gmra.mxu0 %v1571
      %v1656 = vpop.f32.mrf.mxu0
      %v1657 = vadd.f32 0.0, %v1656
      %1658 = vmatmul.f32.gmra.mxu0 %v1571
      %v1659 = vpop.f32.mrf.mxu0
      %v1660 = vadd.f32 0.0, %v1659
      %1661 = vmatmul.f32.gmra.mxu0 %v1571
      %v1662 = vpop.f32.mrf.mxu0
      %v1663 = vadd.f32 0.0, %v1662
      %1664 = vmatmul.f32.gmra.mxu0 %v1571
      %v1665 = vpop.f32.mrf.mxu0
      %v1666 = vadd.f32 0.0, %v1665
      %1667 = vmatmul.f32.gmra.mxu0 %v1571
      %v1668 = vpop.f32.mrf.mxu0
      %v1669 = vadd.f32 0.0, %v1668
      %1670 = vmatmul.f32.gmra.mxu0 %v1571
      %v1671 = vpop.f32.mrf.mxu0
      %v1672 = vadd.f32 0.0, %v1671
      %1673 = vmatmul.f32.gmra.mxu0 %v1571
      %v1674 = vpop.f32.mrf.mxu0
      %v1675 = vadd.f32 0.0, %v1674
      %1676 = vmatmul.f32.gmra.mxu0 %v1571
      %v1677 = vpop.f32.mrf.mxu0
      %v1678 = vadd.f32 0.0, %v1677
      %1679 = vmatmul.f32.gmra.mxu0 %v1571
      %v1680 = vpop.f32.mrf.mxu0
      %v1681 = vadd.f32 0.0, %v1680
      %1682 = vmatmul.f32.gmra.mxu0 %v1571
      %v1683 = vpop.f32.mrf.mxu0
      %v1684 = vadd.f32 0.0, %v1683
      %1685 = vmatmul.f32.gmra.mxu0 %v1571
      %v1686 = vpop.f32.mrf.mxu0
      %v1687 = vadd.f32 0.0, %v1686
      %1688 = vdwg.mxu0
      %v1689 = vlog2.pop %v1594
      %v1690 = vmul.f32 %v1689, 0.6931472
      %v1691 = vlog2.pop %v1597
      %v1692 = vmul.f32 %v1691, 0.6931472
      %v1693 = vlog2.pop %v1600
      %v1694 = vmul.f32 %v1693, 0.6931472
      %v1695 = vlog2.pop %v1603
      %v1696 = vmul.f32 %v1695, 0.6931472
      %v1697 = vlog2.pop %v1606
      %v1698 = vmul.f32 %v1697, 0.6931472
      %v1699 = vlog2.pop %v1609
      %v1700 = vmul.f32 %v1699, 0.6931472
      %v1701 = vlog2.pop %v1612
      %v1702 = vmul.f32 %v1701, 0.6931472
      %v1703 = vlog2.pop %v1615
      %v1704 = vmul.f32 %v1703, 0.6931472
      %v1705 = vlog2.pop %v1618
      %v1706 = vmul.f32 %v1705, 0.6931472
      %v1707 = vlog2.pop %v1621
      %v1708 = vmul.f32 %v1707, 0.6931472
      %v1709 = vlog2.pop %v1624
      %v1710 = vmul.f32 %v1709, 0.6931472
      %v1711 = vlog2.pop %v1627
      %v1712 = vmul.f32 %v1711, 0.6931472
      %v1713 = vlog2.pop %v1630
      %v1714 = vmul.f32 %v1713, 0.6931472
      %v1715 = vlog2.pop %v1633
      %v1716 = vmul.f32 %v1715, 0.6931472
      %v1717 = vlog2.pop %v1636
      %v1718 = vmul.f32 %v1717, 0.6931472
      %v1719 = vlog2.pop %v1639
      %v1720 = vmul.f32 %v1719, 0.6931472
      %v1721 = vlog2.pop %v1642
      %v1722 = vmul.f32 %v1721, 0.6931472
      %v1723 = vlog2.pop %v1645
      %v1724 = vmul.f32 %v1723, 0.6931472
      %v1725 = vlog2.pop %v1648
      %v1726 = vmul.f32 %v1725, 0.6931472
      %v1727 = vlog2.pop %v1651
      %v1728 = vmul.f32 %v1727, 0.6931472
      %v1729 = vlog2.pop %v1654
      %v1730 = vmul.f32 %v1729, 0.6931472
      %v1731 = vlog2.pop %v1657
      %v1732 = vmul.f32 %v1731, 0.6931472
      %v1733 = vlog2.pop %v1660
      %v1734 = vmul.f32 %v1733, 0.6931472
      %v1735 = vlog2.pop %v1663
      %v1736 = vmul.f32 %v1735, 0.6931472
      %v1737 = vlog2.pop %v1666
      %v1738 = vmul.f32 %v1737, 0.6931472
      %v1739 = vlog2.pop %v1669
      %v1740 = vmul.f32 %v1739, 0.6931472
      %v1741 = vlog2.pop %v1672
      %v1742 = vmul.f32 %v1741, 0.6931472
      %v1743 = vlog2.pop %v1675
      %v1744 = vmul.f32 %v1743, 0.6931472
      %v1745 = vlog2.pop %v1678
      %v1746 = vmul.f32 %v1745, 0.6931472
      %v1747 = vlog2.pop %v1681
      %v1748 = vmul.f32 %v1747, 0.6931472
      %v1749 = vlog2.pop %v1684
      %v1750 = vmul.f32 %v1749, 0.6931472
      %v1751 = vlog2.pop %v1687
      %v1752 = vmul.f32 %v1751, 0.6931472
      %v1753 = vadd.f32 %v1690, 0.0
      %v1754 = vadd.f32 %v1692, 0.0
      %v1755 = vadd.f32 %v1694, 0.0
      %v1756 = vadd.f32 %v1696, 0.0
      %v1757 = vadd.f32 %v1698, 0.0
      %v1758 = vadd.f32 %v1700, 0.0
      %v1759 = vadd.f32 %v1702, 0.0
      %v1760 = vadd.f32 %v1704, 0.0
      %v1761 = vadd.f32 %v1706, 0.0
      %v1762 = vadd.f32 %v1708, 0.0
      %v1763 = vadd.f32 %v1710, 0.0
      %v1764 = vadd.f32 %v1712, 0.0
      %v1765 = vadd.f32 %v1714, 0.0
      %v1766 = vadd.f32 %v1716, 0.0
      %v1767 = vadd.f32 %v1718, 0.0
      %v1768 = vadd.f32 %v1720, 0.0
      %v1769 = vadd.f32 %v1722, 0.0
      %v1770 = vadd.f32 %v1724, 0.0
      %v1771 = vadd.f32 %v1726, 0.0
      %v1772 = vadd.f32 %v1728, 0.0
      %v1773 = vadd.f32 %v1730, 0.0
      %v1774 = vadd.f32 %v1732, 0.0
      %v1775 = vadd.f32 %v1734, 0.0
      %v1776 = vadd.f32 %v1736, 0.0
      %v1777 = vadd.f32 %v1738, 0.0
      %v1778 = vadd.f32 %v1740, 0.0
      %v1779 = vadd.f32 %v1742, 0.0
      %v1780 = vadd.f32 %v1744, 0.0
      %v1781 = vadd.f32 %v1746, 0.0
      %v1782 = vadd.f32 %v1748, 0.0
      %v1783 = vadd.f32 %v1750, 0.0
      %v1784 = vadd.f32 %v1752, 0.0
      %v1786 = vperm.slane %v488, 0
      %v1788 = vadd.f32 %v1753, %v1786
      %v1789 = vadd.f32 %v1754, %v1786
      %v1790 = vadd.f32 %v1755, %v1786
      %v1791 = vadd.f32 %v1756, %v1786
      %v1792 = vadd.f32 %v1757, %v1786
      %v1793 = vadd.f32 %v1758, %v1786
      %v1794 = vadd.f32 %v1759, %v1786
      %v1795 = vadd.f32 %v1760, %v1786
      %v1796 = vadd.f32 %v1761, %v1786
      %v1797 = vadd.f32 %v1762, %v1786
      %v1798 = vadd.f32 %v1763, %v1786
      %v1799 = vadd.f32 %v1764, %v1786
      %v1800 = vadd.f32 %v1765, %v1786
      %v1801 = vadd.f32 %v1766, %v1786
      %v1802 = vadd.f32 %v1767, %v1786
      %v1803 = vadd.f32 %v1768, %v1786
      %v1804 = vadd.f32 %v1769, %v1786
      %v1805 = vadd.f32 %v1770, %v1786
      %v1806 = vadd.f32 %v1771, %v1786
      %v1807 = vadd.f32 %v1772, %v1786
      %v1808 = vadd.f32 %v1773, %v1786
      %v1809 = vadd.f32 %v1774, %v1786
      %v1810 = vadd.f32 %v1775, %v1786
      %v1811 = vadd.f32 %v1776, %v1786
      %v1812 = vadd.f32 %v1777, %v1786
      %v1813 = vadd.f32 %v1778, %v1786
      %v1814 = vadd.f32 %v1779, %v1786
      %v1815 = vadd.f32 %v1780, %v1786
      %v1816 = vadd.f32 %v1781, %v1786
      %v1817 = vadd.f32 %v1782, %v1786
      %v1818 = vadd.f32 %v1783, %v1786
      %v1819 = vadd.f32 %v1784, %v1786
      %v1820 = vadd.f32 %v1788, %v1538
      %v1821 = vadd.f32 %v1789, %v1539
      %v1822 = vadd.f32 %v1790, %v1540
      %v1823 = vadd.f32 %v1791, %v1541
      %v1824 = vadd.f32 %v1792, %v1542
      %v1825 = vadd.f32 %v1793, %v1543
      %v1826 = vadd.f32 %v1794, %v1544
      %v1827 = vadd.f32 %v1795, %v1545
      %v1828 = vadd.f32 %v1796, %v1546
      %v1829 = vadd.f32 %v1797, %v1547
      %v1830 = vadd.f32 %v1798, %v1548
      %v1831 = vadd.f32 %v1799, %v1549
      %v1832 = vadd.f32 %v1800, %v1550
      %v1833 = vadd.f32 %v1801, %v1551
      %v1834 = vadd.f32 %v1802, %v1552
      %v1835 = vadd.f32 %v1803, %v1553
      %v1836 = vadd.f32 %v1804, %v1554
      %v1837 = vadd.f32 %v1805, %v1555
      %v1838 = vadd.f32 %v1806, %v1556
      %v1839 = vadd.f32 %v1807, %v1557
      %v1840 = vadd.f32 %v1808, %v1558
      %v1841 = vadd.f32 %v1809, %v1559
      %v1842 = vadd.f32 %v1810, %v1560
      %v1843 = vadd.f32 %v1811, %v1561
      %v1844 = vadd.f32 %v1812, %v1562
      %v1845 = vadd.f32 %v1813, %v1563
      %v1846 = vadd.f32 %v1814, %v1564
      %v1847 = vadd.f32 %v1815, %v1565
      %v1848 = vadd.f32 %v1816, %v1566
      %v1849 = vadd.f32 %v1817, %v1567
      %v1850 = vadd.f32 %v1818, %v1568
      %v1851 = vadd.f32 %v1819, %v1569
      %vm1852 = vcmask 261120
      %1853 = vst.msk [vmem:[#allocation2] sm:$0xff] %vm1852, %v1154
      %1854 = vst.msk [vmem:[#allocation2 + $0x8] sm:$0xff] %vm1852, %v1155
      %1855 = vst.msk [vmem:[#allocation2 + $0x10] sm:$0xff] %vm1852, %v1156
      %1856 = vst.msk [vmem:[#allocation2 + $0x18] sm:$0xff] %vm1852, %v1157
      %1857 = vst.msk [vmem:[#allocation2 + $0x20] sm:$0xff] %vm1852, %v1158
      %1858 = vst.msk [vmem:[#allocation2 + $0x28] sm:$0xff] %vm1852, %v1159
      %1859 = vst.msk [vmem:[#allocation2 + $0x30] sm:$0xff] %vm1852, %v1160
      %1860 = vst.msk [vmem:[#allocation2 + $0x38] sm:$0xff] %vm1852, %v1161
      %1861 = vst.msk [vmem:[#allocation2 + $0x40] sm:$0xff] %vm1852, %v1162
      %1862 = vst.msk [vmem:[#allocation2 + $0x48] sm:$0xff] %vm1852, %v1163
      %1863 = vst.msk [vmem:[#allocation2 + $0x50] sm:$0xff] %vm1852, %v1164
      %1864 = vst.msk [vmem:[#allocation2 + $0x58] sm:$0xff] %vm1852, %v1165
      %1865 = vst.msk [vmem:[#allocation2 + $0x60] sm:$0xff] %vm1852, %v1166
      %1866 = vst.msk [vmem:[#allocation2 + $0x68] sm:$0xff] %vm1852, %v1167
      %1867 = vst.msk [vmem:[#allocation2 + $0x70] sm:$0xff] %vm1852, %v1168
      %1868 = vst.msk [vmem:[#allocation2 + $0x78] sm:$0xff] %vm1852, %v1169
      %1869 = vst.msk [vmem:[#allocation2 + $0x80] sm:$0xff] %vm1852, %v1170
      %1870 = vst.msk [vmem:[#allocation2 + $0x88] sm:$0xff] %vm1852, %v1171
      %1871 = vst.msk [vmem:[#allocation2 + $0x90] sm:$0xff] %vm1852, %v1172
      %1872 = vst.msk [vmem:[#allocation2 + $0x98] sm:$0xff] %vm1852, %v1173
      %1873 = vst.msk [vmem:[#allocation2 + $0xa0] sm:$0xff] %vm1852, %v1174
      %1874 = vst.msk [vmem:[#allocation2 + $0xa8] sm:$0xff] %vm1852, %v1175
      %1875 = vst.msk [vmem:[#allocation2 + $0xb0] sm:$0xff] %vm1852, %v1176
      %1876 = vst.msk [vmem:[#allocation2 + $0xb8] sm:$0xff] %vm1852, %v1177
      %1877 = vst.msk [vmem:[#allocation2 + $0xc0] sm:$0xff] %vm1852, %v1178
      %1878 = vst.msk [vmem:[#allocation2 + $0xc8] sm:$0xff] %vm1852, %v1179
      %1879 = vst.msk [vmem:[#allocation2 + $0xd0] sm:$0xff] %vm1852, %v1180
      %1880 = vst.msk [vmem:[#allocation2 + $0xd8] sm:$0xff] %vm1852, %v1181
      %1881 = vst.msk [vmem:[#allocation2 + $0xe0] sm:$0xff] %vm1852, %v1182
      %1882 = vst.msk [vmem:[#allocation2 + $0xe8] sm:$0xff] %vm1852, %v1183
      %1883 = vst.msk [vmem:[#allocation2 + $0xf0] sm:$0xff] %vm1852, %v1184
      %1884 = vst.msk [vmem:[#allocation2 + $0xf8] sm:$0xff] %vm1852, %v1185
      %1885 = vst.msk [vmem:[#allocation3] sm:$0xff] %vm1852, %v1820
      %1886 = vst.msk [vmem:[#allocation3 + $0x8] sm:$0xff] %vm1852, %v1821
      %1887 = vst.msk [vmem:[#allocation3 + $0x10] sm:$0xff] %vm1852, %v1822
      %1888 = vst.msk [vmem:[#allocation3 + $0x18] sm:$0xff] %vm1852, %v1823
      %1889 = vst.msk [vmem:[#allocation3 + $0x20] sm:$0xff] %vm1852, %v1824
      %1890 = vst.msk [vmem:[#allocation3 + $0x28] sm:$0xff] %vm1852, %v1825
      %1891 = vst.msk [vmem:[#allocation3 + $0x30] sm:$0xff] %vm1852, %v1826
      %1892 = vst.msk [vmem:[#allocation3 + $0x38] sm:$0xff] %vm1852, %v1827
      %1893 = vst.msk [vmem:[#allocation3 + $0x40] sm:$0xff] %vm1852, %v1828
      %1894 = vst.msk [vmem:[#allocation3 + $0x48] sm:$0xff] %vm1852, %v1829
      %1895 = vst.msk [vmem:[#allocation3 + $0x50] sm:$0xff] %vm1852, %v1830
      %1896 = vst.msk [vmem:[#allocation3 + $0x58] sm:$0xff] %vm1852, %v1831
      %1897 = vst.msk [vmem:[#allocation3 + $0x60] sm:$0xff] %vm1852, %v1832
      %1898 = vst.msk [vmem:[#allocation3 + $0x68] sm:$0xff] %vm1852, %v1833
      %1899 = vst.msk [vmem:[#allocation3 + $0x70] sm:$0xff] %vm1852, %v1834
      %1900 = vst.msk [vmem:[#allocation3 + $0x78] sm:$0xff] %vm1852, %v1835
      %1901 = vst.msk [vmem:[#allocation3 + $0x80] sm:$0xff] %vm1852, %v1836
      %1902 = vst.msk [vmem:[#allocation3 + $0x88] sm:$0xff] %vm1852, %v1837
      %1903 = vst.msk [vmem:[#allocation3 + $0x90] sm:$0xff] %vm1852, %v1838
      %1904 = vst.msk [vmem:[#allocation3 + $0x98] sm:$0xff] %vm1852, %v1839
      %1905 = vst.msk [vmem:[#allocation3 + $0xa0] sm:$0xff] %vm1852, %v1840
      %1906 = vst.msk [vmem:[#allocation3 + $0xa8] sm:$0xff] %vm1852, %v1841
      %1907 = vst.msk [vmem:[#allocation3 + $0xb0] sm:$0xff] %vm1852, %v1842
      %1908 = vst.msk [vmem:[#allocation3 + $0xb8] sm:$0xff] %vm1852, %v1843
      %1909 = vst.msk [vmem:[#allocation3 + $0xc0] sm:$0xff] %vm1852, %v1844
      %1910 = vst.msk [vmem:[#allocation3 + $0xc8] sm:$0xff] %vm1852, %v1845
      %1911 = vst.msk [vmem:[#allocation3 + $0xd0] sm:$0xff] %vm1852, %v1846
      %1912 = vst.msk [vmem:[#allocation3 + $0xd8] sm:$0xff] %vm1852, %v1847
      %1913 = vst.msk [vmem:[#allocation3 + $0xe0] sm:$0xff] %vm1852, %v1848
      %1914 = vst.msk [vmem:[#allocation3 + $0xe8] sm:$0xff] %vm1852, %v1849
      %1915 = vst.msk [vmem:[#allocation3 + $0xf0] sm:$0xff] %vm1852, %v1850
      %1916 = vst.msk [vmem:[#allocation3 + $0xf8] sm:$0xff] %vm1852, %v1851
      %v1917 = vld [vmem:[%s5] sm:$0xff]
      %v1918 = vld [vmem:[%s5 + $0x8] sm:$0xff]
      %v1919 = vld [vmem:[%s5 + $0x10] sm:$0xff]
      %v1920 = vld [vmem:[%s5 + $0x18] sm:$0xff]
      %v1921 = vld [vmem:[%s6] sm:$0x1]
      %v1922 = vld [vmem:[%s7] sm:$0xff]
      %v1923 = vld [vmem:[%s7 + $0x8] sm:$0xff]
      %v1924 = vld [vmem:[%s7 + $0x10] sm:$0xff]
      %v1925 = vld [vmem:[%s7 + $0x18] sm:$0xff]
      %v1926 = vld [vmem:[%s8] sm:$0x1]
      %v1927 = vld [vmem:[#allocation2] sm:$0xff]
      %v1928 = vld [vmem:[#allocation2 + $0x8] sm:$0xff]
      %v1929 = vld [vmem:[#allocation2 + $0x10] sm:$0xff]
      %v1930 = vld [vmem:[#allocation2 + $0x18] sm:$0xff]
      %v1931 = vld [vmem:[#allocation2 + $0x20] sm:$0xff]
      %v1932 = vld [vmem:[#allocation2 + $0x28] sm:$0xff]
      %v1933 = vld [vmem:[#allocation2 + $0x30] sm:$0xff]
      %v1934 = vld [vmem:[#allocation2 + $0x38] sm:$0xff]
      %v1935 = vld [vmem:[#allocation2 + $0x40] sm:$0xff]
      %v1936 = vld [vmem:[#allocation2 + $0x48] sm:$0xff]
      %v1937 = vld [vmem:[#allocation2 + $0x50] sm:$0xff]
      %v1938 = vld [vmem:[#allocation2 + $0x58] sm:$0xff]
      %v1939 = vld [vmem:[#allocation2 + $0x60] sm:$0xff]
      %v1940 = vld [vmem:[#allocation2 + $0x68] sm:$0xff]
      %v1941 = vld [vmem:[#allocation2 + $0x70] sm:$0xff]
      %v1942 = vld [vmem:[#allocation2 + $0x78] sm:$0xff]
      %v1943 = vld [vmem:[#allocation2 + $0x80] sm:$0xff]
      %v1944 = vld [vmem:[#allocation2 + $0x88] sm:$0xff]
      %v1945 = vld [vmem:[#allocation2 + $0x90] sm:$0xff]
      %v1946 = vld [vmem:[#allocation2 + $0x98] sm:$0xff]
      %v1947 = vld [vmem:[#allocation2 + $0xa0] sm:$0xff]
      %v1948 = vld [vmem:[#allocation2 + $0xa8] sm:$0xff]
      %v1949 = vld [vmem:[#allocation2 + $0xb0] sm:$0xff]
      %v1950 = vld [vmem:[#allocation2 + $0xb8] sm:$0xff]
      %v1951 = vld [vmem:[#allocation2 + $0xc0] sm:$0xff]
      %v1952 = vld [vmem:[#allocation2 + $0xc8] sm:$0xff]
      %v1953 = vld [vmem:[#allocation2 + $0xd0] sm:$0xff]
      %v1954 = vld [vmem:[#allocation2 + $0xd8] sm:$0xff]
      %v1955 = vld [vmem:[#allocation2 + $0xe0] sm:$0xff]
      %v1956 = vld [vmem:[#allocation2 + $0xe8] sm:$0xff]
      %v1957 = vld [vmem:[#allocation2 + $0xf0] sm:$0xff]
      %v1958 = vld [vmem:[#allocation2 + $0xf8] sm:$0xff]
      %v1959 = vld [vmem:[#allocation3] sm:$0xff]
      %v1960 = vld [vmem:[#allocation3 + $0x8] sm:$0xff]
      %v1961 = vld [vmem:[#allocation3 + $0x10] sm:$0xff]
      %v1962 = vld [vmem:[#allocation3 + $0x18] sm:$0xff]
      %v1963 = vld [vmem:[#allocation3 + $0x20] sm:$0xff]
      %v1964 = vld [vmem:[#allocation3 + $0x28] sm:$0xff]
      %v1965 = vld [vmem:[#allocation3 + $0x30] sm:$0xff]
      %v1966 = vld [vmem:[#allocation3 + $0x38] sm:$0xff]
      %v1967 = vld [vmem:[#allocation3 + $0x40] sm:$0xff]
      %v1968 = vld [vmem:[#allocation3 + $0x48] sm:$0xff]
      %v1969 = vld [vmem:[#allocation3 + $0x50] sm:$0xff]
      %v1970 = vld [vmem:[#allocation3 + $0x58] sm:$0xff]
      %v1971 = vld [vmem:[#allocation3 + $0x60] sm:$0xff]
      %v1972 = vld [vmem:[#allocation3 + $0x68] sm:$0xff]
      %v1973 = vld [vmem:[#allocation3 + $0x70] sm:$0xff]
      %v1974 = vld [vmem:[#allocation3 + $0x78] sm:$0xff]
      %v1975 = vld [vmem:[#allocation3 + $0x80] sm:$0xff]
      %v1976 = vld [vmem:[#allocation3 + $0x88] sm:$0xff]
      %v1977 = vld [vmem:[#allocation3 + $0x90] sm:$0xff]
      %v1978 = vld [vmem:[#allocation3 + $0x98] sm:$0xff]
      %v1979 = vld [vmem:[#allocation3 + $0xa0] sm:$0xff]
      %v1980 = vld [vmem:[#allocation3 + $0xa8] sm:$0xff]
      %v1981 = vld [vmem:[#allocation3 + $0xb0] sm:$0xff]
      %v1982 = vld [vmem:[#allocation3 + $0xb8] sm:$0xff]
      %v1983 = vld [vmem:[#allocation3 + $0xc0] sm:$0xff]
      %v1984 = vld [vmem:[#allocation3 + $0xc8] sm:$0xff]
      %v1985 = vld [vmem:[#allocation3 + $0xd0] sm:$0xff]
      %v1986 = vld [vmem:[#allocation3 + $0xd8] sm:$0xff]
      %v1987 = vld [vmem:[#allocation3 + $0xe0] sm:$0xff]
      %v1988 = vld [vmem:[#allocation3 + $0xe8] sm:$0xff]
      %v1989 = vld [vmem:[#allocation3 + $0xf0] sm:$0xff]
      %v1990 = vld [vmem:[#allocation3 + $0xf8] sm:$0xff]
      %v1992 = vperm.slane %v1921, 0
      %v1995 = vsel %vm1852, %v1927, 0
      %v1998 = vsel %vm1852, %v1928, 0
      %v2001 = vsel %vm1852, %v1929, 0
      %v2004 = vsel %vm1852, %v1930, 0
      %v2007 = vsel %vm1852, %v1931, 0
      %v2010 = vsel %vm1852, %v1932, 0
      %v2013 = vsel %vm1852, %v1933, 0
      %v2016 = vsel %vm1852, %v1934, 0
      %v2019 = vsel %vm1852, %v1935, 0
      %v2022 = vsel %vm1852, %v1936, 0
      %v2025 = vsel %vm1852, %v1937, 0
      %v2028 = vsel %vm1852, %v1938, 0
      %v2031 = vsel %vm1852, %v1939, 0
      %v2034 = vsel %vm1852, %v1940, 0
      %v2037 = vsel %vm1852, %v1941, 0
      %v2040 = vsel %vm1852, %v1942, 0
      %v2043 = vsel %vm1852, %v1943, 0
      %v2046 = vsel %vm1852, %v1944, 0
      %v2049 = vsel %vm1852, %v1945, 0
      %v2052 = vsel %vm1852, %v1946, 0
      %v2055 = vsel %vm1852, %v1947, 0
      %v2058 = vsel %vm1852, %v1948, 0
      %v2061 = vsel %vm1852, %v1949, 0
      %v2064 = vsel %vm1852, %v1950, 0
      %v2067 = vsel %vm1852, %v1951, 0
      %v2070 = vsel %vm1852, %v1952, 0
      %v2073 = vsel %vm1852, %v1953, 0
      %v2076 = vsel %vm1852, %v1954, 0
      %v2079 = vsel %vm1852, %v1955, 0
      %v2082 = vsel %vm1852, %v1956, 0
      %v2085 = vsel %vm1852, %v1957, 0
      %v2088 = vsel %vm1852, %v1958, 0
      %2090 = vmatpush.msra.mxu0 0.0
      %2091 = vmatpush.msra.mxu0 0.0
      %2092 = vmatpush.msra.mxu0 0.0
      %2093 = vmatpush.msra.mxu0 0.0
      %2094 = vmatpush.msra.mxu0 0.0
      %2095 = vmatpush.msra.mxu0 0.0
      %2096 = vmatpush.msra.mxu0 0.0
      %2097 = vmatpush.msra.mxu0 0.0
      %2098 = vmatpush.msra.mxu0 0.0
      %2099 = vmatpush.msra.mxu0 0.0
      %2100 = vmatpush.msra.mxu0 0.0
      %2101 = vmatpush.msra.mxu0 0.0
      %2102 = vmatpush.msra.mxu0 %v1920
      %2103 = vmatpush.msra.mxu0 %v1919
      %2104 = vmatpush.msra.mxu0 %v1918
      %2105 = vmatpush.msra.mxu0 %v1917
      %2106 = vmatmul.f32.gmra.mxu0 %v1995
      %v2107 = vpop.f32.mrf.mxu0
      %v2108 = vadd.f32 %v1992, %v2107
      %2109 = vmatmul.f32.gmra.mxu0 %v1998
      %v2110 = vpop.f32.mrf.mxu0
      %v2111 = vadd.f32 %v1992, %v2110
      %2112 = vmatmul.f32.gmra.mxu0 %v2001
      %v2113 = vpop.f32.mrf.mxu0
      %v2114 = vadd.f32 %v1992, %v2113
      %2115 = vmatmul.f32.gmra.mxu0 %v2004
      %v2116 = vpop.f32.mrf.mxu0
      %v2117 = vadd.f32 %v1992, %v2116
      %2118 = vmatmul.f32.gmra.mxu0 %v2007
      %v2119 = vpop.f32.mrf.mxu0
      %v2120 = vadd.f32 %v1992, %v2119
      %2121 = vmatmul.f32.gmra.mxu0 %v2010
      %v2122 = vpop.f32.mrf.mxu0
      %v2123 = vadd.f32 %v1992, %v2122
      %2124 = vmatmul.f32.gmra.mxu0 %v2013
      %v2125 = vpop.f32.mrf.mxu0
      %v2126 = vadd.f32 %v1992, %v2125
      %2127 = vmatmul.f32.gmra.mxu0 %v2016
      %v2128 = vpop.f32.mrf.mxu0
      %v2129 = vadd.f32 %v1992, %v2128
      %2130 = vmatmul.f32.gmra.mxu0 %v2019
      %v2131 = vpop.f32.mrf.mxu0
      %v2132 = vadd.f32 %v1992, %v2131
      %2133 = vmatmul.f32.gmra.mxu0 %v2022
      %v2134 = vpop.f32.mrf.mxu0
      %v2135 = vadd.f32 %v1992, %v2134
      %2136 = vmatmul.f32.gmra.mxu0 %v2025
      %v2137 = vpop.f32.mrf.mxu0
      %v2138 = vadd.f32 %v1992, %v2137
      %2139 = vmatmul.f32.gmra.mxu0 %v2028
      %v2140 = vpop.f32.mrf.mxu0
      %v2141 = vadd.f32 %v1992, %v2140
      %2142 = vmatmul.f32.gmra.mxu0 %v2031
      %v2143 = vpop.f32.mrf.mxu0
      %v2144 = vadd.f32 %v1992, %v2143
      %2145 = vmatmul.f32.gmra.mxu0 %v2034
      %v2146 = vpop.f32.mrf.mxu0
      %v2147 = vadd.f32 %v1992, %v2146
      %2148 = vmatmul.f32.gmra.mxu0 %v2037
      %v2149 = vpop.f32.mrf.mxu0
      %v2150 = vadd.f32 %v1992, %v2149
      %2151 = vmatmul.f32.gmra.mxu0 %v2040
      %v2152 = vpop.f32.mrf.mxu0
      %v2153 = vadd.f32 %v1992, %v2152
      %2154 = vmatmul.f32.gmra.mxu0 %v2043
      %v2155 = vpop.f32.mrf.mxu0
      %v2156 = vadd.f32 %v1992, %v2155
      %2157 = vmatmul.f32.gmra.mxu0 %v2046
      %v2158 = vpop.f32.mrf.mxu0
      %v2159 = vadd.f32 %v1992, %v2158
      %2160 = vmatmul.f32.gmra.mxu0 %v2049
      %v2161 = vpop.f32.mrf.mxu0
      %v2162 = vadd.f32 %v1992, %v2161
      %2163 = vmatmul.f32.gmra.mxu0 %v2052
      %v2164 = vpop.f32.mrf.mxu0
      %v2165 = vadd.f32 %v1992, %v2164
      %2166 = vmatmul.f32.gmra.mxu0 %v2055
      %v2167 = vpop.f32.mrf.mxu0
      %v2168 = vadd.f32 %v1992, %v2167
      %2169 = vmatmul.f32.gmra.mxu0 %v2058
      %v2170 = vpop.f32.mrf.mxu0
      %v2171 = vadd.f32 %v1992, %v2170
      %2172 = vmatmul.f32.gmra.mxu0 %v2061
      %v2173 = vpop.f32.mrf.mxu0
      %v2174 = vadd.f32 %v1992, %v2173
      %2175 = vmatmul.f32.gmra.mxu0 %v2064
      %v2176 = vpop.f32.mrf.mxu0
      %v2177 = vadd.f32 %v1992, %v2176
      %2178 = vmatmul.f32.gmra.mxu0 %v2067
      %v2179 = vpop.f32.mrf.mxu0
      %v2180 = vadd.f32 %v1992, %v2179
      %2181 = vmatmul.f32.gmra.mxu0 %v2070
      %v2182 = vpop.f32.mrf.mxu0
      %v2183 = vadd.f32 %v1992, %v2182
      %2184 = vmatmul.f32.gmra.mxu0 %v2073
      %v2185 = vpop.f32.mrf.mxu0
      %v2186 = vadd.f32 %v1992, %v2185
      %2187 = vmatmul.f32.gmra.mxu0 %v2076
      %v2188 = vpop.f32.mrf.mxu0
      %v2189 = vadd.f32 %v1992, %v2188
      %2190 = vmatmul.f32.gmra.mxu0 %v2079
      %v2191 = vpop.f32.mrf.mxu0
      %v2192 = vadd.f32 %v1992, %v2191
      %2193 = vmatmul.f32.gmra.mxu0 %v2082
      %v2194 = vpop.f32.mrf.mxu0
      %v2195 = vadd.f32 %v1992, %v2194
      %2196 = vmatmul.f32.gmra.mxu0 %v2085
      %v2197 = vpop.f32.mrf.mxu0
      %v2198 = vadd.f32 %v1992, %v2197
      %2199 = vmatmul.f32.gmra.mxu0 %v2088
      %v2200 = vpop.f32.mrf.mxu0
      %v2201 = vadd.f32 %v1992, %v2200
      %2202 = vdwg.mxu0
      %v2203 = vand.u32 2147483647, %v2108
      %v2204 = vand.u32 2147483647, %v2111
      %v2205 = vand.u32 2147483647, %v2114
      %v2206 = vand.u32 2147483647, %v2117
      %v2207 = vand.u32 2147483647, %v2120
      %v2208 = vand.u32 2147483647, %v2123
      %v2209 = vand.u32 2147483647, %v2126
      %v2210 = vand.u32 2147483647, %v2129
      %v2211 = vand.u32 2147483647, %v2132
      %v2212 = vand.u32 2147483647, %v2135
      %v2213 = vand.u32 2147483647, %v2138
      %v2214 = vand.u32 2147483647, %v2141
      %v2215 = vand.u32 2147483647, %v2144
      %v2216 = vand.u32 2147483647, %v2147
      %v2217 = vand.u32 2147483647, %v2150
      %v2218 = vand.u32 2147483647, %v2153
      %v2219 = vand.u32 2147483647, %v2156
      %v2220 = vand.u32 2147483647, %v2159
      %v2221 = vand.u32 2147483647, %v2162
      %v2222 = vand.u32 2147483647, %v2165
      %v2223 = vand.u32 2147483647, %v2168
      %v2224 = vand.u32 2147483647, %v2171
      %v2225 = vand.u32 2147483647, %v2174
      %v2226 = vand.u32 2147483647, %v2177
      %v2227 = vand.u32 2147483647, %v2180
      %v2228 = vand.u32 2147483647, %v2183
      %v2229 = vand.u32 2147483647, %v2186
      %v2230 = vand.u32 2147483647, %v2189
      %v2231 = vand.u32 2147483647, %v2192
      %v2232 = vand.u32 2147483647, %v2195
      %v2233 = vand.u32 2147483647, %v2198
      %v2234 = vand.u32 2147483647, %v2201
      %v2235 = vmul.f32 %v2203, -2.0
      %v2236 = vmul.f32 %v2204, -2.0
      %v2237 = vmul.f32 %v2205, -2.0
      %v2238 = vmul.f32 %v2206, -2.0
      %v2239 = vmul.f32 %v2207, -2.0
      %v2240 = vmul.f32 %v2208, -2.0
      %v2241 = vmul.f32 %v2209, -2.0
      %v2242 = vmul.f32 %v2210, -2.0
      %v2243 = vmul.f32 %v2211, -2.0
      %v2244 = vmul.f32 %v2212, -2.0
      %v2245 = vmul.f32 %v2213, -2.0
      %v2246 = vmul.f32 %v2214, -2.0
      %v2247 = vmul.f32 %v2215, -2.0
      %v2248 = vmul.f32 %v2216, -2.0
      %v2249 = vmul.f32 %v2217, -2.0
      %v2250 = vmul.f32 %v2218, -2.0
      %v2251 = vmul.f32 %v2219, -2.0
      %v2252 = vmul.f32 %v2220, -2.0
      %v2253 = vmul.f32 %v2221, -2.0
      %v2254 = vmul.f32 %v2222, -2.0
      %v2255 = vmul.f32 %v2223, -2.0
      %v2256 = vmul.f32 %v2224, -2.0
      %v2257 = vmul.f32 %v2225, -2.0
      %v2258 = vmul.f32 %v2226, -2.0
      %v2259 = vmul.f32 %v2227, -2.0
      %v2260 = vmul.f32 %v2228, -2.0
      %v2261 = vmul.f32 %v2229, -2.0
      %v2262 = vmul.f32 %v2230, -2.0
      %v2263 = vmul.f32 %v2231, -2.0
      %v2264 = vmul.f32 %v2232, -2.0
      %v2265 = vmul.f32 %v2233, -2.0
      %v2266 = vmul.f32 %v2234, -2.0
      %v2267 = vmul.f32 %v2235, 1.442695
      %v2268 = vpow.pop %v2267
      %v2269 = vmul.f32 %v2236, 1.442695
      %v2270 = vpow.pop %v2269
      %v2271 = vmul.f32 %v2237, 1.442695
      %v2272 = vpow.pop %v2271
      %v2273 = vmul.f32 %v2238, 1.442695
      %v2274 = vpow.pop %v2273
      %v2275 = vmul.f32 %v2239, 1.442695
      %v2276 = vpow.pop %v2275
      %v2277 = vmul.f32 %v2240, 1.442695
      %v2278 = vpow.pop %v2277
      %v2279 = vmul.f32 %v2241, 1.442695
      %v2280 = vpow.pop %v2279
      %v2281 = vmul.f32 %v2242, 1.442695
      %v2282 = vpow.pop %v2281
      %v2283 = vmul.f32 %v2243, 1.442695
      %v2284 = vpow.pop %v2283
      %v2285 = vmul.f32 %v2244, 1.442695
      %v2286 = vpow.pop %v2285
      %v2287 = vmul.f32 %v2245, 1.442695
      %v2288 = vpow.pop %v2287
      %v2289 = vmul.f32 %v2246, 1.442695
      %v2290 = vpow.pop %v2289
      %v2291 = vmul.f32 %v2247, 1.442695
      %v2292 = vpow.pop %v2291
      %v2293 = vmul.f32 %v2248, 1.442695
      %v2294 = vpow.pop %v2293
      %v2295 = vmul.f32 %v2249, 1.442695
      %v2296 = vpow.pop %v2295
      %v2297 = vmul.f32 %v2250, 1.442695
      %v2298 = vpow.pop %v2297
      %v2299 = vmul.f32 %v2251, 1.442695
      %v2300 = vpow.pop %v2299
      %v2301 = vmul.f32 %v2252, 1.442695
      %v2302 = vpow.pop %v2301
      %v2303 = vmul.f32 %v2253, 1.442695
      %v2304 = vpow.pop %v2303
      %v2305 = vmul.f32 %v2254, 1.442695
      %v2306 = vpow.pop %v2305
      %v2307 = vmul.f32 %v2255, 1.442695
      %v2308 = vpow.pop %v2307
      %v2309 = vmul.f32 %v2256, 1.442695
      %v2310 = vpow.pop %v2309
      %v2311 = vmul.f32 %v2257, 1.442695
      %v2312 = vpow.pop %v2311
      %v2313 = vmul.f32 %v2258, 1.442695
      %v2314 = vpow.pop %v2313
      %v2315 = vmul.f32 %v2259, 1.442695
      %v2316 = vpow.pop %v2315
      %v2317 = vmul.f32 %v2260, 1.442695
      %v2318 = vpow.pop %v2317
      %v2319 = vmul.f32 %v2261, 1.442695
      %v2320 = vpow.pop %v2319
      %v2321 = vmul.f32 %v2262, 1.442695
      %v2322 = vpow.pop %v2321
      %v2323 = vmul.f32 %v2263, 1.442695
      %v2324 = vpow.pop %v2323
      %v2325 = vmul.f32 %v2264, 1.442695
      %v2326 = vpow.pop %v2325
      %v2327 = vmul.f32 %v2265, 1.442695
      %v2328 = vpow.pop %v2327
      %v2329 = vmul.f32 %v2266, 1.442695
      %v2330 = vpow.pop %v2329
      %v2331 = vadd.f32 %v2268, 1.0
      %v2332 = vadd.f32 %v2270, 1.0
      %v2333 = vadd.f32 %v2272, 1.0
      %v2334 = vadd.f32 %v2274, 1.0
      %v2335 = vadd.f32 %v2276, 1.0
      %v2336 = vadd.f32 %v2278, 1.0
      %v2337 = vadd.f32 %v2280, 1.0
      %v2338 = vadd.f32 %v2282, 1.0
      %v2339 = vadd.f32 %v2284, 1.0
      %v2340 = vadd.f32 %v2286, 1.0
      %v2341 = vadd.f32 %v2288, 1.0
      %v2342 = vadd.f32 %v2290, 1.0
      %v2343 = vadd.f32 %v2292, 1.0
      %v2344 = vadd.f32 %v2294, 1.0
      %v2345 = vadd.f32 %v2296, 1.0
      %v2346 = vadd.f32 %v2298, 1.0
      %v2347 = vadd.f32 %v2300, 1.0
      %v2348 = vadd.f32 %v2302, 1.0
      %v2349 = vadd.f32 %v2304, 1.0
      %v2350 = vadd.f32 %v2306, 1.0
      %v2351 = vadd.f32 %v2308, 1.0
      %v2352 = vadd.f32 %v2310, 1.0
      %v2353 = vadd.f32 %v2312, 1.0
      %v2354 = vadd.f32 %v2314, 1.0
      %v2355 = vadd.f32 %v2316, 1.0
      %v2356 = vadd.f32 %v2318, 1.0
      %v2357 = vadd.f32 %v2320, 1.0
      %v2358 = vadd.f32 %v2322, 1.0
      %v2359 = vadd.f32 %v2324, 1.0
      %v2360 = vadd.f32 %v2326, 1.0
      %v2361 = vadd.f32 %v2328, 1.0
      %v2362 = vadd.f32 %v2330, 1.0
      %v2363 = vrcp.pop %v2331
      %v2364 = vrcp.pop %v2332
      %v2365 = vrcp.pop %v2333
      %v2366 = vrcp.pop %v2334
      %v2367 = vrcp.pop %v2335
      %v2368 = vrcp.pop %v2336
      %v2369 = vrcp.pop %v2337
      %v2370 = vrcp.pop %v2338
      %v2371 = vrcp.pop %v2339
      %v2372 = vrcp.pop %v2340
      %v2373 = vrcp.pop %v2341
      %v2374 = vrcp.pop %v2342
      %v2375 = vrcp.pop %v2343
      %v2376 = vrcp.pop %v2344
      %v2377 = vrcp.pop %v2345
      %v2378 = vrcp.pop %v2346
      %v2379 = vrcp.pop %v2347
      %v2380 = vrcp.pop %v2348
      %v2381 = vrcp.pop %v2349
      %v2382 = vrcp.pop %v2350
      %v2383 = vrcp.pop %v2351
      %v2384 = vrcp.pop %v2352
      %v2385 = vrcp.pop %v2353
      %v2386 = vrcp.pop %v2354
      %v2387 = vrcp.pop %v2355
      %v2388 = vrcp.pop %v2356
      %v2389 = vrcp.pop %v2357
      %v2390 = vrcp.pop %v2358
      %v2391 = vrcp.pop %v2359
      %v2392 = vrcp.pop %v2360
      %v2393 = vrcp.pop %v2361
      %v2394 = vrcp.pop %v2362
      %v2395 = vmul.f32 %v2331, %v2363
      %v2396 = vmul.f32 %v2332, %v2364
      %v2397 = vmul.f32 %v2333, %v2365
      %v2398 = vmul.f32 %v2334, %v2366
      %v2399 = vmul.f32 %v2335, %v2367
      %v2400 = vmul.f32 %v2336, %v2368
      %v2401 = vmul.f32 %v2337, %v2369
      %v2402 = vmul.f32 %v2338, %v2370
      %v2403 = vmul.f32 %v2339, %v2371
      %v2404 = vmul.f32 %v2340, %v2372
      %v2405 = vmul.f32 %v2341, %v2373
      %v2406 = vmul.f32 %v2342, %v2374
      %v2407 = vmul.f32 %v2343, %v2375
      %v2408 = vmul.f32 %v2344, %v2376
      %v2409 = vmul.f32 %v2345, %v2377
      %v2410 = vmul.f32 %v2346, %v2378
      %v2411 = vmul.f32 %v2347, %v2379
      %v2412 = vmul.f32 %v2348, %v2380
      %v2413 = vmul.f32 %v2349, %v2381
      %v2414 = vmul.f32 %v2350, %v2382
      %v2415 = vmul.f32 %v2351, %v2383
      %v2416 = vmul.f32 %v2352, %v2384
      %v2417 = vmul.f32 %v2353, %v2385
      %v2418 = vmul.f32 %v2354, %v2386
      %v2419 = vmul.f32 %v2355, %v2387
      %v2420 = vmul.f32 %v2356, %v2388
      %v2421 = vmul.f32 %v2357, %v2389
      %v2422 = vmul.f32 %v2358, %v2390
      %v2423 = vmul.f32 %v2359, %v2391
      %v2424 = vmul.f32 %v2360, %v2392
      %v2425 = vmul.f32 %v2361, %v2393
      %v2426 = vmul.f32 %v2362, %v2394
      %v2427 = vsub.f32 2.0, %v2395
      %v2428 = vsub.f32 2.0, %v2396
      %v2429 = vsub.f32 2.0, %v2397
      %v2430 = vsub.f32 2.0, %v2398
      %v2431 = vsub.f32 2.0, %v2399
      %v2432 = vsub.f32 2.0, %v2400
      %v2433 = vsub.f32 2.0, %v2401
      %v2434 = vsub.f32 2.0, %v2402
      %v2435 = vsub.f32 2.0, %v2403
      %v2436 = vsub.f32 2.0, %v2404
      %v2437 = vsub.f32 2.0, %v2405
      %v2438 = vsub.f32 2.0, %v2406
      %v2439 = vsub.f32 2.0, %v2407
      %v2440 = vsub.f32 2.0, %v2408
      %v2441 = vsub.f32 2.0, %v2409
      %v2442 = vsub.f32 2.0, %v2410
      %v2443 = vsub.f32 2.0, %v2411
      %v2444 = vsub.f32 2.0, %v2412
      %v2445 = vsub.f32 2.0, %v2413
      %v2446 = vsub.f32 2.0, %v2414
      %v2447 = vsub.f32 2.0, %v2415
      %v2448 = vsub.f32 2.0, %v2416
      %v2449 = vsub.f32 2.0, %v2417
      %v2450 = vsub.f32 2.0, %v2418
      %v2451 = vsub.f32 2.0, %v2419
      %v2452 = vsub.f32 2.0, %v2420
      %v2453 = vsub.f32 2.0, %v2421
      %v2454 = vsub.f32 2.0, %v2422
      %v2455 = vsub.f32 2.0, %v2423
      %v2456 = vsub.f32 2.0, %v2424
      %v2457 = vsub.f32 2.0, %v2425
      %v2458 = vsub.f32 2.0, %v2426
      %v2459 = vmul.f32 %v2363, %v2427
      %v2460 = vmul.f32 %v2364, %v2428
      %v2461 = vmul.f32 %v2365, %v2429
      %v2462 = vmul.f32 %v2366, %v2430
      %v2463 = vmul.f32 %v2367, %v2431
      %v2464 = vmul.f32 %v2368, %v2432
      %v2465 = vmul.f32 %v2369, %v2433
      %v2466 = vmul.f32 %v2370, %v2434
      %v2467 = vmul.f32 %v2371, %v2435
      %v2468 = vmul.f32 %v2372, %v2436
      %v2469 = vmul.f32 %v2373, %v2437
      %v2470 = vmul.f32 %v2374, %v2438
      %v2471 = vmul.f32 %v2375, %v2439
      %v2472 = vmul.f32 %v2376, %v2440
      %v2473 = vmul.f32 %v2377, %v2441
      %v2474 = vmul.f32 %v2378, %v2442
      %v2475 = vmul.f32 %v2379, %v2443
      %v2476 = vmul.f32 %v2380, %v2444
      %v2477 = vmul.f32 %v2381, %v2445
      %v2478 = vmul.f32 %v2382, %v2446
      %v2479 = vmul.f32 %v2383, %v2447
      %v2480 = vmul.f32 %v2384, %v2448
      %v2481 = vmul.f32 %v2385, %v2449
      %v2482 = vmul.f32 %v2386, %v2450
      %v2483 = vmul.f32 %v2387, %v2451
      %v2484 = vmul.f32 %v2388, %v2452
      %v2485 = vmul.f32 %v2389, %v2453
      %v2486 = vmul.f32 %v2390, %v2454
      %v2487 = vmul.f32 %v2391, %v2455
      %v2488 = vmul.f32 %v2392, %v2456
      %v2489 = vmul.f32 %v2393, %v2457
      %v2490 = vmul.f32 %v2394, %v2458
      %vm2491 = vcmp.ge.f32.partialorder %v2108, 0.0
      %vm2492 = vcmp.ge.f32.partialorder %v2111, 0.0
      %vm2493 = vcmp.ge.f32.partialorder %v2114, 0.0
      %vm2494 = vcmp.ge.f32.partialorder %v2117, 0.0
      %vm2495 = vcmp.ge.f32.partialorder %v2120, 0.0
      %vm2496 = vcmp.ge.f32.partialorder %v2123, 0.0
      %vm2497 = vcmp.ge.f32.partialorder %v2126, 0.0
      %vm2498 = vcmp.ge.f32.partialorder %v2129, 0.0
      %vm2499 = vcmp.ge.f32.partialorder %v2132, 0.0
      %vm2500 = vcmp.ge.f32.partialorder %v2135, 0.0
      %vm2501 = vcmp.ge.f32.partialorder %v2138, 0.0
      %vm2502 = vcmp.ge.f32.partialorder %v2141, 0.0
      %vm2503 = vcmp.ge.f32.partialorder %v2144, 0.0
      %vm2504 = vcmp.ge.f32.partialorder %v2147, 0.0
      %vm2505 = vcmp.ge.f32.partialorder %v2150, 0.0
      %vm2506 = vcmp.ge.f32.partialorder %v2153, 0.0
      %vm2507 = vcmp.ge.f32.partialorder %v2156, 0.0
      %vm2508 = vcmp.ge.f32.partialorder %v2159, 0.0
      %vm2509 = vcmp.ge.f32.partialorder %v2162, 0.0
      %vm2510 = vcmp.ge.f32.partialorder %v2165, 0.0
      %vm2511 = vcmp.ge.f32.partialorder %v2168, 0.0
      %vm2512 = vcmp.ge.f32.partialorder %v2171, 0.0
      %vm2513 = vcmp.ge.f32.partialorder %v2174, 0.0
      %vm2514 = vcmp.ge.f32.partialorder %v2177, 0.0
      %vm2515 = vcmp.ge.f32.partialorder %v2180, 0.0
      %vm2516 = vcmp.ge.f32.partialorder %v2183, 0.0
      %vm2517 = vcmp.ge.f32.partialorder %v2186, 0.0
      %vm2518 = vcmp.ge.f32.partialorder %v2189, 0.0
      %vm2519 = vcmp.ge.f32.partialorder %v2192, 0.0
      %vm2520 = vcmp.ge.f32.partialorder %v2195, 0.0
      %vm2521 = vcmp.ge.f32.partialorder %v2198, 0.0
      %vm2522 = vcmp.ge.f32.partialorder %v2201, 0.0
      %v2523 = vsel %vm2491, 1.0, -1.0
      %v2524 = vsel %vm2492, 1.0, -1.0
      %v2525 = vsel %vm2493, 1.0, -1.0
      %v2526 = vsel %vm2494, 1.0, -1.0
      %v2527 = vsel %vm2495, 1.0, -1.0
      %v2528 = vsel %vm2496, 1.0, -1.0
      %v2529 = vsel %vm2497, 1.0, -1.0
      %v2530 = vsel %vm2498, 1.0, -1.0
      %v2531 = vsel %vm2499, 1.0, -1.0
      %v2532 = vsel %vm2500, 1.0, -1.0
      %v2533 = vsel %vm2501, 1.0, -1.0
      %v2534 = vsel %vm2502, 1.0, -1.0
      %v2535 = vsel %vm2503, 1.0, -1.0
      %v2536 = vsel %vm2504, 1.0, -1.0
      %v2537 = vsel %vm2505, 1.0, -1.0
      %v2538 = vsel %vm2506, 1.0, -1.0
      %v2539 = vsel %vm2507, 1.0, -1.0
      %v2540 = vsel %vm2508, 1.0, -1.0
      %v2541 = vsel %vm2509, 1.0, -1.0
      %v2542 = vsel %vm2510, 1.0, -1.0
      %v2543 = vsel %vm2511, 1.0, -1.0
      %v2544 = vsel %vm2512, 1.0, -1.0
      %v2545 = vsel %vm2513, 1.0, -1.0
      %v2546 = vsel %vm2514, 1.0, -1.0
      %v2547 = vsel %vm2515, 1.0, -1.0
      %v2548 = vsel %vm2516, 1.0, -1.0
      %v2549 = vsel %vm2517, 1.0, -1.0
      %v2550 = vsel %vm2518, 1.0, -1.0
      %v2551 = vsel %vm2519, 1.0, -1.0
      %v2552 = vsel %vm2520, 1.0, -1.0
      %v2553 = vsel %vm2521, 1.0, -1.0
      %v2554 = vsel %vm2522, 1.0, -1.0
      %v2555 = vsub.f32 1.0, %v2268
      %v2556 = vsub.f32 1.0, %v2270
      %v2557 = vsub.f32 1.0, %v2272
      %v2558 = vsub.f32 1.0, %v2274
      %v2559 = vsub.f32 1.0, %v2276
      %v2560 = vsub.f32 1.0, %v2278
      %v2561 = vsub.f32 1.0, %v2280
      %v2562 = vsub.f32 1.0, %v2282
      %v2563 = vsub.f32 1.0, %v2284
      %v2564 = vsub.f32 1.0, %v2286
      %v2565 = vsub.f32 1.0, %v2288
      %v2566 = vsub.f32 1.0, %v2290
      %v2567 = vsub.f32 1.0, %v2292
      %v2568 = vsub.f32 1.0, %v2294
      %v2569 = vsub.f32 1.0, %v2296
      %v2570 = vsub.f32 1.0, %v2298
      %v2571 = vsub.f32 1.0, %v2300
      %v2572 = vsub.f32 1.0, %v2302
      %v2573 = vsub.f32 1.0, %v2304
      %v2574 = vsub.f32 1.0, %v2306
      %v2575 = vsub.f32 1.0, %v2308
      %v2576 = vsub.f32 1.0, %v2310
      %v2577 = vsub.f32 1.0, %v2312
      %v2578 = vsub.f32 1.0, %v2314
      %v2579 = vsub.f32 1.0, %v2316
      %v2580 = vsub.f32 1.0, %v2318
      %v2581 = vsub.f32 1.0, %v2320
      %v2582 = vsub.f32 1.0, %v2322
      %v2583 = vsub.f32 1.0, %v2324
      %v2584 = vsub.f32 1.0, %v2326
      %v2585 = vsub.f32 1.0, %v2328
      %v2586 = vsub.f32 1.0, %v2330
      %v2587 = vmul.f32 %v2523, %v2555
      %v2588 = vmul.f32 %v2524, %v2556
      %v2589 = vmul.f32 %v2525, %v2557
      %v2590 = vmul.f32 %v2526, %v2558
      %v2591 = vmul.f32 %v2527, %v2559
      %v2592 = vmul.f32 %v2528, %v2560
      %v2593 = vmul.f32 %v2529, %v2561
      %v2594 = vmul.f32 %v2530, %v2562
      %v2595 = vmul.f32 %v2531, %v2563
      %v2596 = vmul.f32 %v2532, %v2564
      %v2597 = vmul.f32 %v2533, %v2565
      %v2598 = vmul.f32 %v2534, %v2566
      %v2599 = vmul.f32 %v2535, %v2567
      %v2600 = vmul.f32 %v2536, %v2568
      %v2601 = vmul.f32 %v2537, %v2569
      %v2602 = vmul.f32 %v2538, %v2570
      %v2603 = vmul.f32 %v2539, %v2571
      %v2604 = vmul.f32 %v2540, %v2572
      %v2605 = vmul.f32 %v2541, %v2573
      %v2606 = vmul.f32 %v2542, %v2574
      %v2607 = vmul.f32 %v2543, %v2575
      %v2608 = vmul.f32 %v2544, %v2576
      %v2609 = vmul.f32 %v2545, %v2577
      %v2610 = vmul.f32 %v2546, %v2578
      %v2611 = vmul.f32 %v2547, %v2579
      %v2612 = vmul.f32 %v2548, %v2580
      %v2613 = vmul.f32 %v2549, %v2581
      %v2614 = vmul.f32 %v2550, %v2582
      %v2615 = vmul.f32 %v2551, %v2583
      %v2616 = vmul.f32 %v2552, %v2584
      %v2617 = vmul.f32 %v2553, %v2585
      %v2618 = vmul.f32 %v2554, %v2586
      %v2619 = vmul.f32 %v2587, %v2459
      %v2620 = vmul.f32 %v2588, %v2460
      %v2621 = vmul.f32 %v2589, %v2461
      %v2622 = vmul.f32 %v2590, %v2462
      %v2623 = vmul.f32 %v2591, %v2463
      %v2624 = vmul.f32 %v2592, %v2464
      %v2625 = vmul.f32 %v2593, %v2465
      %v2626 = vmul.f32 %v2594, %v2466
      %v2627 = vmul.f32 %v2595, %v2467
      %v2628 = vmul.f32 %v2596, %v2468
      %v2629 = vmul.f32 %v2597, %v2469
      %v2630 = vmul.f32 %v2598, %v2470
      %v2631 = vmul.f32 %v2599, %v2471
      %v2632 = vmul.f32 %v2600, %v2472
      %v2633 = vmul.f32 %v2601, %v2473
      %v2634 = vmul.f32 %v2602, %v2474
      %v2635 = vmul.f32 %v2603, %v2475
      %v2636 = vmul.f32 %v2604, %v2476
      %v2637 = vmul.f32 %v2605, %v2477
      %v2638 = vmul.f32 %v2606, %v2478
      %v2639 = vmul.f32 %v2607, %v2479
      %v2640 = vmul.f32 %v2608, %v2480
      %v2641 = vmul.f32 %v2609, %v2481
      %v2642 = vmul.f32 %v2610, %v2482
      %v2643 = vmul.f32 %v2611, %v2483
      %v2644 = vmul.f32 %v2612, %v2484
      %v2645 = vmul.f32 %v2613, %v2485
      %v2646 = vmul.f32 %v2614, %v2486
      %v2647 = vmul.f32 %v2615, %v2487
      %v2648 = vmul.f32 %v2616, %v2488
      %v2649 = vmul.f32 %v2617, %v2489
      %v2650 = vmul.f32 %v2618, %v2490
      %v2651 = vsub.f32 %v2203, 0.6931472
      %v2652 = vsub.f32 %v2204, 0.6931472
      %v2653 = vsub.f32 %v2205, 0.6931472
      %v2654 = vsub.f32 %v2206, 0.6931472
      %v2655 = vsub.f32 %v2207, 0.6931472
      %v2656 = vsub.f32 %v2208, 0.6931472
      %v2657 = vsub.f32 %v2209, 0.6931472
      %v2658 = vsub.f32 %v2210, 0.6931472
      %v2659 = vsub.f32 %v2211, 0.6931472
      %v2660 = vsub.f32 %v2212, 0.6931472
      %v2661 = vsub.f32 %v2213, 0.6931472
      %v2662 = vsub.f32 %v2214, 0.6931472
      %v2663 = vsub.f32 %v2215, 0.6931472
      %v2664 = vsub.f32 %v2216, 0.6931472
      %v2665 = vsub.f32 %v2217, 0.6931472
      %v2666 = vsub.f32 %v2218, 0.6931472
      %v2667 = vsub.f32 %v2219, 0.6931472
      %v2668 = vsub.f32 %v2220, 0.6931472
      %v2669 = vsub.f32 %v2221, 0.6931472
      %v2670 = vsub.f32 %v2222, 0.6931472
      %v2671 = vsub.f32 %v2223, 0.6931472
      %v2672 = vsub.f32 %v2224, 0.6931472
      %v2673 = vsub.f32 %v2225, 0.6931472
      %v2674 = vsub.f32 %v2226, 0.6931472
      %v2675 = vsub.f32 %v2227, 0.6931472
      %v2676 = vsub.f32 %v2228, 0.6931472
      %v2677 = vsub.f32 %v2229, 0.6931472
      %v2678 = vsub.f32 %v2230, 0.6931472
      %v2679 = vsub.f32 %v2231, 0.6931472
      %v2680 = vsub.f32 %v2232, 0.6931472
      %v2681 = vsub.f32 %v2233, 0.6931472
      %v2682 = vsub.f32 %v2234, 0.6931472
      %v2683 = vadd.f32 %v2268, 1.0
      %v2684 = vlog2.pop %v2683
      %v2685 = vmul.f32 %v2684, 0.6931472
      %v2686 = vmul.f32 -0.5, %v2268
      %v2687 = vadd.f32 %v2686, 1.0
      %v2688 = vmul.f32 %v2687, %v2268
      %v2689 = vand.u32 2147483647, %v2268
      %vm2690 = vcmp.lt.f32.partialorder %v2689, 0.0004427343
      %v2691 = vsel %vm2690, %v2688, %v2685
      %v2692 = vadd.f32 %v2270, 1.0
      %v2693 = vlog2.pop %v2692
      %v2694 = vmul.f32 %v2693, 0.6931472
      %v2695 = vmul.f32 -0.5, %v2270
      %v2696 = vadd.f32 %v2695, 1.0
      %v2697 = vmul.f32 %v2696, %v2270
      %v2698 = vand.u32 2147483647, %v2270
      %vm2699 = vcmp.lt.f32.partialorder %v2698, 0.0004427343
      %v2700 = vsel %vm2699, %v2697, %v2694
      %v2701 = vadd.f32 %v2272, 1.0
      %v2702 = vlog2.pop %v2701
      %v2703 = vmul.f32 %v2702, 0.6931472
      %v2704 = vmul.f32 -0.5, %v2272
      %v2705 = vadd.f32 %v2704, 1.0
      %v2706 = vmul.f32 %v2705, %v2272
      %v2707 = vand.u32 2147483647, %v2272
      %vm2708 = vcmp.lt.f32.partialorder %v2707, 0.0004427343
      %v2709 = vsel %vm2708, %v2706, %v2703
      %v2710 = vadd.f32 %v2274, 1.0
      %v2711 = vlog2.pop %v2710
      %v2712 = vmul.f32 %v2711, 0.6931472
      %v2713 = vmul.f32 -0.5, %v2274
      %v2714 = vadd.f32 %v2713, 1.0
      %v2715 = vmul.f32 %v2714, %v2274
      %v2716 = vand.u32 2147483647, %v2274
      %vm2717 = vcmp.lt.f32.partialorder %v2716, 0.0004427343
      %v2718 = vsel %vm2717, %v2715, %v2712
      %v2719 = vadd.f32 %v2276, 1.0
      %v2720 = vlog2.pop %v2719
      %v2721 = vmul.f32 %v2720, 0.6931472
      %v2722 = vmul.f32 -0.5, %v2276
      %v2723 = vadd.f32 %v2722, 1.0
      %v2724 = vmul.f32 %v2723, %v2276
      %v2725 = vand.u32 2147483647, %v2276
      %vm2726 = vcmp.lt.f32.partialorder %v2725, 0.0004427343
      %v2727 = vsel %vm2726, %v2724, %v2721
      %v2728 = vadd.f32 %v2278, 1.0
      %v2729 = vlog2.pop %v2728
      %v2730 = vmul.f32 %v2729, 0.6931472
      %v2731 = vmul.f32 -0.5, %v2278
      %v2732 = vadd.f32 %v2731, 1.0
      %v2733 = vmul.f32 %v2732, %v2278
      %v2734 = vand.u32 2147483647, %v2278
      %vm2735 = vcmp.lt.f32.partialorder %v2734, 0.0004427343
      %v2736 = vsel %vm2735, %v2733, %v2730
      %v2737 = vadd.f32 %v2280, 1.0
      %v2738 = vlog2.pop %v2737
      %v2739 = vmul.f32 %v2738, 0.6931472
      %v2740 = vmul.f32 -0.5, %v2280
      %v2741 = vadd.f32 %v2740, 1.0
      %v2742 = vmul.f32 %v2741, %v2280
      %v2743 = vand.u32 2147483647, %v2280
      %vm2744 = vcmp.lt.f32.partialorder %v2743, 0.0004427343
      %v2745 = vsel %vm2744, %v2742, %v2739
      %v2746 = vadd.f32 %v2282, 1.0
      %v2747 = vlog2.pop %v2746
      %v2748 = vmul.f32 %v2747, 0.6931472
      %v2749 = vmul.f32 -0.5, %v2282
      %v2750 = vadd.f32 %v2749, 1.0
      %v2751 = vmul.f32 %v2750, %v2282
      %v2752 = vand.u32 2147483647, %v2282
      %vm2753 = vcmp.lt.f32.partialorder %v2752, 0.0004427343
      %v2754 = vsel %vm2753, %v2751, %v2748
      %v2755 = vadd.f32 %v2284, 1.0
      %v2756 = vlog2.pop %v2755
      %v2757 = vmul.f32 %v2756, 0.6931472
      %v2758 = vmul.f32 -0.5, %v2284
      %v2759 = vadd.f32 %v2758, 1.0
      %v2760 = vmul.f32 %v2759, %v2284
      %v2761 = vand.u32 2147483647, %v2284
      %vm2762 = vcmp.lt.f32.partialorder %v2761, 0.0004427343
      %v2763 = vsel %vm2762, %v2760, %v2757
      %v2764 = vadd.f32 %v2286, 1.0
      %v2765 = vlog2.pop %v2764
      %v2766 = vmul.f32 %v2765, 0.6931472
      %v2767 = vmul.f32 -0.5, %v2286
      %v2768 = vadd.f32 %v2767, 1.0
      %v2769 = vmul.f32 %v2768, %v2286
      %v2770 = vand.u32 2147483647, %v2286
      %vm2771 = vcmp.lt.f32.partialorder %v2770, 0.0004427343
      %v2772 = vsel %vm2771, %v2769, %v2766
      %v2773 = vadd.f32 %v2288, 1.0
      %v2774 = vlog2.pop %v2773
      %v2775 = vmul.f32 %v2774, 0.6931472
      %v2776 = vmul.f32 -0.5, %v2288
      %v2777 = vadd.f32 %v2776, 1.0
      %v2778 = vmul.f32 %v2777, %v2288
      %v2779 = vand.u32 2147483647, %v2288
      %vm2780 = vcmp.lt.f32.partialorder %v2779, 0.0004427343
      %v2781 = vsel %vm2780, %v2778, %v2775
      %v2782 = vadd.f32 %v2290, 1.0
      %v2783 = vlog2.pop %v2782
      %v2784 = vmul.f32 %v2783, 0.6931472
      %v2785 = vmul.f32 -0.5, %v2290
      %v2786 = vadd.f32 %v2785, 1.0
      %v2787 = vmul.f32 %v2786, %v2290
      %v2788 = vand.u32 2147483647, %v2290
      %vm2789 = vcmp.lt.f32.partialorder %v2788, 0.0004427343
      %v2790 = vsel %vm2789, %v2787, %v2784
      %v2791 = vadd.f32 %v2292, 1.0
      %v2792 = vlog2.pop %v2791
      %v2793 = vmul.f32 %v2792, 0.6931472
      %v2794 = vmul.f32 -0.5, %v2292
      %v2795 = vadd.f32 %v2794, 1.0
      %v2796 = vmul.f32 %v2795, %v2292
      %v2797 = vand.u32 2147483647, %v2292
      %vm2798 = vcmp.lt.f32.partialorder %v2797, 0.0004427343
      %v2799 = vsel %vm2798, %v2796, %v2793
      %v2800 = vadd.f32 %v2294, 1.0
      %v2801 = vlog2.pop %v2800
      %v2802 = vmul.f32 %v2801, 0.6931472
      %v2803 = vmul.f32 -0.5, %v2294
      %v2804 = vadd.f32 %v2803, 1.0
      %v2805 = vmul.f32 %v2804, %v2294
      %v2806 = vand.u32 2147483647, %v2294
      %vm2807 = vcmp.lt.f32.partialorder %v2806, 0.0004427343
      %v2808 = vsel %vm2807, %v2805, %v2802
      %v2809 = vadd.f32 %v2296, 1.0
      %v2810 = vlog2.pop %v2809
      %v2811 = vmul.f32 %v2810, 0.6931472
      %v2812 = vmul.f32 -0.5, %v2296
      %v2813 = vadd.f32 %v2812, 1.0
      %v2814 = vmul.f32 %v2813, %v2296
      %v2815 = vand.u32 2147483647, %v2296
      %vm2816 = vcmp.lt.f32.partialorder %v2815, 0.0004427343
      %v2817 = vsel %vm2816, %v2814, %v2811
      %v2818 = vadd.f32 %v2298, 1.0
      %v2819 = vlog2.pop %v2818
      %v2820 = vmul.f32 %v2819, 0.6931472
      %v2821 = vmul.f32 -0.5, %v2298
      %v2822 = vadd.f32 %v2821, 1.0
      %v2823 = vmul.f32 %v2822, %v2298
      %v2824 = vand.u32 2147483647, %v2298
      %vm2825 = vcmp.lt.f32.partialorder %v2824, 0.0004427343
      %v2826 = vsel %vm2825, %v2823, %v2820
      %v2827 = vadd.f32 %v2300, 1.0
      %v2828 = vlog2.pop %v2827
      %v2829 = vmul.f32 %v2828, 0.6931472
      %v2830 = vmul.f32 -0.5, %v2300
      %v2831 = vadd.f32 %v2830, 1.0
      %v2832 = vmul.f32 %v2831, %v2300
      %v2833 = vand.u32 2147483647, %v2300
      %vm2834 = vcmp.lt.f32.partialorder %v2833, 0.0004427343
      %v2835 = vsel %vm2834, %v2832, %v2829
      %v2836 = vadd.f32 %v2302, 1.0
      %v2837 = vlog2.pop %v2836
      %v2838 = vmul.f32 %v2837, 0.6931472
      %v2839 = vmul.f32 -0.5, %v2302
      %v2840 = vadd.f32 %v2839, 1.0
      %v2841 = vmul.f32 %v2840, %v2302
      %v2842 = vand.u32 2147483647, %v2302
      %vm2843 = vcmp.lt.f32.partialorder %v2842, 0.0004427343
      %v2844 = vsel %vm2843, %v2841, %v2838
      %v2845 = vadd.f32 %v2304, 1.0
      %v2846 = vlog2.pop %v2845
      %v2847 = vmul.f32 %v2846, 0.6931472
      %v2848 = vmul.f32 -0.5, %v2304
      %v2849 = vadd.f32 %v2848, 1.0
      %v2850 = vmul.f32 %v2849, %v2304
      %v2851 = vand.u32 2147483647, %v2304
      %vm2852 = vcmp.lt.f32.partialorder %v2851, 0.0004427343
      %v2853 = vsel %vm2852, %v2850, %v2847
      %v2854 = vadd.f32 %v2306, 1.0
      %v2855 = vlog2.pop %v2854
      %v2856 = vmul.f32 %v2855, 0.6931472
      %v2857 = vmul.f32 -0.5, %v2306
      %v2858 = vadd.f32 %v2857, 1.0
      %v2859 = vmul.f32 %v2858, %v2306
      %v2860 = vand.u32 2147483647, %v2306
      %vm2861 = vcmp.lt.f32.partialorder %v2860, 0.0004427343
      %v2862 = vsel %vm2861, %v2859, %v2856
      %v2863 = vadd.f32 %v2308, 1.0
      %v2864 = vlog2.pop %v2863
      %v2865 = vmul.f32 %v2864, 0.6931472
      %v2866 = vmul.f32 -0.5, %v2308
      %v2867 = vadd.f32 %v2866, 1.0
      %v2868 = vmul.f32 %v2867, %v2308
      %v2869 = vand.u32 2147483647, %v2308
      %vm2870 = vcmp.lt.f32.partialorder %v2869, 0.0004427343
      %v2871 = vsel %vm2870, %v2868, %v2865
      %v2872 = vadd.f32 %v2310, 1.0
      %v2873 = vlog2.pop %v2872
      %v2874 = vmul.f32 %v2873, 0.6931472
      %v2875 = vmul.f32 -0.5, %v2310
      %v2876 = vadd.f32 %v2875, 1.0
      %v2877 = vmul.f32 %v2876, %v2310
      %v2878 = vand.u32 2147483647, %v2310
      %vm2879 = vcmp.lt.f32.partialorder %v2878, 0.0004427343
      %v2880 = vsel %vm2879, %v2877, %v2874
      %v2881 = vadd.f32 %v2312, 1.0
      %v2882 = vlog2.pop %v2881
      %v2883 = vmul.f32 %v2882, 0.6931472
      %v2884 = vmul.f32 -0.5, %v2312
      %v2885 = vadd.f32 %v2884, 1.0
      %v2886 = vmul.f32 %v2885, %v2312
      %v2887 = vand.u32 2147483647, %v2312
      %vm2888 = vcmp.lt.f32.partialorder %v2887, 0.0004427343
      %v2889 = vsel %vm2888, %v2886, %v2883
      %v2890 = vadd.f32 %v2314, 1.0
      %v2891 = vlog2.pop %v2890
      %v2892 = vmul.f32 %v2891, 0.6931472
      %v2893 = vmul.f32 -0.5, %v2314
      %v2894 = vadd.f32 %v2893, 1.0
      %v2895 = vmul.f32 %v2894, %v2314
      %v2896 = vand.u32 2147483647, %v2314
      %vm2897 = vcmp.lt.f32.partialorder %v2896, 0.0004427343
      %v2898 = vsel %vm2897, %v2895, %v2892
      %v2899 = vadd.f32 %v2316, 1.0
      %v2900 = vlog2.pop %v2899
      %v2901 = vmul.f32 %v2900, 0.6931472
      %v2902 = vmul.f32 -0.5, %v2316
      %v2903 = vadd.f32 %v2902, 1.0
      %v2904 = vmul.f32 %v2903, %v2316
      %v2905 = vand.u32 2147483647, %v2316
      %vm2906 = vcmp.lt.f32.partialorder %v2905, 0.0004427343
      %v2907 = vsel %vm2906, %v2904, %v2901
      %v2908 = vadd.f32 %v2318, 1.0
      %v2909 = vlog2.pop %v2908
      %v2910 = vmul.f32 %v2909, 0.6931472
      %v2911 = vmul.f32 -0.5, %v2318
      %v2912 = vadd.f32 %v2911, 1.0
      %v2913 = vmul.f32 %v2912, %v2318
      %v2914 = vand.u32 2147483647, %v2318
      %vm2915 = vcmp.lt.f32.partialorder %v2914, 0.0004427343
      %v2916 = vsel %vm2915, %v2913, %v2910
      %v2917 = vadd.f32 %v2320, 1.0
      %v2918 = vlog2.pop %v2917
      %v2919 = vmul.f32 %v2918, 0.6931472
      %v2920 = vmul.f32 -0.5, %v2320
      %v2921 = vadd.f32 %v2920, 1.0
      %v2922 = vmul.f32 %v2921, %v2320
      %v2923 = vand.u32 2147483647, %v2320
      %vm2924 = vcmp.lt.f32.partialorder %v2923, 0.0004427343
      %v2925 = vsel %vm2924, %v2922, %v2919
      %v2926 = vadd.f32 %v2322, 1.0
      %v2927 = vlog2.pop %v2926
      %v2928 = vmul.f32 %v2927, 0.6931472
      %v2929 = vmul.f32 -0.5, %v2322
      %v2930 = vadd.f32 %v2929, 1.0
      %v2931 = vmul.f32 %v2930, %v2322
      %v2932 = vand.u32 2147483647, %v2322
      %vm2933 = vcmp.lt.f32.partialorder %v2932, 0.0004427343
      %v2934 = vsel %vm2933, %v2931, %v2928
      %v2935 = vadd.f32 %v2324, 1.0
      %v2936 = vlog2.pop %v2935
      %v2937 = vmul.f32 %v2936, 0.6931472
      %v2938 = vmul.f32 -0.5, %v2324
      %v2939 = vadd.f32 %v2938, 1.0
      %v2940 = vmul.f32 %v2939, %v2324
      %v2941 = vand.u32 2147483647, %v2324
      %vm2942 = vcmp.lt.f32.partialorder %v2941, 0.0004427343
      %v2943 = vsel %vm2942, %v2940, %v2937
      %v2944 = vadd.f32 %v2326, 1.0
      %v2945 = vlog2.pop %v2944
      %v2946 = vmul.f32 %v2945, 0.6931472
      %v2947 = vmul.f32 -0.5, %v2326
      %v2948 = vadd.f32 %v2947, 1.0
      %v2949 = vmul.f32 %v2948, %v2326
      %v2950 = vand.u32 2147483647, %v2326
      %vm2951 = vcmp.lt.f32.partialorder %v2950, 0.0004427343
      %v2952 = vsel %vm2951, %v2949, %v2946
      %v2953 = vadd.f32 %v2328, 1.0
      %v2954 = vlog2.pop %v2953
      %v2955 = vmul.f32 %v2954, 0.6931472
      %v2956 = vmul.f32 -0.5, %v2328
      %v2957 = vadd.f32 %v2956, 1.0
      %v2958 = vmul.f32 %v2957, %v2328
      %v2959 = vand.u32 2147483647, %v2328
      %vm2960 = vcmp.lt.f32.partialorder %v2959, 0.0004427343
      %v2961 = vsel %vm2960, %v2958, %v2955
      %v2962 = vadd.f32 %v2330, 1.0
      %v2963 = vlog2.pop %v2962
      %v2964 = vmul.f32 %v2963, 0.6931472
      %v2965 = vmul.f32 -0.5, %v2330
      %v2966 = vadd.f32 %v2965, 1.0
      %v2967 = vmul.f32 %v2966, %v2330
      %v2968 = vand.u32 2147483647, %v2330
      %vm2969 = vcmp.lt.f32.partialorder %v2968, 0.0004427343
      %v2970 = vsel %vm2969, %v2967, %v2964
      %v2971 = vadd.f32 %v2651, %v2691
      %v2972 = vadd.f32 %v2652, %v2700
      %v2973 = vadd.f32 %v2653, %v2709
      %v2974 = vadd.f32 %v2654, %v2718
      %v2975 = vadd.f32 %v2655, %v2727
      %v2976 = vadd.f32 %v2656, %v2736
      %v2977 = vadd.f32 %v2657, %v2745
      %v2978 = vadd.f32 %v2658, %v2754
      %v2979 = vadd.f32 %v2659, %v2763
      %v2980 = vadd.f32 %v2660, %v2772
      %v2981 = vadd.f32 %v2661, %v2781
      %v2982 = vadd.f32 %v2662, %v2790
      %v2983 = vadd.f32 %v2663, %v2799
      %v2984 = vadd.f32 %v2664, %v2808
      %v2985 = vadd.f32 %v2665, %v2817
      %v2986 = vadd.f32 %v2666, %v2826
      %v2987 = vadd.f32 %v2667, %v2835
      %v2988 = vadd.f32 %v2668, %v2844
      %v2989 = vadd.f32 %v2669, %v2853
      %v2990 = vadd.f32 %v2670, %v2862
      %v2991 = vadd.f32 %v2671, %v2871
      %v2992 = vadd.f32 %v2672, %v2880
      %v2993 = vadd.f32 %v2673, %v2889
      %v2994 = vadd.f32 %v2674, %v2898
      %v2995 = vadd.f32 %v2675, %v2907
      %v2996 = vadd.f32 %v2676, %v2916
      %v2997 = vadd.f32 %v2677, %v2925
      %v2998 = vadd.f32 %v2678, %v2934
      %v2999 = vadd.f32 %v2679, %v2943
      %v3000 = vadd.f32 %v2680, %v2952
      %v3001 = vadd.f32 %v2681, %v2961
      %v3002 = vadd.f32 %v2682, %v2970
      %v3003 = vmul.f32 %v2971, -2.0
      %v3004 = vmul.f32 %v2972, -2.0
      %v3005 = vmul.f32 %v2973, -2.0
      %v3006 = vmul.f32 %v2974, -2.0
      %v3007 = vmul.f32 %v2975, -2.0
      %v3008 = vmul.f32 %v2976, -2.0
      %v3009 = vmul.f32 %v2977, -2.0
      %v3010 = vmul.f32 %v2978, -2.0
      %v3011 = vmul.f32 %v2979, -2.0
      %v3012 = vmul.f32 %v2980, -2.0
      %v3013 = vmul.f32 %v2981, -2.0
      %v3014 = vmul.f32 %v2982, -2.0
      %v3015 = vmul.f32 %v2983, -2.0
      %v3016 = vmul.f32 %v2984, -2.0
      %v3017 = vmul.f32 %v2985, -2.0
      %v3018 = vmul.f32 %v2986, -2.0
      %v3019 = vmul.f32 %v2987, -2.0
      %v3020 = vmul.f32 %v2988, -2.0
      %v3021 = vmul.f32 %v2989, -2.0
      %v3022 = vmul.f32 %v2990, -2.0
      %v3023 = vmul.f32 %v2991, -2.0
      %v3024 = vmul.f32 %v2992, -2.0
      %v3025 = vmul.f32 %v2993, -2.0
      %v3026 = vmul.f32 %v2994, -2.0
      %v3027 = vmul.f32 %v2995, -2.0
      %v3028 = vmul.f32 %v2996, -2.0
      %v3029 = vmul.f32 %v2997, -2.0
      %v3030 = vmul.f32 %v2998, -2.0
      %v3031 = vmul.f32 %v2999, -2.0
      %v3032 = vmul.f32 %v3000, -2.0
      %v3033 = vmul.f32 %v3001, -2.0
      %v3034 = vmul.f32 %v3002, -2.0
      %vm3035 = vcmask 64512
      %v3036 = vsel %vm3035, %v1959, -inf
      %3037 = vmax.xlane.f32.xlu0 %v3036
      %v3038 = vpop.xlane.xlu0 %3037
      %v3039 = vsel %vm3035, %v1960, -inf
      %3040 = vmax.xlane.f32.xlu0 %v3039
      %v3041 = vpop.xlane.xlu0 %3040
      %v3042 = vsel %vm3035, %v1961, -inf
      %3043 = vmax.xlane.f32.xlu0 %v3042
      %v3044 = vpop.xlane.xlu0 %3043
      %v3045 = vsel %vm3035, %v1962, -inf
      %3046 = vmax.xlane.f32.xlu0 %v3045
      %v3047 = vpop.xlane.xlu0 %3046
      %v3048 = vsel %vm3035, %v1963, -inf
      %3049 = vmax.xlane.f32.xlu0 %v3048
      %v3050 = vpop.xlane.xlu0 %3049
      %v3051 = vsel %vm3035, %v1964, -inf
      %3052 = vmax.xlane.f32.xlu0 %v3051
      %v3053 = vpop.xlane.xlu0 %3052
      %v3054 = vsel %vm3035, %v1965, -inf
      %3055 = vmax.xlane.f32.xlu0 %v3054
      %v3056 = vpop.xlane.xlu0 %3055
      %v3057 = vsel %vm3035, %v1966, -inf
      %3058 = vmax.xlane.f32.xlu0 %v3057
      %v3059 = vpop.xlane.xlu0 %3058
      %v3060 = vsel %vm3035, %v1967, -inf
      %3061 = vmax.xlane.f32.xlu0 %v3060
      %v3062 = vpop.xlane.xlu0 %3061
      %v3063 = vsel %vm3035, %v1968, -inf
      %3064 = vmax.xlane.f32.xlu0 %v3063
      %v3065 = vpop.xlane.xlu0 %3064
      %v3066 = vsel %vm3035, %v1969, -inf
      %3067 = vmax.xlane.f32.xlu0 %v3066
      %v3068 = vpop.xlane.xlu0 %3067
      %v3069 = vsel %vm3035, %v1970, -inf
      %3070 = vmax.xlane.f32.xlu0 %v3069
      %v3071 = vpop.xlane.xlu0 %3070
      %v3072 = vsel %vm3035, %v1971, -inf
      %3073 = vmax.xlane.f32.xlu0 %v3072
      %v3074 = vpop.xlane.xlu0 %3073
      %v3075 = vsel %vm3035, %v1972, -inf
      %3076 = vmax.xlane.f32.xlu0 %v3075
      %v3077 = vpop.xlane.xlu0 %3076
      %v3078 = vsel %vm3035, %v1973, -inf
      %3079 = vmax.xlane.f32.xlu0 %v3078
      %v3080 = vpop.xlane.xlu0 %3079
      %v3081 = vsel %vm3035, %v1974, -inf
      %3082 = vmax.xlane.f32.xlu0 %v3081
      %v3083 = vpop.xlane.xlu0 %3082
      %v3084 = vsel %vm3035, %v1975, -inf
      %3085 = vmax.xlane.f32.xlu0 %v3084
      %v3086 = vpop.xlane.xlu0 %3085
      %v3087 = vsel %vm3035, %v1976, -inf
      %3088 = vmax.xlane.f32.xlu0 %v3087
      %v3089 = vpop.xlane.xlu0 %3088
      %v3090 = vsel %vm3035, %v1977, -inf
      %3091 = vmax.xlane.f32.xlu0 %v3090
      %v3092 = vpop.xlane.xlu0 %3091
      %v3093 = vsel %vm3035, %v1978, -inf
      %3094 = vmax.xlane.f32.xlu0 %v3093
      %v3095 = vpop.xlane.xlu0 %3094
      %v3096 = vsel %vm3035, %v1979, -inf
      %3097 = vmax.xlane.f32.xlu0 %v3096
      %v3098 = vpop.xlane.xlu0 %3097
      %v3099 = vsel %vm3035, %v1980, -inf
      %3100 = vmax.xlane.f32.xlu0 %v3099
      %v3101 = vpop.xlane.xlu0 %3100
      %v3102 = vsel %vm3035, %v1981, -inf
      %3103 = vmax.xlane.f32.xlu0 %v3102
      %v3104 = vpop.xlane.xlu0 %3103
      %v3105 = vsel %vm3035, %v1982, -inf
      %3106 = vmax.xlane.f32.xlu0 %v3105
      %v3107 = vpop.xlane.xlu0 %3106
      %v3108 = vsel %vm3035, %v1983, -inf
      %3109 = vmax.xlane.f32.xlu0 %v3108
      %v3110 = vpop.xlane.xlu0 %3109
      %v3111 = vsel %vm3035, %v1984, -inf
      %3112 = vmax.xlane.f32.xlu0 %v3111
      %v3113 = vpop.xlane.xlu0 %3112
      %v3114 = vsel %vm3035, %v1985, -inf
      %3115 = vmax.xlane.f32.xlu0 %v3114
      %v3116 = vpop.xlane.xlu0 %3115
      %v3117 = vsel %vm3035, %v1986, -inf
      %3118 = vmax.xlane.f32.xlu0 %v3117
      %v3119 = vpop.xlane.xlu0 %3118
      %v3120 = vsel %vm3035, %v1987, -inf
      %3121 = vmax.xlane.f32.xlu0 %v3120
      %v3122 = vpop.xlane.xlu0 %3121
      %v3123 = vsel %vm3035, %v1988, -inf
      %3124 = vmax.xlane.f32.xlu0 %v3123
      %v3125 = vpop.xlane.xlu0 %3124
      %v3126 = vsel %vm3035, %v1989, -inf
      %3127 = vmax.xlane.f32.xlu0 %v3126
      %v3128 = vpop.xlane.xlu0 %3127
      %v3129 = vsel %vm3035, %v1990, -inf
      %3130 = vmax.xlane.f32.xlu0 %v3129
      %v3131 = vpop.xlane.xlu0 %3130
      %vm3132 = vcmask 130112
      %v3133 = vsel %vm3132, %v1959, -inf
      %3134 = vmax.xlane.f32.xlu0 %v3133
      %v3135 = vpop.xlane.xlu0 %3134
      %v3136 = vsel %vm3132, %v1960, -inf
      %3137 = vmax.xlane.f32.xlu0 %v3136
      %v3138 = vpop.xlane.xlu0 %3137
      %v3139 = vsel %vm3132, %v1961, -inf
      %3140 = vmax.xlane.f32.xlu0 %v3139
      %v3141 = vpop.xlane.xlu0 %3140
      %v3142 = vsel %vm3132, %v1962, -inf
      %3143 = vmax.xlane.f32.xlu0 %v3142
      %v3144 = vpop.xlane.xlu0 %3143
      %v3145 = vsel %vm3132, %v1963, -inf
      %3146 = vmax.xlane.f32.xlu0 %v3145
      %v3147 = vpop.xlane.xlu0 %3146
      %v3148 = vsel %vm3132, %v1964, -inf
      %3149 = vmax.xlane.f32.xlu0 %v3148
      %v3150 = vpop.xlane.xlu0 %3149
      %v3151 = vsel %vm3132, %v1965, -inf
      %3152 = vmax.xlane.f32.xlu0 %v3151
      %v3153 = vpop.xlane.xlu0 %3152
      %v3154 = vsel %vm3132, %v1966, -inf
      %3155 = vmax.xlane.f32.xlu0 %v3154
      %v3156 = vpop.xlane.xlu0 %3155
      %v3157 = vsel %vm3132, %v1967, -inf
      %3158 = vmax.xlane.f32.xlu0 %v3157
      %v3159 = vpop.xlane.xlu0 %3158
      %v3160 = vsel %vm3132, %v1968, -inf
      %3161 = vmax.xlane.f32.xlu0 %v3160
      %v3162 = vpop.xlane.xlu0 %3161
      %v3163 = vsel %vm3132, %v1969, -inf
      %3164 = vmax.xlane.f32.xlu0 %v3163
      %v3165 = vpop.xlane.xlu0 %3164
      %v3166 = vsel %vm3132, %v1970, -inf
      %3167 = vmax.xlane.f32.xlu0 %v3166
      %v3168 = vpop.xlane.xlu0 %3167
      %v3169 = vsel %vm3132, %v1971, -inf
      %3170 = vmax.xlane.f32.xlu0 %v3169
      %v3171 = vpop.xlane.xlu0 %3170
      %v3172 = vsel %vm3132, %v1972, -inf
      %3173 = vmax.xlane.f32.xlu0 %v3172
      %v3174 = vpop.xlane.xlu0 %3173
      %v3175 = vsel %vm3132, %v1973, -inf
      %3176 = vmax.xlane.f32.xlu0 %v3175
      %v3177 = vpop.xlane.xlu0 %3176
      %v3178 = vsel %vm3132, %v1974, -inf
      %3179 = vmax.xlane.f32.xlu0 %v3178
      %v3180 = vpop.xlane.xlu0 %3179
      %v3181 = vsel %vm3132, %v1975, -inf
      %3182 = vmax.xlane.f32.xlu0 %v3181
      %v3183 = vpop.xlane.xlu0 %3182
      %v3184 = vsel %vm3132, %v1976, -inf
      %3185 = vmax.xlane.f32.xlu0 %v3184
      %v3186 = vpop.xlane.xlu0 %3185
      %v3187 = vsel %vm3132, %v1977, -inf
      %3188 = vmax.xlane.f32.xlu0 %v3187
      %v3189 = vpop.xlane.xlu0 %3188
      %v3190 = vsel %vm3132, %v1978, -inf
      %3191 = vmax.xlane.f32.xlu0 %v3190
      %v3192 = vpop.xlane.xlu0 %3191
      %v3193 = vsel %vm3132, %v1979, -inf
      %3194 = vmax.xlane.f32.xlu0 %v3193
      %v3195 = vpop.xlane.xlu0 %3194
      %v3196 = vsel %vm3132, %v1980, -inf
      %3197 = vmax.xlane.f32.xlu0 %v3196
      %v3198 = vpop.xlane.xlu0 %3197
      %v3199 = vsel %vm3132, %v1981, -inf
      %3200 = vmax.xlane.f32.xlu0 %v3199
      %v3201 = vpop.xlane.xlu0 %3200
      %v3202 = vsel %vm3132, %v1982, -inf
      %3203 = vmax.xlane.f32.xlu0 %v3202
      %v3204 = vpop.xlane.xlu0 %3203
      %v3205 = vsel %vm3132, %v1983, -inf
      %3206 = vmax.xlane.f32.xlu0 %v3205
      %v3207 = vpop.xlane.xlu0 %3206
      %v3208 = vsel %vm3132, %v1984, -inf
      %3209 = vmax.xlane.f32.xlu0 %v3208
      %v3210 = vpop.xlane.xlu0 %3209
      %v3211 = vsel %vm3132, %v1985, -inf
      %3212 = vmax.xlane.f32.xlu0 %v3211
      %v3213 = vpop.xlane.xlu0 %3212
      %v3214 = vsel %vm3132, %v1986, -inf
      %3215 = vmax.xlane.f32.xlu0 %v3214
      %v3216 = vpop.xlane.xlu0 %3215
      %v3217 = vsel %vm3132, %v1987, -inf
      %3218 = vmax.xlane.f32.xlu0 %v3217
      %v3219 = vpop.xlane.xlu0 %3218
      %v3220 = vsel %vm3132, %v1988, -inf
      %3221 = vmax.xlane.f32.xlu0 %v3220
      %v3222 = vpop.xlane.xlu0 %3221
      %v3223 = vsel %vm3132, %v1989, -inf
      %3224 = vmax.xlane.f32.xlu0 %v3223
      %v3225 = vpop.xlane.xlu0 %3224
      %v3226 = vsel %vm3132, %v1990, -inf
      %3227 = vmax.xlane.f32.xlu0 %v3226
      %v3228 = vpop.xlane.xlu0 %3227
      %vm3229 = vcmask 195712
      %v3230 = vsel %vm3229, %v1959, -inf
      %3231 = vmax.xlane.f32.xlu0 %v3230
      %v3232 = vpop.xlane.xlu0 %3231
      %v3233 = vsel %vm3229, %v1960, -inf
      %3234 = vmax.xlane.f32.xlu0 %v3233
      %v3235 = vpop.xlane.xlu0 %3234
      %v3236 = vsel %vm3229, %v1961, -inf
      %3237 = vmax.xlane.f32.xlu0 %v3236
      %v3238 = vpop.xlane.xlu0 %3237
      %v3239 = vsel %vm3229, %v1962, -inf
      %3240 = vmax.xlane.f32.xlu0 %v3239
      %v3241 = vpop.xlane.xlu0 %3240
      %v3242 = vsel %vm3229, %v1963, -inf
      %3243 = vmax.xlane.f32.xlu0 %v3242
      %v3244 = vpop.xlane.xlu0 %3243
      %v3245 = vsel %vm3229, %v1964, -inf
      %3246 = vmax.xlane.f32.xlu0 %v3245
      %v3247 = vpop.xlane.xlu0 %3246
      %v3248 = vsel %vm3229, %v1965, -inf
      %3249 = vmax.xlane.f32.xlu0 %v3248
      %v3250 = vpop.xlane.xlu0 %3249
      %v3251 = vsel %vm3229, %v1966, -inf
      %3252 = vmax.xlane.f32.xlu0 %v3251
      %v3253 = vpop.xlane.xlu0 %3252
      %v3254 = vsel %vm3229, %v1967, -inf
      %3255 = vmax.xlane.f32.xlu0 %v3254
      %v3256 = vpop.xlane.xlu0 %3255
      %v3257 = vsel %vm3229, %v1968, -inf
      %3258 = vmax.xlane.f32.xlu0 %v3257
      %v3259 = vpop.xlane.xlu0 %3258
      %v3260 = vsel %vm3229, %v1969, -inf
      %3261 = vmax.xlane.f32.xlu0 %v3260
      %v3262 = vpop.xlane.xlu0 %3261
      %v3263 = vsel %vm3229, %v1970, -inf
      %3264 = vmax.xlane.f32.xlu0 %v3263
      %v3265 = vpop.xlane.xlu0 %3264
      %v3266 = vsel %vm3229, %v1971, -inf
      %3267 = vmax.xlane.f32.xlu0 %v3266
      %v3268 = vpop.xlane.xlu0 %3267
      %v3269 = vsel %vm3229, %v1972, -inf
      %3270 = vmax.xlane.f32.xlu0 %v3269
      %v3271 = vpop.xlane.xlu0 %3270
      %v3272 = vsel %vm3229, %v1973, -inf
      %3273 = vmax.xlane.f32.xlu0 %v3272
      %v3274 = vpop.xlane.xlu0 %3273
      %v3275 = vsel %vm3229, %v1974, -inf
      %3276 = vmax.xlane.f32.xlu0 %v3275
      %v3277 = vpop.xlane.xlu0 %3276
      %v3278 = vsel %vm3229, %v1975, -inf
      %3279 = vmax.xlane.f32.xlu0 %v3278
      %v3280 = vpop.xlane.xlu0 %3279
      %v3281 = vsel %vm3229, %v1976, -inf
      %3282 = vmax.xlane.f32.xlu0 %v3281
      %v3283 = vpop.xlane.xlu0 %3282
      %v3284 = vsel %vm3229, %v1977, -inf
      %3285 = vmax.xlane.f32.xlu0 %v3284
      %v3286 = vpop.xlane.xlu0 %3285
      %v3287 = vsel %vm3229, %v1978, -inf
      %3288 = vmax.xlane.f32.xlu0 %v3287
      %v3289 = vpop.xlane.xlu0 %3288
      %v3290 = vsel %vm3229, %v1979, -inf
      %3291 = vmax.xlane.f32.xlu0 %v3290
      %v3292 = vpop.xlane.xlu0 %3291
      %v3293 = vsel %vm3229, %v1980, -inf
      %3294 = vmax.xlane.f32.xlu0 %v3293
      %v3295 = vpop.xlane.xlu0 %3294
      %v3296 = vsel %vm3229, %v1981, -inf
      %3297 = vmax.xlane.f32.xlu0 %v3296
      %v3298 = vpop.xlane.xlu0 %3297
      %v3299 = vsel %vm3229, %v1982, -inf
      %3300 = vmax.xlane.f32.xlu0 %v3299
      %v3301 = vpop.xlane.xlu0 %3300
      %v3302 = vsel %vm3229, %v1983, -inf
      %3303 = vmax.xlane.f32.xlu0 %v3302
      %v3304 = vpop.xlane.xlu0 %3303
      %v3305 = vsel %vm3229, %v1984, -inf
      %3306 = vmax.xlane.f32.xlu0 %v3305
      %v3307 = vpop.xlane.xlu0 %3306
      %v3308 = vsel %vm3229, %v1985, -inf
      %3309 = vmax.xlane.f32.xlu0 %v3308
      %v3310 = vpop.xlane.xlu0 %3309
      %v3311 = vsel %vm3229, %v1986, -inf
      %3312 = vmax.xlane.f32.xlu0 %v3311
      %v3313 = vpop.xlane.xlu0 %3312
      %v3314 = vsel %vm3229, %v1987, -inf
      %3315 = vmax.xlane.f32.xlu0 %v3314
      %v3316 = vpop.xlane.xlu0 %3315
      %v3317 = vsel %vm3229, %v1988, -inf
      %3318 = vmax.xlane.f32.xlu0 %v3317
      %v3319 = vpop.xlane.xlu0 %3318
      %v3320 = vsel %vm3229, %v1989, -inf
      %3321 = vmax.xlane.f32.xlu0 %v3320
      %v3322 = vpop.xlane.xlu0 %3321
      %v3323 = vsel %vm3229, %v1990, -inf
      %3324 = vmax.xlane.f32.xlu0 %v3323
      %v3325 = vpop.xlane.xlu0 %3324
      %vm3326 = vcmask 261312
      %v3327 = vsel %vm3326, %v1959, -inf
      %3328 = vmax.xlane.f32.xlu0 %v3327
      %v3329 = vpop.xlane.xlu0 %3328
      %v3330 = vsel %vm3326, %v1960, -inf
      %3331 = vmax.xlane.f32.xlu0 %v3330
      %v3332 = vpop.xlane.xlu0 %3331
      %v3333 = vsel %vm3326, %v1961, -inf
      %3334 = vmax.xlane.f32.xlu0 %v3333
      %v3335 = vpop.xlane.xlu0 %3334
      %v3336 = vsel %vm3326, %v1962, -inf
      %3337 = vmax.xlane.f32.xlu0 %v3336
      %v3338 = vpop.xlane.xlu0 %3337
      %v3339 = vsel %vm3326, %v1963, -inf
      %3340 = vmax.xlane.f32.xlu0 %v3339
      %v3341 = vpop.xlane.xlu0 %3340
      %v3342 = vsel %vm3326, %v1964, -inf
      %3343 = vmax.xlane.f32.xlu0 %v3342
      %v3344 = vpop.xlane.xlu0 %3343
      %v3345 = vsel %vm3326, %v1965, -inf
      %3346 = vmax.xlane.f32.xlu0 %v3345
      %v3347 = vpop.xlane.xlu0 %3346
      %v3348 = vsel %vm3326, %v1966, -inf
      %3349 = vmax.xlane.f32.xlu0 %v3348
      %v3350 = vpop.xlane.xlu0 %3349
      %v3351 = vsel %vm3326, %v1967, -inf
      %3352 = vmax.xlane.f32.xlu0 %v3351
      %v3353 = vpop.xlane.xlu0 %3352
      %v3354 = vsel %vm3326, %v1968, -inf
      %3355 = vmax.xlane.f32.xlu0 %v3354
      %v3356 = vpop.xlane.xlu0 %3355
      %v3357 = vsel %vm3326, %v1969, -inf
      %3358 = vmax.xlane.f32.xlu0 %v3357
      %v3359 = vpop.xlane.xlu0 %3358
      %v3360 = vsel %vm3326, %v1970, -inf
      %3361 = vmax.xlane.f32.xlu0 %v3360
      %v3362 = vpop.xlane.xlu0 %3361
      %v3363 = vsel %vm3326, %v1971, -inf
      %3364 = vmax.xlane.f32.xlu0 %v3363
      %v3365 = vpop.xlane.xlu0 %3364
      %v3366 = vsel %vm3326, %v1972, -inf
      %3367 = vmax.xlane.f32.xlu0 %v3366
      %v3368 = vpop.xlane.xlu0 %3367
      %v3369 = vsel %vm3326, %v1973, -inf
      %3370 = vmax.xlane.f32.xlu0 %v3369
      %v3371 = vpop.xlane.xlu0 %3370
      %v3372 = vsel %vm3326, %v1974, -inf
      %3373 = vmax.xlane.f32.xlu0 %v3372
      %v3374 = vpop.xlane.xlu0 %3373
      %v3375 = vsel %vm3326, %v1975, -inf
      %3376 = vmax.xlane.f32.xlu0 %v3375
      %v3377 = vpop.xlane.xlu0 %3376
      %v3378 = vsel %vm3326, %v1976, -inf
      %3379 = vmax.xlane.f32.xlu0 %v3378
      %v3380 = vpop.xlane.xlu0 %3379
      %v3381 = vsel %vm3326, %v1977, -inf
      %3382 = vmax.xlane.f32.xlu0 %v3381
      %v3383 = vpop.xlane.xlu0 %3382
      %v3384 = vsel %vm3326, %v1978, -inf
      %3385 = vmax.xlane.f32.xlu0 %v3384
      %v3386 = vpop.xlane.xlu0 %3385
      %v3387 = vsel %vm3326, %v1979, -inf
      %3388 = vmax.xlane.f32.xlu0 %v3387
      %v3389 = vpop.xlane.xlu0 %3388
      %v3390 = vsel %vm3326, %v1980, -inf
      %3391 = vmax.xlane.f32.xlu0 %v3390
      %v3392 = vpop.xlane.xlu0 %3391
      %v3393 = vsel %vm3326, %v1981, -inf
      %3394 = vmax.xlane.f32.xlu0 %v3393
      %v3395 = vpop.xlane.xlu0 %3394
      %v3396 = vsel %vm3326, %v1982, -inf
      %3397 = vmax.xlane.f32.xlu0 %v3396
      %v3398 = vpop.xlane.xlu0 %3397
      %v3399 = vsel %vm3326, %v1983, -inf
      %3400 = vmax.xlane.f32.xlu0 %v3399
      %v3401 = vpop.xlane.xlu0 %3400
      %v3402 = vsel %vm3326, %v1984, -inf
      %3403 = vmax.xlane.f32.xlu0 %v3402
      %v3404 = vpop.xlane.xlu0 %3403
      %v3405 = vsel %vm3326, %v1985, -inf
      %3406 = vmax.xlane.f32.xlu0 %v3405
      %v3407 = vpop.xlane.xlu0 %3406
      %v3408 = vsel %vm3326, %v1986, -inf
      %3409 = vmax.xlane.f32.xlu0 %v3408
      %v3410 = vpop.xlane.xlu0 %3409
      %v3411 = vsel %vm3326, %v1987, -inf
      %3412 = vmax.xlane.f32.xlu0 %v3411
      %v3413 = vpop.xlane.xlu0 %3412
      %v3414 = vsel %vm3326, %v1988, -inf
      %3415 = vmax.xlane.f32.xlu0 %v3414
      %v3416 = vpop.xlane.xlu0 %3415
      %v3417 = vsel %vm3326, %v1989, -inf
      %3418 = vmax.xlane.f32.xlu0 %v3417
      %v3419 = vpop.xlane.xlu0 %3418
      %v3420 = vsel %vm3326, %v1990, -inf
      %3421 = vmax.xlane.f32.xlu0 %v3420
      %v3422 = vpop.xlane.xlu0 %3421
      %v3423 = vsel %vm3035, %v3038, %v3135
      %v3424 = vsel %vm3035, %v3041, %v3138
      %v3425 = vsel %vm3035, %v3044, %v3141
      %v3426 = vsel %vm3035, %v3047, %v3144
      %v3427 = vsel %vm3035, %v3050, %v3147
      %v3428 = vsel %vm3035, %v3053, %v3150
      %v3429 = vsel %vm3035, %v3056, %v3153
      %v3430 = vsel %vm3035, %v3059, %v3156
      %v3431 = vsel %vm3035, %v3062, %v3159
      %v3432 = vsel %vm3035, %v3065, %v3162
      %v3433 = vsel %vm3035, %v3068, %v3165
      %v3434 = vsel %vm3035, %v3071, %v3168
      %v3435 = vsel %vm3035, %v3074, %v3171
      %v3436 = vsel %vm3035, %v3077, %v3174
      %v3437 = vsel %vm3035, %v3080, %v3177
      %v3438 = vsel %vm3035, %v3083, %v3180
      %v3439 = vsel %vm3035, %v3086, %v3183
      %v3440 = vsel %vm3035, %v3089, %v3186
      %v3441 = vsel %vm3035, %v3092, %v3189
      %v3442 = vsel %vm3035, %v3095, %v3192
      %v3443 = vsel %vm3035, %v3098, %v3195
      %v3444 = vsel %vm3035, %v3101, %v3198
      %v3445 = vsel %vm3035, %v3104, %v3201
      %v3446 = vsel %vm3035, %v3107, %v3204
      %v3447 = vsel %vm3035, %v3110, %v3207
      %v3448 = vsel %vm3035, %v3113, %v3210
      %v3449 = vsel %vm3035, %v3116, %v3213
      %v3450 = vsel %vm3035, %v3119, %v3216
      %v3451 = vsel %vm3035, %v3122, %v3219
      %v3452 = vsel %vm3035, %v3125, %v3222
      %v3453 = vsel %vm3035, %v3128, %v3225
      %v3454 = vsel %vm3035, %v3131, %v3228
      %vm3455 = vcmask 130048
      %v3456 = vsel %vm3455, %v3423, %v3232
      %v3457 = vsel %vm3455, %v3424, %v3235
      %v3458 = vsel %vm3455, %v3425, %v3238
      %v3459 = vsel %vm3455, %v3426, %v3241
      %v3460 = vsel %vm3455, %v3427, %v3244
      %v3461 = vsel %vm3455, %v3428, %v3247
      %v3462 = vsel %vm3455, %v3429, %v3250
      %v3463 = vsel %vm3455, %v3430, %v3253
      %v3464 = vsel %vm3455, %v3431, %v3256
      %v3465 = vsel %vm3455, %v3432, %v3259
      %v3466 = vsel %vm3455, %v3433, %v3262
      %v3467 = vsel %vm3455, %v3434, %v3265
      %v3468 = vsel %vm3455, %v3435, %v3268
      %v3469 = vsel %vm3455, %v3436, %v3271
      %v3470 = vsel %vm3455, %v3437, %v3274
      %v3471 = vsel %vm3455, %v3438, %v3277
      %v3472 = vsel %vm3455, %v3439, %v3280
      %v3473 = vsel %vm3455, %v3440, %v3283
      %v3474 = vsel %vm3455, %v3441, %v3286
      %v3475 = vsel %vm3455, %v3442, %v3289
      %v3476 = vsel %vm3455, %v3443, %v3292
      %v3477 = vsel %vm3455, %v3444, %v3295
      %v3478 = vsel %vm3455, %v3445, %v3298
      %v3479 = vsel %vm3455, %v3446, %v3301
      %v3480 = vsel %vm3455, %v3447, %v3304
      %v3481 = vsel %vm3455, %v3448, %v3307
      %v3482 = vsel %vm3455, %v3449, %v3310
      %v3483 = vsel %vm3455, %v3450, %v3313
      %v3484 = vsel %vm3455, %v3451, %v3316
      %v3485 = vsel %vm3455, %v3452, %v3319
      %v3486 = vsel %vm3455, %v3453, %v3322
      %v3487 = vsel %vm3455, %v3454, %v3325
      %vm3488 = vcmask 195584
      %v3489 = vsel %vm3488, %v3456, %v3329
      %v3490 = vsel %vm3488, %v3457, %v3332
      %v3491 = vsel %vm3488, %v3458, %v3335
      %v3492 = vsel %vm3488, %v3459, %v3338
      %v3493 = vsel %vm3488, %v3460, %v3341
      %v3494 = vsel %vm3488, %v3461, %v3344
      %v3495 = vsel %vm3488, %v3462, %v3347
      %v3496 = vsel %vm3488, %v3463, %v3350
      %v3497 = vsel %vm3488, %v3464, %v3353
      %v3498 = vsel %vm3488, %v3465, %v3356
      %v3499 = vsel %vm3488, %v3466, %v3359
      %v3500 = vsel %vm3488, %v3467, %v3362
      %v3501 = vsel %vm3488, %v3468, %v3365
      %v3502 = vsel %vm3488, %v3469, %v3368
      %v3503 = vsel %vm3488, %v3470, %v3371
      %v3504 = vsel %vm3488, %v3471, %v3374
      %v3505 = vsel %vm3488, %v3472, %v3377
      %v3506 = vsel %vm3488, %v3473, %v3380
      %v3507 = vsel %vm3488, %v3474, %v3383
      %v3508 = vsel %vm3488, %v3475, %v3386
      %v3509 = vsel %vm3488, %v3476, %v3389
      %v3510 = vsel %vm3488, %v3477, %v3392
      %v3511 = vsel %vm3488, %v3478, %v3395
      %v3512 = vsel %vm3488, %v3479, %v3398
      %v3513 = vsel %vm3488, %v3480, %v3401
      %v3514 = vsel %vm3488, %v3481, %v3404
      %v3515 = vsel %vm3488, %v3482, %v3407
      %v3516 = vsel %vm3488, %v3483, %v3410
      %v3517 = vsel %vm3488, %v3484, %v3413
      %v3518 = vsel %vm3488, %v3485, %v3416
      %v3519 = vsel %vm3488, %v3486, %v3419
      %v3520 = vsel %vm3488, %v3487, %v3422
      %v3521 = vsub.f32 %v1959, %v3489
      %v3522 = vsub.f32 %v1960, %v3490
      %v3523 = vsub.f32 %v1961, %v3491
      %v3524 = vsub.f32 %v1962, %v3492
      %v3525 = vsub.f32 %v1963, %v3493
      %v3526 = vsub.f32 %v1964, %v3494
      %v3527 = vsub.f32 %v1965, %v3495
      %v3528 = vsub.f32 %v1966, %v3496
      %v3529 = vsub.f32 %v1967, %v3497
      %v3530 = vsub.f32 %v1968, %v3498
      %v3531 = vsub.f32 %v1969, %v3499
      %v3532 = vsub.f32 %v1970, %v3500
      %v3533 = vsub.f32 %v1971, %v3501
      %v3534 = vsub.f32 %v1972, %v3502
      %v3535 = vsub.f32 %v1973, %v3503
      %v3536 = vsub.f32 %v1974, %v3504
      %v3537 = vsub.f32 %v1975, %v3505
      %v3538 = vsub.f32 %v1976, %v3506
      %v3539 = vsub.f32 %v1977, %v3507
      %v3540 = vsub.f32 %v1978, %v3508
      %v3541 = vsub.f32 %v1979, %v3509
      %v3542 = vsub.f32 %v1980, %v3510
      %v3543 = vsub.f32 %v1981, %v3511
      %v3544 = vsub.f32 %v1982, %v3512
      %v3545 = vsub.f32 %v1983, %v3513
      %v3546 = vsub.f32 %v1984, %v3514
      %v3547 = vsub.f32 %v1985, %v3515
      %v3548 = vsub.f32 %v1986, %v3516
      %v3549 = vsub.f32 %v1987, %v3517
      %v3550 = vsub.f32 %v1988, %v3518
      %v3551 = vsub.f32 %v1989, %v3519
      %v3552 = vsub.f32 %v1990, %v3520
      %v3553 = vmul.f32 %v3521, 1.442695
      %v3554 = vpow.pop %v3553
      %v3555 = vmul.f32 %v3522, 1.442695
      %v3556 = vpow.pop %v3555
      %v3557 = vmul.f32 %v3523, 1.442695
      %v3558 = vpow.pop %v3557
      %v3559 = vmul.f32 %v3524, 1.442695
      %v3560 = vpow.pop %v3559
      %v3561 = vmul.f32 %v3525, 1.442695
      %v3562 = vpow.pop %v3561
      %v3563 = vmul.f32 %v3526, 1.442695
      %v3564 = vpow.pop %v3563
      %v3565 = vmul.f32 %v3527, 1.442695
      %v3566 = vpow.pop %v3565
      %v3567 = vmul.f32 %v3528, 1.442695
      %v3568 = vpow.pop %v3567
      %v3569 = vmul.f32 %v3529, 1.442695
      %v3570 = vpow.pop %v3569
      %v3571 = vmul.f32 %v3530, 1.442695
      %v3572 = vpow.pop %v3571
      %v3573 = vmul.f32 %v3531, 1.442695
      %v3574 = vpow.pop %v3573
      %v3575 = vmul.f32 %v3532, 1.442695
      %v3576 = vpow.pop %v3575
      %v3577 = vmul.f32 %v3533, 1.442695
      %v3578 = vpow.pop %v3577
      %v3579 = vmul.f32 %v3534, 1.442695
      %v3580 = vpow.pop %v3579
      %v3581 = vmul.f32 %v3535, 1.442695
      %v3582 = vpow.pop %v3581
      %v3583 = vmul.f32 %v3536, 1.442695
      %v3584 = vpow.pop %v3583
      %v3585 = vmul.f32 %v3537, 1.442695
      %v3586 = vpow.pop %v3585
      %v3587 = vmul.f32 %v3538, 1.442695
      %v3588 = vpow.pop %v3587
      %v3589 = vmul.f32 %v3539, 1.442695
      %v3590 = vpow.pop %v3589
      %v3591 = vmul.f32 %v3540, 1.442695
      %v3592 = vpow.pop %v3591
      %v3593 = vmul.f32 %v3541, 1.442695
      %v3594 = vpow.pop %v3593
      %v3595 = vmul.f32 %v3542, 1.442695
      %v3596 = vpow.pop %v3595
      %v3597 = vmul.f32 %v3543, 1.442695
      %v3598 = vpow.pop %v3597
      %v3599 = vmul.f32 %v3544, 1.442695
      %v3600 = vpow.pop %v3599
      %v3601 = vmul.f32 %v3545, 1.442695
      %v3602 = vpow.pop %v3601
      %v3603 = vmul.f32 %v3546, 1.442695
      %v3604 = vpow.pop %v3603
      %v3605 = vmul.f32 %v3547, 1.442695
      %v3606 = vpow.pop %v3605
      %v3607 = vmul.f32 %v3548, 1.442695
      %v3608 = vpow.pop %v3607
      %v3609 = vmul.f32 %v3549, 1.442695
      %v3610 = vpow.pop %v3609
      %v3611 = vmul.f32 %v3550, 1.442695
      %v3612 = vpow.pop %v3611
      %v3613 = vmul.f32 %v3551, 1.442695
      %v3614 = vpow.pop %v3613
      %v3615 = vmul.f32 %v3552, 1.442695
      %v3616 = vpow.pop %v3615
      %v3618 = vsel %vm1852, %v3554, 0
      %v3621 = vsel %vm1852, %v3556, 0
      %v3624 = vsel %vm1852, %v3558, 0
      %v3627 = vsel %vm1852, %v3560, 0
      %v3630 = vsel %vm1852, %v3562, 0
      %v3633 = vsel %vm1852, %v3564, 0
      %v3636 = vsel %vm1852, %v3566, 0
      %v3639 = vsel %vm1852, %v3568, 0
      %v3642 = vsel %vm1852, %v3570, 0
      %v3645 = vsel %vm1852, %v3572, 0
      %v3648 = vsel %vm1852, %v3574, 0
      %v3651 = vsel %vm1852, %v3576, 0
      %v3654 = vsel %vm1852, %v3578, 0
      %v3657 = vsel %vm1852, %v3580, 0
      %v3660 = vsel %vm1852, %v3582, 0
      %v3663 = vsel %vm1852, %v3584, 0
      %v3666 = vsel %vm1852, %v3586, 0
      %v3669 = vsel %vm1852, %v3588, 0
      %v3672 = vsel %vm1852, %v3590, 0
      %v3675 = vsel %vm1852, %v3592, 0
      %v3678 = vsel %vm1852, %v3594, 0
      %v3681 = vsel %vm1852, %v3596, 0
      %v3684 = vsel %vm1852, %v3598, 0
      %v3687 = vsel %vm1852, %v3600, 0
      %v3690 = vsel %vm1852, %v3602, 0
      %v3693 = vsel %vm1852, %v3604, 0
      %v3696 = vsel %vm1852, %v3606, 0
      %v3699 = vsel %vm1852, %v3608, 0
      %v3702 = vsel %vm1852, %v3610, 0
      %v3705 = vsel %vm1852, %v3612, 0
      %v3708 = vsel %vm1852, %v3614, 0
      %v3711 = vsel %vm1852, %v3616, 0
      %3713 = vmatpush.msra.mxu0 0.0
      %3714 = vmatpush.msra.mxu0 0.0
      %3715 = vmatpush.msra.mxu0 0.0
      %3716 = vmatpush.msra.mxu0 0.0
      %3717 = vmatpush.msra.mxu0 0.0
      %3718 = vmatpush.msra.mxu0 0.0
      %3719 = vmatpush.msra.mxu0 0.0
      %3720 = vmatpush.msra.mxu0 0.0
      %3721 = vmatpush.msra.mxu0 0.0
      %3722 = vmatpush.msra.mxu0 0.0
      %3723 = vmatpush.msra.mxu0 0.0
      %3724 = vmatpush.msra.mxu0 0.0
      %3725 = vmatpush.msra.mxu0 %v1925
      %3726 = vmatpush.msra.mxu0 %v1924
      %3727 = vmatpush.msra.mxu0 %v1923
      %3728 = vmatpush.msra.mxu0 %v1922
      %3729 = vmatmul.f32.gmra.mxu0 %v3618
      %v3730 = vpop.f32.mrf.mxu0
      %v3731 = vadd.f32 0.0, %v3730
      %3732 = vmatmul.f32.gmra.mxu0 %v3621
      %v3733 = vpop.f32.mrf.mxu0
      %v3734 = vadd.f32 0.0, %v3733
      %3735 = vmatmul.f32.gmra.mxu0 %v3624
      %v3736 = vpop.f32.mrf.mxu0
      %v3737 = vadd.f32 0.0, %v3736
      %3738 = vmatmul.f32.gmra.mxu0 %v3627
      %v3739 = vpop.f32.mrf.mxu0
      %v3740 = vadd.f32 0.0, %v3739
      %3741 = vmatmul.f32.gmra.mxu0 %v3630
      %v3742 = vpop.f32.mrf.mxu0
      %v3743 = vadd.f32 0.0, %v3742
      %3744 = vmatmul.f32.gmra.mxu0 %v3633
      %v3745 = vpop.f32.mrf.mxu0
      %v3746 = vadd.f32 0.0, %v3745
      %3747 = vmatmul.f32.gmra.mxu0 %v3636
      %v3748 = vpop.f32.mrf.mxu0
      %v3749 = vadd.f32 0.0, %v3748
      %3750 = vmatmul.f32.gmra.mxu0 %v3639
      %v3751 = vpop.f32.mrf.mxu0
      %v3752 = vadd.f32 0.0, %v3751
      %3753 = vmatmul.f32.gmra.mxu0 %v3642
      %v3754 = vpop.f32.mrf.mxu0
      %v3755 = vadd.f32 0.0, %v3754
      %3756 = vmatmul.f32.gmra.mxu0 %v3645
      %v3757 = vpop.f32.mrf.mxu0
      %v3758 = vadd.f32 0.0, %v3757
      %3759 = vmatmul.f32.gmra.mxu0 %v3648
      %v3760 = vpop.f32.mrf.mxu0
      %v3761 = vadd.f32 0.0, %v3760
      %3762 = vmatmul.f32.gmra.mxu0 %v3651
      %v3763 = vpop.f32.mrf.mxu0
      %v3764 = vadd.f32 0.0, %v3763
      %3765 = vmatmul.f32.gmra.mxu0 %v3654
      %v3766 = vpop.f32.mrf.mxu0
      %v3767 = vadd.f32 0.0, %v3766
      %3768 = vmatmul.f32.gmra.mxu0 %v3657
      %v3769 = vpop.f32.mrf.mxu0
      %v3770 = vadd.f32 0.0, %v3769
      %3771 = vmatmul.f32.gmra.mxu0 %v3660
      %v3772 = vpop.f32.mrf.mxu0
      %v3773 = vadd.f32 0.0, %v3772
      %3774 = vmatmul.f32.gmra.mxu0 %v3663
      %v3775 = vpop.f32.mrf.mxu0
      %v3776 = vadd.f32 0.0, %v3775
      %3777 = vmatmul.f32.gmra.mxu0 %v3666
      %v3778 = vpop.f32.mrf.mxu0
      %v3779 = vadd.f32 0.0, %v3778
      %3780 = vmatmul.f32.gmra.mxu0 %v3669
      %v3781 = vpop.f32.mrf.mxu0
      %v3782 = vadd.f32 0.0, %v3781
      %3783 = vmatmul.f32.gmra.mxu0 %v3672
      %v3784 = vpop.f32.mrf.mxu0
      %v3785 = vadd.f32 0.0, %v3784
      %3786 = vmatmul.f32.gmra.mxu0 %v3675
      %v3787 = vpop.f32.mrf.mxu0
      %v3788 = vadd.f32 0.0, %v3787
      %3789 = vmatmul.f32.gmra.mxu0 %v3678
      %v3790 = vpop.f32.mrf.mxu0
      %v3791 = vadd.f32 0.0, %v3790
      %3792 = vmatmul.f32.gmra.mxu0 %v3681
      %v3793 = vpop.f32.mrf.mxu0
      %v3794 = vadd.f32 0.0, %v3793
      %3795 = vmatmul.f32.gmra.mxu0 %v3684
      %v3796 = vpop.f32.mrf.mxu0
      %v3797 = vadd.f32 0.0, %v3796
      %3798 = vmatmul.f32.gmra.mxu0 %v3687
      %v3799 = vpop.f32.mrf.mxu0
      %v3800 = vadd.f32 0.0, %v3799
      %3801 = vmatmul.f32.gmra.mxu0 %v3690
      %v3802 = vpop.f32.mrf.mxu0
      %v3803 = vadd.f32 0.0, %v3802
      %3804 = vmatmul.f32.gmra.mxu0 %v3693
      %v3805 = vpop.f32.mrf.mxu0
      %v3806 = vadd.f32 0.0, %v3805
      %3807 = vmatmul.f32.gmra.mxu0 %v3696
      %v3808 = vpop.f32.mrf.mxu0
      %v3809 = vadd.f32 0.0, %v3808
      %3810 = vmatmul.f32.gmra.mxu0 %v3699
      %v3811 = vpop.f32.mrf.mxu0
      %v3812 = vadd.f32 0.0, %v3811
      %3813 = vmatmul.f32.gmra.mxu0 %v3702
      %v3814 = vpop.f32.mrf.mxu0
      %v3815 = vadd.f32 0.0, %v3814
      %3816 = vmatmul.f32.gmra.mxu0 %v3705
      %v3817 = vpop.f32.mrf.mxu0
      %v3818 = vadd.f32 0.0, %v3817
      %3819 = vmatmul.f32.gmra.mxu0 %v3708
      %v3820 = vpop.f32.mrf.mxu0
      %v3821 = vadd.f32 0.0, %v3820
      %3822 = vmatmul.f32.gmra.mxu0 %v3711
      %v3823 = vpop.f32.mrf.mxu0
      %v3824 = vadd.f32 0.0, %v3823
      %3825 = vdwg.mxu0
      %v3826 = vlog2.pop %v3731
      %v3827 = vmul.f32 %v3826, 0.6931472
      %v3828 = vlog2.pop %v3734
      %v3829 = vmul.f32 %v3828, 0.6931472
      %v3830 = vlog2.pop %v3737
      %v3831 = vmul.f32 %v3830, 0.6931472
      %v3832 = vlog2.pop %v3740
      %v3833 = vmul.f32 %v3832, 0.6931472
      %v3834 = vlog2.pop %v3743
      %v3835 = vmul.f32 %v3834, 0.6931472
      %v3836 = vlog2.pop %v3746
      %v3837 = vmul.f32 %v3836, 0.6931472
      %v3838 = vlog2.pop %v3749
      %v3839 = vmul.f32 %v3838, 0.6931472
      %v3840 = vlog2.pop %v3752
      %v3841 = vmul.f32 %v3840, 0.6931472
      %v3842 = vlog2.pop %v3755
      %v3843 = vmul.f32 %v3842, 0.6931472
      %v3844 = vlog2.pop %v3758
      %v3845 = vmul.f32 %v3844, 0.6931472
      %v3846 = vlog2.pop %v3761
      %v3847 = vmul.f32 %v3846, 0.6931472
      %v3848 = vlog2.pop %v3764
      %v3849 = vmul.f32 %v3848, 0.6931472
      %v3850 = vlog2.pop %v3767
      %v3851 = vmul.f32 %v3850, 0.6931472
      %v3852 = vlog2.pop %v3770
      %v3853 = vmul.f32 %v3852, 0.6931472
      %v3854 = vlog2.pop %v3773
      %v3855 = vmul.f32 %v3854, 0.6931472
      %v3856 = vlog2.pop %v3776
      %v3857 = vmul.f32 %v3856, 0.6931472
      %v3858 = vlog2.pop %v3779
      %v3859 = vmul.f32 %v3858, 0.6931472
      %v3860 = vlog2.pop %v3782
      %v3861 = vmul.f32 %v3860, 0.6931472
      %v3862 = vlog2.pop %v3785
      %v3863 = vmul.f32 %v3862, 0.6931472
      %v3864 = vlog2.pop %v3788
      %v3865 = vmul.f32 %v3864, 0.6931472
      %v3866 = vlog2.pop %v3791
      %v3867 = vmul.f32 %v3866, 0.6931472
      %v3868 = vlog2.pop %v3794
      %v3869 = vmul.f32 %v3868, 0.6931472
      %v3870 = vlog2.pop %v3797
      %v3871 = vmul.f32 %v3870, 0.6931472
      %v3872 = vlog2.pop %v3800
      %v3873 = vmul.f32 %v3872, 0.6931472
      %v3874 = vlog2.pop %v3803
      %v3875 = vmul.f32 %v3874, 0.6931472
      %v3876 = vlog2.pop %v3806
      %v3877 = vmul.f32 %v3876, 0.6931472
      %v3878 = vlog2.pop %v3809
      %v3879 = vmul.f32 %v3878, 0.6931472
      %v3880 = vlog2.pop %v3812
      %v3881 = vmul.f32 %v3880, 0.6931472
      %v3882 = vlog2.pop %v3815
      %v3883 = vmul.f32 %v3882, 0.6931472
      %v3884 = vlog2.pop %v3818
      %v3885 = vmul.f32 %v3884, 0.6931472
      %v3886 = vlog2.pop %v3821
      %v3887 = vmul.f32 %v3886, 0.6931472
      %v3888 = vlog2.pop %v3824
      %v3889 = vmul.f32 %v3888, 0.6931472
      %v3890 = vadd.f32 %v3827, %v3489
      %v3891 = vadd.f32 %v3829, %v3490
      %v3892 = vadd.f32 %v3831, %v3491
      %v3893 = vadd.f32 %v3833, %v3492
      %v3894 = vadd.f32 %v3835, %v3493
      %v3895 = vadd.f32 %v3837, %v3494
      %v3896 = vadd.f32 %v3839, %v3495
      %v3897 = vadd.f32 %v3841, %v3496
      %v3898 = vadd.f32 %v3843, %v3497
      %v3899 = vadd.f32 %v3845, %v3498
      %v3900 = vadd.f32 %v3847, %v3499
      %v3901 = vadd.f32 %v3849, %v3500
      %v3902 = vadd.f32 %v3851, %v3501
      %v3903 = vadd.f32 %v3853, %v3502
      %v3904 = vadd.f32 %v3855, %v3503
      %v3905 = vadd.f32 %v3857, %v3504
      %v3906 = vadd.f32 %v3859, %v3505
      %v3907 = vadd.f32 %v3861, %v3506
      %v3908 = vadd.f32 %v3863, %v3507
      %v3909 = vadd.f32 %v3865, %v3508
      %v3910 = vadd.f32 %v3867, %v3509
      %v3911 = vadd.f32 %v3869, %v3510
      %v3912 = vadd.f32 %v3871, %v3511
      %v3913 = vadd.f32 %v3873, %v3512
      %v3914 = vadd.f32 %v3875, %v3513
      %v3915 = vadd.f32 %v3877, %v3514
      %v3916 = vadd.f32 %v3879, %v3515
      %v3917 = vadd.f32 %v3881, %v3516
      %v3918 = vadd.f32 %v3883, %v3517
      %v3919 = vadd.f32 %v3885, %v3518
      %v3920 = vadd.f32 %v3887, %v3519
      %v3921 = vadd.f32 %v3889, %v3520
      %v3923 = vperm.slane %v1926, 0
      %v3925 = vadd.f32 %v3890, %v3923
      %v3926 = vadd.f32 %v3891, %v3923
      %v3927 = vadd.f32 %v3892, %v3923
      %v3928 = vadd.f32 %v3893, %v3923
      %v3929 = vadd.f32 %v3894, %v3923
      %v3930 = vadd.f32 %v3895, %v3923
      %v3931 = vadd.f32 %v3896, %v3923
      %v3932 = vadd.f32 %v3897, %v3923
      %v3933 = vadd.f32 %v3898, %v3923
      %v3934 = vadd.f32 %v3899, %v3923
      %v3935 = vadd.f32 %v3900, %v3923
      %v3936 = vadd.f32 %v3901, %v3923
      %v3937 = vadd.f32 %v3902, %v3923
      %v3938 = vadd.f32 %v3903, %v3923
      %v3939 = vadd.f32 %v3904, %v3923
      %v3940 = vadd.f32 %v3905, %v3923
      %v3941 = vadd.f32 %v3906, %v3923
      %v3942 = vadd.f32 %v3907, %v3923
      %v3943 = vadd.f32 %v3908, %v3923
      %v3944 = vadd.f32 %v3909, %v3923
      %v3945 = vadd.f32 %v3910, %v3923
      %v3946 = vadd.f32 %v3911, %v3923
      %v3947 = vadd.f32 %v3912, %v3923
      %v3948 = vadd.f32 %v3913, %v3923
      %v3949 = vadd.f32 %v3914, %v3923
      %v3950 = vadd.f32 %v3915, %v3923
      %v3951 = vadd.f32 %v3916, %v3923
      %v3952 = vadd.f32 %v3917, %v3923
      %v3953 = vadd.f32 %v3918, %v3923
      %v3954 = vadd.f32 %v3919, %v3923
      %v3955 = vadd.f32 %v3920, %v3923
      %v3956 = vadd.f32 %v3921, %v3923
      %v3957 = vadd.f32 %v3925, %v3003
      %v3958 = vadd.f32 %v3926, %v3004
      %v3959 = vadd.f32 %v3927, %v3005
      %v3960 = vadd.f32 %v3928, %v3006
      %v3961 = vadd.f32 %v3929, %v3007
      %v3962 = vadd.f32 %v3930, %v3008
      %v3963 = vadd.f32 %v3931, %v3009
      %v3964 = vadd.f32 %v3932, %v3010
      %v3965 = vadd.f32 %v3933, %v3011
      %v3966 = vadd.f32 %v3934, %v3012
      %v3967 = vadd.f32 %v3935, %v3013
      %v3968 = vadd.f32 %v3936, %v3014
      %v3969 = vadd.f32 %v3937, %v3015
      %v3970 = vadd.f32 %v3938, %v3016
      %v3971 = vadd.f32 %v3939, %v3017
      %v3972 = vadd.f32 %v3940, %v3018
      %v3973 = vadd.f32 %v3941, %v3019
      %v3974 = vadd.f32 %v3942, %v3020
      %v3975 = vadd.f32 %v3943, %v3021
      %v3976 = vadd.f32 %v3944, %v3022
      %v3977 = vadd.f32 %v3945, %v3023
      %v3978 = vadd.f32 %v3946, %v3024
      %v3979 = vadd.f32 %v3947, %v3025
      %v3980 = vadd.f32 %v3948, %v3026
      %v3981 = vadd.f32 %v3949, %v3027
      %v3982 = vadd.f32 %v3950, %v3028
      %v3983 = vadd.f32 %v3951, %v3029
      %v3984 = vadd.f32 %v3952, %v3030
      %v3985 = vadd.f32 %v3953, %v3031
      %v3986 = vadd.f32 %v3954, %v3032
      %v3987 = vadd.f32 %v3955, %v3033
      %v3988 = vadd.f32 %v3956, %v3034
      %3989 = vst.msk [vmem:[#allocation2] sm:$0xff] %vm1852, %v2619
      %3990 = vst.msk [vmem:[#allocation2 + $0x8] sm:$0xff] %vm1852, %v2620
      %3991 = vst.msk [vmem:[#allocation2 + $0x10] sm:$0xff] %vm1852, %v2621
      %3992 = vst.msk [vmem:[#allocation2 + $0x18] sm:$0xff] %vm1852, %v2622
      %3993 = vst.msk [vmem:[#allocation2 + $0x20] sm:$0xff] %vm1852, %v2623
      %3994 = vst.msk [vmem:[#allocation2 + $0x28] sm:$0xff] %vm1852, %v2624
      %3995 = vst.msk [vmem:[#allocation2 + $0x30] sm:$0xff] %vm1852, %v2625
      %3996 = vst.msk [vmem:[#allocation2 + $0x38] sm:$0xff] %vm1852, %v2626
      %3997 = vst.msk [vmem:[#allocation2 + $0x40] sm:$0xff] %vm1852, %v2627
      %3998 = vst.msk [vmem:[#allocation2 + $0x48] sm:$0xff] %vm1852, %v2628
      %3999 = vst.msk [vmem:[#allocation2 + $0x50] sm:$0xff] %vm1852, %v2629
      %4000 = vst.msk [vmem:[#allocation2 + $0x58] sm:$0xff] %vm1852, %v2630
      %4001 = vst.msk [vmem:[#allocation2 + $0x60] sm:$0xff] %vm1852, %v2631
      %4002 = vst.msk [vmem:[#allocation2 + $0x68] sm:$0xff] %vm1852, %v2632
      %4003 = vst.msk [vmem:[#allocation2 + $0x70] sm:$0xff] %vm1852, %v2633
      %4004 = vst.msk [vmem:[#allocation2 + $0x78] sm:$0xff] %vm1852, %v2634
      %4005 = vst.msk [vmem:[#allocation2 + $0x80] sm:$0xff] %vm1852, %v2635
      %4006 = vst.msk [vmem:[#allocation2 + $0x88] sm:$0xff] %vm1852, %v2636
      %4007 = vst.msk [vmem:[#allocation2 + $0x90] sm:$0xff] %vm1852, %v2637
      %4008 = vst.msk [vmem:[#allocation2 + $0x98] sm:$0xff] %vm1852, %v2638
      %4009 = vst.msk [vmem:[#allocation2 + $0xa0] sm:$0xff] %vm1852, %v2639
      %4010 = vst.msk [vmem:[#allocation2 + $0xa8] sm:$0xff] %vm1852, %v2640
      %4011 = vst.msk [vmem:[#allocation2 + $0xb0] sm:$0xff] %vm1852, %v2641
      %4012 = vst.msk [vmem:[#allocation2 + $0xb8] sm:$0xff] %vm1852, %v2642
      %4013 = vst.msk [vmem:[#allocation2 + $0xc0] sm:$0xff] %vm1852, %v2643
      %4014 = vst.msk [vmem:[#allocation2 + $0xc8] sm:$0xff] %vm1852, %v2644
      %4015 = vst.msk [vmem:[#allocation2 + $0xd0] sm:$0xff] %vm1852, %v2645
      %4016 = vst.msk [vmem:[#allocation2 + $0xd8] sm:$0xff] %vm1852, %v2646
      %4017 = vst.msk [vmem:[#allocation2 + $0xe0] sm:$0xff] %vm1852, %v2647
      %4018 = vst.msk [vmem:[#allocation2 + $0xe8] sm:$0xff] %vm1852, %v2648
      %4019 = vst.msk [vmem:[#allocation2 + $0xf0] sm:$0xff] %vm1852, %v2649
      %4020 = vst.msk [vmem:[#allocation2 + $0xf8] sm:$0xff] %vm1852, %v2650
      %4021 = vst.msk [vmem:[#allocation3] sm:$0xff] %vm1852, %v3957
      %4022 = vst.msk [vmem:[#allocation3 + $0x8] sm:$0xff] %vm1852, %v3958
      %4023 = vst.msk [vmem:[#allocation3 + $0x10] sm:$0xff] %vm1852, %v3959
      %4024 = vst.msk [vmem:[#allocation3 + $0x18] sm:$0xff] %vm1852, %v3960
      %4025 = vst.msk [vmem:[#allocation3 + $0x20] sm:$0xff] %vm1852, %v3961
      %4026 = vst.msk [vmem:[#allocation3 + $0x28] sm:$0xff] %vm1852, %v3962
      %4027 = vst.msk [vmem:[#allocation3 + $0x30] sm:$0xff] %vm1852, %v3963
      %4028 = vst.msk [vmem:[#allocation3 + $0x38] sm:$0xff] %vm1852, %v3964
      %4029 = vst.msk [vmem:[#allocation3 + $0x40] sm:$0xff] %vm1852, %v3965
      %4030 = vst.msk [vmem:[#allocation3 + $0x48] sm:$0xff] %vm1852, %v3966
      %4031 = vst.msk [vmem:[#allocation3 + $0x50] sm:$0xff] %vm1852, %v3967
      %4032 = vst.msk [vmem:[#allocation3 + $0x58] sm:$0xff] %vm1852, %v3968
      %4033 = vst.msk [vmem:[#allocation3 + $0x60] sm:$0xff] %vm1852, %v3969
      %4034 = vst.msk [vmem:[#allocation3 + $0x68] sm:$0xff] %vm1852, %v3970
      %4035 = vst.msk [vmem:[#allocation3 + $0x70] sm:$0xff] %vm1852, %v3971
      %4036 = vst.msk [vmem:[#allocation3 + $0x78] sm:$0xff] %vm1852, %v3972
      %4037 = vst.msk [vmem:[#allocation3 + $0x80] sm:$0xff] %vm1852, %v3973
      %4038 = vst.msk [vmem:[#allocation3 + $0x88] sm:$0xff] %vm1852, %v3974
      %4039 = vst.msk [vmem:[#allocation3 + $0x90] sm:$0xff] %vm1852, %v3975
      %4040 = vst.msk [vmem:[#allocation3 + $0x98] sm:$0xff] %vm1852, %v3976
      %4041 = vst.msk [vmem:[#allocation3 + $0xa0] sm:$0xff] %vm1852, %v3977
      %4042 = vst.msk [vmem:[#allocation3 + $0xa8] sm:$0xff] %vm1852, %v3978
      %4043 = vst.msk [vmem:[#allocation3 + $0xb0] sm:$0xff] %vm1852, %v3979
      %4044 = vst.msk [vmem:[#allocation3 + $0xb8] sm:$0xff] %vm1852, %v3980
      %4045 = vst.msk [vmem:[#allocation3 + $0xc0] sm:$0xff] %vm1852, %v3981
      %4046 = vst.msk [vmem:[#allocation3 + $0xc8] sm:$0xff] %vm1852, %v3982
      %4047 = vst.msk [vmem:[#allocation3 + $0xd0] sm:$0xff] %vm1852, %v3983
      %4048 = vst.msk [vmem:[#allocation3 + $0xd8] sm:$0xff] %vm1852, %v3984
      %4049 = vst.msk [vmem:[#allocation3 + $0xe0] sm:$0xff] %vm1852, %v3985
      %4050 = vst.msk [vmem:[#allocation3 + $0xe8] sm:$0xff] %vm1852, %v3986
      %4051 = vst.msk [vmem:[#allocation3 + $0xf0] sm:$0xff] %vm1852, %v3987
      %4052 = vst.msk [vmem:[#allocation3 + $0xf8] sm:$0xff] %vm1852, %v3988
      %v4053 = vld [vmem:[%s9] sm:$0xff]
      %v4054 = vld [vmem:[%s9 + $0x8] sm:$0xff]
      %v4055 = vld [vmem:[%s9 + $0x10] sm:$0xff]
      %v4056 = vld [vmem:[%s9 + $0x18] sm:$0xff]
      %v4057 = vld [vmem:[%s10] sm:$0x1]
      %v4058 = vld [vmem:[%s11] sm:$0xff]
      %v4059 = vld [vmem:[%s11 + $0x8] sm:$0xff]
      %v4060 = vld [vmem:[%s11 + $0x10] sm:$0xff]
      %v4061 = vld [vmem:[%s11 + $0x18] sm:$0xff]
      %v4062 = vld [vmem:[%s12] sm:$0x1]
      %v4063 = vld [vmem:[#allocation2] sm:$0xff]
      %v4064 = vld [vmem:[#allocation2 + $0x8] sm:$0xff]
      %v4065 = vld [vmem:[#allocation2 + $0x10] sm:$0xff]
      %v4066 = vld [vmem:[#allocation2 + $0x18] sm:$0xff]
      %v4067 = vld [vmem:[#allocation2 + $0x20] sm:$0xff]
      %v4068 = vld [vmem:[#allocation2 + $0x28] sm:$0xff]
      %v4069 = vld [vmem:[#allocation2 + $0x30] sm:$0xff]
      %v4070 = vld [vmem:[#allocation2 + $0x38] sm:$0xff]
      %v4071 = vld [vmem:[#allocation2 + $0x40] sm:$0xff]
      %v4072 = vld [vmem:[#allocation2 + $0x48] sm:$0xff]
      %v4073 = vld [vmem:[#allocation2 + $0x50] sm:$0xff]
      %v4074 = vld [vmem:[#allocation2 + $0x58] sm:$0xff]
      %v4075 = vld [vmem:[#allocation2 + $0x60] sm:$0xff]
      %v4076 = vld [vmem:[#allocation2 + $0x68] sm:$0xff]
      %v4077 = vld [vmem:[#allocation2 + $0x70] sm:$0xff]
      %v4078 = vld [vmem:[#allocation2 + $0x78] sm:$0xff]
      %v4079 = vld [vmem:[#allocation2 + $0x80] sm:$0xff]
      %v4080 = vld [vmem:[#allocation2 + $0x88] sm:$0xff]
      %v4081 = vld [vmem:[#allocation2 + $0x90] sm:$0xff]
      %v4082 = vld [vmem:[#allocation2 + $0x98] sm:$0xff]
      %v4083 = vld [vmem:[#allocation2 + $0xa0] sm:$0xff]
      %v4084 = vld [vmem:[#allocation2 + $0xa8] sm:$0xff]
      %v4085 = vld [vmem:[#allocation2 + $0xb0] sm:$0xff]
      %v4086 = vld [vmem:[#allocation2 + $0xb8] sm:$0xff]
      %v4087 = vld [vmem:[#allocation2 + $0xc0] sm:$0xff]
      %v4088 = vld [vmem:[#allocation2 + $0xc8] sm:$0xff]
      %v4089 = vld [vmem:[#allocation2 + $0xd0] sm:$0xff]
      %v4090 = vld [vmem:[#allocation2 + $0xd8] sm:$0xff]
      %v4091 = vld [vmem:[#allocation2 + $0xe0] sm:$0xff]
      %v4092 = vld [vmem:[#allocation2 + $0xe8] sm:$0xff]
      %v4093 = vld [vmem:[#allocation2 + $0xf0] sm:$0xff]
      %v4094 = vld [vmem:[#allocation2 + $0xf8] sm:$0xff]
      %v4095 = vld [vmem:[#allocation3] sm:$0xff]
      %v4096 = vld [vmem:[#allocation3 + $0x8] sm:$0xff]
      %v4097 = vld [vmem:[#allocation3 + $0x10] sm:$0xff]
      %v4098 = vld [vmem:[#allocation3 + $0x18] sm:$0xff]
      %v4099 = vld [vmem:[#allocation3 + $0x20] sm:$0xff]
      %v4100 = vld [vmem:[#allocation3 + $0x28] sm:$0xff]
      %v4101 = vld [vmem:[#allocation3 + $0x30] sm:$0xff]
      %v4102 = vld [vmem:[#allocation3 + $0x38] sm:$0xff]
      %v4103 = vld [vmem:[#allocation3 + $0x40] sm:$0xff]
      %v4104 = vld [vmem:[#allocation3 + $0x48] sm:$0xff]
      %v4105 = vld [vmem:[#allocation3 + $0x50] sm:$0xff]
      %v4106 = vld [vmem:[#allocation3 + $0x58] sm:$0xff]
      %v4107 = vld [vmem:[#allocation3 + $0x60] sm:$0xff]
      %v4108 = vld [vmem:[#allocation3 + $0x68] sm:$0xff]
      %v4109 = vld [vmem:[#allocation3 + $0x70] sm:$0xff]
      %v4110 = vld [vmem:[#allocation3 + $0x78] sm:$0xff]
      %v4111 = vld [vmem:[#allocation3 + $0x80] sm:$0xff]
      %v4112 = vld [vmem:[#allocation3 + $0x88] sm:$0xff]
      %v4113 = vld [vmem:[#allocation3 + $0x90] sm:$0xff]
      %v4114 = vld [vmem:[#allocation3 + $0x98] sm:$0xff]
      %v4115 = vld [vmem:[#allocation3 + $0xa0] sm:$0xff]
      %v4116 = vld [vmem:[#allocation3 + $0xa8] sm:$0xff]
      %v4117 = vld [vmem:[#allocation3 + $0xb0] sm:$0xff]
      %v4118 = vld [vmem:[#allocation3 + $0xb8] sm:$0xff]
      %v4119 = vld [vmem:[#allocation3 + $0xc0] sm:$0xff]
      %v4120 = vld [vmem:[#allocation3 + $0xc8] sm:$0xff]
      %v4121 = vld [vmem:[#allocation3 + $0xd0] sm:$0xff]
      %v4122 = vld [vmem:[#allocation3 + $0xd8] sm:$0xff]
      %v4123 = vld [vmem:[#allocation3 + $0xe0] sm:$0xff]
      %v4124 = vld [vmem:[#allocation3 + $0xe8] sm:$0xff]
      %v4125 = vld [vmem:[#allocation3 + $0xf0] sm:$0xff]
      %v4126 = vld [vmem:[#allocation3 + $0xf8] sm:$0xff]
      %v4128 = vperm.slane %v4057, 0
      %v4131 = vsel %vm1852, %v4063, 0
      %v4134 = vsel %vm1852, %v4064, 0
      %v4137 = vsel %vm1852, %v4065, 0
      %v4140 = vsel %vm1852, %v4066, 0
      %v4143 = vsel %vm1852, %v4067, 0
      %v4146 = vsel %vm1852, %v4068, 0
      %v4149 = vsel %vm1852, %v4069, 0
      %v4152 = vsel %vm1852, %v4070, 0
      %v4155 = vsel %vm1852, %v4071, 0
      %v4158 = vsel %vm1852, %v4072, 0
      %v4161 = vsel %vm1852, %v4073, 0
      %v4164 = vsel %vm1852, %v4074, 0
      %v4167 = vsel %vm1852, %v4075, 0
      %v4170 = vsel %vm1852, %v4076, 0
      %v4173 = vsel %vm1852, %v4077, 0
      %v4176 = vsel %vm1852, %v4078, 0
      %v4179 = vsel %vm1852, %v4079, 0
      %v4182 = vsel %vm1852, %v4080, 0
      %v4185 = vsel %vm1852, %v4081, 0
      %v4188 = vsel %vm1852, %v4082, 0
      %v4191 = vsel %vm1852, %v4083, 0
      %v4194 = vsel %vm1852, %v4084, 0
      %v4197 = vsel %vm1852, %v4085, 0
      %v4200 = vsel %vm1852, %v4086, 0
      %v4203 = vsel %vm1852, %v4087, 0
      %v4206 = vsel %vm1852, %v4088, 0
      %v4209 = vsel %vm1852, %v4089, 0
      %v4212 = vsel %vm1852, %v4090, 0
      %v4215 = vsel %vm1852, %v4091, 0
      %v4218 = vsel %vm1852, %v4092, 0
      %v4221 = vsel %vm1852, %v4093, 0
      %v4224 = vsel %vm1852, %v4094, 0
      %4226 = vmatpush.msra.mxu0 0.0
      %4227 = vmatpush.msra.mxu0 0.0
      %4228 = vmatpush.msra.mxu0 0.0
      %4229 = vmatpush.msra.mxu0 0.0
      %4230 = vmatpush.msra.mxu0 0.0
      %4231 = vmatpush.msra.mxu0 0.0
      %4232 = vmatpush.msra.mxu0 0.0
      %4233 = vmatpush.msra.mxu0 0.0
      %4234 = vmatpush.msra.mxu0 0.0
      %4235 = vmatpush.msra.mxu0 0.0
      %4236 = vmatpush.msra.mxu0 0.0
      %4237 = vmatpush.msra.mxu0 0.0
      %4238 = vmatpush.msra.mxu0 %v4056
      %4239 = vmatpush.msra.mxu0 %v4055
      %4240 = vmatpush.msra.mxu0 %v4054
      %4241 = vmatpush.msra.mxu0 %v4053
      %4242 = vmatmul.f32.gmra.mxu0 %v4131
      %v4243 = vpop.f32.mrf.mxu0
      %v4244 = vadd.f32 %v4128, %v4243
      %4245 = vmatmul.f32.gmra.mxu0 %v4134
      %v4246 = vpop.f32.mrf.mxu0
      %v4247 = vadd.f32 %v4128, %v4246
      %4248 = vmatmul.f32.gmra.mxu0 %v4137
      %v4249 = vpop.f32.mrf.mxu0
      %v4250 = vadd.f32 %v4128, %v4249
      %4251 = vmatmul.f32.gmra.mxu0 %v4140
      %v4252 = vpop.f32.mrf.mxu0
      %v4253 = vadd.f32 %v4128, %v4252
      %4254 = vmatmul.f32.gmra.mxu0 %v4143
      %v4255 = vpop.f32.mrf.mxu0
      %v4256 = vadd.f32 %v4128, %v4255
      %4257 = vmatmul.f32.gmra.mxu0 %v4146
      %v4258 = vpop.f32.mrf.mxu0
      %v4259 = vadd.f32 %v4128, %v4258
      %4260 = vmatmul.f32.gmra.mxu0 %v4149
      %v4261 = vpop.f32.mrf.mxu0
      %v4262 = vadd.f32 %v4128, %v4261
      %4263 = vmatmul.f32.gmra.mxu0 %v4152
      %v4264 = vpop.f32.mrf.mxu0
      %v4265 = vadd.f32 %v4128, %v4264
      %4266 = vmatmul.f32.gmra.mxu0 %v4155
      %v4267 = vpop.f32.mrf.mxu0
      %v4268 = vadd.f32 %v4128, %v4267
      %4269 = vmatmul.f32.gmra.mxu0 %v4158
      %v4270 = vpop.f32.mrf.mxu0
      %v4271 = vadd.f32 %v4128, %v4270
      %4272 = vmatmul.f32.gmra.mxu0 %v4161
      %v4273 = vpop.f32.mrf.mxu0
      %v4274 = vadd.f32 %v4128, %v4273
      %4275 = vmatmul.f32.gmra.mxu0 %v4164
      %v4276 = vpop.f32.mrf.mxu0
      %v4277 = vadd.f32 %v4128, %v4276
      %4278 = vmatmul.f32.gmra.mxu0 %v4167
      %v4279 = vpop.f32.mrf.mxu0
      %v4280 = vadd.f32 %v4128, %v4279
      %4281 = vmatmul.f32.gmra.mxu0 %v4170
      %v4282 = vpop.f32.mrf.mxu0
      %v4283 = vadd.f32 %v4128, %v4282
      %4284 = vmatmul.f32.gmra.mxu0 %v4173
      %v4285 = vpop.f32.mrf.mxu0
      %v4286 = vadd.f32 %v4128, %v4285
      %4287 = vmatmul.f32.gmra.mxu0 %v4176
      %v4288 = vpop.f32.mrf.mxu0
      %v4289 = vadd.f32 %v4128, %v4288
      %4290 = vmatmul.f32.gmra.mxu0 %v4179
      %v4291 = vpop.f32.mrf.mxu0
      %v4292 = vadd.f32 %v4128, %v4291
      %4293 = vmatmul.f32.gmra.mxu0 %v4182
      %v4294 = vpop.f32.mrf.mxu0
      %v4295 = vadd.f32 %v4128, %v4294
      %4296 = vmatmul.f32.gmra.mxu0 %v4185
      %v4297 = vpop.f32.mrf.mxu0
      %v4298 = vadd.f32 %v4128, %v4297
      %4299 = vmatmul.f32.gmra.mxu0 %v4188
      %v4300 = vpop.f32.mrf.mxu0
      %v4301 = vadd.f32 %v4128, %v4300
      %4302 = vmatmul.f32.gmra.mxu0 %v4191
      %v4303 = vpop.f32.mrf.mxu0
      %v4304 = vadd.f32 %v4128, %v4303
      %4305 = vmatmul.f32.gmra.mxu0 %v4194
      %v4306 = vpop.f32.mrf.mxu0
      %v4307 = vadd.f32 %v4128, %v4306
      %4308 = vmatmul.f32.gmra.mxu0 %v4197
      %v4309 = vpop.f32.mrf.mxu0
      %v4310 = vadd.f32 %v4128, %v4309
      %4311 = vmatmul.f32.gmra.mxu0 %v4200
      %v4312 = vpop.f32.mrf.mxu0
      %v4313 = vadd.f32 %v4128, %v4312
      %4314 = vmatmul.f32.gmra.mxu0 %v4203
      %v4315 = vpop.f32.mrf.mxu0
      %v4316 = vadd.f32 %v4128, %v4315
      %4317 = vmatmul.f32.gmra.mxu0 %v4206
      %v4318 = vpop.f32.mrf.mxu0
      %v4319 = vadd.f32 %v4128, %v4318
      %4320 = vmatmul.f32.gmra.mxu0 %v4209
      %v4321 = vpop.f32.mrf.mxu0
      %v4322 = vadd.f32 %v4128, %v4321
      %4323 = vmatmul.f32.gmra.mxu0 %v4212
      %v4324 = vpop.f32.mrf.mxu0
      %v4325 = vadd.f32 %v4128, %v4324
      %4326 = vmatmul.f32.gmra.mxu0 %v4215
      %v4327 = vpop.f32.mrf.mxu0
      %v4328 = vadd.f32 %v4128, %v4327
      %4329 = vmatmul.f32.gmra.mxu0 %v4218
      %v4330 = vpop.f32.mrf.mxu0
      %v4331 = vadd.f32 %v4128, %v4330
      %4332 = vmatmul.f32.gmra.mxu0 %v4221
      %v4333 = vpop.f32.mrf.mxu0
      %v4334 = vadd.f32 %v4128, %v4333
      %4335 = vmatmul.f32.gmra.mxu0 %v4224
      %v4336 = vpop.f32.mrf.mxu0
      %v4337 = vadd.f32 %v4128, %v4336
      %4338 = vdwg.mxu0
      %v4339 = vand.u32 2147483647, %v4244
      %v4340 = vand.u32 2147483647, %v4247
      %v4341 = vand.u32 2147483647, %v4250
      %v4342 = vand.u32 2147483647, %v4253
      %v4343 = vand.u32 2147483647, %v4256
      %v4344 = vand.u32 2147483647, %v4259
      %v4345 = vand.u32 2147483647, %v4262
      %v4346 = vand.u32 2147483647, %v4265
      %v4347 = vand.u32 2147483647, %v4268
      %v4348 = vand.u32 2147483647, %v4271
      %v4349 = vand.u32 2147483647, %v4274
      %v4350 = vand.u32 2147483647, %v4277
      %v4351 = vand.u32 2147483647, %v4280
      %v4352 = vand.u32 2147483647, %v4283
      %v4353 = vand.u32 2147483647, %v4286
      %v4354 = vand.u32 2147483647, %v4289
      %v4355 = vand.u32 2147483647, %v4292
      %v4356 = vand.u32 2147483647, %v4295
      %v4357 = vand.u32 2147483647, %v4298
      %v4358 = vand.u32 2147483647, %v4301
      %v4359 = vand.u32 2147483647, %v4304
      %v4360 = vand.u32 2147483647, %v4307
      %v4361 = vand.u32 2147483647, %v4310
      %v4362 = vand.u32 2147483647, %v4313
      %v4363 = vand.u32 2147483647, %v4316
      %v4364 = vand.u32 2147483647, %v4319
      %v4365 = vand.u32 2147483647, %v4322
      %v4366 = vand.u32 2147483647, %v4325
      %v4367 = vand.u32 2147483647, %v4328
      %v4368 = vand.u32 2147483647, %v4331
      %v4369 = vand.u32 2147483647, %v4334
      %v4370 = vand.u32 2147483647, %v4337
      %v4371 = vmul.f32 %v4339, -2.0
      %v4372 = vmul.f32 %v4340, -2.0
      %v4373 = vmul.f32 %v4341, -2.0
      %v4374 = vmul.f32 %v4342, -2.0
      %v4375 = vmul.f32 %v4343, -2.0
      %v4376 = vmul.f32 %v4344, -2.0
      %v4377 = vmul.f32 %v4345, -2.0
      %v4378 = vmul.f32 %v4346, -2.0
      %v4379 = vmul.f32 %v4347, -2.0
      %v4380 = vmul.f32 %v4348, -2.0
      %v4381 = vmul.f32 %v4349, -2.0
      %v4382 = vmul.f32 %v4350, -2.0
      %v4383 = vmul.f32 %v4351, -2.0
      %v4384 = vmul.f32 %v4352, -2.0
      %v4385 = vmul.f32 %v4353, -2.0
      %v4386 = vmul.f32 %v4354, -2.0
      %v4387 = vmul.f32 %v4355, -2.0
      %v4388 = vmul.f32 %v4356, -2.0
      %v4389 = vmul.f32 %v4357, -2.0
      %v4390 = vmul.f32 %v4358, -2.0
      %v4391 = vmul.f32 %v4359, -2.0
      %v4392 = vmul.f32 %v4360, -2.0
      %v4393 = vmul.f32 %v4361, -2.0
      %v4394 = vmul.f32 %v4362, -2.0
      %v4395 = vmul.f32 %v4363, -2.0
      %v4396 = vmul.f32 %v4364, -2.0
      %v4397 = vmul.f32 %v4365, -2.0
      %v4398 = vmul.f32 %v4366, -2.0
      %v4399 = vmul.f32 %v4367, -2.0
      %v4400 = vmul.f32 %v4368, -2.0
      %v4401 = vmul.f32 %v4369, -2.0
      %v4402 = vmul.f32 %v4370, -2.0
      %v4403 = vmul.f32 %v4371, 1.442695
      %v4404 = vpow.pop %v4403
      %v4405 = vmul.f32 %v4372, 1.442695
      %v4406 = vpow.pop %v4405
      %v4407 = vmul.f32 %v4373, 1.442695
      %v4408 = vpow.pop %v4407
      %v4409 = vmul.f32 %v4374, 1.442695
      %v4410 = vpow.pop %v4409
      %v4411 = vmul.f32 %v4375, 1.442695
      %v4412 = vpow.pop %v4411
      %v4413 = vmul.f32 %v4376, 1.442695
      %v4414 = vpow.pop %v4413
      %v4415 = vmul.f32 %v4377, 1.442695
      %v4416 = vpow.pop %v4415
      %v4417 = vmul.f32 %v4378, 1.442695
      %v4418 = vpow.pop %v4417
      %v4419 = vmul.f32 %v4379, 1.442695
      %v4420 = vpow.pop %v4419
      %v4421 = vmul.f32 %v4380, 1.442695
      %v4422 = vpow.pop %v4421
      %v4423 = vmul.f32 %v4381, 1.442695
      %v4424 = vpow.pop %v4423
      %v4425 = vmul.f32 %v4382, 1.442695
      %v4426 = vpow.pop %v4425
      %v4427 = vmul.f32 %v4383, 1.442695
      %v4428 = vpow.pop %v4427
      %v4429 = vmul.f32 %v4384, 1.442695
      %v4430 = vpow.pop %v4429
      %v4431 = vmul.f32 %v4385, 1.442695
      %v4432 = vpow.pop %v4431
      %v4433 = vmul.f32 %v4386, 1.442695
      %v4434 = vpow.pop %v4433
      %v4435 = vmul.f32 %v4387, 1.442695
      %v4436 = vpow.pop %v4435
      %v4437 = vmul.f32 %v4388, 1.442695
      %v4438 = vpow.pop %v4437
      %v4439 = vmul.f32 %v4389, 1.442695
      %v4440 = vpow.pop %v4439
      %v4441 = vmul.f32 %v4390, 1.442695
      %v4442 = vpow.pop %v4441
      %v4443 = vmul.f32 %v4391, 1.442695
      %v4444 = vpow.pop %v4443
      %v4445 = vmul.f32 %v4392, 1.442695
      %v4446 = vpow.pop %v4445
      %v4447 = vmul.f32 %v4393, 1.442695
      %v4448 = vpow.pop %v4447
      %v4449 = vmul.f32 %v4394, 1.442695
      %v4450 = vpow.pop %v4449
      %v4451 = vmul.f32 %v4395, 1.442695
      %v4452 = vpow.pop %v4451
      %v4453 = vmul.f32 %v4396, 1.442695
      %v4454 = vpow.pop %v4453
      %v4455 = vmul.f32 %v4397, 1.442695
      %v4456 = vpow.pop %v4455
      %v4457 = vmul.f32 %v4398, 1.442695
      %v4458 = vpow.pop %v4457
      %v4459 = vmul.f32 %v4399, 1.442695
      %v4460 = vpow.pop %v4459
      %v4461 = vmul.f32 %v4400, 1.442695
      %v4462 = vpow.pop %v4461
      %v4463 = vmul.f32 %v4401, 1.442695
      %v4464 = vpow.pop %v4463
      %v4465 = vmul.f32 %v4402, 1.442695
      %v4466 = vpow.pop %v4465
      %v4467 = vadd.f32 %v4404, 1.0
      %v4468 = vadd.f32 %v4406, 1.0
      %v4469 = vadd.f32 %v4408, 1.0
      %v4470 = vadd.f32 %v4410, 1.0
      %v4471 = vadd.f32 %v4412, 1.0
      %v4472 = vadd.f32 %v4414, 1.0
      %v4473 = vadd.f32 %v4416, 1.0
      %v4474 = vadd.f32 %v4418, 1.0
      %v4475 = vadd.f32 %v4420, 1.0
      %v4476 = vadd.f32 %v4422, 1.0
      %v4477 = vadd.f32 %v4424, 1.0
      %v4478 = vadd.f32 %v4426, 1.0
      %v4479 = vadd.f32 %v4428, 1.0
      %v4480 = vadd.f32 %v4430, 1.0
      %v4481 = vadd.f32 %v4432, 1.0
      %v4482 = vadd.f32 %v4434, 1.0
      %v4483 = vadd.f32 %v4436, 1.0
      %v4484 = vadd.f32 %v4438, 1.0
      %v4485 = vadd.f32 %v4440, 1.0
      %v4486 = vadd.f32 %v4442, 1.0
      %v4487 = vadd.f32 %v4444, 1.0
      %v4488 = vadd.f32 %v4446, 1.0
      %v4489 = vadd.f32 %v4448, 1.0
      %v4490 = vadd.f32 %v4450, 1.0
      %v4491 = vadd.f32 %v4452, 1.0
      %v4492 = vadd.f32 %v4454, 1.0
      %v4493 = vadd.f32 %v4456, 1.0
      %v4494 = vadd.f32 %v4458, 1.0
      %v4495 = vadd.f32 %v4460, 1.0
      %v4496 = vadd.f32 %v4462, 1.0
      %v4497 = vadd.f32 %v4464, 1.0
      %v4498 = vadd.f32 %v4466, 1.0
      %v4499 = vrcp.pop %v4467
      %v4500 = vrcp.pop %v4468
      %v4501 = vrcp.pop %v4469
      %v4502 = vrcp.pop %v4470
      %v4503 = vrcp.pop %v4471
      %v4504 = vrcp.pop %v4472
      %v4505 = vrcp.pop %v4473
      %v4506 = vrcp.pop %v4474
      %v4507 = vrcp.pop %v4475
      %v4508 = vrcp.pop %v4476
      %v4509 = vrcp.pop %v4477
      %v4510 = vrcp.pop %v4478
      %v4511 = vrcp.pop %v4479
      %v4512 = vrcp.pop %v4480
      %v4513 = vrcp.pop %v4481
      %v4514 = vrcp.pop %v4482
      %v4515 = vrcp.pop %v4483
      %v4516 = vrcp.pop %v4484
      %v4517 = vrcp.pop %v4485
      %v4518 = vrcp.pop %v4486
      %v4519 = vrcp.pop %v4487
      %v4520 = vrcp.pop %v4488
      %v4521 = vrcp.pop %v4489
      %v4522 = vrcp.pop %v4490
      %v4523 = vrcp.pop %v4491
      %v4524 = vrcp.pop %v4492
      %v4525 = vrcp.pop %v4493
      %v4526 = vrcp.pop %v4494
      %v4527 = vrcp.pop %v4495
      %v4528 = vrcp.pop %v4496
      %v4529 = vrcp.pop %v4497
      %v4530 = vrcp.pop %v4498
      %v4531 = vmul.f32 %v4467, %v4499
      %v4532 = vmul.f32 %v4468, %v4500
      %v4533 = vmul.f32 %v4469, %v4501
      %v4534 = vmul.f32 %v4470, %v4502
      %v4535 = vmul.f32 %v4471, %v4503
      %v4536 = vmul.f32 %v4472, %v4504
      %v4537 = vmul.f32 %v4473, %v4505
      %v4538 = vmul.f32 %v4474, %v4506
      %v4539 = vmul.f32 %v4475, %v4507
      %v4540 = vmul.f32 %v4476, %v4508
      %v4541 = vmul.f32 %v4477, %v4509
      %v4542 = vmul.f32 %v4478, %v4510
      %v4543 = vmul.f32 %v4479, %v4511
      %v4544 = vmul.f32 %v4480, %v4512
      %v4545 = vmul.f32 %v4481, %v4513
      %v4546 = vmul.f32 %v4482, %v4514
      %v4547 = vmul.f32 %v4483, %v4515
      %v4548 = vmul.f32 %v4484, %v4516
      %v4549 = vmul.f32 %v4485, %v4517
      %v4550 = vmul.f32 %v4486, %v4518
      %v4551 = vmul.f32 %v4487, %v4519
      %v4552 = vmul.f32 %v4488, %v4520
      %v4553 = vmul.f32 %v4489, %v4521
      %v4554 = vmul.f32 %v4490, %v4522
      %v4555 = vmul.f32 %v4491, %v4523
      %v4556 = vmul.f32 %v4492, %v4524
      %v4557 = vmul.f32 %v4493, %v4525
      %v4558 = vmul.f32 %v4494, %v4526
      %v4559 = vmul.f32 %v4495, %v4527
      %v4560 = vmul.f32 %v4496, %v4528
      %v4561 = vmul.f32 %v4497, %v4529
      %v4562 = vmul.f32 %v4498, %v4530
      %v4563 = vsub.f32 2.0, %v4531
      %v4564 = vsub.f32 2.0, %v4532
      %v4565 = vsub.f32 2.0, %v4533
      %v4566 = vsub.f32 2.0, %v4534
      %v4567 = vsub.f32 2.0, %v4535
      %v4568 = vsub.f32 2.0, %v4536
      %v4569 = vsub.f32 2.0, %v4537
      %v4570 = vsub.f32 2.0, %v4538
      %v4571 = vsub.f32 2.0, %v4539
      %v4572 = vsub.f32 2.0, %v4540
      %v4573 = vsub.f32 2.0, %v4541
      %v4574 = vsub.f32 2.0, %v4542
      %v4575 = vsub.f32 2.0, %v4543
      %v4576 = vsub.f32 2.0, %v4544
      %v4577 = vsub.f32 2.0, %v4545
      %v4578 = vsub.f32 2.0, %v4546
      %v4579 = vsub.f32 2.0, %v4547
      %v4580 = vsub.f32 2.0, %v4548
      %v4581 = vsub.f32 2.0, %v4549
      %v4582 = vsub.f32 2.0, %v4550
      %v4583 = vsub.f32 2.0, %v4551
      %v4584 = vsub.f32 2.0, %v4552
      %v4585 = vsub.f32 2.0, %v4553
      %v4586 = vsub.f32 2.0, %v4554
      %v4587 = vsub.f32 2.0, %v4555
      %v4588 = vsub.f32 2.0, %v4556
      %v4589 = vsub.f32 2.0, %v4557
      %v4590 = vsub.f32 2.0, %v4558
      %v4591 = vsub.f32 2.0, %v4559
      %v4592 = vsub.f32 2.0, %v4560
      %v4593 = vsub.f32 2.0, %v4561
      %v4594 = vsub.f32 2.0, %v4562
      %v4595 = vmul.f32 %v4499, %v4563
      %v4596 = vmul.f32 %v4500, %v4564
      %v4597 = vmul.f32 %v4501, %v4565
      %v4598 = vmul.f32 %v4502, %v4566
      %v4599 = vmul.f32 %v4503, %v4567
      %v4600 = vmul.f32 %v4504, %v4568
      %v4601 = vmul.f32 %v4505, %v4569
      %v4602 = vmul.f32 %v4506, %v4570
      %v4603 = vmul.f32 %v4507, %v4571
      %v4604 = vmul.f32 %v4508, %v4572
      %v4605 = vmul.f32 %v4509, %v4573
      %v4606 = vmul.f32 %v4510, %v4574
      %v4607 = vmul.f32 %v4511, %v4575
      %v4608 = vmul.f32 %v4512, %v4576
      %v4609 = vmul.f32 %v4513, %v4577
      %v4610 = vmul.f32 %v4514, %v4578
      %v4611 = vmul.f32 %v4515, %v4579
      %v4612 = vmul.f32 %v4516, %v4580
      %v4613 = vmul.f32 %v4517, %v4581
      %v4614 = vmul.f32 %v4518, %v4582
      %v4615 = vmul.f32 %v4519, %v4583
      %v4616 = vmul.f32 %v4520, %v4584
      %v4617 = vmul.f32 %v4521, %v4585
      %v4618 = vmul.f32 %v4522, %v4586
      %v4619 = vmul.f32 %v4523, %v4587
      %v4620 = vmul.f32 %v4524, %v4588
      %v4621 = vmul.f32 %v4525, %v4589
      %v4622 = vmul.f32 %v4526, %v4590
      %v4623 = vmul.f32 %v4527, %v4591
      %v4624 = vmul.f32 %v4528, %v4592
      %v4625 = vmul.f32 %v4529, %v4593
      %v4626 = vmul.f32 %v4530, %v4594
      %vm4627 = vcmp.ge.f32.partialorder %v4244, 0.0
      %vm4628 = vcmp.ge.f32.partialorder %v4247, 0.0
      %vm4629 = vcmp.ge.f32.partialorder %v4250, 0.0
      %vm4630 = vcmp.ge.f32.partialorder %v4253, 0.0
      %vm4631 = vcmp.ge.f32.partialorder %v4256, 0.0
      %vm4632 = vcmp.ge.f32.partialorder %v4259, 0.0
      %vm4633 = vcmp.ge.f32.partialorder %v4262, 0.0
      %vm4634 = vcmp.ge.f32.partialorder %v4265, 0.0
      %vm4635 = vcmp.ge.f32.partialorder %v4268, 0.0
      %vm4636 = vcmp.ge.f32.partialorder %v4271, 0.0
      %vm4637 = vcmp.ge.f32.partialorder %v4274, 0.0
      %vm4638 = vcmp.ge.f32.partialorder %v4277, 0.0
      %vm4639 = vcmp.ge.f32.partialorder %v4280, 0.0
      %vm4640 = vcmp.ge.f32.partialorder %v4283, 0.0
      %vm4641 = vcmp.ge.f32.partialorder %v4286, 0.0
      %vm4642 = vcmp.ge.f32.partialorder %v4289, 0.0
      %vm4643 = vcmp.ge.f32.partialorder %v4292, 0.0
      %vm4644 = vcmp.ge.f32.partialorder %v4295, 0.0
      %vm4645 = vcmp.ge.f32.partialorder %v4298, 0.0
      %vm4646 = vcmp.ge.f32.partialorder %v4301, 0.0
      %vm4647 = vcmp.ge.f32.partialorder %v4304, 0.0
      %vm4648 = vcmp.ge.f32.partialorder %v4307, 0.0
      %vm4649 = vcmp.ge.f32.partialorder %v4310, 0.0
      %vm4650 = vcmp.ge.f32.partialorder %v4313, 0.0
      %vm4651 = vcmp.ge.f32.partialorder %v4316, 0.0
      %vm4652 = vcmp.ge.f32.partialorder %v4319, 0.0
      %vm4653 = vcmp.ge.f32.partialorder %v4322, 0.0
      %vm4654 = vcmp.ge.f32.partialorder %v4325, 0.0
      %vm4655 = vcmp.ge.f32.partialorder %v4328, 0.0
      %vm4656 = vcmp.ge.f32.partialorder %v4331, 0.0
      %vm4657 = vcmp.ge.f32.partialorder %v4334, 0.0
      %vm4658 = vcmp.ge.f32.partialorder %v4337, 0.0
      %v4659 = vsel %vm4627, 1.0, -1.0
      %v4660 = vsel %vm4628, 1.0, -1.0
      %v4661 = vsel %vm4629, 1.0, -1.0
      %v4662 = vsel %vm4630, 1.0, -1.0
      %v4663 = vsel %vm4631, 1.0, -1.0
      %v4664 = vsel %vm4632, 1.0, -1.0
      %v4665 = vsel %vm4633, 1.0, -1.0
      %v4666 = vsel %vm4634, 1.0, -1.0
      %v4667 = vsel %vm4635, 1.0, -1.0
      %v4668 = vsel %vm4636, 1.0, -1.0
      %v4669 = vsel %vm4637, 1.0, -1.0
      %v4670 = vsel %vm4638, 1.0, -1.0
      %v4671 = vsel %vm4639, 1.0, -1.0
      %v4672 = vsel %vm4640, 1.0, -1.0
      %v4673 = vsel %vm4641, 1.0, -1.0
      %v4674 = vsel %vm4642, 1.0, -1.0
      %v4675 = vsel %vm4643, 1.0, -1.0
      %v4676 = vsel %vm4644, 1.0, -1.0
      %v4677 = vsel %vm4645, 1.0, -1.0
      %v4678 = vsel %vm4646, 1.0, -1.0
      %v4679 = vsel %vm4647, 1.0, -1.0
      %v4680 = vsel %vm4648, 1.0, -1.0
      %v4681 = vsel %vm4649, 1.0, -1.0
      %v4682 = vsel %vm4650, 1.0, -1.0
      %v4683 = vsel %vm4651, 1.0, -1.0
      %v4684 = vsel %vm4652, 1.0, -1.0
      %v4685 = vsel %vm4653, 1.0, -1.0
      %v4686 = vsel %vm4654, 1.0, -1.0
      %v4687 = vsel %vm4655, 1.0, -1.0
      %v4688 = vsel %vm4656, 1.0, -1.0
      %v4689 = vsel %vm4657, 1.0, -1.0
      %v4690 = vsel %vm4658, 1.0, -1.0
      %v4691 = vsub.f32 1.0, %v4404
      %v4692 = vsub.f32 1.0, %v4406
      %v4693 = vsub.f32 1.0, %v4408
      %v4694 = vsub.f32 1.0, %v4410
      %v4695 = vsub.f32 1.0, %v4412
      %v4696 = vsub.f32 1.0, %v4414
      %v4697 = vsub.f32 1.0, %v4416
      %v4698 = vsub.f32 1.0, %v4418
      %v4699 = vsub.f32 1.0, %v4420
      %v4700 = vsub.f32 1.0, %v4422
      %v4701 = vsub.f32 1.0, %v4424
      %v4702 = vsub.f32 1.0, %v4426
      %v4703 = vsub.f32 1.0, %v4428
      %v4704 = vsub.f32 1.0, %v4430
      %v4705 = vsub.f32 1.0, %v4432
      %v4706 = vsub.f32 1.0, %v4434
      %v4707 = vsub.f32 1.0, %v4436
      %v4708 = vsub.f32 1.0, %v4438
      %v4709 = vsub.f32 1.0, %v4440
      %v4710 = vsub.f32 1.0, %v4442
      %v4711 = vsub.f32 1.0, %v4444
      %v4712 = vsub.f32 1.0, %v4446
      %v4713 = vsub.f32 1.0, %v4448
      %v4714 = vsub.f32 1.0, %v4450
      %v4715 = vsub.f32 1.0, %v4452
      %v4716 = vsub.f32 1.0, %v4454
      %v4717 = vsub.f32 1.0, %v4456
      %v4718 = vsub.f32 1.0, %v4458
      %v4719 = vsub.f32 1.0, %v4460
      %v4720 = vsub.f32 1.0, %v4462
      %v4721 = vsub.f32 1.0, %v4464
      %v4722 = vsub.f32 1.0, %v4466
      %v4723 = vmul.f32 %v4659, %v4691
      %v4724 = vmul.f32 %v4660, %v4692
      %v4725 = vmul.f32 %v4661, %v4693
      %v4726 = vmul.f32 %v4662, %v4694
      %v4727 = vmul.f32 %v4663, %v4695
      %v4728 = vmul.f32 %v4664, %v4696
      %v4729 = vmul.f32 %v4665, %v4697
      %v4730 = vmul.f32 %v4666, %v4698
      %v4731 = vmul.f32 %v4667, %v4699
      %v4732 = vmul.f32 %v4668, %v4700
      %v4733 = vmul.f32 %v4669, %v4701
      %v4734 = vmul.f32 %v4670, %v4702
      %v4735 = vmul.f32 %v4671, %v4703
      %v4736 = vmul.f32 %v4672, %v4704
      %v4737 = vmul.f32 %v4673, %v4705
      %v4738 = vmul.f32 %v4674, %v4706
      %v4739 = vmul.f32 %v4675, %v4707
      %v4740 = vmul.f32 %v4676, %v4708
      %v4741 = vmul.f32 %v4677, %v4709
      %v4742 = vmul.f32 %v4678, %v4710
      %v4743 = vmul.f32 %v4679, %v4711
      %v4744 = vmul.f32 %v4680, %v4712
      %v4745 = vmul.f32 %v4681, %v4713
      %v4746 = vmul.f32 %v4682, %v4714
      %v4747 = vmul.f32 %v4683, %v4715
      %v4748 = vmul.f32 %v4684, %v4716
      %v4749 = vmul.f32 %v4685, %v4717
      %v4750 = vmul.f32 %v4686, %v4718
      %v4751 = vmul.f32 %v4687, %v4719
      %v4752 = vmul.f32 %v4688, %v4720
      %v4753 = vmul.f32 %v4689, %v4721
      %v4754 = vmul.f32 %v4690, %v4722
      %v4755 = vmul.f32 %v4723, %v4595
      %v4756 = vmul.f32 %v4724, %v4596
      %v4757 = vmul.f32 %v4725, %v4597
      %v4758 = vmul.f32 %v4726, %v4598
      %v4759 = vmul.f32 %v4727, %v4599
      %v4760 = vmul.f32 %v4728, %v4600
      %v4761 = vmul.f32 %v4729, %v4601
      %v4762 = vmul.f32 %v4730, %v4602
      %v4763 = vmul.f32 %v4731, %v4603
      %v4764 = vmul.f32 %v4732, %v4604
      %v4765 = vmul.f32 %v4733, %v4605
      %v4766 = vmul.f32 %v4734, %v4606
      %v4767 = vmul.f32 %v4735, %v4607
      %v4768 = vmul.f32 %v4736, %v4608
      %v4769 = vmul.f32 %v4737, %v4609
      %v4770 = vmul.f32 %v4738, %v4610
      %v4771 = vmul.f32 %v4739, %v4611
      %v4772 = vmul.f32 %v4740, %v4612
      %v4773 = vmul.f32 %v4741, %v4613
      %v4774 = vmul.f32 %v4742, %v4614
      %v4775 = vmul.f32 %v4743, %v4615
      %v4776 = vmul.f32 %v4744, %v4616
      %v4777 = vmul.f32 %v4745, %v4617
      %v4778 = vmul.f32 %v4746, %v4618
      %v4779 = vmul.f32 %v4747, %v4619
      %v4780 = vmul.f32 %v4748, %v4620
      %v4781 = vmul.f32 %v4749, %v4621
      %v4782 = vmul.f32 %v4750, %v4622
      %v4783 = vmul.f32 %v4751, %v4623
      %v4784 = vmul.f32 %v4752, %v4624
      %v4785 = vmul.f32 %v4753, %v4625
      %v4786 = vmul.f32 %v4754, %v4626
      %v4787 = vsub.f32 %v4339, 0.6931472
      %v4788 = vsub.f32 %v4340, 0.6931472
      %v4789 = vsub.f32 %v4341, 0.6931472
      %v4790 = vsub.f32 %v4342, 0.6931472
      %v4791 = vsub.f32 %v4343, 0.6931472
      %v4792 = vsub.f32 %v4344, 0.6931472
      %v4793 = vsub.f32 %v4345, 0.6931472
      %v4794 = vsub.f32 %v4346, 0.6931472
      %v4795 = vsub.f32 %v4347, 0.6931472
      %v4796 = vsub.f32 %v4348, 0.6931472
      %v4797 = vsub.f32 %v4349, 0.6931472
      %v4798 = vsub.f32 %v4350, 0.6931472
      %v4799 = vsub.f32 %v4351, 0.6931472
      %v4800 = vsub.f32 %v4352, 0.6931472
      %v4801 = vsub.f32 %v4353, 0.6931472
      %v4802 = vsub.f32 %v4354, 0.6931472
      %v4803 = vsub.f32 %v4355, 0.6931472
      %v4804 = vsub.f32 %v4356, 0.6931472
      %v4805 = vsub.f32 %v4357, 0.6931472
      %v4806 = vsub.f32 %v4358, 0.6931472
      %v4807 = vsub.f32 %v4359, 0.6931472
      %v4808 = vsub.f32 %v4360, 0.6931472
      %v4809 = vsub.f32 %v4361, 0.6931472
      %v4810 = vsub.f32 %v4362, 0.6931472
      %v4811 = vsub.f32 %v4363, 0.6931472
      %v4812 = vsub.f32 %v4364, 0.6931472
      %v4813 = vsub.f32 %v4365, 0.6931472
      %v4814 = vsub.f32 %v4366, 0.6931472
      %v4815 = vsub.f32 %v4367, 0.6931472
      %v4816 = vsub.f32 %v4368, 0.6931472
      %v4817 = vsub.f32 %v4369, 0.6931472
      %v4818 = vsub.f32 %v4370, 0.6931472
      %v4819 = vadd.f32 %v4404, 1.0
      %v4820 = vlog2.pop %v4819
      %v4821 = vmul.f32 %v4820, 0.6931472
      %v4822 = vmul.f32 -0.5, %v4404
      %v4823 = vadd.f32 %v4822, 1.0
      %v4824 = vmul.f32 %v4823, %v4404
      %v4825 = vand.u32 2147483647, %v4404
      %vm4826 = vcmp.lt.f32.partialorder %v4825, 0.0004427343
      %v4827 = vsel %vm4826, %v4824, %v4821
      %v4828 = vadd.f32 %v4406, 1.0
      %v4829 = vlog2.pop %v4828
      %v4830 = vmul.f32 %v4829, 0.6931472
      %v4831 = vmul.f32 -0.5, %v4406
      %v4832 = vadd.f32 %v4831, 1.0
      %v4833 = vmul.f32 %v4832, %v4406
      %v4834 = vand.u32 2147483647, %v4406
      %vm4835 = vcmp.lt.f32.partialorder %v4834, 0.0004427343
      %v4836 = vsel %vm4835, %v4833, %v4830
      %v4837 = vadd.f32 %v4408, 1.0
      %v4838 = vlog2.pop %v4837
      %v4839 = vmul.f32 %v4838, 0.6931472
      %v4840 = vmul.f32 -0.5, %v4408
      %v4841 = vadd.f32 %v4840, 1.0
      %v4842 = vmul.f32 %v4841, %v4408
      %v4843 = vand.u32 2147483647, %v4408
      %vm4844 = vcmp.lt.f32.partialorder %v4843, 0.0004427343
      %v4845 = vsel %vm4844, %v4842, %v4839
      %v4846 = vadd.f32 %v4410, 1.0
      %v4847 = vlog2.pop %v4846
      %v4848 = vmul.f32 %v4847, 0.6931472
      %v4849 = vmul.f32 -0.5, %v4410
      %v4850 = vadd.f32 %v4849, 1.0
      %v4851 = vmul.f32 %v4850, %v4410
      %v4852 = vand.u32 2147483647, %v4410
      %vm4853 = vcmp.lt.f32.partialorder %v4852, 0.0004427343
      %v4854 = vsel %vm4853, %v4851, %v4848
      %v4855 = vadd.f32 %v4412, 1.0
      %v4856 = vlog2.pop %v4855
      %v4857 = vmul.f32 %v4856, 0.6931472
      %v4858 = vmul.f32 -0.5, %v4412
      %v4859 = vadd.f32 %v4858, 1.0
      %v4860 = vmul.f32 %v4859, %v4412
      %v4861 = vand.u32 2147483647, %v4412
      %vm4862 = vcmp.lt.f32.partialorder %v4861, 0.0004427343
      %v4863 = vsel %vm4862, %v4860, %v4857
      %v4864 = vadd.f32 %v4414, 1.0
      %v4865 = vlog2.pop %v4864
      %v4866 = vmul.f32 %v4865, 0.6931472
      %v4867 = vmul.f32 -0.5, %v4414
      %v4868 = vadd.f32 %v4867, 1.0
      %v4869 = vmul.f32 %v4868, %v4414
      %v4870 = vand.u32 2147483647, %v4414
      %vm4871 = vcmp.lt.f32.partialorder %v4870, 0.0004427343
      %v4872 = vsel %vm4871, %v4869, %v4866
      %v4873 = vadd.f32 %v4416, 1.0
      %v4874 = vlog2.pop %v4873
      %v4875 = vmul.f32 %v4874, 0.6931472
      %v4876 = vmul.f32 -0.5, %v4416
      %v4877 = vadd.f32 %v4876, 1.0
      %v4878 = vmul.f32 %v4877, %v4416
      %v4879 = vand.u32 2147483647, %v4416
      %vm4880 = vcmp.lt.f32.partialorder %v4879, 0.0004427343
      %v4881 = vsel %vm4880, %v4878, %v4875
      %v4882 = vadd.f32 %v4418, 1.0
      %v4883 = vlog2.pop %v4882
      %v4884 = vmul.f32 %v4883, 0.6931472
      %v4885 = vmul.f32 -0.5, %v4418
      %v4886 = vadd.f32 %v4885, 1.0
      %v4887 = vmul.f32 %v4886, %v4418
      %v4888 = vand.u32 2147483647, %v4418
      %vm4889 = vcmp.lt.f32.partialorder %v4888, 0.0004427343
      %v4890 = vsel %vm4889, %v4887, %v4884
      %v4891 = vadd.f32 %v4420, 1.0
      %v4892 = vlog2.pop %v4891
      %v4893 = vmul.f32 %v4892, 0.6931472
      %v4894 = vmul.f32 -0.5, %v4420
      %v4895 = vadd.f32 %v4894, 1.0
      %v4896 = vmul.f32 %v4895, %v4420
      %v4897 = vand.u32 2147483647, %v4420
      %vm4898 = vcmp.lt.f32.partialorder %v4897, 0.0004427343
      %v4899 = vsel %vm4898, %v4896, %v4893
      %v4900 = vadd.f32 %v4422, 1.0
      %v4901 = vlog2.pop %v4900
      %v4902 = vmul.f32 %v4901, 0.6931472
      %v4903 = vmul.f32 -0.5, %v4422
      %v4904 = vadd.f32 %v4903, 1.0
      %v4905 = vmul.f32 %v4904, %v4422
      %v4906 = vand.u32 2147483647, %v4422
      %vm4907 = vcmp.lt.f32.partialorder %v4906, 0.0004427343
      %v4908 = vsel %vm4907, %v4905, %v4902
      %v4909 = vadd.f32 %v4424, 1.0
      %v4910 = vlog2.pop %v4909
      %v4911 = vmul.f32 %v4910, 0.6931472
      %v4912 = vmul.f32 -0.5, %v4424
      %v4913 = vadd.f32 %v4912, 1.0
      %v4914 = vmul.f32 %v4913, %v4424
      %v4915 = vand.u32 2147483647, %v4424
      %vm4916 = vcmp.lt.f32.partialorder %v4915, 0.0004427343
      %v4917 = vsel %vm4916, %v4914, %v4911
      %v4918 = vadd.f32 %v4426, 1.0
      %v4919 = vlog2.pop %v4918
      %v4920 = vmul.f32 %v4919, 0.6931472
      %v4921 = vmul.f32 -0.5, %v4426
      %v4922 = vadd.f32 %v4921, 1.0
      %v4923 = vmul.f32 %v4922, %v4426
      %v4924 = vand.u32 2147483647, %v4426
      %vm4925 = vcmp.lt.f32.partialorder %v4924, 0.0004427343
      %v4926 = vsel %vm4925, %v4923, %v4920
      %v4927 = vadd.f32 %v4428, 1.0
      %v4928 = vlog2.pop %v4927
      %v4929 = vmul.f32 %v4928, 0.6931472
      %v4930 = vmul.f32 -0.5, %v4428
      %v4931 = vadd.f32 %v4930, 1.0
      %v4932 = vmul.f32 %v4931, %v4428
      %v4933 = vand.u32 2147483647, %v4428
      %vm4934 = vcmp.lt.f32.partialorder %v4933, 0.0004427343
      %v4935 = vsel %vm4934, %v4932, %v4929
      %v4936 = vadd.f32 %v4430, 1.0
      %v4937 = vlog2.pop %v4936
      %v4938 = vmul.f32 %v4937, 0.6931472
      %v4939 = vmul.f32 -0.5, %v4430
      %v4940 = vadd.f32 %v4939, 1.0
      %v4941 = vmul.f32 %v4940, %v4430
      %v4942 = vand.u32 2147483647, %v4430
      %vm4943 = vcmp.lt.f32.partialorder %v4942, 0.0004427343
      %v4944 = vsel %vm4943, %v4941, %v4938
      %v4945 = vadd.f32 %v4432, 1.0
      %v4946 = vlog2.pop %v4945
      %v4947 = vmul.f32 %v4946, 0.6931472
      %v4948 = vmul.f32 -0.5, %v4432
      %v4949 = vadd.f32 %v4948, 1.0
      %v4950 = vmul.f32 %v4949, %v4432
      %v4951 = vand.u32 2147483647, %v4432
      %vm4952 = vcmp.lt.f32.partialorder %v4951, 0.0004427343
      %v4953 = vsel %vm4952, %v4950, %v4947
      %v4954 = vadd.f32 %v4434, 1.0
      %v4955 = vlog2.pop %v4954
      %v4956 = vmul.f32 %v4955, 0.6931472
      %v4957 = vmul.f32 -0.5, %v4434
      %v4958 = vadd.f32 %v4957, 1.0
      %v4959 = vmul.f32 %v4958, %v4434
      %v4960 = vand.u32 2147483647, %v4434
      %vm4961 = vcmp.lt.f32.partialorder %v4960, 0.0004427343
      %v4962 = vsel %vm4961, %v4959, %v4956
      %v4963 = vadd.f32 %v4436, 1.0
      %v4964 = vlog2.pop %v4963
      %v4965 = vmul.f32 %v4964, 0.6931472
      %v4966 = vmul.f32 -0.5, %v4436
      %v4967 = vadd.f32 %v4966, 1.0
      %v4968 = vmul.f32 %v4967, %v4436
      %v4969 = vand.u32 2147483647, %v4436
      %vm4970 = vcmp.lt.f32.partialorder %v4969, 0.0004427343
      %v4971 = vsel %vm4970, %v4968, %v4965
      %v4972 = vadd.f32 %v4438, 1.0
      %v4973 = vlog2.pop %v4972
      %v4974 = vmul.f32 %v4973, 0.6931472
      %v4975 = vmul.f32 -0.5, %v4438
      %v4976 = vadd.f32 %v4975, 1.0
      %v4977 = vmul.f32 %v4976, %v4438
      %v4978 = vand.u32 2147483647, %v4438
      %vm4979 = vcmp.lt.f32.partialorder %v4978, 0.0004427343
      %v4980 = vsel %vm4979, %v4977, %v4974
      %v4981 = vadd.f32 %v4440, 1.0
      %v4982 = vlog2.pop %v4981
      %v4983 = vmul.f32 %v4982, 0.6931472
      %v4984 = vmul.f32 -0.5, %v4440
      %v4985 = vadd.f32 %v4984, 1.0
      %v4986 = vmul.f32 %v4985, %v4440
      %v4987 = vand.u32 2147483647, %v4440
      %vm4988 = vcmp.lt.f32.partialorder %v4987, 0.0004427343
      %v4989 = vsel %vm4988, %v4986, %v4983
      %v4990 = vadd.f32 %v4442, 1.0
      %v4991 = vlog2.pop %v4990
      %v4992 = vmul.f32 %v4991, 0.6931472
      %v4993 = vmul.f32 -0.5, %v4442
      %v4994 = vadd.f32 %v4993, 1.0
      %v4995 = vmul.f32 %v4994, %v4442
      %v4996 = vand.u32 2147483647, %v4442
      %vm4997 = vcmp.lt.f32.partialorder %v4996, 0.0004427343
      %v4998 = vsel %vm4997, %v4995, %v4992
      %v4999 = vadd.f32 %v4444, 1.0
      %v5000 = vlog2.pop %v4999
      %v5001 = vmul.f32 %v5000, 0.6931472
      %v5002 = vmul.f32 -0.5, %v4444
      %v5003 = vadd.f32 %v5002, 1.0
      %v5004 = vmul.f32 %v5003, %v4444
      %v5005 = vand.u32 2147483647, %v4444
      %vm5006 = vcmp.lt.f32.partialorder %v5005, 0.0004427343
      %v5007 = vsel %vm5006, %v5004, %v5001
      %v5008 = vadd.f32 %v4446, 1.0
      %v5009 = vlog2.pop %v5008
      %v5010 = vmul.f32 %v5009, 0.6931472
      %v5011 = vmul.f32 -0.5, %v4446
      %v5012 = vadd.f32 %v5011, 1.0
      %v5013 = vmul.f32 %v5012, %v4446
      %v5014 = vand.u32 2147483647, %v4446
      %vm5015 = vcmp.lt.f32.partialorder %v5014, 0.0004427343
      %v5016 = vsel %vm5015, %v5013, %v5010
      %v5017 = vadd.f32 %v4448, 1.0
      %v5018 = vlog2.pop %v5017
      %v5019 = vmul.f32 %v5018, 0.6931472
      %v5020 = vmul.f32 -0.5, %v4448
      %v5021 = vadd.f32 %v5020, 1.0
      %v5022 = vmul.f32 %v5021, %v4448
      %v5023 = vand.u32 2147483647, %v4448
      %vm5024 = vcmp.lt.f32.partialorder %v5023, 0.0004427343
      %v5025 = vsel %vm5024, %v5022, %v5019
      %v5026 = vadd.f32 %v4450, 1.0
      %v5027 = vlog2.pop %v5026
      %v5028 = vmul.f32 %v5027, 0.6931472
      %v5029 = vmul.f32 -0.5, %v4450
      %v5030 = vadd.f32 %v5029, 1.0
      %v5031 = vmul.f32 %v5030, %v4450
      %v5032 = vand.u32 2147483647, %v4450
      %vm5033 = vcmp.lt.f32.partialorder %v5032, 0.0004427343
      %v5034 = vsel %vm5033, %v5031, %v5028
      %v5035 = vadd.f32 %v4452, 1.0
      %v5036 = vlog2.pop %v5035
      %v5037 = vmul.f32 %v5036, 0.6931472
      %v5038 = vmul.f32 -0.5, %v4452
      %v5039 = vadd.f32 %v5038, 1.0
      %v5040 = vmul.f32 %v5039, %v4452
      %v5041 = vand.u32 2147483647, %v4452
      %vm5042 = vcmp.lt.f32.partialorder %v5041, 0.0004427343
      %v5043 = vsel %vm5042, %v5040, %v5037
      %v5044 = vadd.f32 %v4454, 1.0
      %v5045 = vlog2.pop %v5044
      %v5046 = vmul.f32 %v5045, 0.6931472
      %v5047 = vmul.f32 -0.5, %v4454
      %v5048 = vadd.f32 %v5047, 1.0
      %v5049 = vmul.f32 %v5048, %v4454
      %v5050 = vand.u32 2147483647, %v4454
      %vm5051 = vcmp.lt.f32.partialorder %v5050, 0.0004427343
      %v5052 = vsel %vm5051, %v5049, %v5046
      %v5053 = vadd.f32 %v4456, 1.0
      %v5054 = vlog2.pop %v5053
      %v5055 = vmul.f32 %v5054, 0.6931472
      %v5056 = vmul.f32 -0.5, %v4456
      %v5057 = vadd.f32 %v5056, 1.0
      %v5058 = vmul.f32 %v5057, %v4456
      %v5059 = vand.u32 2147483647, %v4456
      %vm5060 = vcmp.lt.f32.partialorder %v5059, 0.0004427343
      %v5061 = vsel %vm5060, %v5058, %v5055
      %v5062 = vadd.f32 %v4458, 1.0
      %v5063 = vlog2.pop %v5062
      %v5064 = vmul.f32 %v5063, 0.6931472
      %v5065 = vmul.f32 -0.5, %v4458
      %v5066 = vadd.f32 %v5065, 1.0
      %v5067 = vmul.f32 %v5066, %v4458
      %v5068 = vand.u32 2147483647, %v4458
      %vm5069 = vcmp.lt.f32.partialorder %v5068, 0.0004427343
      %v5070 = vsel %vm5069, %v5067, %v5064
      %v5071 = vadd.f32 %v4460, 1.0
      %v5072 = vlog2.pop %v5071
      %v5073 = vmul.f32 %v5072, 0.6931472
      %v5074 = vmul.f32 -0.5, %v4460
      %v5075 = vadd.f32 %v5074, 1.0
      %v5076 = vmul.f32 %v5075, %v4460
      %v5077 = vand.u32 2147483647, %v4460
      %vm5078 = vcmp.lt.f32.partialorder %v5077, 0.0004427343
      %v5079 = vsel %vm5078, %v5076, %v5073
      %v5080 = vadd.f32 %v4462, 1.0
      %v5081 = vlog2.pop %v5080
      %v5082 = vmul.f32 %v5081, 0.6931472
      %v5083 = vmul.f32 -0.5, %v4462
      %v5084 = vadd.f32 %v5083, 1.0
      %v5085 = vmul.f32 %v5084, %v4462
      %v5086 = vand.u32 2147483647, %v4462
      %vm5087 = vcmp.lt.f32.partialorder %v5086, 0.0004427343
      %v5088 = vsel %vm5087, %v5085, %v5082
      %v5089 = vadd.f32 %v4464, 1.0
      %v5090 = vlog2.pop %v5089
      %v5091 = vmul.f32 %v5090, 0.6931472
      %v5092 = vmul.f32 -0.5, %v4464
      %v5093 = vadd.f32 %v5092, 1.0
      %v5094 = vmul.f32 %v5093, %v4464
      %v5095 = vand.u32 2147483647, %v4464
      %vm5096 = vcmp.lt.f32.partialorder %v5095, 0.0004427343
      %v5097 = vsel %vm5096, %v5094, %v5091
      %v5098 = vadd.f32 %v4466, 1.0
      %v5099 = vlog2.pop %v5098
      %v5100 = vmul.f32 %v5099, 0.6931472
      %v5101 = vmul.f32 -0.5, %v4466
      %v5102 = vadd.f32 %v5101, 1.0
      %v5103 = vmul.f32 %v5102, %v4466
      %v5104 = vand.u32 2147483647, %v4466
      %vm5105 = vcmp.lt.f32.partialorder %v5104, 0.0004427343
      %v5106 = vsel %vm5105, %v5103, %v5100
      %v5107 = vadd.f32 %v4787, %v4827
      %v5108 = vadd.f32 %v4788, %v4836
      %v5109 = vadd.f32 %v4789, %v4845
      %v5110 = vadd.f32 %v4790, %v4854
      %v5111 = vadd.f32 %v4791, %v4863
      %v5112 = vadd.f32 %v4792, %v4872
      %v5113 = vadd.f32 %v4793, %v4881
      %v5114 = vadd.f32 %v4794, %v4890
      %v5115 = vadd.f32 %v4795, %v4899
      %v5116 = vadd.f32 %v4796, %v4908
      %v5117 = vadd.f32 %v4797, %v4917
      %v5118 = vadd.f32 %v4798, %v4926
      %v5119 = vadd.f32 %v4799, %v4935
      %v5120 = vadd.f32 %v4800, %v4944
      %v5121 = vadd.f32 %v4801, %v4953
      %v5122 = vadd.f32 %v4802, %v4962
      %v5123 = vadd.f32 %v4803, %v4971
      %v5124 = vadd.f32 %v4804, %v4980
      %v5125 = vadd.f32 %v4805, %v4989
      %v5126 = vadd.f32 %v4806, %v4998
      %v5127 = vadd.f32 %v4807, %v5007
      %v5128 = vadd.f32 %v4808, %v5016
      %v5129 = vadd.f32 %v4809, %v5025
      %v5130 = vadd.f32 %v4810, %v5034
      %v5131 = vadd.f32 %v4811, %v5043
      %v5132 = vadd.f32 %v4812, %v5052
      %v5133 = vadd.f32 %v4813, %v5061
      %v5134 = vadd.f32 %v4814, %v5070
      %v5135 = vadd.f32 %v4815, %v5079
      %v5136 = vadd.f32 %v4816, %v5088
      %v5137 = vadd.f32 %v4817, %v5097
      %v5138 = vadd.f32 %v4818, %v5106
      %v5139 = vmul.f32 %v5107, -2.0
      %v5140 = vmul.f32 %v5108, -2.0
      %v5141 = vmul.f32 %v5109, -2.0
      %v5142 = vmul.f32 %v5110, -2.0
      %v5143 = vmul.f32 %v5111, -2.0
      %v5144 = vmul.f32 %v5112, -2.0
      %v5145 = vmul.f32 %v5113, -2.0
      %v5146 = vmul.f32 %v5114, -2.0
      %v5147 = vmul.f32 %v5115, -2.0
      %v5148 = vmul.f32 %v5116, -2.0
      %v5149 = vmul.f32 %v5117, -2.0
      %v5150 = vmul.f32 %v5118, -2.0
      %v5151 = vmul.f32 %v5119, -2.0
      %v5152 = vmul.f32 %v5120, -2.0
      %v5153 = vmul.f32 %v5121, -2.0
      %v5154 = vmul.f32 %v5122, -2.0
      %v5155 = vmul.f32 %v5123, -2.0
      %v5156 = vmul.f32 %v5124, -2.0
      %v5157 = vmul.f32 %v5125, -2.0
      %v5158 = vmul.f32 %v5126, -2.0
      %v5159 = vmul.f32 %v5127, -2.0
      %v5160 = vmul.f32 %v5128, -2.0
      %v5161 = vmul.f32 %v5129, -2.0
      %v5162 = vmul.f32 %v5130, -2.0
      %v5163 = vmul.f32 %v5131, -2.0
      %v5164 = vmul.f32 %v5132, -2.0
      %v5165 = vmul.f32 %v5133, -2.0
      %v5166 = vmul.f32 %v5134, -2.0
      %v5167 = vmul.f32 %v5135, -2.0
      %v5168 = vmul.f32 %v5136, -2.0
      %v5169 = vmul.f32 %v5137, -2.0
      %v5170 = vmul.f32 %v5138, -2.0
      %v5171 = vsel %vm3035, %v4095, -inf
      %5172 = vmax.xlane.f32.xlu0 %v5171
      %v5173 = vpop.xlane.xlu0 %5172
      %v5174 = vsel %vm3035, %v4096, -inf
      %5175 = vmax.xlane.f32.xlu0 %v5174
      %v5176 = vpop.xlane.xlu0 %5175
      %v5177 = vsel %vm3035, %v4097, -inf
      %5178 = vmax.xlane.f32.xlu0 %v5177
      %v5179 = vpop.xlane.xlu0 %5178
      %v5180 = vsel %vm3035, %v4098, -inf
      %5181 = vmax.xlane.f32.xlu0 %v5180
      %v5182 = vpop.xlane.xlu0 %5181
      %v5183 = vsel %vm3035, %v4099, -inf
      %5184 = vmax.xlane.f32.xlu0 %v5183
      %v5185 = vpop.xlane.xlu0 %5184
      %v5186 = vsel %vm3035, %v4100, -inf
      %5187 = vmax.xlane.f32.xlu0 %v5186
      %v5188 = vpop.xlane.xlu0 %5187
      %v5189 = vsel %vm3035, %v4101, -inf
      %5190 = vmax.xlane.f32.xlu0 %v5189
      %v5191 = vpop.xlane.xlu0 %5190
      %v5192 = vsel %vm3035, %v4102, -inf
      %5193 = vmax.xlane.f32.xlu0 %v5192
      %v5194 = vpop.xlane.xlu0 %5193
      %v5195 = vsel %vm3035, %v4103, -inf
      %5196 = vmax.xlane.f32.xlu0 %v5195
      %v5197 = vpop.xlane.xlu0 %5196
      %v5198 = vsel %vm3035, %v4104, -inf
      %5199 = vmax.xlane.f32.xlu0 %v5198
      %v5200 = vpop.xlane.xlu0 %5199
      %v5201 = vsel %vm3035, %v4105, -inf
      %5202 = vmax.xlane.f32.xlu0 %v5201
      %v5203 = vpop.xlane.xlu0 %5202
      %v5204 = vsel %vm3035, %v4106, -inf
      %5205 = vmax.xlane.f32.xlu0 %v5204
      %v5206 = vpop.xlane.xlu0 %5205
      %v5207 = vsel %vm3035, %v4107, -inf
      %5208 = vmax.xlane.f32.xlu0 %v5207
      %v5209 = vpop.xlane.xlu0 %5208
      %v5210 = vsel %vm3035, %v4108, -inf
      %5211 = vmax.xlane.f32.xlu0 %v5210
      %v5212 = vpop.xlane.xlu0 %5211
      %v5213 = vsel %vm3035, %v4109, -inf
      %5214 = vmax.xlane.f32.xlu0 %v5213
      %v5215 = vpop.xlane.xlu0 %5214
      %v5216 = vsel %vm3035, %v4110, -inf
      %5217 = vmax.xlane.f32.xlu0 %v5216
      %v5218 = vpop.xlane.xlu0 %5217
      %v5219 = vsel %vm3035, %v4111, -inf
      %5220 = vmax.xlane.f32.xlu0 %v5219
      %v5221 = vpop.xlane.xlu0 %5220
      %v5222 = vsel %vm3035, %v4112, -inf
      %5223 = vmax.xlane.f32.xlu0 %v5222
      %v5224 = vpop.xlane.xlu0 %5223
      %v5225 = vsel %vm3035, %v4113, -inf
      %5226 = vmax.xlane.f32.xlu0 %v5225
      %v5227 = vpop.xlane.xlu0 %5226
      %v5228 = vsel %vm3035, %v4114, -inf
      %5229 = vmax.xlane.f32.xlu0 %v5228
      %v5230 = vpop.xlane.xlu0 %5229
      %v5231 = vsel %vm3035, %v4115, -inf
      %5232 = vmax.xlane.f32.xlu0 %v5231
      %v5233 = vpop.xlane.xlu0 %5232
      %v5234 = vsel %vm3035, %v4116, -inf
      %5235 = vmax.xlane.f32.xlu0 %v5234
      %v5236 = vpop.xlane.xlu0 %5235
      %v5237 = vsel %vm3035, %v4117, -inf
      %5238 = vmax.xlane.f32.xlu0 %v5237
      %v5239 = vpop.xlane.xlu0 %5238
      %v5240 = vsel %vm3035, %v4118, -inf
      %5241 = vmax.xlane.f32.xlu0 %v5240
      %v5242 = vpop.xlane.xlu0 %5241
      %v5243 = vsel %vm3035, %v4119, -inf
      %5244 = vmax.xlane.f32.xlu0 %v5243
      %v5245 = vpop.xlane.xlu0 %5244
      %v5246 = vsel %vm3035, %v4120, -inf
      %5247 = vmax.xlane.f32.xlu0 %v5246
      %v5248 = vpop.xlane.xlu0 %5247
      %v5249 = vsel %vm3035, %v4121, -inf
      %5250 = vmax.xlane.f32.xlu0 %v5249
      %v5251 = vpop.xlane.xlu0 %5250
      %v5252 = vsel %vm3035, %v4122, -inf
      %5253 = vmax.xlane.f32.xlu0 %v5252
      %v5254 = vpop.xlane.xlu0 %5253
      %v5255 = vsel %vm3035, %v4123, -inf
      %5256 = vmax.xlane.f32.xlu0 %v5255
      %v5257 = vpop.xlane.xlu0 %5256
      %v5258 = vsel %vm3035, %v4124, -inf
      %5259 = vmax.xlane.f32.xlu0 %v5258
      %v5260 = vpop.xlane.xlu0 %5259
      %v5261 = vsel %vm3035, %v4125, -inf
      %5262 = vmax.xlane.f32.xlu0 %v5261
      %v5263 = vpop.xlane.xlu0 %5262
      %v5264 = vsel %vm3035, %v4126, -inf
      %5265 = vmax.xlane.f32.xlu0 %v5264
      %v5266 = vpop.xlane.xlu0 %5265
      %v5267 = vsel %vm3132, %v4095, -inf
      %5268 = vmax.xlane.f32.xlu0 %v5267
      %v5269 = vpop.xlane.xlu0 %5268
      %v5270 = vsel %vm3132, %v4096, -inf
      %5271 = vmax.xlane.f32.xlu0 %v5270
      %v5272 = vpop.xlane.xlu0 %5271
      %v5273 = vsel %vm3132, %v4097, -inf
      %5274 = vmax.xlane.f32.xlu0 %v5273
      %v5275 = vpop.xlane.xlu0 %5274
      %v5276 = vsel %vm3132, %v4098, -inf
      %5277 = vmax.xlane.f32.xlu0 %v5276
      %v5278 = vpop.xlane.xlu0 %5277
      %v5279 = vsel %vm3132, %v4099, -inf
      %5280 = vmax.xlane.f32.xlu0 %v5279
      %v5281 = vpop.xlane.xlu0 %5280
      %v5282 = vsel %vm3132, %v4100, -inf
      %5283 = vmax.xlane.f32.xlu0 %v5282
      %v5284 = vpop.xlane.xlu0 %5283
      %v5285 = vsel %vm3132, %v4101, -inf
      %5286 = vmax.xlane.f32.xlu0 %v5285
      %v5287 = vpop.xlane.xlu0 %5286
      %v5288 = vsel %vm3132, %v4102, -inf
      %5289 = vmax.xlane.f32.xlu0 %v5288
      %v5290 = vpop.xlane.xlu0 %5289
      %v5291 = vsel %vm3132, %v4103, -inf
      %5292 = vmax.xlane.f32.xlu0 %v5291
      %v5293 = vpop.xlane.xlu0 %5292
      %v5294 = vsel %vm3132, %v4104, -inf
      %5295 = vmax.xlane.f32.xlu0 %v5294
      %v5296 = vpop.xlane.xlu0 %5295
      %v5297 = vsel %vm3132, %v4105, -inf
      %5298 = vmax.xlane.f32.xlu0 %v5297
      %v5299 = vpop.xlane.xlu0 %5298
      %v5300 = vsel %vm3132, %v4106, -inf
      %5301 = vmax.xlane.f32.xlu0 %v5300
      %v5302 = vpop.xlane.xlu0 %5301
      %v5303 = vsel %vm3132, %v4107, -inf
      %5304 = vmax.xlane.f32.xlu0 %v5303
      %v5305 = vpop.xlane.xlu0 %5304
      %v5306 = vsel %vm3132, %v4108, -inf
      %5307 = vmax.xlane.f32.xlu0 %v5306
      %v5308 = vpop.xlane.xlu0 %5307
      %v5309 = vsel %vm3132, %v4109, -inf
      %5310 = vmax.xlane.f32.xlu0 %v5309
      %v5311 = vpop.xlane.xlu0 %5310
      %v5312 = vsel %vm3132, %v4110, -inf
      %5313 = vmax.xlane.f32.xlu0 %v5312
      %v5314 = vpop.xlane.xlu0 %5313
      %v5315 = vsel %vm3132, %v4111, -inf
      %5316 = vmax.xlane.f32.xlu0 %v5315
      %v5317 = vpop.xlane.xlu0 %5316
      %v5318 = vsel %vm3132, %v4112, -inf
      %5319 = vmax.xlane.f32.xlu0 %v5318
      %v5320 = vpop.xlane.xlu0 %5319
      %v5321 = vsel %vm3132, %v4113, -inf
      %5322 = vmax.xlane.f32.xlu0 %v5321
      %v5323 = vpop.xlane.xlu0 %5322
      %v5324 = vsel %vm3132, %v4114, -inf
      %5325 = vmax.xlane.f32.xlu0 %v5324
      %v5326 = vpop.xlane.xlu0 %5325
      %v5327 = vsel %vm3132, %v4115, -inf
      %5328 = vmax.xlane.f32.xlu0 %v5327
      %v5329 = vpop.xlane.xlu0 %5328
      %v5330 = vsel %vm3132, %v4116, -inf
      %5331 = vmax.xlane.f32.xlu0 %v5330
      %v5332 = vpop.xlane.xlu0 %5331
      %v5333 = vsel %vm3132, %v4117, -inf
      %5334 = vmax.xlane.f32.xlu0 %v5333
      %v5335 = vpop.xlane.xlu0 %5334
      %v5336 = vsel %vm3132, %v4118, -inf
      %5337 = vmax.xlane.f32.xlu0 %v5336
      %v5338 = vpop.xlane.xlu0 %5337
      %v5339 = vsel %vm3132, %v4119, -inf
      %5340 = vmax.xlane.f32.xlu0 %v5339
      %v5341 = vpop.xlane.xlu0 %5340
      %v5342 = vsel %vm3132, %v4120, -inf
      %5343 = vmax.xlane.f32.xlu0 %v5342
      %v5344 = vpop.xlane.xlu0 %5343
      %v5345 = vsel %vm3132, %v4121, -inf
      %5346 = vmax.xlane.f32.xlu0 %v5345
      %v5347 = vpop.xlane.xlu0 %5346
      %v5348 = vsel %vm3132, %v4122, -inf
      %5349 = vmax.xlane.f32.xlu0 %v5348
      %v5350 = vpop.xlane.xlu0 %5349
      %v5351 = vsel %vm3132, %v4123, -inf
      %5352 = vmax.xlane.f32.xlu0 %v5351
      %v5353 = vpop.xlane.xlu0 %5352
      %v5354 = vsel %vm3132, %v4124, -inf
      %5355 = vmax.xlane.f32.xlu0 %v5354
      %v5356 = vpop.xlane.xlu0 %5355
      %v5357 = vsel %vm3132, %v4125, -inf
      %5358 = vmax.xlane.f32.xlu0 %v5357
      %v5359 = vpop.xlane.xlu0 %5358
      %v5360 = vsel %vm3132, %v4126, -inf
      %5361 = vmax.xlane.f32.xlu0 %v5360
      %v5362 = vpop.xlane.xlu0 %5361
      %v5363 = vsel %vm3229, %v4095, -inf
      %5364 = vmax.xlane.f32.xlu0 %v5363
      %v5365 = vpop.xlane.xlu0 %5364
      %v5366 = vsel %vm3229, %v4096, -inf
      %5367 = vmax.xlane.f32.xlu0 %v5366
      %v5368 = vpop.xlane.xlu0 %5367
      %v5369 = vsel %vm3229, %v4097, -inf
      %5370 = vmax.xlane.f32.xlu0 %v5369
      %v5371 = vpop.xlane.xlu0 %5370
      %v5372 = vsel %vm3229, %v4098, -inf
      %5373 = vmax.xlane.f32.xlu0 %v5372
      %v5374 = vpop.xlane.xlu0 %5373
      %v5375 = vsel %vm3229, %v4099, -inf
      %5376 = vmax.xlane.f32.xlu0 %v5375
      %v5377 = vpop.xlane.xlu0 %5376
      %v5378 = vsel %vm3229, %v4100, -inf
      %5379 = vmax.xlane.f32.xlu0 %v5378
      %v5380 = vpop.xlane.xlu0 %5379
      %v5381 = vsel %vm3229, %v4101, -inf
      %5382 = vmax.xlane.f32.xlu0 %v5381
      %v5383 = vpop.xlane.xlu0 %5382
      %v5384 = vsel %vm3229, %v4102, -inf
      %5385 = vmax.xlane.f32.xlu0 %v5384
      %v5386 = vpop.xlane.xlu0 %5385
      %v5387 = vsel %vm3229, %v4103, -inf
      %5388 = vmax.xlane.f32.xlu0 %v5387
      %v5389 = vpop.xlane.xlu0 %5388
      %v5390 = vsel %vm3229, %v4104, -inf
      %5391 = vmax.xlane.f32.xlu0 %v5390
      %v5392 = vpop.xlane.xlu0 %5391
      %v5393 = vsel %vm3229, %v4105, -inf
      %5394 = vmax.xlane.f32.xlu0 %v5393
      %v5395 = vpop.xlane.xlu0 %5394
      %v5396 = vsel %vm3229, %v4106, -inf
      %5397 = vmax.xlane.f32.xlu0 %v5396
      %v5398 = vpop.xlane.xlu0 %5397
      %v5399 = vsel %vm3229, %v4107, -inf
      %5400 = vmax.xlane.f32.xlu0 %v5399
      %v5401 = vpop.xlane.xlu0 %5400
      %v5402 = vsel %vm3229, %v4108, -inf
      %5403 = vmax.xlane.f32.xlu0 %v5402
      %v5404 = vpop.xlane.xlu0 %5403
      %v5405 = vsel %vm3229, %v4109, -inf
      %5406 = vmax.xlane.f32.xlu0 %v5405
      %v5407 = vpop.xlane.xlu0 %5406
      %v5408 = vsel %vm3229, %v4110, -inf
      %5409 = vmax.xlane.f32.xlu0 %v5408
      %v5410 = vpop.xlane.xlu0 %5409
      %v5411 = vsel %vm3229, %v4111, -inf
      %5412 = vmax.xlane.f32.xlu0 %v5411
      %v5413 = vpop.xlane.xlu0 %5412
      %v5414 = vsel %vm3229, %v4112, -inf
      %5415 = vmax.xlane.f32.xlu0 %v5414
      %v5416 = vpop.xlane.xlu0 %5415
      %v5417 = vsel %vm3229, %v4113, -inf
      %5418 = vmax.xlane.f32.xlu0 %v5417
      %v5419 = vpop.xlane.xlu0 %5418
      %v5420 = vsel %vm3229, %v4114, -inf
      %5421 = vmax.xlane.f32.xlu0 %v5420
      %v5422 = vpop.xlane.xlu0 %5421
      %v5423 = vsel %vm3229, %v4115, -inf
      %5424 = vmax.xlane.f32.xlu0 %v5423
      %v5425 = vpop.xlane.xlu0 %5424
      %v5426 = vsel %vm3229, %v4116, -inf
      %5427 = vmax.xlane.f32.xlu0 %v5426
      %v5428 = vpop.xlane.xlu0 %5427
      %v5429 = vsel %vm3229, %v4117, -inf
      %5430 = vmax.xlane.f32.xlu0 %v5429
      %v5431 = vpop.xlane.xlu0 %5430
      %v5432 = vsel %vm3229, %v4118, -inf
      %5433 = vmax.xlane.f32.xlu0 %v5432
      %v5434 = vpop.xlane.xlu0 %5433
      %v5435 = vsel %vm3229, %v4119, -inf
      %5436 = vmax.xlane.f32.xlu0 %v5435
      %v5437 = vpop.xlane.xlu0 %5436
      %v5438 = vsel %vm3229, %v4120, -inf
      %5439 = vmax.xlane.f32.xlu0 %v5438
      %v5440 = vpop.xlane.xlu0 %5439
      %v5441 = vsel %vm3229, %v4121, -inf
      %5442 = vmax.xlane.f32.xlu0 %v5441
      %v5443 = vpop.xlane.xlu0 %5442
      %v5444 = vsel %vm3229, %v4122, -inf
      %5445 = vmax.xlane.f32.xlu0 %v5444
      %v5446 = vpop.xlane.xlu0 %5445
      %v5447 = vsel %vm3229, %v4123, -inf
      %5448 = vmax.xlane.f32.xlu0 %v5447
      %v5449 = vpop.xlane.xlu0 %5448
      %v5450 = vsel %vm3229, %v4124, -inf
      %5451 = vmax.xlane.f32.xlu0 %v5450
      %v5452 = vpop.xlane.xlu0 %5451
      %v5453 = vsel %vm3229, %v4125, -inf
      %5454 = vmax.xlane.f32.xlu0 %v5453
      %v5455 = vpop.xlane.xlu0 %5454
      %v5456 = vsel %vm3229, %v4126, -inf
      %5457 = vmax.xlane.f32.xlu0 %v5456
      %v5458 = vpop.xlane.xlu0 %5457
      %v5459 = vsel %vm3326, %v4095, -inf
      %5460 = vmax.xlane.f32.xlu0 %v5459
      %v5461 = vpop.xlane.xlu0 %5460
      %v5462 = vsel %vm3326, %v4096, -inf
      %5463 = vmax.xlane.f32.xlu0 %v5462
      %v5464 = vpop.xlane.xlu0 %5463
      %v5465 = vsel %vm3326, %v4097, -inf
      %5466 = vmax.xlane.f32.xlu0 %v5465
      %v5467 = vpop.xlane.xlu0 %5466
      %v5468 = vsel %vm3326, %v4098, -inf
      %5469 = vmax.xlane.f32.xlu0 %v5468
      %v5470 = vpop.xlane.xlu0 %5469
      %v5471 = vsel %vm3326, %v4099, -inf
      %5472 = vmax.xlane.f32.xlu0 %v5471
      %v5473 = vpop.xlane.xlu0 %5472
      %v5474 = vsel %vm3326, %v4100, -inf
      %5475 = vmax.xlane.f32.xlu0 %v5474
      %v5476 = vpop.xlane.xlu0 %5475
      %v5477 = vsel %vm3326, %v4101, -inf
      %5478 = vmax.xlane.f32.xlu0 %v5477
      %v5479 = vpop.xlane.xlu0 %5478
      %v5480 = vsel %vm3326, %v4102, -inf
      %5481 = vmax.xlane.f32.xlu0 %v5480
      %v5482 = vpop.xlane.xlu0 %5481
      %v5483 = vsel %vm3326, %v4103, -inf
      %5484 = vmax.xlane.f32.xlu0 %v5483
      %v5485 = vpop.xlane.xlu0 %5484
      %v5486 = vsel %vm3326, %v4104, -inf
      %5487 = vmax.xlane.f32.xlu0 %v5486
      %v5488 = vpop.xlane.xlu0 %5487
      %v5489 = vsel %vm3326, %v4105, -inf
      %5490 = vmax.xlane.f32.xlu0 %v5489
      %v5491 = vpop.xlane.xlu0 %5490
      %v5492 = vsel %vm3326, %v4106, -inf
      %5493 = vmax.xlane.f32.xlu0 %v5492
      %v5494 = vpop.xlane.xlu0 %5493
      %v5495 = vsel %vm3326, %v4107, -inf
      %5496 = vmax.xlane.f32.xlu0 %v5495
      %v5497 = vpop.xlane.xlu0 %5496
      %v5498 = vsel %vm3326, %v4108, -inf
      %5499 = vmax.xlane.f32.xlu0 %v5498
      %v5500 = vpop.xlane.xlu0 %5499
      %v5501 = vsel %vm3326, %v4109, -inf
      %5502 = vmax.xlane.f32.xlu0 %v5501
      %v5503 = vpop.xlane.xlu0 %5502
      %v5504 = vsel %vm3326, %v4110, -inf
      %5505 = vmax.xlane.f32.xlu0 %v5504
      %v5506 = vpop.xlane.xlu0 %5505
      %v5507 = vsel %vm3326, %v4111, -inf
      %5508 = vmax.xlane.f32.xlu0 %v5507
      %v5509 = vpop.xlane.xlu0 %5508
      %v5510 = vsel %vm3326, %v4112, -inf
      %5511 = vmax.xlane.f32.xlu0 %v5510
      %v5512 = vpop.xlane.xlu0 %5511
      %v5513 = vsel %vm3326, %v4113, -inf
      %5514 = vmax.xlane.f32.xlu0 %v5513
      %v5515 = vpop.xlane.xlu0 %5514
      %v5516 = vsel %vm3326, %v4114, -inf
      %5517 = vmax.xlane.f32.xlu0 %v5516
      %v5518 = vpop.xlane.xlu0 %5517
      %v5519 = vsel %vm3326, %v4115, -inf
      %5520 = vmax.xlane.f32.xlu0 %v5519
      %v5521 = vpop.xlane.xlu0 %5520
      %v5522 = vsel %vm3326, %v4116, -inf
      %5523 = vmax.xlane.f32.xlu0 %v5522
      %v5524 = vpop.xlane.xlu0 %5523
      %v5525 = vsel %vm3326, %v4117, -inf
      %5526 = vmax.xlane.f32.xlu0 %v5525
      %v5527 = vpop.xlane.xlu0 %5526
      %v5528 = vsel %vm3326, %v4118, -inf
      %5529 = vmax.xlane.f32.xlu0 %v5528
      %v5530 = vpop.xlane.xlu0 %5529
      %v5531 = vsel %vm3326, %v4119, -inf
      %5532 = vmax.xlane.f32.xlu0 %v5531
      %v5533 = vpop.xlane.xlu0 %5532
      %v5534 = vsel %vm3326, %v4120, -inf
      %5535 = vmax.xlane.f32.xlu0 %v5534
      %v5536 = vpop.xlane.xlu0 %5535
      %v5537 = vsel %vm3326, %v4121, -inf
      %5538 = vmax.xlane.f32.xlu0 %v5537
      %v5539 = vpop.xlane.xlu0 %5538
      %v5540 = vsel %vm3326, %v4122, -inf
      %5541 = vmax.xlane.f32.xlu0 %v5540
      %v5542 = vpop.xlane.xlu0 %5541
      %v5543 = vsel %vm3326, %v4123, -inf
      %5544 = vmax.xlane.f32.xlu0 %v5543
      %v5545 = vpop.xlane.xlu0 %5544
      %v5546 = vsel %vm3326, %v4124, -inf
      %5547 = vmax.xlane.f32.xlu0 %v5546
      %v5548 = vpop.xlane.xlu0 %5547
      %v5549 = vsel %vm3326, %v4125, -inf
      %5550 = vmax.xlane.f32.xlu0 %v5549
      %v5551 = vpop.xlane.xlu0 %5550
      %v5552 = vsel %vm3326, %v4126, -inf
      %5553 = vmax.xlane.f32.xlu0 %v5552
      %v5554 = vpop.xlane.xlu0 %5553
      %v5555 = vsel %vm3035, %v5173, %v5269
      %v5556 = vsel %vm3035, %v5176, %v5272
      %v5557 = vsel %vm3035, %v5179, %v5275
      %v5558 = vsel %vm3035, %v5182, %v5278
      %v5559 = vsel %vm3035, %v5185, %v5281
      %v5560 = vsel %vm3035, %v5188, %v5284
      %v5561 = vsel %vm3035, %v5191, %v5287
      %v5562 = vsel %vm3035, %v5194, %v5290
      %v5563 = vsel %vm3035, %v5197, %v5293
      %v5564 = vsel %vm3035, %v5200, %v5296
      %v5565 = vsel %vm3035, %v5203, %v5299
      %v5566 = vsel %vm3035, %v5206, %v5302
      %v5567 = vsel %vm3035, %v5209, %v5305
      %v5568 = vsel %vm3035, %v5212, %v5308
      %v5569 = vsel %vm3035, %v5215, %v5311
      %v5570 = vsel %vm3035, %v5218, %v5314
      %v5571 = vsel %vm3035, %v5221, %v5317
      %v5572 = vsel %vm3035, %v5224, %v5320
      %v5573 = vsel %vm3035, %v5227, %v5323
      %v5574 = vsel %vm3035, %v5230, %v5326
      %v5575 = vsel %vm3035, %v5233, %v5329
      %v5576 = vsel %vm3035, %v5236, %v5332
      %v5577 = vsel %vm3035, %v5239, %v5335
      %v5578 = vsel %vm3035, %v5242, %v5338
      %v5579 = vsel %vm3035, %v5245, %v5341
      %v5580 = vsel %vm3035, %v5248, %v5344
      %v5581 = vsel %vm3035, %v5251, %v5347
      %v5582 = vsel %vm3035, %v5254, %v5350
      %v5583 = vsel %vm3035, %v5257, %v5353
      %v5584 = vsel %vm3035, %v5260, %v5356
      %v5585 = vsel %vm3035, %v5263, %v5359
      %v5586 = vsel %vm3035, %v5266, %v5362
      %v5587 = vsel %vm3455, %v5555, %v5365
      %v5588 = vsel %vm3455, %v5556, %v5368
      %v5589 = vsel %vm3455, %v5557, %v5371
      %v5590 = vsel %vm3455, %v5558, %v5374
      %v5591 = vsel %vm3455, %v5559, %v5377
      %v5592 = vsel %vm3455, %v5560, %v5380
      %v5593 = vsel %vm3455, %v5561, %v5383
      %v5594 = vsel %vm3455, %v5562, %v5386
      %v5595 = vsel %vm3455, %v5563, %v5389
      %v5596 = vsel %vm3455, %v5564, %v5392
      %v5597 = vsel %vm3455, %v5565, %v5395
      %v5598 = vsel %vm3455, %v5566, %v5398
      %v5599 = vsel %vm3455, %v5567, %v5401
      %v5600 = vsel %vm3455, %v5568, %v5404
      %v5601 = vsel %vm3455, %v5569, %v5407
      %v5602 = vsel %vm3455, %v5570, %v5410
      %v5603 = vsel %vm3455, %v5571, %v5413
      %v5604 = vsel %vm3455, %v5572, %v5416
      %v5605 = vsel %vm3455, %v5573, %v5419
      %v5606 = vsel %vm3455, %v5574, %v5422
      %v5607 = vsel %vm3455, %v5575, %v5425
      %v5608 = vsel %vm3455, %v5576, %v5428
      %v5609 = vsel %vm3455, %v5577, %v5431
      %v5610 = vsel %vm3455, %v5578, %v5434
      %v5611 = vsel %vm3455, %v5579, %v5437
      %v5612 = vsel %vm3455, %v5580, %v5440
      %v5613 = vsel %vm3455, %v5581, %v5443
      %v5614 = vsel %vm3455, %v5582, %v5446
      %v5615 = vsel %vm3455, %v5583, %v5449
      %v5616 = vsel %vm3455, %v5584, %v5452
      %v5617 = vsel %vm3455, %v5585, %v5455
      %v5618 = vsel %vm3455, %v5586, %v5458
      %v5619 = vsel %vm3488, %v5587, %v5461
      %v5620 = vsel %vm3488, %v5588, %v5464
      %v5621 = vsel %vm3488, %v5589, %v5467
      %v5622 = vsel %vm3488, %v5590, %v5470
      %v5623 = vsel %vm3488, %v5591, %v5473
      %v5624 = vsel %vm3488, %v5592, %v5476
      %v5625 = vsel %vm3488, %v5593, %v5479
      %v5626 = vsel %vm3488, %v5594, %v5482
      %v5627 = vsel %vm3488, %v5595, %v5485
      %v5628 = vsel %vm3488, %v5596, %v5488
      %v5629 = vsel %vm3488, %v5597, %v5491
      %v5630 = vsel %vm3488, %v5598, %v5494
      %v5631 = vsel %vm3488, %v5599, %v5497
      %v5632 = vsel %vm3488, %v5600, %v5500
      %v5633 = vsel %vm3488, %v5601, %v5503
      %v5634 = vsel %vm3488, %v5602, %v5506
      %v5635 = vsel %vm3488, %v5603, %v5509
      %v5636 = vsel %vm3488, %v5604, %v5512
      %v5637 = vsel %vm3488, %v5605, %v5515
      %v5638 = vsel %vm3488, %v5606, %v5518
      %v5639 = vsel %vm3488, %v5607, %v5521
      %v5640 = vsel %vm3488, %v5608, %v5524
      %v5641 = vsel %vm3488, %v5609, %v5527
      %v5642 = vsel %vm3488, %v5610, %v5530
      %v5643 = vsel %vm3488, %v5611, %v5533
      %v5644 = vsel %vm3488, %v5612, %v5536
      %v5645 = vsel %vm3488, %v5613, %v5539
      %v5646 = vsel %vm3488, %v5614, %v5542
      %v5647 = vsel %vm3488, %v5615, %v5545
      %v5648 = vsel %vm3488, %v5616, %v5548
      %v5649 = vsel %vm3488, %v5617, %v5551
      %v5650 = vsel %vm3488, %v5618, %v5554
      %v5651 = vsub.f32 %v4095, %v5619
      %v5652 = vsub.f32 %v4096, %v5620
      %v5653 = vsub.f32 %v4097, %v5621
      %v5654 = vsub.f32 %v4098, %v5622
      %v5655 = vsub.f32 %v4099, %v5623
      %v5656 = vsub.f32 %v4100, %v5624
      %v5657 = vsub.f32 %v4101, %v5625
      %v5658 = vsub.f32 %v4102, %v5626
      %v5659 = vsub.f32 %v4103, %v5627
      %v5660 = vsub.f32 %v4104, %v5628
      %v5661 = vsub.f32 %v4105, %v5629
      %v5662 = vsub.f32 %v4106, %v5630
      %v5663 = vsub.f32 %v4107, %v5631
      %v5664 = vsub.f32 %v4108, %v5632
      %v5665 = vsub.f32 %v4109, %v5633
      %v5666 = vsub.f32 %v4110, %v5634
      %v5667 = vsub.f32 %v4111, %v5635
      %v5668 = vsub.f32 %v4112, %v5636
      %v5669 = vsub.f32 %v4113, %v5637
      %v5670 = vsub.f32 %v4114, %v5638
      %v5671 = vsub.f32 %v4115, %v5639
      %v5672 = vsub.f32 %v4116, %v5640
      %v5673 = vsub.f32 %v4117, %v5641
      %v5674 = vsub.f32 %v4118, %v5642
      %v5675 = vsub.f32 %v4119, %v5643
      %v5676 = vsub.f32 %v4120, %v5644
      %v5677 = vsub.f32 %v4121, %v5645
      %v5678 = vsub.f32 %v4122, %v5646
      %v5679 = vsub.f32 %v4123, %v5647
      %v5680 = vsub.f32 %v4124, %v5648
      %v5681 = vsub.f32 %v4125, %v5649
      %v5682 = vsub.f32 %v4126, %v5650
      %v5683 = vmul.f32 %v5651, 1.442695
      %v5684 = vpow.pop %v5683
      %v5685 = vmul.f32 %v5652, 1.442695
      %v5686 = vpow.pop %v5685
      %v5687 = vmul.f32 %v5653, 1.442695
      %v5688 = vpow.pop %v5687
      %v5689 = vmul.f32 %v5654, 1.442695
      %v5690 = vpow.pop %v5689
      %v5691 = vmul.f32 %v5655, 1.442695
      %v5692 = vpow.pop %v5691
      %v5693 = vmul.f32 %v5656, 1.442695
      %v5694 = vpow.pop %v5693
      %v5695 = vmul.f32 %v5657, 1.442695
      %v5696 = vpow.pop %v5695
      %v5697 = vmul.f32 %v5658, 1.442695
      %v5698 = vpow.pop %v5697
      %v5699 = vmul.f32 %v5659, 1.442695
      %v5700 = vpow.pop %v5699
      %v5701 = vmul.f32 %v5660, 1.442695
      %v5702 = vpow.pop %v5701
      %v5703 = vmul.f32 %v5661, 1.442695
      %v5704 = vpow.pop %v5703
      %v5705 = vmul.f32 %v5662, 1.442695
      %v5706 = vpow.pop %v5705
      %v5707 = vmul.f32 %v5663, 1.442695
      %v5708 = vpow.pop %v5707
      %v5709 = vmul.f32 %v5664, 1.442695
      %v5710 = vpow.pop %v5709
      %v5711 = vmul.f32 %v5665, 1.442695
      %v5712 = vpow.pop %v5711
      %v5713 = vmul.f32 %v5666, 1.442695
      %v5714 = vpow.pop %v5713
      %v5715 = vmul.f32 %v5667, 1.442695
      %v5716 = vpow.pop %v5715
      %v5717 = vmul.f32 %v5668, 1.442695
      %v5718 = vpow.pop %v5717
      %v5719 = vmul.f32 %v5669, 1.442695
      %v5720 = vpow.pop %v5719
      %v5721 = vmul.f32 %v5670, 1.442695
      %v5722 = vpow.pop %v5721
      %v5723 = vmul.f32 %v5671, 1.442695
      %v5724 = vpow.pop %v5723
      %v5725 = vmul.f32 %v5672, 1.442695
      %v5726 = vpow.pop %v5725
      %v5727 = vmul.f32 %v5673, 1.442695
      %v5728 = vpow.pop %v5727
      %v5729 = vmul.f32 %v5674, 1.442695
      %v5730 = vpow.pop %v5729
      %v5731 = vmul.f32 %v5675, 1.442695
      %v5732 = vpow.pop %v5731
      %v5733 = vmul.f32 %v5676, 1.442695
      %v5734 = vpow.pop %v5733
      %v5735 = vmul.f32 %v5677, 1.442695
      %v5736 = vpow.pop %v5735
      %v5737 = vmul.f32 %v5678, 1.442695
      %v5738 = vpow.pop %v5737
      %v5739 = vmul.f32 %v5679, 1.442695
      %v5740 = vpow.pop %v5739
      %v5741 = vmul.f32 %v5680, 1.442695
      %v5742 = vpow.pop %v5741
      %v5743 = vmul.f32 %v5681, 1.442695
      %v5744 = vpow.pop %v5743
      %v5745 = vmul.f32 %v5682, 1.442695
      %v5746 = vpow.pop %v5745
      %v5748 = vsel %vm1852, %v5684, 0
      %v5751 = vsel %vm1852, %v5686, 0
      %v5754 = vsel %vm1852, %v5688, 0
      %v5757 = vsel %vm1852, %v5690, 0
      %v5760 = vsel %vm1852, %v5692, 0
      %v5763 = vsel %vm1852, %v5694, 0
      %v5766 = vsel %vm1852, %v5696, 0
      %v5769 = vsel %vm1852, %v5698, 0
      %v5772 = vsel %vm1852, %v5700, 0
      %v5775 = vsel %vm1852, %v5702, 0
      %v5778 = vsel %vm1852, %v5704, 0
      %v5781 = vsel %vm1852, %v5706, 0
      %v5784 = vsel %vm1852, %v5708, 0
      %v5787 = vsel %vm1852, %v5710, 0
      %v5790 = vsel %vm1852, %v5712, 0
      %v5793 = vsel %vm1852, %v5714, 0
      %v5796 = vsel %vm1852, %v5716, 0
      %v5799 = vsel %vm1852, %v5718, 0
      %v5802 = vsel %vm1852, %v5720, 0
      %v5805 = vsel %vm1852, %v5722, 0
      %v5808 = vsel %vm1852, %v5724, 0
      %v5811 = vsel %vm1852, %v5726, 0
      %v5814 = vsel %vm1852, %v5728, 0
      %v5817 = vsel %vm1852, %v5730, 0
      %v5820 = vsel %vm1852, %v5732, 0
      %v5823 = vsel %vm1852, %v5734, 0
      %v5826 = vsel %vm1852, %v5736, 0
      %v5829 = vsel %vm1852, %v5738, 0
      %v5832 = vsel %vm1852, %v5740, 0
      %v5835 = vsel %vm1852, %v5742, 0
      %v5838 = vsel %vm1852, %v5744, 0
      %v5841 = vsel %vm1852, %v5746, 0
      %5843 = vmatpush.msra.mxu0 0.0
      %5844 = vmatpush.msra.mxu0 0.0
      %5845 = vmatpush.msra.mxu0 0.0
      %5846 = vmatpush.msra.mxu0 0.0
      %5847 = vmatpush.msra.mxu0 0.0
      %5848 = vmatpush.msra.mxu0 0.0
      %5849 = vmatpush.msra.mxu0 0.0
      %5850 = vmatpush.msra.mxu0 0.0
      %5851 = vmatpush.msra.mxu0 0.0
      %5852 = vmatpush.msra.mxu0 0.0
      %5853 = vmatpush.msra.mxu0 0.0
      %5854 = vmatpush.msra.mxu0 0.0
      %5855 = vmatpush.msra.mxu0 %v4061
      %5856 = vmatpush.msra.mxu0 %v4060
      %5857 = vmatpush.msra.mxu0 %v4059
      %5858 = vmatpush.msra.mxu0 %v4058
      %5859 = vmatmul.f32.gmra.mxu0 %v5748
      %v5860 = vpop.f32.mrf.mxu0
      %v5861 = vadd.f32 0.0, %v5860
      %5862 = vmatmul.f32.gmra.mxu0 %v5751
      %v5863 = vpop.f32.mrf.mxu0
      %v5864 = vadd.f32 0.0, %v5863
      %5865 = vmatmul.f32.gmra.mxu0 %v5754
      %v5866 = vpop.f32.mrf.mxu0
      %v5867 = vadd.f32 0.0, %v5866
      %5868 = vmatmul.f32.gmra.mxu0 %v5757
      %v5869 = vpop.f32.mrf.mxu0
      %v5870 = vadd.f32 0.0, %v5869
      %5871 = vmatmul.f32.gmra.mxu0 %v5760
      %v5872 = vpop.f32.mrf.mxu0
      %v5873 = vadd.f32 0.0, %v5872
      %5874 = vmatmul.f32.gmra.mxu0 %v5763
      %v5875 = vpop.f32.mrf.mxu0
      %v5876 = vadd.f32 0.0, %v5875
      %5877 = vmatmul.f32.gmra.mxu0 %v5766
      %v5878 = vpop.f32.mrf.mxu0
      %v5879 = vadd.f32 0.0, %v5878
      %5880 = vmatmul.f32.gmra.mxu0 %v5769
      %v5881 = vpop.f32.mrf.mxu0
      %v5882 = vadd.f32 0.0, %v5881
      %5883 = vmatmul.f32.gmra.mxu0 %v5772
      %v5884 = vpop.f32.mrf.mxu0
      %v5885 = vadd.f32 0.0, %v5884
      %5886 = vmatmul.f32.gmra.mxu0 %v5775
      %v5887 = vpop.f32.mrf.mxu0
      %v5888 = vadd.f32 0.0, %v5887
      %5889 = vmatmul.f32.gmra.mxu0 %v5778
      %v5890 = vpop.f32.mrf.mxu0
      %v5891 = vadd.f32 0.0, %v5890
      %5892 = vmatmul.f32.gmra.mxu0 %v5781
      %v5893 = vpop.f32.mrf.mxu0
      %v5894 = vadd.f32 0.0, %v5893
      %5895 = vmatmul.f32.gmra.mxu0 %v5784
      %v5896 = vpop.f32.mrf.mxu0
      %v5897 = vadd.f32 0.0, %v5896
      %5898 = vmatmul.f32.gmra.mxu0 %v5787
      %v5899 = vpop.f32.mrf.mxu0
      %v5900 = vadd.f32 0.0, %v5899
      %5901 = vmatmul.f32.gmra.mxu0 %v5790
      %v5902 = vpop.f32.mrf.mxu0
      %v5903 = vadd.f32 0.0, %v5902
      %5904 = vmatmul.f32.gmra.mxu0 %v5793
      %v5905 = vpop.f32.mrf.mxu0
      %v5906 = vadd.f32 0.0, %v5905
      %5907 = vmatmul.f32.gmra.mxu0 %v5796
      %v5908 = vpop.f32.mrf.mxu0
      %v5909 = vadd.f32 0.0, %v5908
      %5910 = vmatmul.f32.gmra.mxu0 %v5799
      %v5911 = vpop.f32.mrf.mxu0
      %v5912 = vadd.f32 0.0, %v5911
      %5913 = vmatmul.f32.gmra.mxu0 %v5802
      %v5914 = vpop.f32.mrf.mxu0
      %v5915 = vadd.f32 0.0, %v5914
      %5916 = vmatmul.f32.gmra.mxu0 %v5805
      %v5917 = vpop.f32.mrf.mxu0
      %v5918 = vadd.f32 0.0, %v5917
      %5919 = vmatmul.f32.gmra.mxu0 %v5808
      %v5920 = vpop.f32.mrf.mxu0
      %v5921 = vadd.f32 0.0, %v5920
      %5922 = vmatmul.f32.gmra.mxu0 %v5811
      %v5923 = vpop.f32.mrf.mxu0
      %v5924 = vadd.f32 0.0, %v5923
      %5925 = vmatmul.f32.gmra.mxu0 %v5814
      %v5926 = vpop.f32.mrf.mxu0
      %v5927 = vadd.f32 0.0, %v5926
      %5928 = vmatmul.f32.gmra.mxu0 %v5817
      %v5929 = vpop.f32.mrf.mxu0
      %v5930 = vadd.f32 0.0, %v5929
      %5931 = vmatmul.f32.gmra.mxu0 %v5820
      %v5932 = vpop.f32.mrf.mxu0
      %v5933 = vadd.f32 0.0, %v5932
      %5934 = vmatmul.f32.gmra.mxu0 %v5823
      %v5935 = vpop.f32.mrf.mxu0
      %v5936 = vadd.f32 0.0, %v5935
      %5937 = vmatmul.f32.gmra.mxu0 %v5826
      %v5938 = vpop.f32.mrf.mxu0
      %v5939 = vadd.f32 0.0, %v5938
      %5940 = vmatmul.f32.gmra.mxu0 %v5829
      %v5941 = vpop.f32.mrf.mxu0
      %v5942 = vadd.f32 0.0, %v5941
      %5943 = vmatmul.f32.gmra.mxu0 %v5832
      %v5944 = vpop.f32.mrf.mxu0
      %v5945 = vadd.f32 0.0, %v5944
      %5946 = vmatmul.f32.gmra.mxu0 %v5835
      %v5947 = vpop.f32.mrf.mxu0
      %v5948 = vadd.f32 0.0, %v5947
      %5949 = vmatmul.f32.gmra.mxu0 %v5838
      %v5950 = vpop.f32.mrf.mxu0
      %v5951 = vadd.f32 0.0, %v5950
      %5952 = vmatmul.f32.gmra.mxu0 %v5841
      %v5953 = vpop.f32.mrf.mxu0
      %v5954 = vadd.f32 0.0, %v5953
      %5955 = vdwg.mxu0
      %vm5956 = vcmask 7168
      %v5957 = vsel %vm5956, %v5173, %v5269
      %v5958 = vsel %vm5956, %v5176, %v5272
      %v5959 = vsel %vm5956, %v5179, %v5275
      %v5960 = vsel %vm5956, %v5182, %v5278
      %v5961 = vsel %vm5956, %v5185, %v5281
      %v5962 = vsel %vm5956, %v5188, %v5284
      %v5963 = vsel %vm5956, %v5191, %v5287
      %v5964 = vsel %vm5956, %v5194, %v5290
      %v5965 = vsel %vm5956, %v5197, %v5293
      %v5966 = vsel %vm5956, %v5200, %v5296
      %v5967 = vsel %vm5956, %v5203, %v5299
      %v5968 = vsel %vm5956, %v5206, %v5302
      %v5969 = vsel %vm5956, %v5209, %v5305
      %v5970 = vsel %vm5956, %v5212, %v5308
      %v5971 = vsel %vm5956, %v5215, %v5311
      %v5972 = vsel %vm5956, %v5218, %v5314
      %v5973 = vsel %vm5956, %v5221, %v5317
      %v5974 = vsel %vm5956, %v5224, %v5320
      %v5975 = vsel %vm5956, %v5227, %v5323
      %v5976 = vsel %vm5956, %v5230, %v5326
      %v5977 = vsel %vm5956, %v5233, %v5329
      %v5978 = vsel %vm5956, %v5236, %v5332
      %v5979 = vsel %vm5956, %v5239, %v5335
      %v5980 = vsel %vm5956, %v5242, %v5338
      %v5981 = vsel %vm5956, %v5245, %v5341
      %v5982 = vsel %vm5956, %v5248, %v5344
      %v5983 = vsel %vm5956, %v5251, %v5347
      %v5984 = vsel %vm5956, %v5254, %v5350
      %v5985 = vsel %vm5956, %v5257, %v5353
      %v5986 = vsel %vm5956, %v5260, %v5356
      %v5987 = vsel %vm5956, %v5263, %v5359
      %v5988 = vsel %vm5956, %v5266, %v5362
      %vm5989 = vcmask 15360
      %v5990 = vsel %vm5989, %v5957, %v5365
      %v5991 = vsel %vm5989, %v5958, %v5368
      %v5992 = vsel %vm5989, %v5959, %v5371
      %v5993 = vsel %vm5989, %v5960, %v5374
      %v5994 = vsel %vm5989, %v5961, %v5377
      %v5995 = vsel %vm5989, %v5962, %v5380
      %v5996 = vsel %vm5989, %v5963, %v5383
      %v5997 = vsel %vm5989, %v5964, %v5386
      %v5998 = vsel %vm5989, %v5965, %v5389
      %v5999 = vsel %vm5989, %v5966, %v5392
      %v6000 = vsel %vm5989, %v5967, %v5395
      %v6001 = vsel %vm5989, %v5968, %v5398
      %v6002 = vsel %vm5989, %v5969, %v5401
      %v6003 = vsel %vm5989, %v5970, %v5404
      %v6004 = vsel %vm5989, %v5971, %v5407
      %v6005 = vsel %vm5989, %v5972, %v5410
      %v6006 = vsel %vm5989, %v5973, %v5413
      %v6007 = vsel %vm5989, %v5974, %v5416
      %v6008 = vsel %vm5989, %v5975, %v5419
      %v6009 = vsel %vm5989, %v5976, %v5422
      %v6010 = vsel %vm5989, %v5977, %v5425
      %v6011 = vsel %vm5989, %v5978, %v5428
      %v6012 = vsel %vm5989, %v5979, %v5431
      %v6013 = vsel %vm5989, %v5980, %v5434
      %v6014 = vsel %vm5989, %v5981, %v5437
      %v6015 = vsel %vm5989, %v5982, %v5440
      %v6016 = vsel %vm5989, %v5983, %v5443
      %v6017 = vsel %vm5989, %v5984, %v5446
      %v6018 = vsel %vm5989, %v5985, %v5449
      %v6019 = vsel %vm5989, %v5986, %v5452
      %v6020 = vsel %vm5989, %v5987, %v5455
      %v6021 = vsel %vm5989, %v5988, %v5458
      %vm6022 = vcmask 23552
      %v6023 = vsel %vm6022, %v5990, %v5461
      %v6024 = vsel %vm6022, %v5991, %v5464
      %v6025 = vsel %vm6022, %v5992, %v5467
      %v6026 = vsel %vm6022, %v5993, %v5470
      %v6027 = vsel %vm6022, %v5994, %v5473
      %v6028 = vsel %vm6022, %v5995, %v5476
      %v6029 = vsel %vm6022, %v5996, %v5479
      %v6030 = vsel %vm6022, %v5997, %v5482
      %v6031 = vsel %vm6022, %v5998, %v5485
      %v6032 = vsel %vm6022, %v5999, %v5488
      %v6033 = vsel %vm6022, %v6000, %v5491
      %v6034 = vsel %vm6022, %v6001, %v5494
      %v6035 = vsel %vm6022, %v6002, %v5497
      %v6036 = vsel %vm6022, %v6003, %v5500
      %v6037 = vsel %vm6022, %v6004, %v5503
      %v6038 = vsel %vm6022, %v6005, %v5506
      %v6039 = vsel %vm6022, %v6006, %v5509
      %v6040 = vsel %vm6022, %v6007, %v5512
      %v6041 = vsel %vm6022, %v6008, %v5515
      %v6042 = vsel %vm6022, %v6009, %v5518
      %v6043 = vsel %vm6022, %v6010, %v5521
      %v6044 = vsel %vm6022, %v6011, %v5524
      %v6045 = vsel %vm6022, %v6012, %v5527
      %v6046 = vsel %vm6022, %v6013, %v5530
      %v6047 = vsel %vm6022, %v6014, %v5533
      %v6048 = vsel %vm6022, %v6015, %v5536
      %v6049 = vsel %vm6022, %v6016, %v5539
      %v6050 = vsel %vm6022, %v6017, %v5542
      %v6051 = vsel %vm6022, %v6018, %v5545
      %v6052 = vsel %vm6022, %v6019, %v5548
      %v6053 = vsel %vm6022, %v6020, %v5551
      %v6054 = vsel %vm6022, %v6021, %v5554
      %v6055 = vlog2.pop %v5861
      %v6056 = vmul.f32 %v6055, 0.6931472
      %v6057 = vlog2.pop %v5864
      %v6058 = vmul.f32 %v6057, 0.6931472
      %v6059 = vlog2.pop %v5867
      %v6060 = vmul.f32 %v6059, 0.6931472
      %v6061 = vlog2.pop %v5870
      %v6062 = vmul.f32 %v6061, 0.6931472
      %v6063 = vlog2.pop %v5873
      %v6064 = vmul.f32 %v6063, 0.6931472
      %v6065 = vlog2.pop %v5876
      %v6066 = vmul.f32 %v6065, 0.6931472
      %v6067 = vlog2.pop %v5879
      %v6068 = vmul.f32 %v6067, 0.6931472
      %v6069 = vlog2.pop %v5882
      %v6070 = vmul.f32 %v6069, 0.6931472
      %v6071 = vlog2.pop %v5885
      %v6072 = vmul.f32 %v6071, 0.6931472
      %v6073 = vlog2.pop %v5888
      %v6074 = vmul.f32 %v6073, 0.6931472
      %v6075 = vlog2.pop %v5891
      %v6076 = vmul.f32 %v6075, 0.6931472
      %v6077 = vlog2.pop %v5894
      %v6078 = vmul.f32 %v6077, 0.6931472
      %v6079 = vlog2.pop %v5897
      %v6080 = vmul.f32 %v6079, 0.6931472
      %v6081 = vlog2.pop %v5900
      %v6082 = vmul.f32 %v6081, 0.6931472
      %v6083 = vlog2.pop %v5903
      %v6084 = vmul.f32 %v6083, 0.6931472
      %v6085 = vlog2.pop %v5906
      %v6086 = vmul.f32 %v6085, 0.6931472
      %v6087 = vlog2.pop %v5909
      %v6088 = vmul.f32 %v6087, 0.6931472
      %v6089 = vlog2.pop %v5912
      %v6090 = vmul.f32 %v6089, 0.6931472
      %v6091 = vlog2.pop %v5915
      %v6092 = vmul.f32 %v6091, 0.6931472
      %v6093 = vlog2.pop %v5918
      %v6094 = vmul.f32 %v6093, 0.6931472
      %v6095 = vlog2.pop %v5921
      %v6096 = vmul.f32 %v6095, 0.6931472
      %v6097 = vlog2.pop %v5924
      %v6098 = vmul.f32 %v6097, 0.6931472
      %v6099 = vlog2.pop %v5927
      %v6100 = vmul.f32 %v6099, 0.6931472
      %v6101 = vlog2.pop %v5930
      %v6102 = vmul.f32 %v6101, 0.6931472
      %v6103 = vlog2.pop %v5933
      %v6104 = vmul.f32 %v6103, 0.6931472
      %v6105 = vlog2.pop %v5936
      %v6106 = vmul.f32 %v6105, 0.6931472
      %v6107 = vlog2.pop %v5939
      %v6108 = vmul.f32 %v6107, 0.6931472
      %v6109 = vlog2.pop %v5942
      %v6110 = vmul.f32 %v6109, 0.6931472
      %v6111 = vlog2.pop %v5945
      %v6112 = vmul.f32 %v6111, 0.6931472
      %v6113 = vlog2.pop %v5948
      %v6114 = vmul.f32 %v6113, 0.6931472
      %v6115 = vlog2.pop %v5951
      %v6116 = vmul.f32 %v6115, 0.6931472
      %v6117 = vlog2.pop %v5954
      %v6118 = vmul.f32 %v6117, 0.6931472
      %v6119 = vadd.f32 %v6056, %v6023
      %v6120 = vadd.f32 %v6058, %v6024
      %v6121 = vadd.f32 %v6060, %v6025
      %v6122 = vadd.f32 %v6062, %v6026
      %v6123 = vadd.f32 %v6064, %v6027
      %v6124 = vadd.f32 %v6066, %v6028
      %v6125 = vadd.f32 %v6068, %v6029
      %v6126 = vadd.f32 %v6070, %v6030
      %v6127 = vadd.f32 %v6072, %v6031
      %v6128 = vadd.f32 %v6074, %v6032
      %v6129 = vadd.f32 %v6076, %v6033
      %v6130 = vadd.f32 %v6078, %v6034
      %v6131 = vadd.f32 %v6080, %v6035
      %v6132 = vadd.f32 %v6082, %v6036
      %v6133 = vadd.f32 %v6084, %v6037
      %v6134 = vadd.f32 %v6086, %v6038
      %v6135 = vadd.f32 %v6088, %v6039
      %v6136 = vadd.f32 %v6090, %v6040
      %v6137 = vadd.f32 %v6092, %v6041
      %v6138 = vadd.f32 %v6094, %v6042
      %v6139 = vadd.f32 %v6096, %v6043
      %v6140 = vadd.f32 %v6098, %v6044
      %v6141 = vadd.f32 %v6100, %v6045
      %v6142 = vadd.f32 %v6102, %v6046
      %v6143 = vadd.f32 %v6104, %v6047
      %v6144 = vadd.f32 %v6106, %v6048
      %v6145 = vadd.f32 %v6108, %v6049
      %v6146 = vadd.f32 %v6110, %v6050
      %v6147 = vadd.f32 %v6112, %v6051
      %v6148 = vadd.f32 %v6114, %v6052
      %v6149 = vadd.f32 %v6116, %v6053
      %v6150 = vadd.f32 %v6118, %v6054
      %v6152 = vperm.slane %v4062, 0
      %v6154 = vadd.f32 %v6119, %v6152
      %v6155 = vadd.f32 %v6120, %v6152
      %v6156 = vadd.f32 %v6121, %v6152
      %v6157 = vadd.f32 %v6122, %v6152
      %v6158 = vadd.f32 %v6123, %v6152
      %v6159 = vadd.f32 %v6124, %v6152
      %v6160 = vadd.f32 %v6125, %v6152
      %v6161 = vadd.f32 %v6126, %v6152
      %v6162 = vadd.f32 %v6127, %v6152
      %v6163 = vadd.f32 %v6128, %v6152
      %v6164 = vadd.f32 %v6129, %v6152
      %v6165 = vadd.f32 %v6130, %v6152
      %v6166 = vadd.f32 %v6131, %v6152
      %v6167 = vadd.f32 %v6132, %v6152
      %v6168 = vadd.f32 %v6133, %v6152
      %v6169 = vadd.f32 %v6134, %v6152
      %v6170 = vadd.f32 %v6135, %v6152
      %v6171 = vadd.f32 %v6136, %v6152
      %v6172 = vadd.f32 %v6137, %v6152
      %v6173 = vadd.f32 %v6138, %v6152
      %v6174 = vadd.f32 %v6139, %v6152
      %v6175 = vadd.f32 %v6140, %v6152
      %v6176 = vadd.f32 %v6141, %v6152
      %v6177 = vadd.f32 %v6142, %v6152
      %v6178 = vadd.f32 %v6143, %v6152
      %v6179 = vadd.f32 %v6144, %v6152
      %v6180 = vadd.f32 %v6145, %v6152
      %v6181 = vadd.f32 %v6146, %v6152
      %v6182 = vadd.f32 %v6147, %v6152
      %v6183 = vadd.f32 %v6148, %v6152
      %v6184 = vadd.f32 %v6149, %v6152
      %v6185 = vadd.f32 %v6150, %v6152
      %v6186 = vadd.f32 %v6154, %v5139
      %v6187 = vadd.f32 %v6155, %v5140
      %v6188 = vadd.f32 %v6156, %v5141
      %v6189 = vadd.f32 %v6157, %v5142
      %v6190 = vadd.f32 %v6158, %v5143
      %v6191 = vadd.f32 %v6159, %v5144
      %v6192 = vadd.f32 %v6160, %v5145
      %v6193 = vadd.f32 %v6161, %v5146
      %v6194 = vadd.f32 %v6162, %v5147
      %v6195 = vadd.f32 %v6163, %v5148
      %v6196 = vadd.f32 %v6164, %v5149
      %v6197 = vadd.f32 %v6165, %v5150
      %v6198 = vadd.f32 %v6166, %v5151
      %v6199 = vadd.f32 %v6167, %v5152
      %v6200 = vadd.f32 %v6168, %v5153
      %v6201 = vadd.f32 %v6169, %v5154
      %v6202 = vadd.f32 %v6170, %v5155
      %v6203 = vadd.f32 %v6171, %v5156
      %v6204 = vadd.f32 %v6172, %v5157
      %v6205 = vadd.f32 %v6173, %v5158
      %v6206 = vadd.f32 %v6174, %v5159
      %v6207 = vadd.f32 %v6175, %v5160
      %v6208 = vadd.f32 %v6176, %v5161
      %v6209 = vadd.f32 %v6177, %v5162
      %v6210 = vadd.f32 %v6178, %v5163
      %v6211 = vadd.f32 %v6179, %v5164
      %v6212 = vadd.f32 %v6180, %v5165
      %v6213 = vadd.f32 %v6181, %v5166
      %v6214 = vadd.f32 %v6182, %v5167
      %v6215 = vadd.f32 %v6183, %v5168
      %v6216 = vadd.f32 %v6184, %v5169
      %v6217 = vadd.f32 %v6185, %v5170
      %6218 = vst.msk [vmem:[%s477] sm:$0xff] %vm524, %v4755
      %6219 = vst.msk [vmem:[%s477 + $0x8] sm:$0xff] %vm524, %v4756
      %6220 = vst.msk [vmem:[%s477 + $0x10] sm:$0xff] %vm524, %v4757
      %6221 = vst.msk [vmem:[%s477 + $0x18] sm:$0xff] %vm524, %v4758
      %6222 = vst.msk [vmem:[%s477 + $0x20] sm:$0xff] %vm524, %v4759
      %6223 = vst.msk [vmem:[%s477 + $0x28] sm:$0xff] %vm524, %v4760
      %6224 = vst.msk [vmem:[%s477 + $0x30] sm:$0xff] %vm524, %v4761
      %6225 = vst.msk [vmem:[%s477 + $0x38] sm:$0xff] %vm524, %v4762
      %6226 = vst.msk [vmem:[%s477 + $0x40] sm:$0xff] %vm524, %v4763
      %6227 = vst.msk [vmem:[%s477 + $0x48] sm:$0xff] %vm524, %v4764
      %6228 = vst.msk [vmem:[%s477 + $0x50] sm:$0xff] %vm524, %v4765
      %6229 = vst.msk [vmem:[%s477 + $0x58] sm:$0xff] %vm524, %v4766
      %6230 = vst.msk [vmem:[%s477 + $0x60] sm:$0xff] %vm524, %v4767
      %6231 = vst.msk [vmem:[%s477 + $0x68] sm:$0xff] %vm524, %v4768
      %6232 = vst.msk [vmem:[%s477 + $0x70] sm:$0xff] %vm524, %v4769
      %6233 = vst.msk [vmem:[%s477 + $0x78] sm:$0xff] %vm524, %v4770
      %6234 = vst.msk [vmem:[%s477 + $0x80] sm:$0xff] %vm524, %v4771
      %6235 = vst.msk [vmem:[%s477 + $0x88] sm:$0xff] %vm524, %v4772
      %6236 = vst.msk [vmem:[%s477 + $0x90] sm:$0xff] %vm524, %v4773
      %6237 = vst.msk [vmem:[%s477 + $0x98] sm:$0xff] %vm524, %v4774
      %6238 = vst.msk [vmem:[%s477 + $0xa0] sm:$0xff] %vm524, %v4775
      %6239 = vst.msk [vmem:[%s477 + $0xa8] sm:$0xff] %vm524, %v4776
      %6240 = vst.msk [vmem:[%s477 + $0xb0] sm:$0xff] %vm524, %v4777
      %6241 = vst.msk [vmem:[%s477 + $0xb8] sm:$0xff] %vm524, %v4778
      %6242 = vst.msk [vmem:[%s477 + $0xc0] sm:$0xff] %vm524, %v4779
      %6243 = vst.msk [vmem:[%s477 + $0xc8] sm:$0xff] %vm524, %v4780
      %6244 = vst.msk [vmem:[%s477 + $0xd0] sm:$0xff] %vm524, %v4781
      %6245 = vst.msk [vmem:[%s477 + $0xd8] sm:$0xff] %vm524, %v4782
      %6246 = vst.msk [vmem:[%s477 + $0xe0] sm:$0xff] %vm524, %v4783
      %6247 = vst.msk [vmem:[%s477 + $0xe8] sm:$0xff] %vm524, %v4784
      %6248 = vst.msk [vmem:[%s477 + $0xf0] sm:$0xff] %vm524, %v4785
      %6249 = vst.msk [vmem:[%s477 + $0xf8] sm:$0xff] %vm524, %v4786
      %6250 = vst.msk [vmem:[%s483] sm:$0xff] %vm524, %v6186
      %6251 = vst.msk [vmem:[%s483 + $0x8] sm:$0xff] %vm524, %v6187
      %6252 = vst.msk [vmem:[%s483 + $0x10] sm:$0xff] %vm524, %v6188
      %6253 = vst.msk [vmem:[%s483 + $0x18] sm:$0xff] %vm524, %v6189
      %6254 = vst.msk [vmem:[%s483 + $0x20] sm:$0xff] %vm524, %v6190
      %6255 = vst.msk [vmem:[%s483 + $0x28] sm:$0xff] %vm524, %v6191
      %6256 = vst.msk [vmem:[%s483 + $0x30] sm:$0xff] %vm524, %v6192
      %6257 = vst.msk [vmem:[%s483 + $0x38] sm:$0xff] %vm524, %v6193
      %6258 = vst.msk [vmem:[%s483 + $0x40] sm:$0xff] %vm524, %v6194
      %6259 = vst.msk [vmem:[%s483 + $0x48] sm:$0xff] %vm524, %v6195
      %6260 = vst.msk [vmem:[%s483 + $0x50] sm:$0xff] %vm524, %v6196
      %6261 = vst.msk [vmem:[%s483 + $0x58] sm:$0xff] %vm524, %v6197
      %6262 = vst.msk [vmem:[%s483 + $0x60] sm:$0xff] %vm524, %v6198
      %6263 = vst.msk [vmem:[%s483 + $0x68] sm:$0xff] %vm524, %v6199
      %6264 = vst.msk [vmem:[%s483 + $0x70] sm:$0xff] %vm524, %v6200
      %6265 = vst.msk [vmem:[%s483 + $0x78] sm:$0xff] %vm524, %v6201
      %6266 = vst.msk [vmem:[%s483 + $0x80] sm:$0xff] %vm524, %v6202
      %6267 = vst.msk [vmem:[%s483 + $0x88] sm:$0xff] %vm524, %v6203
      %6268 = vst.msk [vmem:[%s483 + $0x90] sm:$0xff] %vm524, %v6204
      %6269 = vst.msk [vmem:[%s483 + $0x98] sm:$0xff] %vm524, %v6205
      %6270 = vst.msk [vmem:[%s483 + $0xa0] sm:$0xff] %vm524, %v6206
      %6271 = vst.msk [vmem:[%s483 + $0xa8] sm:$0xff] %vm524, %v6207
      %6272 = vst.msk [vmem:[%s483 + $0xb0] sm:$0xff] %vm524, %v6208
      %6273 = vst.msk [vmem:[%s483 + $0xb8] sm:$0xff] %vm524, %v6209
      %6274 = vst.msk [vmem:[%s483 + $0xc0] sm:$0xff] %vm524, %v6210
      %6275 = vst.msk [vmem:[%s483 + $0xc8] sm:$0xff] %vm524, %v6211
      %6276 = vst.msk [vmem:[%s483 + $0xd0] sm:$0xff] %vm524, %v6212
      %6277 = vst.msk [vmem:[%s483 + $0xd8] sm:$0xff] %vm524, %v6213
      %6278 = vst.msk [vmem:[%s483 + $0xe0] sm:$0xff] %vm524, %v6214
      %6279 = vst.msk [vmem:[%s483 + $0xe8] sm:$0xff] %vm524, %v6215
      %6280 = vst.msk [vmem:[%s483 + $0xf0] sm:$0xff] %vm524, %v6216
      %6281 = vst.msk [vmem:[%s483 + $0xf8] sm:$0xff] %vm524, %v6217
      %s6282 = smul.u32 32, %s26
      %p6283 = scmp.lt.s32.totalorder %s6282, 63
      %s6284 = scalar_select %p6283, %s6282, 63
      %s6285 = smul.addr %s6284, 8
      %s6286 = scalar_lea.vmem %s13, %s6285
      %s6287 = smul.u32 32, %s26
      %p6288 = scmp.lt.s32.totalorder %s6287, 63
      %s6289 = scalar_select %p6288, %s6287, 63
      %s6290 = smul.addr %s6289, 8
      %s6291 = scalar_lea.vmem %s14, %s6290
      // Predicated region
      $region73: #{_lambda_.1} parent=71 // pred_check
        %p6292 = pneg %p322
      $region74: #{_lambda_.1} parent=71 // pred_check_branch
        %6294 = sbr.rel (%p6292) target = $region76
      $region75: #{_lambda_.1} parent=71 // pred_region
        %s6295 = smul.u32 32, %s26
      $region76: #{_lambda_.1} parent=71 // pred_fallthru
        _
      // Predicated region
      $region77: #{_lambda_.1} parent=71 // pred_check
        %p6296 = pneg %p348
      $region78: #{_lambda_.1} parent=71 // pred_check_branch
        %6298 = sbr.rel (%p6296) target = $region80
      $region79: #{_lambda_.1} parent=71 // pred_region
        %s6299 = smul.u32 32, %s26
      $region80: #{_lambda_.1} parent=71 // pred_fallthru
        _
    $region72: #{_lambda_.1} parent=5 // pred_fallthru
      _
    %p6300 = scmp.le.s32.totalorder 2, %s21
    // Predicated region
    $region81: #{_lambda_.1} parent=5 // pred_check
      %p6301 = pneg %p6300
    $region82: #{_lambda_.1} parent=5 // pred_check_branch
      %6303 = sbr.rel (%p6301) target = $region84
    $region83: #{_lambda_.1} parent=5 // pred_region
      %s6304 = ssub.s32 %s21, 2
      // Predicated region
      $region85: #{_lambda_.1} parent=83 // pred_check
        %p6305 = pneg %p328
      $region86: #{_lambda_.1} parent=83 // pred_check_branch
        %6307 = sbr.rel (%p6305) target = $region88
      $region87: #{_lambda_.1} parent=83 // pred_region
        %s6308 = smul.u32 32, %s27
        %p6309 = scmp.lt.s32.totalorder %s6308, 63
        %s6310 = scalar_select %p6309, %s6308, 63
        %s6311 = smul.addr %s6310, 8
        %s6312 = scalar_lea.vmem %s13, %s6311
      $region88: #{_lambda_.1} parent=83 // pred_fallthru
        _
      // Predicated region
      $region89: #{_lambda_.1} parent=83 // pred_check
        %p6313 = pneg %p354
      $region90: #{_lambda_.1} parent=83 // pred_check_branch
        %6315 = sbr.rel (%p6313) target = $region92
      $region91: #{_lambda_.1} parent=83 // pred_region
        %s6316 = smul.u32 32, %s27
        %p6317 = scmp.lt.s32.totalorder %s6316, 63
        %s6318 = scalar_select %p6317, %s6316, 63
        %s6319 = smul.addr %s6318, 8
        %s6320 = scalar_lea.vmem %s14, %s6319
      $region92: #{_lambda_.1} parent=83 // pred_fallthru
        _
    $region84: #{_lambda_.1} parent=5 // pred_fallthru
      _
  $region6: #{_lambda_.1} parent=0 // loop_footer
    %s25 = sadd.s32 1, %s21
  $region7: #{_lambda_.1} parent=0 // loop_footer_branch
    %20 = sbr.rel target = $region3
  $region8: #{_lambda_.1} parent=0 // loop_exit
    _

</llo_original>
